<compile_context>
chip_gen: v7x
topology: tpu7x:2x2x1
jax: 0.10.0
libtpu: 0.0.40
codegen_flags: <defaults>
</compile_context>

<pallas_src>
import functools
import math

import jax
import jax.numpy as jnp
import numpy as np
from jax import lax
from jax.experimental import pallas as pl
from jax.experimental.pallas import tpu as pltpu


def _round_up(x, m):
    return ((x + m - 1) // m) * m


# ----------------------------------------------------------------------------
# Pallas kernel: whole autoencoder forward for one batch tile
# ----------------------------------------------------------------------------
def lstm_ae_kernel(
    x_ref,       # (Bt, T, Din)   f32  input tile (batch-major, as in HBM)
    we_ih_ref,   # (Din, 4E)      f32  encoder input->gates
    we_hh_ref,   # (E, 4E)        f32  encoder hidden->gates
    be_ref,      # (1, 4E)        f32  encoder combined bias (b_ih + b_hh)
    wd_ih_ref,   # (E, 4E)        f32  decoder input->gates
    wd_hh_ref,   # (E, 4E)        f32  decoder hidden->gates
    bd_ref,      # (1, 4E)        f32  decoder combined bias
    wo_ref,      # (E, Dout)      f32  output linear weight
    bo_ref,      # (1, Dout)      f32  output linear bias
    o_ref,       # (Bt, T*Dout)   f32  lane-dense, batch-major output tile
    xtm_scr,     # (T, Bt, Din)   f32  scratch: time-major repack of x
    xp_scr,      # (T, Bt, 4E)    f32  scratch: time-major encoder x-projection
    hdec_scr,    # (T, Bt, E)     f32  scratch: decoder hidden states
    *,
    mm_dtype,    # dtype of MXU operands (f32 or bf16); accum/gates stay f32
    unroll,      # unroll factor for the two serial time loops
):
    Bt, T_, Din = x_ref.shape
    E = we_hh_ref.shape[0]
    G = 4 * E
    Dout = wo_ref.shape[1]

    # Partial unroll (capped, and forced to divide T so scan never sees a
    # ragged tail) keeps LLO scheduling visibility without code-size blowup.
    unroll = max(1, min(int(unroll), T_))
    if T_ % unroll:
        unroll = math.gcd(T_, unroll)

    # Gate-select mask (hoisted out of the loops): lanes [2E, 3E) are the "g"
    # gate (plain tanh); everything else is sigmoid (= tanh of half the input).
    lane = lax.broadcasted_iota(jnp.int32, (Bt, G), 1)
    g_mask = (lane >= 2 * E) & (lane < 3 * E)

    def lstm_step(z, c):
        # Single EUP pass for all four gates: sigmoid(x) = 0.5*(1 + tanh(x/2)).
        t = jnp.tanh(jnp.where(g_mask, z, 0.5 * z))
        a = jnp.where(g_mask, t, 0.5 * t + 0.5)
        i = a[:, 0 * E:1 * E]
        f = a[:, 1 * E:2 * E]
        g = a[:, 2 * E:3 * E]
        o = a[:, 3 * E:4 * E]
        c_new = f * c + i * g
        h_new = o * jnp.tanh(c_new)
        return h_new, c_new

    # Recurrent weights loaded (and cast for the MXU) once; vreg-resident.
    w_ehh = we_hh_ref[...].astype(mm_dtype)
    w_dhh = wd_hh_ref[...].astype(mm_dtype)

    # ---------------- Encoder LSTM (zero initial state) ----------------
    # Once-per-tile repack of the (batch-major) x block into time-major order.
    # Done on the narrow Din-wide input (cheapest place to reorder) and fully
    # off the serial recurrence.
    for t in range(T_):
        xtm_scr[t] = x_ref[:, t, :]

    # Input projection hoisted off the serial chain: one big MXU matmul, one
    # dense store into the time-major scratch.
    # TODO(synk): for small T*Bt*4E the xp_scr round-trip could be skipped by
    # feeding static slices of the in-register projection to an unrolled loop.
    xp = (
        jnp.dot(xtm_scr[...].reshape(T_ * Bt, Din).astype(mm_dtype),
                we_ih_ref[...].astype(mm_dtype),
                preferred_element_type=jnp.float32)
        + be_ref[...]
    )
    xp_scr[...] = xp.reshape(T_, Bt, G)

    zeros = jnp.zeros((Bt, E), jnp.float32)

    def enc_body(t, carry):
        h, c = carry
        z = xp_scr[t] + jnp.dot(h.astype(mm_dtype), w_ehh,
                                preferred_element_type=jnp.float32)
        return lstm_step(z, c)

    h_enc, _ = lax.fori_loop(0, T_, enc_body, (zeros, zeros), unroll=unroll)

    # ---------------- Decoder LSTM (zero initial state) ----------------
    # Decoder input is h_enc repeated T times (PyTorch:
    # context.unsqueeze(1).repeat((1, T, 1))) => its input projection is
    # computed exactly once.
    xd_proj = (
        jnp.dot(h_enc.astype(mm_dtype), wd_ih_ref[...].astype(mm_dtype),
                preferred_element_type=jnp.float32)
        + bd_ref[...]
    )

    def dec_body(t, carry):
        h, c = carry
        z = xd_proj + jnp.dot(h.astype(mm_dtype), w_dhh,
                              preferred_element_type=jnp.float32)
        h_new, c_new = lstm_step(z, c)
        hdec_scr[t] = h_new
        return h_new, c_new

    lax.fori_loop(0, T_, dec_body, (zeros, zeros), unroll=unroll)

    # Output linear hoisted out of the loop: one batched matmul, then written
    # batch-major into the lane-dense (Bt, T*Dout) output block, whose HBM
    # writeback is a dense unmasked store.
    y = (
        jnp.dot(hdec_scr[...].reshape(T_ * Bt, E).astype(mm_dtype),
                wo_ref[...].astype(mm_dtype),
                preferred_element_type=jnp.float32)
        + bo_ref[...]
    )
    y3 = y.astype(o_ref.dtype).reshape(T_, Bt, Dout)
    for t in range(T_):
        o_ref[:, t * Dout:(t + 1) * Dout] = y3[t]


# ----------------------------------------------------------------------------
# Wrapper
# ----------------------------------------------------------------------------
def lstm_autoencoder_forward(
    x,
    params,
    *,
    b_tile=None,
    matmul_dtype=jnp.float32,   # jnp.bfloat16 for ~2x MXU on v6e/v7x
    unroll=8,
    vmem_budget_bytes=40 * 1024 * 1024,   # keeps v7x (64 MiB physical) safe
):
    """x: (B, T, Din) float32, batch-first like PyTorch. Returns (B, T, Din)."""
    B, T_, Din = x.shape
    E = params["we_hh"].shape[0]
    Dout = params["wo"].shape[1]

    # ---- per-tile VMEM footprint (bytes), with (8, 128) layout padding ----
    def _tile_bytes(*dims, n=1, itemsize=4):
        *lead, r, c = dims
        for d in lead:
            n *= d
        return n * _round_up(r, 8) * _round_up(c, 128) * itemsize

    def vmem_needed(bt):
        scratch = (_tile_bytes(T_, bt, Din) + _tile_bytes(T_, bt, 4 * E)
                   + _tile_bytes(T_, bt, E))
        io = _tile_bytes(bt, T_, Din, n=2) + _tile_bytes(bt, T_ * Dout, n=2)
        weights = 2 * (  # x2: conservative (covers double-buffered fallback)
            _tile_bytes(Din, 4 * E) + 3 * _tile_bytes(E, 4 * E)
            + 2 * _tile_bytes(1, 4 * E) + _tile_bytes(E, Dout)
            + _tile_bytes(1, Dout))
        return scratch + io + weights

    # ---- batch tile: aim for 128 MXU rows on the serial h@W_hh chain, -----
    # ---- keep >= 2 tiles for megacore when possible, stay in VMEM budget --
    if b_tile is None:
        b8 = _round_up(B, 8)
        b_tile = min(128, b8)
        if b8 >= 16 and _round_up(B, b_tile) // b_tile < 2:
            b_tile = max(8, _round_up(b8 // 2, 8))
    b_tile = _round_up(int(b_tile), 8)
    while b_tile > 8 and vmem_needed(b_tile) > vmem_budget_bytes:
        b_tile = max(8, _round_up(b_tile // 2, 8))

    B_pad = _round_up(B, b_tile)
    if B_pad != B:
        # Padded rows compute harmless finite garbage and are sliced off below.
        x = jnp.pad(x, ((0, B_pad - B), (0, 0), (0, 0)))

    grid = (B_pad // b_tile,)
    vmem_limit = int(min(max(vmem_needed(b_tile) + 8 * 2**20, 32 * 2**20),
                         48 * 2**20))

    kernel = functools.partial(lstm_ae_kernel, mm_dtype=matmul_dtype,
                               unroll=unroll)

    def build(weight_pipeline_mode):
        def wspec(shape):
            # Grid-invariant weights/biases: constant index_map, so double
            # buffering buys nothing -- single-buffer them to save VMEM.
            kwargs = {}
            if weight_pipeline_mode is not None:
                kwargs["pipeline_mode"] = weight_pipeline_mode
            return pl.BlockSpec(shape, lambda b: (0,) * len(shape), **kwargs)

        return pl.pallas_call(
            kernel,
            out_shape=jax.ShapeDtypeStruct((B_pad, T_ * Dout), x.dtype),
            grid=grid,
            in_specs=[
                pl.BlockSpec((b_tile, T_, Din), lambda b: (b, 0, 0)),  # x
                wspec((Din, 4 * E)),   # we_ih
                wspec((E, 4 * E)),     # we_hh
                wspec((1, 4 * E)),     # be
                wspec((E, 4 * E)),     # wd_ih
                wspec((E, 4 * E)),     # wd_hh
                wspec((1, 4 * E)),     # bd
                wspec((E, Dout)),      # wo
                wspec((1, Dout)),      # bo
            ],
            out_specs=pl.BlockSpec((b_tile, T_ * Dout), lambda b: (b, 0)),
            scratch_shapes=[
                pltpu.VMEM((T_, b_tile, Din), jnp.float32),    # time-major x
                pltpu.VMEM((T_, b_tile, 4 * E), jnp.float32),  # x-projection
                pltpu.VMEM((T_, b_tile, E), jnp.float32),      # decoder hiddens
            ],
            compiler_params=pltpu.CompilerParams(
                # Batch tiles are independent: shard across TensorCores and
                # double-buffer the x / o tile DMAs.
                dimension_semantics=("parallel",),
                vmem_limit_bytes=vmem_limit,
            ),
        )

    args = (x,
            params["we_ih"], params["we_hh"], params["be"],
            params["wd_ih"], params["wd_hh"], params["bd"],
            params["wo"], params["bo"])
    try:
        out_flat = build(pl.Buffered(1))(*args)
    except Exception:  # pragma: no cover - JAX without single-buffer support
        out_flat = build(None)(*args)

    # Kernel output is already batch-major and lane-dense: a free reshape and
    # a slice to drop padding -- no post-kernel HBM transpose.
    return out_flat.reshape(B_pad, T_, Dout)[:B]


# ----------------------------------------------------------------------------
# Deterministic parameter init (PyTorch-style uniform(-1/sqrt(H), 1/sqrt(H)))
# ----------------------------------------------------------------------------
def init_params(key, input_dim, encoded_dim):
    E = encoded_dim
    ks = jax.random.split(key, 10)
    bnd_e = 1.0 / math.sqrt(E)

    def u(k, shape, bnd):
        return jax.random.uniform(k, shape, jnp.float32, -bnd, bnd)

    return {
        # encoder LSTM (input_dim -> E); weights transposed vs PyTorch
        "we_ih": u(ks[0], (input_dim, 4 * E), bnd_e),
        "we_hh": u(ks[1], (E, 4 * E), bnd_e),
        "be":    u(ks[2], (1, 4 * E), bnd_e) + u(ks[3], (1, 4 * E), bnd_e),
        # decoder LSTM (E -> E)
        "wd_ih": u(ks[4], (E, 4 * E), bnd_e),
        "wd_hh": u(ks[5], (E, 4 * E), bnd_e),
        "bd":    u(ks[6], (1, 4 * E), bnd_e) + u(ks[7], (1, 4 * E), bnd_e),
        # output linear (E -> input_dim)
        "wo":    u(ks[8], (E, input_dim), bnd_e),
        "bo":    u(ks[9], (1, input_dim), bnd_e),
    }


# ----------------------------------------------------------------------------
# Pure-JAX reference (for correctness check)
# ----------------------------------------------------------------------------
def _lstm_ref(x_seq, w_ih, w_hh, b, E):
    B = x_seq.shape[0]

    def step(carry, x_t):
        h, c = carry
        z = x_t @ w_ih + h @ w_hh + b
        i = jax.nn.sigmoid(z[:, :E])
        f = jax.nn.sigmoid(z[:, E:2 * E])
        g = jnp.tanh(z[:, 2 * E:3 * E])
        o = jax.nn.sigmoid(z[:, 3 * E:])
        c = f * c + i * g
        h = o * jnp.tanh(c)
        return (h, c), h

    init = (jnp.zeros((B, E), jnp.float32), jnp.zeros((B, E), jnp.float32))
    (h, _), hs = lax.scan(step, init, jnp.transpose(x_seq, (1, 0, 2)))
    return jnp.transpose(hs, (1, 0, 2)), h


def reference_forward(x, params):
    E = params["we_hh"].shape[0]
    B, T_, _ = x.shape
    _, h_enc = _lstm_ref(x, params["we_ih"], params["we_hh"], params["be"], E)
    dec_in = jnp.broadcast_to(h_enc[:, None, :], (B, T_, E))
    hs_dec, _ = _lstm_ref(dec_in, params["wd_ih"], params["wd_hh"], params["bd"], E)
    return hs_dec @ params["wo"] + params["bo"]


# ----------------------------------------------------------------------------
if __name__ == "__main__":
    B, T, D_IN, ENC = 2, 8, 16, 32

    key = jax.random.PRNGKey(0)
    k_x, k_p = jax.random.split(key)
    x = jax.random.normal(k_x, (B, T, D_IN), jnp.float32)
    params = init_params(k_p, D_IN, ENC)

    ref = jax.block_until_ready(reference_forward(x, params))

    # f32 MXU operands: exact-parity path (v5e-safe).
    out = jax.block_until_ready(lstm_autoencoder_forward(x, params))
    assert out.shape == (B, T, D_IN)
    np.testing.assert_allclose(np.asarray(out), np.asarray(ref),
                               rtol=2e-5, atol=2e-5)

    # bf16 MXU operands (v6e/v7x throughput path); gate math stays f32.
    out_bf16 = jax.block_until_ready(
        lstm_autoencoder_forward(x, params, matmul_dtype=jnp.bfloat16))
    np.testing.assert_allclose(np.asarray(out_bf16), np.asarray(ref),
                               rtol=1e-1, atol=1e-1)

    print("KERNEL_OK")
</pallas_src>

<mosaic_0001>
module attributes {stable_mosaic.version = 11 : i64} {
  func.func @lstm_ae_kernel(%arg0: i32, %arg1: memref<8x8x16xf32, #tpu.memory_space<vmem>>, %arg2: memref<16x128xf32, #tpu.memory_space<vmem>>, %arg3: memref<32x128xf32, #tpu.memory_space<vmem>>, %arg4: memref<1x128xf32, #tpu.memory_space<vmem>>, %arg5: memref<32x128xf32, #tpu.memory_space<vmem>>, %arg6: memref<32x128xf32, #tpu.memory_space<vmem>>, %arg7: memref<1x128xf32, #tpu.memory_space<vmem>>, %arg8: memref<32x16xf32, #tpu.memory_space<vmem>>, %arg9: memref<1x16xf32, #tpu.memory_space<vmem>>, %arg10: memref<8x128xf32, #tpu.memory_space<vmem>>, %arg11: memref<8x8x16xf32, #tpu.memory_space<vmem>>, %arg12: memref<8x8x128xf32, #tpu.memory_space<vmem>>, %arg13: memref<8x8x32xf32, #tpu.memory_space<vmem>>) attributes {dimension_semantics = [#tpu.dimension_semantics<parallel>], iteration_bounds = array<i64: 1>, scalar_prefetch = 0 : i64, scratch_operands = 3 : i64, tpu.core_type = #tpu.core_type<tc>, window_params = [{transform_indices = @transform_0, window_bounds = array<i64: 8, 8, 16>}, {pipeline_mode = #tpu.pipeline_mode<synchronous>, transform_indices = @transform_1, window_bounds = array<i64: 16, 128>}, {pipeline_mode = #tpu.pipeline_mode<synchronous>, transform_indices = @transform_2, window_bounds = array<i64: 32, 128>}, {pipeline_mode = #tpu.pipeline_mode<synchronous>, transform_indices = @transform_3, window_bounds = array<i64: 1, 128>}, {pipeline_mode = #tpu.pipeline_mode<synchronous>, transform_indices = @transform_4, window_bounds = array<i64: 32, 128>}, {pipeline_mode = #tpu.pipeline_mode<synchronous>, transform_indices = @transform_5, window_bounds = array<i64: 32, 128>}, {pipeline_mode = #tpu.pipeline_mode<synchronous>, transform_indices = @transform_6, window_bounds = array<i64: 1, 128>}, {pipeline_mode = #tpu.pipeline_mode<synchronous>, transform_indices = @transform_7, window_bounds = array<i64: 32, 16>}, {pipeline_mode = #tpu.pipeline_mode<synchronous>, transform_indices = @transform_8, window_bounds = array<i64: 1, 16>}, {transform_indices = @transform_9, window_bounds = array<i64: 8, 128>}]} {
    %0 = tpu.iota {dimensions = array<i32: 1>} : vector<8x128xi32>
    %c64_i32 = arith.constant 64 : i32
    %1 = vector.broadcast %c64_i32 : i32 to vector<8x128xi32>
    %2 = arith.cmpi sge, %0, %1 : vector<8x128xi32>
    %c96_i32 = arith.constant 96 : i32
    %3 = vector.broadcast %c96_i32 : i32 to vector<8x128xi32>
    %4 = arith.cmpi slt, %0, %3 : vector<8x128xi32>
    %5 = arith.andi %2, %4 : vector<8x128xi1>
    %c0 = arith.constant 0 : index
    %c0_0 = arith.constant 0 : index
    %6 = vector.load %arg3[%c0, %c0_0] : memref<32x128xf32, #tpu.memory_space<vmem>>, vector<32x128xf32>
    %c0_1 = arith.constant 0 : index
    %c0_2 = arith.constant 0 : index
    %7 = vector.load %arg6[%c0_1, %c0_2] : memref<32x128xf32, #tpu.memory_space<vmem>>, vector<32x128xf32>
    %c0_3 = arith.constant 0 : index
    %c0_4 = arith.constant 0 : index
    %c0_5 = arith.constant 0 : index
    %8 = vector.load %arg1[%c0_3, %c0_4, %c0_5] : memref<8x8x16xf32, #tpu.memory_space<vmem>>, vector<8x1x16xf32>
    %9 = vector.shape_cast %8 : vector<8x1x16xf32> to vector<8x16xf32>
    %c0_6 = arith.constant 0 : index
    %c0_7 = arith.constant 0 : index
    %c0_8 = arith.constant 0 : index
    %10 = vector.load %arg11[%c0_6, %c0_7, %c0_8] : memref<8x8x16xf32, #tpu.memory_space<vmem>>, vector<1x8x16xf32>
    %11 = vector.shape_cast %10 : vector<1x8x16xf32> to vector<8x16xf32>
    %12 = vector.shape_cast %9 : vector<8x16xf32> to vector<1x8x16xf32>
    tpu.vector_store %arg11[%c0_6, %c0_7, %c0_8], %12 {strides = array<i32>} : memref<8x8x16xf32, #tpu.memory_space<vmem>>, vector<1x8x16xf32>,
    %c0_9 = arith.constant 0 : index
    %c1 = arith.constant 1 : index
    %c0_10 = arith.constant 0 : index
    %13 = vector.load %arg1[%c0_9, %c1, %c0_10] : memref<8x8x16xf32, #tpu.memory_space<vmem>>, vector<8x1x16xf32>
    %14 = vector.shape_cast %13 : vector<8x1x16xf32> to vector<8x16xf32>
    %c1_11 = arith.constant 1 : index
    %c0_12 = arith.constant 0 : index
    %c0_13 = arith.constant 0 : index
    %15 = vector.load %arg11[%c1_11, %c0_12, %c0_13] : memref<8x8x16xf32, #tpu.memory_space<vmem>>, vector<1x8x16xf32>
    %16 = vector.shape_cast %15 : vector<1x8x16xf32> to vector<8x16xf32>
    %17 = vector.shape_cast %14 : vector<8x16xf32> to vector<1x8x16xf32>
    tpu.vector_store %arg11[%c1_11, %c0_12, %c0_13], %17 {strides = array<i32>} : memref<8x8x16xf32, #tpu.memory_space<vmem>>, vector<1x8x16xf32>,
    %c0_14 = arith.constant 0 : index
    %c2 = arith.constant 2 : index
    %c0_15 = arith.constant 0 : index
    %18 = vector.load %arg1[%c0_14, %c2, %c0_15] : memref<8x8x16xf32, #tpu.memory_space<vmem>>, vector<8x1x16xf32>
    %19 = vector.shape_cast %18 : vector<8x1x16xf32> to vector<8x16xf32>
    %c2_16 = arith.constant 2 : index
    %c0_17 = arith.constant 0 : index
    %c0_18 = arith.constant 0 : index
    %20 = vector.load %arg11[%c2_16, %c0_17, %c0_18] : memref<8x8x16xf32, #tpu.memory_space<vmem>>, vector<1x8x16xf32>
    %21 = vector.shape_cast %20 : vector<1x8x16xf32> to vector<8x16xf32>
    %22 = vector.shape_cast %19 : vector<8x16xf32> to vector<1x8x16xf32>
    tpu.vector_store %arg11[%c2_16, %c0_17, %c0_18], %22 {strides = array<i32>} : memref<8x8x16xf32, #tpu.memory_space<vmem>>, vector<1x8x16xf32>,
    %c0_19 = arith.constant 0 : index
    %c3 = arith.constant 3 : index
    %c0_20 = arith.constant 0 : index
    %23 = vector.load %arg1[%c0_19, %c3, %c0_20] : memref<8x8x16xf32, #tpu.memory_space<vmem>>, vector<8x1x16xf32>
    %24 = vector.shape_cast %23 : vector<8x1x16xf32> to vector<8x16xf32>
    %c3_21 = arith.constant 3 : index
    %c0_22 = arith.constant 0 : index
    %c0_23 = arith.constant 0 : index
    %25 = vector.load %arg11[%c3_21, %c0_22, %c0_23] : memref<8x8x16xf32, #tpu.memory_space<vmem>>, vector<1x8x16xf32>
    %26 = vector.shape_cast %25 : vector<1x8x16xf32> to vector<8x16xf32>
    %27 = vector.shape_cast %24 : vector<8x16xf32> to vector<1x8x16xf32>
    tpu.vector_store %arg11[%c3_21, %c0_22, %c0_23], %27 {strides = array<i32>} : memref<8x8x16xf32, #tpu.memory_space<vmem>>, vector<1x8x16xf32>,
    %c0_24 = arith.constant 0 : index
    %c4 = arith.constant 4 : index
    %c0_25 = arith.constant 0 : index
    %28 = vector.load %arg1[%c0_24, %c4, %c0_25] : memref<8x8x16xf32, #tpu.memory_space<vmem>>, vector<8x1x16xf32>
    %29 = vector.shape_cast %28 : vector<8x1x16xf32> to vector<8x16xf32>
    %c4_26 = arith.constant 4 : index
    %c0_27 = arith.constant 0 : index
    %c0_28 = arith.constant 0 : index
    %30 = vector.load %arg11[%c4_26, %c0_27, %c0_28] : memref<8x8x16xf32, #tpu.memory_space<vmem>>, vector<1x8x16xf32>
    %31 = vector.shape_cast %30 : vector<1x8x16xf32> to vector<8x16xf32>
    %32 = vector.shape_cast %29 : vector<8x16xf32> to vector<1x8x16xf32>
    tpu.vector_store %arg11[%c4_26, %c0_27, %c0_28], %32 {strides = array<i32>} : memref<8x8x16xf32, #tpu.memory_space<vmem>>, vector<1x8x16xf32>,
    %c0_29 = arith.constant 0 : index
    %c5 = arith.constant 5 : index
    %c0_30 = arith.constant 0 : index
    %33 = vector.load %arg1[%c0_29, %c5, %c0_30] : memref<8x8x16xf32, #tpu.memory_space<vmem>>, vector<8x1x16xf32>
    %34 = vector.shape_cast %33 : vector<8x1x16xf32> to vector<8x16xf32>
    %c5_31 = arith.constant 5 : index
    %c0_32 = arith.constant 0 : index
    %c0_33 = arith.constant 0 : index
    %35 = vector.load %arg11[%c5_31, %c0_32, %c0_33] : memref<8x8x16xf32, #tpu.memory_space<vmem>>, vector<1x8x16xf32>
    %36 = vector.shape_cast %35 : vector<1x8x16xf32> to vector<8x16xf32>
    %37 = vector.shape_cast %34 : vector<8x16xf32> to vector<1x8x16xf32>
    tpu.vector_store %arg11[%c5_31, %c0_32, %c0_33], %37 {strides = array<i32>} : memref<8x8x16xf32, #tpu.memory_space<vmem>>, vector<1x8x16xf32>,
    %c0_34 = arith.constant 0 : index
    %c6 = arith.constant 6 : index
    %c0_35 = arith.constant 0 : index
    %38 = vector.load %arg1[%c0_34, %c6, %c0_35] : memref<8x8x16xf32, #tpu.memory_space<vmem>>, vector<8x1x16xf32>
    %39 = vector.shape_cast %38 : vector<8x1x16xf32> to vector<8x16xf32>
    %c6_36 = arith.constant 6 : index
    %c0_37 = arith.constant 0 : index
    %c0_38 = arith.constant 0 : index
    %40 = vector.load %arg11[%c6_36, %c0_37, %c0_38] : memref<8x8x16xf32, #tpu.memory_space<vmem>>, vector<1x8x16xf32>
    %41 = vector.shape_cast %40 : vector<1x8x16xf32> to vector<8x16xf32>
    %42 = vector.shape_cast %39 : vector<8x16xf32> to vector<1x8x16xf32>
    tpu.vector_store %arg11[%c6_36, %c0_37, %c0_38], %42 {strides = array<i32>} : memref<8x8x16xf32, #tpu.memory_space<vmem>>, vector<1x8x16xf32>,
    %c0_39 = arith.constant 0 : index
    %c7 = arith.constant 7 : index
    %c0_40 = arith.constant 0 : index
    %43 = vector.load %arg1[%c0_39, %c7, %c0_40] : memref<8x8x16xf32, #tpu.memory_space<vmem>>, vector<8x1x16xf32>
    %44 = vector.shape_cast %43 : vector<8x1x16xf32> to vector<8x16xf32>
    %c7_41 = arith.constant 7 : index
    %c0_42 = arith.constant 0 : index
    %c0_43 = arith.constant 0 : index
    %45 = vector.load %arg11[%c7_41, %c0_42, %c0_43] : memref<8x8x16xf32, #tpu.memory_space<vmem>>, vector<1x8x16xf32>
    %46 = vector.shape_cast %45 : vector<1x8x16xf32> to vector<8x16xf32>
    %47 = vector.shape_cast %44 : vector<8x16xf32> to vector<1x8x16xf32>
    tpu.vector_store %arg11[%c7_41, %c0_42, %c0_43], %47 {strides = array<i32>} : memref<8x8x16xf32, #tpu.memory_space<vmem>>, vector<1x8x16xf32>,
    %c0_44 = arith.constant 0 : index
    %c0_45 = arith.constant 0 : index
    %c0_46 = arith.constant 0 : index
    %48 = vector.load %arg11[%c0_44, %c0_45, %c0_46] : memref<8x8x16xf32, #tpu.memory_space<vmem>>, vector<8x8x16xf32>
    %49 = vector.shape_cast %48 : vector<8x8x16xf32> to vector<64x16xf32>
    %c0_47 = arith.constant 0 : index
    %c0_48 = arith.constant 0 : index
    %50 = vector.load %arg2[%c0_47, %c0_48] : memref<16x128xf32, #tpu.memory_space<vmem>>, vector<16x128xf32>
    %cst = arith.constant dense<0.000000e+00> : vector<64x128xf32>
    %51 = tpu.matmul %49, %50, %cst {dimension_numbers = #tpu.dot_dimension_numbers<[1], [0], [0], [1], [0, 0, 1, 1], [], []>} : vector<64x16xf32>, vector<16x128xf32>, vector<64x128xf32> -> vector<64x128xf32>
    %c0_49 = arith.constant 0 : index
    %c0_50 = arith.constant 0 : index
    %52 = vector.load %arg4[%c0_49, %c0_50] : memref<1x128xf32, #tpu.memory_space<vmem>>, vector<1x128xf32>
    %53 = vector.broadcast %52 : vector<1x128xf32> to vector<64x128xf32>
    %54 = arith.addf %51, %53 : vector<64x128xf32>
    %55 = vector.shape_cast %54 : vector<64x128xf32> to vector<8x8x128xf32>
    %c0_51 = arith.constant 0 : index
    %c0_52 = arith.constant 0 : index
    %c0_53 = arith.constant 0 : index
    %56 = vector.load %arg12[%c0_51, %c0_52, %c0_53] : memref<8x8x128xf32, #tpu.memory_space<vmem>>, vector<8x8x128xf32>
    tpu.vector_store %arg12[%c0_51, %c0_52, %c0_53], %55 {strides = array<i32>} : memref<8x8x128xf32, #tpu.memory_space<vmem>>, vector<8x8x128xf32>,
    %cst_54 = arith.constant 0.000000e+00 : f32
    %57 = vector.broadcast %cst_54 : f32 to vector<8x32xf32>
    %c0_i32 = arith.constant 0 : i32
    %58 = arith.index_cast %c0_i32 : i32 to index
    %c0_55 = arith.constant 0 : index
    %c0_56 = arith.constant 0 : index
    %59 = vector.load %arg12[%58, %c0_55, %c0_56] : memref<8x8x128xf32, #tpu.memory_space<vmem>>, vector<1x8x128xf32>
    %60 = vector.shape_cast %59 : vector<1x8x128xf32> to vector<8x128xf32>
    %cst_57 = arith.constant dense<0.000000e+00> : vector<8x128xf32>
    %61 = tpu.matmul %57, %6, %cst_57 {dimension_numbers = #tpu.dot_dimension_numbers<[1], [0], [0], [1], [0, 0, 1, 1], [], []>} : vector<8x32xf32>, vector<32x128xf32>, vector<8x128xf32> -> vector<8x128xf32>
    %62 = arith.addf %60, %61 : vector<8x128xf32>
    %cst_58 = arith.constant 5.000000e-01 : f32
    %63 = vector.broadcast %cst_58 : f32 to vector<8x128xf32>
    %64 = arith.mulf %63, %62 : vector<8x128xf32>
    %65 = arith.select %5, %62, %64 : vector<8x128xi1>, vector<8x128xf32>
    %66 = math.tanh %65 : vector<8x128xf32>
    %cst_59 = arith.constant 5.000000e-01 : f32
    %67 = vector.broadcast %cst_59 : f32 to vector<8x128xf32>
    %68 = arith.mulf %67, %66 : vector<8x128xf32>
    %cst_60 = arith.constant 5.000000e-01 : f32
    %69 = vector.broadcast %cst_60 : f32 to vector<8x128xf32>
    %70 = arith.addf %68, %69 : vector<8x128xf32>
    %71 = arith.select %5, %66, %70 : vector<8x128xi1>, vector<8x128xf32>
    %72 = vector.extract_strided_slice %71 {offsets = [0, 0], sizes = [8, 32], strides = [1, 1]} : vector<8x128xf32> to vector<8x32xf32>
    %73 = vector.extract_strided_slice %71 {offsets = [0, 32], sizes = [8, 32], strides = [1, 1]} : vector<8x128xf32> to vector<8x32xf32>
    %74 = vector.extract_strided_slice %71 {offsets = [0, 64], sizes = [8, 32], strides = [1, 1]} : vector<8x128xf32> to vector<8x32xf32>
    %75 = vector.extract_strided_slice %71 {offsets = [0, 96], sizes = [8, 32], strides = [1, 1]} : vector<8x128xf32> to vector<8x32xf32>
    %76 = arith.mulf %73, %57 : vector<8x32xf32>
    %77 = arith.mulf %72, %74 : vector<8x32xf32>
    %78 = arith.addf %76, %77 : vector<8x32xf32>
    %79 = math.tanh %78 : vector<8x32xf32>
    %80 = arith.mulf %75, %79 : vector<8x32xf32>
    %c1_i32 = arith.constant 1 : i32
    %81 = arith.index_cast %c1_i32 : i32 to index
    %c0_61 = arith.constant 0 : index
    %c0_62 = arith.constant 0 : index
    %82 = vector.load %arg12[%81, %c0_61, %c0_62] : memref<8x8x128xf32, #tpu.memory_space<vmem>>, vector<1x8x128xf32>
    %83 = vector.shape_cast %82 : vector<1x8x128xf32> to vector<8x128xf32>
    %cst_63 = arith.constant dense<0.000000e+00> : vector<8x128xf32>
    %84 = tpu.matmul %80, %6, %cst_63 {dimension_numbers = #tpu.dot_dimension_numbers<[1], [0], [0], [1], [0, 0, 1, 1], [], []>} : vector<8x32xf32>, vector<32x128xf32>, vector<8x128xf32> -> vector<8x128xf32>
    %85 = arith.addf %83, %84 : vector<8x128xf32>
    %cst_64 = arith.constant 5.000000e-01 : f32
    %86 = vector.broadcast %cst_64 : f32 to vector<8x128xf32>
    %87 = arith.mulf %86, %85 : vector<8x128xf32>
    %88 = arith.select %5, %85, %87 : vector<8x128xi1>, vector<8x128xf32>
    %89 = math.tanh %88 : vector<8x128xf32>
    %cst_65 = arith.constant 5.000000e-01 : f32
    %90 = vector.broadcast %cst_65 : f32 to vector<8x128xf32>
    %91 = arith.mulf %90, %89 : vector<8x128xf32>
    %cst_66 = arith.constant 5.000000e-01 : f32
    %92 = vector.broadcast %cst_66 : f32 to vector<8x128xf32>
    %93 = arith.addf %91, %92 : vector<8x128xf32>
    %94 = arith.select %5, %89, %93 : vector<8x128xi1>, vector<8x128xf32>
    %95 = vector.extract_strided_slice %94 {offsets = [0, 0], sizes = [8, 32], strides = [1, 1]} : vector<8x128xf32> to vector<8x32xf32>
    %96 = vector.extract_strided_slice %94 {offsets = [0, 32], sizes = [8, 32], strides = [1, 1]} : vector<8x128xf32> to vector<8x32xf32>
    %97 = vector.extract_strided_slice %94 {offsets = [0, 64], sizes = [8, 32], strides = [1, 1]} : vector<8x128xf32> to vector<8x32xf32>
    %98 = vector.extract_strided_slice %94 {offsets = [0, 96], sizes = [8, 32], strides = [1, 1]} : vector<8x128xf32> to vector<8x32xf32>
    %99 = arith.mulf %96, %78 : vector<8x32xf32>
    %100 = arith.mulf %95, %97 : vector<8x32xf32>
    %101 = arith.addf %99, %100 : vector<8x32xf32>
    %102 = math.tanh %101 : vector<8x32xf32>
    %103 = arith.mulf %98, %102 : vector<8x32xf32>
    %c2_i32 = arith.constant 2 : i32
    %104 = arith.index_cast %c2_i32 : i32 to index
    %c0_67 = arith.constant 0 : index
    %c0_68 = arith.constant 0 : index
    %105 = vector.load %arg12[%104, %c0_67, %c0_68] : memref<8x8x128xf32, #tpu.memory_space<vmem>>, vector<1x8x128xf32>
    %106 = vector.shape_cast %105 : vector<1x8x128xf32> to vector<8x128xf32>
    %cst_69 = arith.constant dense<0.000000e+00> : vector<8x128xf32>
    %107 = tpu.matmul %103, %6, %cst_69 {dimension_numbers = #tpu.dot_dimension_numbers<[1], [0], [0], [1], [0, 0, 1, 1], [], []>} : vector<8x32xf32>, vector<32x128xf32>, vector<8x128xf32> -> vector<8x128xf32>
    %108 = arith.addf %106, %107 : vector<8x128xf32>
    %cst_70 = arith.constant 5.000000e-01 : f32
    %109 = vector.broadcast %cst_70 : f32 to vector<8x128xf32>
    %110 = arith.mulf %109, %108 : vector<8x128xf32>
    %111 = arith.select %5, %108, %110 : vector<8x128xi1>, vector<8x128xf32>
    %112 = math.tanh %111 : vector<8x128xf32>
    %cst_71 = arith.constant 5.000000e-01 : f32
    %113 = vector.broadcast %cst_71 : f32 to vector<8x128xf32>
    %114 = arith.mulf %113, %112 : vector<8x128xf32>
    %cst_72 = arith.constant 5.000000e-01 : f32
    %115 = vector.broadcast %cst_72 : f32 to vector<8x128xf32>
    %116 = arith.addf %114, %115 : vector<8x128xf32>
    %117 = arith.select %5, %112, %116 : vector<8x128xi1>, vector<8x128xf32>
    %118 = vector.extract_strided_slice %117 {offsets = [0, 0], sizes = [8, 32], strides = [1, 1]} : vector<8x128xf32> to vector<8x32xf32>
    %119 = vector.extract_strided_slice %117 {offsets = [0, 32], sizes = [8, 32], strides = [1, 1]} : vector<8x128xf32> to vector<8x32xf32>
    %120 = vector.extract_strided_slice %117 {offsets = [0, 64], sizes = [8, 32], strides = [1, 1]} : vector<8x128xf32> to vector<8x32xf32>
    %121 = vector.extract_strided_slice %117 {offsets = [0, 96], sizes = [8, 32], strides = [1, 1]} : vector<8x128xf32> to vector<8x32xf32>
    %122 = arith.mulf %119, %101 : vector<8x32xf32>
    %123 = arith.mulf %118, %120 : vector<8x32xf32>
    %124 = arith.addf %122, %123 : vector<8x32xf32>
    %125 = math.tanh %124 : vector<8x32xf32>
    %126 = arith.mulf %121, %125 : vector<8x32xf32>
    %c3_i32 = arith.constant 3 : i32
    %127 = arith.index_cast %c3_i32 : i32 to index
    %c0_73 = arith.constant 0 : index
    %c0_74 = arith.constant 0 : index
    %128 = vector.load %arg12[%127, %c0_73, %c0_74] : memref<8x8x128xf32, #tpu.memory_space<vmem>>, vector<1x8x128xf32>
    %129 = vector.shape_cast %128 : vector<1x8x128xf32> to vector<8x128xf32>
    %cst_75 = arith.constant dense<0.000000e+00> : vector<8x128xf32>
    %130 = tpu.matmul %126, %6, %cst_75 {dimension_numbers = #tpu.dot_dimension_numbers<[1], [0], [0], [1], [0, 0, 1, 1], [], []>} : vector<8x32xf32>, vector<32x128xf32>, vector<8x128xf32> -> vector<8x128xf32>
    %131 = arith.addf %129, %130 : vector<8x128xf32>
    %cst_76 = arith.constant 5.000000e-01 : f32
    %132 = vector.broadcast %cst_76 : f32 to vector<8x128xf32>
    %133 = arith.mulf %132, %131 : vector<8x128xf32>
    %134 = arith.select %5, %131, %133 : vector<8x128xi1>, vector<8x128xf32>
    %135 = math.tanh %134 : vector<8x128xf32>
    %cst_77 = arith.constant 5.000000e-01 : f32
    %136 = vector.broadcast %cst_77 : f32 to vector<8x128xf32>
    %137 = arith.mulf %136, %135 : vector<8x128xf32>
    %cst_78 = arith.constant 5.000000e-01 : f32
    %138 = vector.broadcast %cst_78 : f32 to vector<8x128xf32>
    %139 = arith.addf %137, %138 : vector<8x128xf32>
    %140 = arith.select %5, %135, %139 : vector<8x128xi1>, vector<8x128xf32>
    %141 = vector.extract_strided_slice %140 {offsets = [0, 0], sizes = [8, 32], strides = [1, 1]} : vector<8x128xf32> to vector<8x32xf32>
    %142 = vector.extract_strided_slice %140 {offsets = [0, 32], sizes = [8, 32], strides = [1, 1]} : vector<8x128xf32> to vector<8x32xf32>
    %143 = vector.extract_strided_slice %140 {offsets = [0, 64], sizes = [8, 32], strides = [1, 1]} : vector<8x128xf32> to vector<8x32xf32>
    %144 = vector.extract_strided_slice %140 {offsets = [0, 96], sizes = [8, 32], strides = [1, 1]} : vector<8x128xf32> to vector<8x32xf32>
    %145 = arith.mulf %142, %124 : vector<8x32xf32>
    %146 = arith.mulf %141, %143 : vector<8x32xf32>
    %147 = arith.addf %145, %146 : vector<8x32xf32>
    %148 = math.tanh %147 : vector<8x32xf32>
    %149 = arith.mulf %144, %148 : vector<8x32xf32>
    %c4_i32 = arith.constant 4 : i32
    %150 = arith.index_cast %c4_i32 : i32 to index
    %c0_79 = arith.constant 0 : index
    %c0_80 = arith.constant 0 : index
    %151 = vector.load %arg12[%150, %c0_79, %c0_80] : memref<8x8x128xf32, #tpu.memory_space<vmem>>, vector<1x8x128xf32>
    %152 = vector.shape_cast %151 : vector<1x8x128xf32> to vector<8x128xf32>
    %cst_81 = arith.constant dense<0.000000e+00> : vector<8x128xf32>
    %153 = tpu.matmul %149, %6, %cst_81 {dimension_numbers = #tpu.dot_dimension_numbers<[1], [0], [0], [1], [0, 0, 1, 1], [], []>} : vector<8x32xf32>, vector<32x128xf32>, vector<8x128xf32> -> vector<8x128xf32>
    %154 = arith.addf %152, %153 : vector<8x128xf32>
    %cst_82 = arith.constant 5.000000e-01 : f32
    %155 = vector.broadcast %cst_82 : f32 to vector<8x128xf32>
    %156 = arith.mulf %155, %154 : vector<8x128xf32>
    %157 = arith.select %5, %154, %156 : vector<8x128xi1>, vector<8x128xf32>
    %158 = math.tanh %157 : vector<8x128xf32>
    %cst_83 = arith.constant 5.000000e-01 : f32
    %159 = vector.broadcast %cst_83 : f32 to vector<8x128xf32>
    %160 = arith.mulf %159, %158 : vector<8x128xf32>
    %cst_84 = arith.constant 5.000000e-01 : f32
    %161 = vector.broadcast %cst_84 : f32 to vector<8x128xf32>
    %162 = arith.addf %160, %161 : vector<8x128xf32>
    %163 = arith.select %5, %158, %162 : vector<8x128xi1>, vector<8x128xf32>
    %164 = vector.extract_strided_slice %163 {offsets = [0, 0], sizes = [8, 32], strides = [1, 1]} : vector<8x128xf32> to vector<8x32xf32>
    %165 = vector.extract_strided_slice %163 {offsets = [0, 32], sizes = [8, 32], strides = [1, 1]} : vector<8x128xf32> to vector<8x32xf32>
    %166 = vector.extract_strided_slice %163 {offsets = [0, 64], sizes = [8, 32], strides = [1, 1]} : vector<8x128xf32> to vector<8x32xf32>
    %167 = vector.extract_strided_slice %163 {offsets = [0, 96], sizes = [8, 32], strides = [1, 1]} : vector<8x128xf32> to vector<8x32xf32>
    %168 = arith.mulf %165, %147 : vector<8x32xf32>
    %169 = arith.mulf %164, %166 : vector<8x32xf32>
    %170 = arith.addf %168, %169 : vector<8x32xf32>
    %171 = math.tanh %170 : vector<8x32xf32>
    %172 = arith.mulf %167, %171 : vector<8x32xf32>
    %c5_i32 = arith.constant 5 : i32
    %173 = arith.index_cast %c5_i32 : i32 to index
    %c0_85 = arith.constant 0 : index
    %c0_86 = arith.constant 0 : index
    %174 = vector.load %arg12[%173, %c0_85, %c0_86] : memref<8x8x128xf32, #tpu.memory_space<vmem>>, vector<1x8x128xf32>
    %175 = vector.shape_cast %174 : vector<1x8x128xf32> to vector<8x128xf32>
    %cst_87 = arith.constant dense<0.000000e+00> : vector<8x128xf32>
    %176 = tpu.matmul %172, %6, %cst_87 {dimension_numbers = #tpu.dot_dimension_numbers<[1], [0], [0], [1], [0, 0, 1, 1], [], []>} : vector<8x32xf32>, vector<32x128xf32>, vector<8x128xf32> -> vector<8x128xf32>
    %177 = arith.addf %175, %176 : vector<8x128xf32>
    %cst_88 = arith.constant 5.000000e-01 : f32
    %178 = vector.broadcast %cst_88 : f32 to vector<8x128xf32>
    %179 = arith.mulf %178, %177 : vector<8x128xf32>
    %180 = arith.select %5, %177, %179 : vector<8x128xi1>, vector<8x128xf32>
    %181 = math.tanh %180 : vector<8x128xf32>
    %cst_89 = arith.constant 5.000000e-01 : f32
    %182 = vector.broadcast %cst_89 : f32 to vector<8x128xf32>
    %183 = arith.mulf %182, %181 : vector<8x128xf32>
    %cst_90 = arith.constant 5.000000e-01 : f32
    %184 = vector.broadcast %cst_90 : f32 to vector<8x128xf32>
    %185 = arith.addf %183, %184 : vector<8x128xf32>
    %186 = arith.select %5, %181, %185 : vector<8x128xi1>, vector<8x128xf32>
    %187 = vector.extract_strided_slice %186 {offsets = [0, 0], sizes = [8, 32], strides = [1, 1]} : vector<8x128xf32> to vector<8x32xf32>
    %188 = vector.extract_strided_slice %186 {offsets = [0, 32], sizes = [8, 32], strides = [1, 1]} : vector<8x128xf32> to vector<8x32xf32>
    %189 = vector.extract_strided_slice %186 {offsets = [0, 64], sizes = [8, 32], strides = [1, 1]} : vector<8x128xf32> to vector<8x32xf32>
    %190 = vector.extract_strided_slice %186 {offsets = [0, 96], sizes = [8, 32], strides = [1, 1]} : vector<8x128xf32> to vector<8x32xf32>
    %191 = arith.mulf %188, %170 : vector<8x32xf32>
    %192 = arith.mulf %187, %189 : vector<8x32xf32>
    %193 = arith.addf %191, %192 : vector<8x32xf32>
    %194 = math.tanh %193 : vector<8x32xf32>
    %195 = arith.mulf %190, %194 : vector<8x32xf32>
    %c6_i32 = arith.constant 6 : i32
    %196 = arith.index_cast %c6_i32 : i32 to index
    %c0_91 = arith.constant 0 : index
    %c0_92 = arith.constant 0 : index
    %197 = vector.load %arg12[%196, %c0_91, %c0_92] : memref<8x8x128xf32, #tpu.memory_space<vmem>>, vector<1x8x128xf32>
    %198 = vector.shape_cast %197 : vector<1x8x128xf32> to vector<8x128xf32>
    %cst_93 = arith.constant dense<0.000000e+00> : vector<8x128xf32>
    %199 = tpu.matmul %195, %6, %cst_93 {dimension_numbers = #tpu.dot_dimension_numbers<[1], [0], [0], [1], [0, 0, 1, 1], [], []>} : vector<8x32xf32>, vector<32x128xf32>, vector<8x128xf32> -> vector<8x128xf32>
    %200 = arith.addf %198, %199 : vector<8x128xf32>
    %cst_94 = arith.constant 5.000000e-01 : f32
    %201 = vector.broadcast %cst_94 : f32 to vector<8x128xf32>
    %202 = arith.mulf %201, %200 : vector<8x128xf32>
    %203 = arith.select %5, %200, %202 : vector<8x128xi1>, vector<8x128xf32>
    %204 = math.tanh %203 : vector<8x128xf32>
    %cst_95 = arith.constant 5.000000e-01 : f32
    %205 = vector.broadcast %cst_95 : f32 to vector<8x128xf32>
    %206 = arith.mulf %205, %204 : vector<8x128xf32>
    %cst_96 = arith.constant 5.000000e-01 : f32
    %207 = vector.broadcast %cst_96 : f32 to vector<8x128xf32>
    %208 = arith.addf %206, %207 : vector<8x128xf32>
    %209 = arith.select %5, %204, %208 : vector<8x128xi1>, vector<8x128xf32>
    %210 = vector.extract_strided_slice %209 {offsets = [0, 0], sizes = [8, 32], strides = [1, 1]} : vector<8x128xf32> to vector<8x32xf32>
    %211 = vector.extract_strided_slice %209 {offsets = [0, 32], sizes = [8, 32], strides = [1, 1]} : vector<8x128xf32> to vector<8x32xf32>
    %212 = vector.extract_strided_slice %209 {offsets = [0, 64], sizes = [8, 32], strides = [1, 1]} : vector<8x128xf32> to vector<8x32xf32>
    %213 = vector.extract_strided_slice %209 {offsets = [0, 96], sizes = [8, 32], strides = [1, 1]} : vector<8x128xf32> to vector<8x32xf32>
    %214 = arith.mulf %211, %193 : vector<8x32xf32>
    %215 = arith.mulf %210, %212 : vector<8x32xf32>
    %216 = arith.addf %214, %215 : vector<8x32xf32>
    %217 = math.tanh %216 : vector<8x32xf32>
    %218 = arith.mulf %213, %217 : vector<8x32xf32>
    %c7_i32 = arith.constant 7 : i32
    %219 = arith.index_cast %c7_i32 : i32 to index
    %c0_97 = arith.constant 0 : index
    %c0_98 = arith.constant 0 : index
    %220 = vector.load %arg12[%219, %c0_97, %c0_98] : memref<8x8x128xf32, #tpu.memory_space<vmem>>, vector<1x8x128xf32>
    %221 = vector.shape_cast %220 : vector<1x8x128xf32> to vector<8x128xf32>
    %cst_99 = arith.constant dense<0.000000e+00> : vector<8x128xf32>
    %222 = tpu.matmul %218, %6, %cst_99 {dimension_numbers = #tpu.dot_dimension_numbers<[1], [0], [0], [1], [0, 0, 1, 1], [], []>} : vector<8x32xf32>, vector<32x128xf32>, vector<8x128xf32> -> vector<8x128xf32>
    %223 = arith.addf %221, %222 : vector<8x128xf32>
    %cst_100 = arith.constant 5.000000e-01 : f32
    %224 = vector.broadcast %cst_100 : f32 to vector<8x128xf32>
    %225 = arith.mulf %224, %223 : vector<8x128xf32>
    %226 = arith.select %5, %223, %225 : vector<8x128xi1>, vector<8x128xf32>
    %227 = math.tanh %226 : vector<8x128xf32>
    %cst_101 = arith.constant 5.000000e-01 : f32
    %228 = vector.broadcast %cst_101 : f32 to vector<8x128xf32>
    %229 = arith.mulf %228, %227 : vector<8x128xf32>
    %cst_102 = arith.constant 5.000000e-01 : f32
    %230 = vector.broadcast %cst_102 : f32 to vector<8x128xf32>
    %231 = arith.addf %229, %230 : vector<8x128xf32>
    %232 = arith.select %5, %227, %231 : vector<8x128xi1>, vector<8x128xf32>
    %233 = vector.extract_strided_slice %232 {offsets = [0, 0], sizes = [8, 32], strides = [1, 1]} : vector<8x128xf32> to vector<8x32xf32>
    %234 = vector.extract_strided_slice %232 {offsets = [0, 32], sizes = [8, 32], strides = [1, 1]} : vector<8x128xf32> to vector<8x32xf32>
    %235 = vector.extract_strided_slice %232 {offsets = [0, 64], sizes = [8, 32], strides = [1, 1]} : vector<8x128xf32> to vector<8x32xf32>
    %236 = vector.extract_strided_slice %232 {offsets = [0, 96], sizes = [8, 32], strides = [1, 1]} : vector<8x128xf32> to vector<8x32xf32>
    %237 = arith.mulf %234, %216 : vector<8x32xf32>
    %238 = arith.mulf %233, %235 : vector<8x32xf32>
    %239 = arith.addf %237, %238 : vector<8x32xf32>
    %240 = math.tanh %239 : vector<8x32xf32>
    %241 = arith.mulf %236, %240 : vector<8x32xf32>
    %c8_i32 = arith.constant 8 : i32
    %c0_103 = arith.constant 0 : index
    %c0_104 = arith.constant 0 : index
    %242 = vector.load %arg5[%c0_103, %c0_104] : memref<32x128xf32, #tpu.memory_space<vmem>>, vector<32x128xf32>
    %cst_105 = arith.constant dense<0.000000e+00> : vector<8x128xf32>
    %243 = tpu.matmul %241, %242, %cst_105 {dimension_numbers = #tpu.dot_dimension_numbers<[1], [0], [0], [1], [0, 0, 1, 1], [], []>} : vector<8x32xf32>, vector<32x128xf32>, vector<8x128xf32> -> vector<8x128xf32>
    %c0_106 = arith.constant 0 : index
    %c0_107 = arith.constant 0 : index
    %244 = vector.load %arg7[%c0_106, %c0_107] : memref<1x128xf32, #tpu.memory_space<vmem>>, vector<1x128xf32>
    %245 = vector.broadcast %244 : vector<1x128xf32> to vector<8x128xf32>
    %246 = arith.addf %243, %245 : vector<8x128xf32>
    %c0_i32_108 = arith.constant 0 : i32
    %cst_109 = arith.constant dense<0.000000e+00> : vector<8x128xf32>
    %247 = tpu.matmul %57, %7, %cst_109 {dimension_numbers = #tpu.dot_dimension_numbers<[1], [0], [0], [1], [0, 0, 1, 1], [], []>} : vector<8x32xf32>, vector<32x128xf32>, vector<8x128xf32> -> vector<8x128xf32>
    %248 = arith.addf %246, %247 : vector<8x128xf32>
    %cst_110 = arith.constant 5.000000e-01 : f32
    %249 = vector.broadcast %cst_110 : f32 to vector<8x128xf32>
    %250 = arith.mulf %249, %248 : vector<8x128xf32>
    %251 = arith.select %5, %248, %250 : vector<8x128xi1>, vector<8x128xf32>
    %252 = math.tanh %251 : vector<8x128xf32>
    %cst_111 = arith.constant 5.000000e-01 : f32
    %253 = vector.broadcast %cst_111 : f32 to vector<8x128xf32>
    %254 = arith.mulf %253, %252 : vector<8x128xf32>
    %cst_112 = arith.constant 5.000000e-01 : f32
    %255 = vector.broadcast %cst_112 : f32 to vector<8x128xf32>
    %256 = arith.addf %254, %255 : vector<8x128xf32>
    %257 = arith.select %5, %252, %256 : vector<8x128xi1>, vector<8x128xf32>
    %258 = vector.extract_strided_slice %257 {offsets = [0, 0], sizes = [8, 32], strides = [1, 1]} : vector<8x128xf32> to vector<8x32xf32>
    %259 = vector.extract_strided_slice %257 {offsets = [0, 32], sizes = [8, 32], strides = [1, 1]} : vector<8x128xf32> to vector<8x32xf32>
    %260 = vector.extract_strided_slice %257 {offsets = [0, 64], sizes = [8, 32], strides = [1, 1]} : vector<8x128xf32> to vector<8x32xf32>
    %261 = vector.extract_strided_slice %257 {offsets = [0, 96], sizes = [8, 32], strides = [1, 1]} : vector<8x128xf32> to vector<8x32xf32>
    %262 = arith.mulf %259, %57 : vector<8x32xf32>
    %263 = arith.mulf %258, %260 : vector<8x32xf32>
    %264 = arith.addf %262, %263 : vector<8x32xf32>
    %265 = math.tanh %264 : vector<8x32xf32>
    %266 = arith.mulf %261, %265 : vector<8x32xf32>
    %267 = arith.index_cast %c0_i32_108 : i32 to index
    %c0_113 = arith.constant 0 : index
    %c0_114 = arith.constant 0 : index
    %268 = vector.load %arg13[%267, %c0_113, %c0_114] : memref<8x8x32xf32, #tpu.memory_space<vmem>>, vector<1x8x32xf32>
    %269 = vector.shape_cast %268 : vector<1x8x32xf32> to vector<8x32xf32>
    %270 = vector.shape_cast %266 : vector<8x32xf32> to vector<1x8x32xf32>
    tpu.vector_store %arg13[%267, %c0_113, %c0_114], %270 {strides = array<i32>} : memref<8x8x32xf32, #tpu.memory_space<vmem>>, vector<1x8x32xf32>,
    %c1_i32_115 = arith.constant 1 : i32
    %cst_116 = arith.constant dense<0.000000e+00> : vector<8x128xf32>
    %271 = tpu.matmul %266, %7, %cst_116 {dimension_numbers = #tpu.dot_dimension_numbers<[1], [0], [0], [1], [0, 0, 1, 1], [], []>} : vector<8x32xf32>, vector<32x128xf32>, vector<8x128xf32> -> vector<8x128xf32>
    %272 = arith.addf %246, %271 : vector<8x128xf32>
    %cst_117 = arith.constant 5.000000e-01 : f32
    %273 = vector.broadcast %cst_117 : f32 to vector<8x128xf32>
    %274 = arith.mulf %273, %272 : vector<8x128xf32>
    %275 = arith.select %5, %272, %274 : vector<8x128xi1>, vector<8x128xf32>
    %276 = math.tanh %275 : vector<8x128xf32>
    %cst_118 = arith.constant 5.000000e-01 : f32
    %277 = vector.broadcast %cst_118 : f32 to vector<8x128xf32>
    %278 = arith.mulf %277, %276 : vector<8x128xf32>
    %cst_119 = arith.constant 5.000000e-01 : f32
    %279 = vector.broadcast %cst_119 : f32 to vector<8x128xf32>
    %280 = arith.addf %278, %279 : vector<8x128xf32>
    %281 = arith.select %5, %276, %280 : vector<8x128xi1>, vector<8x128xf32>
    %282 = vector.extract_strided_slice %281 {offsets = [0, 0], sizes = [8, 32], strides = [1, 1]} : vector<8x128xf32> to vector<8x32xf32>
    %283 = vector.extract_strided_slice %281 {offsets = [0, 32], sizes = [8, 32], strides = [1, 1]} : vector<8x128xf32> to vector<8x32xf32>
    %284 = vector.extract_strided_slice %281 {offsets = [0, 64], sizes = [8, 32], strides = [1, 1]} : vector<8x128xf32> to vector<8x32xf32>
    %285 = vector.extract_strided_slice %281 {offsets = [0, 96], sizes = [8, 32], strides = [1, 1]} : vector<8x128xf32> to vector<8x32xf32>
    %286 = arith.mulf %283, %264 : vector<8x32xf32>
    %287 = arith.mulf %282, %284 : vector<8x32xf32>
    %288 = arith.addf %286, %287 : vector<8x32xf32>
    %289 = math.tanh %288 : vector<8x32xf32>
    %290 = arith.mulf %285, %289 : vector<8x32xf32>
    %291 = arith.index_cast %c1_i32_115 : i32 to index
    %c0_120 = arith.constant 0 : index
    %c0_121 = arith.constant 0 : index
    %292 = vector.load %arg13[%291, %c0_120, %c0_121] : memref<8x8x32xf32, #tpu.memory_space<vmem>>, vector<1x8x32xf32>
    %293 = vector.shape_cast %292 : vector<1x8x32xf32> to vector<8x32xf32>
    %294 = vector.shape_cast %290 : vector<8x32xf32> to vector<1x8x32xf32>
    tpu.vector_store %arg13[%291, %c0_120, %c0_121], %294 {strides = array<i32>} : memref<8x8x32xf32, #tpu.memory_space<vmem>>, vector<1x8x32xf32>,
    %c2_i32_122 = arith.constant 2 : i32
    %cst_123 = arith.constant dense<0.000000e+00> : vector<8x128xf32>
    %295 = tpu.matmul %290, %7, %cst_123 {dimension_numbers = #tpu.dot_dimension_numbers<[1], [0], [0], [1], [0, 0, 1, 1], [], []>} : vector<8x32xf32>, vector<32x128xf32>, vector<8x128xf32> -> vector<8x128xf32>
    %296 = arith.addf %246, %295 : vector<8x128xf32>
    %cst_124 = arith.constant 5.000000e-01 : f32
    %297 = vector.broadcast %cst_124 : f32 to vector<8x128xf32>
    %298 = arith.mulf %297, %296 : vector<8x128xf32>
    %299 = arith.select %5, %296, %298 : vector<8x128xi1>, vector<8x128xf32>
    %300 = math.tanh %299 : vector<8x128xf32>
    %cst_125 = arith.constant 5.000000e-01 : f32
    %301 = vector.broadcast %cst_125 : f32 to vector<8x128xf32>
    %302 = arith.mulf %301, %300 : vector<8x128xf32>
    %cst_126 = arith.constant 5.000000e-01 : f32
    %303 = vector.broadcast %cst_126 : f32 to vector<8x128xf32>
    %304 = arith.addf %302, %303 : vector<8x128xf32>
    %305 = arith.select %5, %300, %304 : vector<8x128xi1>, vector<8x128xf32>
    %306 = vector.extract_strided_slice %305 {offsets = [0, 0], sizes = [8, 32], strides = [1, 1]} : vector<8x128xf32> to vector<8x32xf32>
    %307 = vector.extract_strided_slice %305 {offsets = [0, 32], sizes = [8, 32], strides = [1, 1]} : vector<8x128xf32> to vector<8x32xf32>
    %308 = vector.extract_strided_slice %305 {offsets = [0, 64], sizes = [8, 32], strides = [1, 1]} : vector<8x128xf32> to vector<8x32xf32>
    %309 = vector.extract_strided_slice %305 {offsets = [0, 96], sizes = [8, 32], strides = [1, 1]} : vector<8x128xf32> to vector<8x32xf32>
    %310 = arith.mulf %307, %288 : vector<8x32xf32>
    %311 = arith.mulf %306, %308 : vector<8x32xf32>
    %312 = arith.addf %310, %311 : vector<8x32xf32>
    %313 = math.tanh %312 : vector<8x32xf32>
    %314 = arith.mulf %309, %313 : vector<8x32xf32>
    %315 = arith.index_cast %c2_i32_122 : i32 to index
    %c0_127 = arith.constant 0 : index
    %c0_128 = arith.constant 0 : index
    %316 = vector.load %arg13[%315, %c0_127, %c0_128] : memref<8x8x32xf32, #tpu.memory_space<vmem>>, vector<1x8x32xf32>
    %317 = vector.shape_cast %316 : vector<1x8x32xf32> to vector<8x32xf32>
    %318 = vector.shape_cast %314 : vector<8x32xf32> to vector<1x8x32xf32>
    tpu.vector_store %arg13[%315, %c0_127, %c0_128], %318 {strides = array<i32>} : memref<8x8x32xf32, #tpu.memory_space<vmem>>, vector<1x8x32xf32>,
    %c3_i32_129 = arith.constant 3 : i32
    %cst_130 = arith.constant dense<0.000000e+00> : vector<8x128xf32>
    %319 = tpu.matmul %314, %7, %cst_130 {dimension_numbers = #tpu.dot_dimension_numbers<[1], [0], [0], [1], [0, 0, 1, 1], [], []>} : vector<8x32xf32>, vector<32x128xf32>, vector<8x128xf32> -> vector<8x128xf32>
    %320 = arith.addf %246, %319 : vector<8x128xf32>
    %cst_131 = arith.constant 5.000000e-01 : f32
    %321 = vector.broadcast %cst_131 : f32 to vector<8x128xf32>
    %322 = arith.mulf %321, %320 : vector<8x128xf32>
    %323 = arith.select %5, %320, %322 : vector<8x128xi1>, vector<8x128xf32>
    %324 = math.tanh %323 : vector<8x128xf32>
    %cst_132 = arith.constant 5.000000e-01 : f32
    %325 = vector.broadcast %cst_132 : f32 to vector<8x128xf32>
    %326 = arith.mulf %325, %324 : vector<8x128xf32>
    %cst_133 = arith.constant 5.000000e-01 : f32
    %327 = vector.broadcast %cst_133 : f32 to vector<8x128xf32>
    %328 = arith.addf %326, %327 : vector<8x128xf32>
    %329 = arith.select %5, %324, %328 : vector<8x128xi1>, vector<8x128xf32>
    %330 = vector.extract_strided_slice %329 {offsets = [0, 0], sizes = [8, 32], strides = [1, 1]} : vector<8x128xf32> to vector<8x32xf32>
    %331 = vector.extract_strided_slice %329 {offsets = [0, 32], sizes = [8, 32], strides = [1, 1]} : vector<8x128xf32> to vector<8x32xf32>
    %332 = vector.extract_strided_slice %329 {offsets = [0, 64], sizes = [8, 32], strides = [1, 1]} : vector<8x128xf32> to vector<8x32xf32>
    %333 = vector.extract_strided_slice %329 {offsets = [0, 96], sizes = [8, 32], strides = [1, 1]} : vector<8x128xf32> to vector<8x32xf32>
    %334 = arith.mulf %331, %312 : vector<8x32xf32>
    %335 = arith.mulf %330, %332 : vector<8x32xf32>
    %336 = arith.addf %334, %335 : vector<8x32xf32>
    %337 = math.tanh %336 : vector<8x32xf32>
    %338 = arith.mulf %333, %337 : vector<8x32xf32>
    %339 = arith.index_cast %c3_i32_129 : i32 to index
    %c0_134 = arith.constant 0 : index
    %c0_135 = arith.constant 0 : index
    %340 = vector.load %arg13[%339, %c0_134, %c0_135] : memref<8x8x32xf32, #tpu.memory_space<vmem>>, vector<1x8x32xf32>
    %341 = vector.shape_cast %340 : vector<1x8x32xf32> to vector<8x32xf32>
    %342 = vector.shape_cast %338 : vector<8x32xf32> to vector<1x8x32xf32>
    tpu.vector_store %arg13[%339, %c0_134, %c0_135], %342 {strides = array<i32>} : memref<8x8x32xf32, #tpu.memory_space<vmem>>, vector<1x8x32xf32>,
    %c4_i32_136 = arith.constant 4 : i32
    %cst_137 = arith.constant dense<0.000000e+00> : vector<8x128xf32>
    %343 = tpu.matmul %338, %7, %cst_137 {dimension_numbers = #tpu.dot_dimension_numbers<[1], [0], [0], [1], [0, 0, 1, 1], [], []>} : vector<8x32xf32>, vector<32x128xf32>, vector<8x128xf32> -> vector<8x128xf32>
    %344 = arith.addf %246, %343 : vector<8x128xf32>
    %cst_138 = arith.constant 5.000000e-01 : f32
    %345 = vector.broadcast %cst_138 : f32 to vector<8x128xf32>
    %346 = arith.mulf %345, %344 : vector<8x128xf32>
    %347 = arith.select %5, %344, %346 : vector<8x128xi1>, vector<8x128xf32>
    %348 = math.tanh %347 : vector<8x128xf32>
    %cst_139 = arith.constant 5.000000e-01 : f32
    %349 = vector.broadcast %cst_139 : f32 to vector<8x128xf32>
    %350 = arith.mulf %349, %348 : vector<8x128xf32>
    %cst_140 = arith.constant 5.000000e-01 : f32
    %351 = vector.broadcast %cst_140 : f32 to vector<8x128xf32>
    %352 = arith.addf %350, %351 : vector<8x128xf32>
    %353 = arith.select %5, %348, %352 : vector<8x128xi1>, vector<8x128xf32>
    %354 = vector.extract_strided_slice %353 {offsets = [0, 0], sizes = [8, 32], strides = [1, 1]} : vector<8x128xf32> to vector<8x32xf32>
    %355 = vector.extract_strided_slice %353 {offsets = [0, 32], sizes = [8, 32], strides = [1, 1]} : vector<8x128xf32> to vector<8x32xf32>
    %356 = vector.extract_strided_slice %353 {offsets = [0, 64], sizes = [8, 32], strides = [1, 1]} : vector<8x128xf32> to vector<8x32xf32>
    %357 = vector.extract_strided_slice %353 {offsets = [0, 96], sizes = [8, 32], strides = [1, 1]} : vector<8x128xf32> to vector<8x32xf32>
    %358 = arith.mulf %355, %336 : vector<8x32xf32>
    %359 = arith.mulf %354, %356 : vector<8x32xf32>
    %360 = arith.addf %358, %359 : vector<8x32xf32>
    %361 = math.tanh %360 : vector<8x32xf32>
    %362 = arith.mulf %357, %361 : vector<8x32xf32>
    %363 = arith.index_cast %c4_i32_136 : i32 to index
    %c0_141 = arith.constant 0 : index
    %c0_142 = arith.constant 0 : index
    %364 = vector.load %arg13[%363, %c0_141, %c0_142] : memref<8x8x32xf32, #tpu.memory_space<vmem>>, vector<1x8x32xf32>
    %365 = vector.shape_cast %364 : vector<1x8x32xf32> to vector<8x32xf32>
    %366 = vector.shape_cast %362 : vector<8x32xf32> to vector<1x8x32xf32>
    tpu.vector_store %arg13[%363, %c0_141, %c0_142], %366 {strides = array<i32>} : memref<8x8x32xf32, #tpu.memory_space<vmem>>, vector<1x8x32xf32>,
    %c5_i32_143 = arith.constant 5 : i32
    %cst_144 = arith.constant dense<0.000000e+00> : vector<8x128xf32>
    %367 = tpu.matmul %362, %7, %cst_144 {dimension_numbers = #tpu.dot_dimension_numbers<[1], [0], [0], [1], [0, 0, 1, 1], [], []>} : vector<8x32xf32>, vector<32x128xf32>, vector<8x128xf32> -> vector<8x128xf32>
    %368 = arith.addf %246, %367 : vector<8x128xf32>
    %cst_145 = arith.constant 5.000000e-01 : f32
    %369 = vector.broadcast %cst_145 : f32 to vector<8x128xf32>
    %370 = arith.mulf %369, %368 : vector<8x128xf32>
    %371 = arith.select %5, %368, %370 : vector<8x128xi1>, vector<8x128xf32>
    %372 = math.tanh %371 : vector<8x128xf32>
    %cst_146 = arith.constant 5.000000e-01 : f32
    %373 = vector.broadcast %cst_146 : f32 to vector<8x128xf32>
    %374 = arith.mulf %373, %372 : vector<8x128xf32>
    %cst_147 = arith.constant 5.000000e-01 : f32
    %375 = vector.broadcast %cst_147 : f32 to vector<8x128xf32>
    %376 = arith.addf %374, %375 : vector<8x128xf32>
    %377 = arith.select %5, %372, %376 : vector<8x128xi1>, vector<8x128xf32>
    %378 = vector.extract_strided_slice %377 {offsets = [0, 0], sizes = [8, 32], strides = [1, 1]} : vector<8x128xf32> to vector<8x32xf32>
    %379 = vector.extract_strided_slice %377 {offsets = [0, 32], sizes = [8, 32], strides = [1, 1]} : vector<8x128xf32> to vector<8x32xf32>
    %380 = vector.extract_strided_slice %377 {offsets = [0, 64], sizes = [8, 32], strides = [1, 1]} : vector<8x128xf32> to vector<8x32xf32>
    %381 = vector.extract_strided_slice %377 {offsets = [0, 96], sizes = [8, 32], strides = [1, 1]} : vector<8x128xf32> to vector<8x32xf32>
    %382 = arith.mulf %379, %360 : vector<8x32xf32>
    %383 = arith.mulf %378, %380 : vector<8x32xf32>
    %384 = arith.addf %382, %383 : vector<8x32xf32>
    %385 = math.tanh %384 : vector<8x32xf32>
    %386 = arith.mulf %381, %385 : vector<8x32xf32>
    %387 = arith.index_cast %c5_i32_143 : i32 to index
    %c0_148 = arith.constant 0 : index
    %c0_149 = arith.constant 0 : index
    %388 = vector.load %arg13[%387, %c0_148, %c0_149] : memref<8x8x32xf32, #tpu.memory_space<vmem>>, vector<1x8x32xf32>
    %389 = vector.shape_cast %388 : vector<1x8x32xf32> to vector<8x32xf32>
    %390 = vector.shape_cast %386 : vector<8x32xf32> to vector<1x8x32xf32>
    tpu.vector_store %arg13[%387, %c0_148, %c0_149], %390 {strides = array<i32>} : memref<8x8x32xf32, #tpu.memory_space<vmem>>, vector<1x8x32xf32>,
    %c6_i32_150 = arith.constant 6 : i32
    %cst_151 = arith.constant dense<0.000000e+00> : vector<8x128xf32>
    %391 = tpu.matmul %386, %7, %cst_151 {dimension_numbers = #tpu.dot_dimension_numbers<[1], [0], [0], [1], [0, 0, 1, 1], [], []>} : vector<8x32xf32>, vector<32x128xf32>, vector<8x128xf32> -> vector<8x128xf32>
    %392 = arith.addf %246, %391 : vector<8x128xf32>
    %cst_152 = arith.constant 5.000000e-01 : f32
    %393 = vector.broadcast %cst_152 : f32 to vector<8x128xf32>
    %394 = arith.mulf %393, %392 : vector<8x128xf32>
    %395 = arith.select %5, %392, %394 : vector<8x128xi1>, vector<8x128xf32>
    %396 = math.tanh %395 : vector<8x128xf32>
    %cst_153 = arith.constant 5.000000e-01 : f32
    %397 = vector.broadcast %cst_153 : f32 to vector<8x128xf32>
    %398 = arith.mulf %397, %396 : vector<8x128xf32>
    %cst_154 = arith.constant 5.000000e-01 : f32
    %399 = vector.broadcast %cst_154 : f32 to vector<8x128xf32>
    %400 = arith.addf %398, %399 : vector<8x128xf32>
    %401 = arith.select %5, %396, %400 : vector<8x128xi1>, vector<8x128xf32>
    %402 = vector.extract_strided_slice %401 {offsets = [0, 0], sizes = [8, 32], strides = [1, 1]} : vector<8x128xf32> to vector<8x32xf32>
    %403 = vector.extract_strided_slice %401 {offsets = [0, 32], sizes = [8, 32], strides = [1, 1]} : vector<8x128xf32> to vector<8x32xf32>
    %404 = vector.extract_strided_slice %401 {offsets = [0, 64], sizes = [8, 32], strides = [1, 1]} : vector<8x128xf32> to vector<8x32xf32>
    %405 = vector.extract_strided_slice %401 {offsets = [0, 96], sizes = [8, 32], strides = [1, 1]} : vector<8x128xf32> to vector<8x32xf32>
    %406 = arith.mulf %403, %384 : vector<8x32xf32>
    %407 = arith.mulf %402, %404 : vector<8x32xf32>
    %408 = arith.addf %406, %407 : vector<8x32xf32>
    %409 = math.tanh %408 : vector<8x32xf32>
    %410 = arith.mulf %405, %409 : vector<8x32xf32>
    %411 = arith.index_cast %c6_i32_150 : i32 to index
    %c0_155 = arith.constant 0 : index
    %c0_156 = arith.constant 0 : index
    %412 = vector.load %arg13[%411, %c0_155, %c0_156] : memref<8x8x32xf32, #tpu.memory_space<vmem>>, vector<1x8x32xf32>
    %413 = vector.shape_cast %412 : vector<1x8x32xf32> to vector<8x32xf32>
    %414 = vector.shape_cast %410 : vector<8x32xf32> to vector<1x8x32xf32>
    tpu.vector_store %arg13[%411, %c0_155, %c0_156], %414 {strides = array<i32>} : memref<8x8x32xf32, #tpu.memory_space<vmem>>, vector<1x8x32xf32>,
    %c7_i32_157 = arith.constant 7 : i32
    %cst_158 = arith.constant dense<0.000000e+00> : vector<8x128xf32>
    %415 = tpu.matmul %410, %7, %cst_158 {dimension_numbers = #tpu.dot_dimension_numbers<[1], [0], [0], [1], [0, 0, 1, 1], [], []>} : vector<8x32xf32>, vector<32x128xf32>, vector<8x128xf32> -> vector<8x128xf32>
    %416 = arith.addf %246, %415 : vector<8x128xf32>
    %cst_159 = arith.constant 5.000000e-01 : f32
    %417 = vector.broadcast %cst_159 : f32 to vector<8x128xf32>
    %418 = arith.mulf %417, %416 : vector<8x128xf32>
    %419 = arith.select %5, %416, %418 : vector<8x128xi1>, vector<8x128xf32>
    %420 = math.tanh %419 : vector<8x128xf32>
    %cst_160 = arith.constant 5.000000e-01 : f32
    %421 = vector.broadcast %cst_160 : f32 to vector<8x128xf32>
    %422 = arith.mulf %421, %420 : vector<8x128xf32>
    %cst_161 = arith.constant 5.000000e-01 : f32
    %423 = vector.broadcast %cst_161 : f32 to vector<8x128xf32>
    %424 = arith.addf %422, %423 : vector<8x128xf32>
    %425 = arith.select %5, %420, %424 : vector<8x128xi1>, vector<8x128xf32>
    %426 = vector.extract_strided_slice %425 {offsets = [0, 0], sizes = [8, 32], strides = [1, 1]} : vector<8x128xf32> to vector<8x32xf32>
    %427 = vector.extract_strided_slice %425 {offsets = [0, 32], sizes = [8, 32], strides = [1, 1]} : vector<8x128xf32> to vector<8x32xf32>
    %428 = vector.extract_strided_slice %425 {offsets = [0, 64], sizes = [8, 32], strides = [1, 1]} : vector<8x128xf32> to vector<8x32xf32>
    %429 = vector.extract_strided_slice %425 {offsets = [0, 96], sizes = [8, 32], strides = [1, 1]} : vector<8x128xf32> to vector<8x32xf32>
    %430 = arith.mulf %427, %408 : vector<8x32xf32>
    %431 = arith.mulf %426, %428 : vector<8x32xf32>
    %432 = arith.addf %430, %431 : vector<8x32xf32>
    %433 = math.tanh %432 : vector<8x32xf32>
    %434 = arith.mulf %429, %433 : vector<8x32xf32>
    %435 = arith.index_cast %c7_i32_157 : i32 to index
    %c0_162 = arith.constant 0 : index
    %c0_163 = arith.constant 0 : index
    %436 = vector.load %arg13[%435, %c0_162, %c0_163] : memref<8x8x32xf32, #tpu.memory_space<vmem>>, vector<1x8x32xf32>
    %437 = vector.shape_cast %436 : vector<1x8x32xf32> to vector<8x32xf32>
    %438 = vector.shape_cast %434 : vector<8x32xf32> to vector<1x8x32xf32>
    tpu.vector_store %arg13[%435, %c0_162, %c0_163], %438 {strides = array<i32>} : memref<8x8x32xf32, #tpu.memory_space<vmem>>, vector<1x8x32xf32>,
    %c8_i32_164 = arith.constant 8 : i32
    %c0_165 = arith.constant 0 : index
    %c0_166 = arith.constant 0 : index
    %c0_167 = arith.constant 0 : index
    %439 = vector.load %arg13[%c0_165, %c0_166, %c0_167] : memref<8x8x32xf32, #tpu.memory_space<vmem>>, vector<8x8x32xf32>
    %440 = vector.shape_cast %439 : vector<8x8x32xf32> to vector<64x32xf32>
    %c0_168 = arith.constant 0 : index
    %c0_169 = arith.constant 0 : index
    %441 = vector.load %arg8[%c0_168, %c0_169] : memref<32x16xf32, #tpu.memory_space<vmem>>, vector<32x16xf32>
    %cst_170 = arith.constant dense<0.000000e+00> : vector<64x16xf32>
    %442 = tpu.matmul %440, %441, %cst_170 {dimension_numbers = #tpu.dot_dimension_numbers<[1], [0], [0], [1], [0, 0, 1, 1], [], []>} : vector<64x32xf32>, vector<32x16xf32>, vector<64x16xf32> -> vector<64x16xf32>
    %c0_171 = arith.constant 0 : index
    %c0_172 = arith.constant 0 : index
    %443 = vector.load %arg9[%c0_171, %c0_172] : memref<1x16xf32, #tpu.memory_space<vmem>>, vector<1x16xf32>
    %444 = vector.broadcast %443 : vector<1x16xf32> to vector<64x16xf32>
    %445 = arith.addf %442, %444 : vector<64x16xf32>
    %446 = vector.shape_cast %445 : vector<64x16xf32> to vector<8x8x16xf32>
    %447 = vector.extract_strided_slice %446 {offsets = [0, 0, 0], sizes = [1, 8, 16], strides = [1, 1, 1]} : vector<8x8x16xf32> to vector<1x8x16xf32>
    %448 = vector.shape_cast %447 : vector<1x8x16xf32> to vector<8x16xf32>
    %c0_173 = arith.constant 0 : index
    %c0_174 = arith.constant 0 : index
    %449 = vector.load %arg10[%c0_173, %c0_174] : memref<8x128xf32, #tpu.memory_space<vmem>>, vector<8x16xf32>
    tpu.vector_store %arg10[%c0_173, %c0_174], %448 {strides = array<i32>} : memref<8x128xf32, #tpu.memory_space<vmem>>, vector<8x16xf32>,
    %450 = vector.extract_strided_slice %446 {offsets = [1, 0, 0], sizes = [1, 8, 16], strides = [1, 1, 1]} : vector<8x8x16xf32> to vector<1x8x16xf32>
    %451 = vector.shape_cast %450 : vector<1x8x16xf32> to vector<8x16xf32>
    %c0_175 = arith.constant 0 : index
    %c16 = arith.constant 16 : index
    %452 = vector.load %arg10[%c0_175, %c16] : memref<8x128xf32, #tpu.memory_space<vmem>>, vector<8x16xf32>
    tpu.vector_store %arg10[%c0_175, %c16], %451 {strides = array<i32>} : memref<8x128xf32, #tpu.memory_space<vmem>>, vector<8x16xf32>,
    %453 = vector.extract_strided_slice %446 {offsets = [2, 0, 0], sizes = [1, 8, 16], strides = [1, 1, 1]} : vector<8x8x16xf32> to vector<1x8x16xf32>
    %454 = vector.shape_cast %453 : vector<1x8x16xf32> to vector<8x16xf32>
    %c0_176 = arith.constant 0 : index
    %c32 = arith.constant 32 : index
    %455 = vector.load %arg10[%c0_176, %c32] : memref<8x128xf32, #tpu.memory_space<vmem>>, vector<8x16xf32>
    tpu.vector_store %arg10[%c0_176, %c32], %454 {strides = array<i32>} : memref<8x128xf32, #tpu.memory_space<vmem>>, vector<8x16xf32>,
    %456 = vector.extract_strided_slice %446 {offsets = [3, 0, 0], sizes = [1, 8, 16], strides = [1, 1, 1]} : vector<8x8x16xf32> to vector<1x8x16xf32>
    %457 = vector.shape_cast %456 : vector<1x8x16xf32> to vector<8x16xf32>
    %c0_177 = arith.constant 0 : index
    %c48 = arith.constant 48 : index
    %458 = vector.load %arg10[%c0_177, %c48] : memref<8x128xf32, #tpu.memory_space<vmem>>, vector<8x16xf32>
    tpu.vector_store %arg10[%c0_177, %c48], %457 {strides = array<i32>} : memref<8x128xf32, #tpu.memory_space<vmem>>, vector<8x16xf32>,
    %459 = vector.extract_strided_slice %446 {offsets = [4, 0, 0], sizes = [1, 8, 16], strides = [1, 1, 1]} : vector<8x8x16xf32> to vector<1x8x16xf32>
    %460 = vector.shape_cast %459 : vector<1x8x16xf32> to vector<8x16xf32>
    %c0_178 = arith.constant 0 : index
    %c64 = arith.constant 64 : index
    %461 = vector.load %arg10[%c0_178, %c64] : memref<8x128xf32, #tpu.memory_space<vmem>>, vector<8x16xf32>
    tpu.vector_store %arg10[%c0_178, %c64], %460 {strides = array<i32>} : memref<8x128xf32, #tpu.memory_space<vmem>>, vector<8x16xf32>,
    %462 = vector.extract_strided_slice %446 {offsets = [5, 0, 0], sizes = [1, 8, 16], strides = [1, 1, 1]} : vector<8x8x16xf32> to vector<1x8x16xf32>
    %463 = vector.shape_cast %462 : vector<1x8x16xf32> to vector<8x16xf32>
    %c0_179 = arith.constant 0 : index
    %c80 = arith.constant 80 : index
    %464 = vector.load %arg10[%c0_179, %c80] : memref<8x128xf32, #tpu.memory_space<vmem>>, vector<8x16xf32>
    tpu.vector_store %arg10[%c0_179, %c80], %463 {strides = array<i32>} : memref<8x128xf32, #tpu.memory_space<vmem>>, vector<8x16xf32>,
    %465 = vector.extract_strided_slice %446 {offsets = [6, 0, 0], sizes = [1, 8, 16], strides = [1, 1, 1]} : vector<8x8x16xf32> to vector<1x8x16xf32>
    %466 = vector.shape_cast %465 : vector<1x8x16xf32> to vector<8x16xf32>
    %c0_180 = arith.constant 0 : index
    %c96 = arith.constant 96 : index
    %467 = vector.load %arg10[%c0_180, %c96] : memref<8x128xf32, #tpu.memory_space<vmem>>, vector<8x16xf32>
    tpu.vector_store %arg10[%c0_180, %c96], %466 {strides = array<i32>} : memref<8x128xf32, #tpu.memory_space<vmem>>, vector<8x16xf32>,
    %468 = vector.extract_strided_slice %446 {offsets = [7, 0, 0], sizes = [1, 8, 16], strides = [1, 1, 1]} : vector<8x8x16xf32> to vector<1x8x16xf32>
    %469 = vector.shape_cast %468 : vector<1x8x16xf32> to vector<8x16xf32>
    %c0_181 = arith.constant 0 : index
    %c112 = arith.constant 112 : index
    %470 = vector.load %arg10[%c0_181, %c112] : memref<8x128xf32, #tpu.memory_space<vmem>>, vector<8x16xf32>
    tpu.vector_store %arg10[%c0_181, %c112], %469 {strides = array<i32>} : memref<8x128xf32, #tpu.memory_space<vmem>>, vector<8x16xf32>,
    return
  }
  func.func @transform_0(%arg0: i32) -> (i32, i32, i32) {
    %c0_i32 = arith.constant 0 : i32
    %c0_i32_0 = arith.constant 0 : i32
    %c0_i32_1 = arith.constant 0 : i32
    return %arg0, %c0_i32, %c0_i32_0 : i32, i32, i32
  }
  func.func @transform_1(%arg0: i32) -> (i32, i32) {
    %c0_i32 = arith.constant 0 : i32
    %c0_i32_0 = arith.constant 0 : i32
    %c0_i32_1 = arith.constant 0 : i32
    return %c0_i32, %c0_i32_0 : i32, i32
  }
  func.func @transform_2(%arg0: i32) -> (i32, i32) {
    %c0_i32 = arith.constant 0 : i32
    %c0_i32_0 = arith.constant 0 : i32
    %c0_i32_1 = arith.constant 0 : i32
    return %c0_i32, %c0_i32_0 : i32, i32
  }
  func.func @transform_3(%arg0: i32) -> (i32, i32) {
    %c0_i32 = arith.constant 0 : i32
    %c0_i32_0 = arith.constant 0 : i32
    %c0_i32_1 = arith.constant 0 : i32
    return %c0_i32, %c0_i32_0 : i32, i32
  }
  func.func @transform_4(%arg0: i32) -> (i32, i32) {
    %c0_i32 = arith.constant 0 : i32
    %c0_i32_0 = arith.constant 0 : i32
    %c0_i32_1 = arith.constant 0 : i32
    return %c0_i32, %c0_i32_0 : i32, i32
  }
  func.func @transform_5(%arg0: i32) -> (i32, i32) {
    %c0_i32 = arith.constant 0 : i32
    %c0_i32_0 = arith.constant 0 : i32
    %c0_i32_1 = arith.constant 0 : i32
    return %c0_i32, %c0_i32_0 : i32, i32
  }
  func.func @transform_6(%arg0: i32) -> (i32, i32) {
    %c0_i32 = arith.constant 0 : i32
    %c0_i32_0 = arith.constant 0 : i32
    %c0_i32_1 = arith.constant 0 : i32
    return %c0_i32, %c0_i32_0 : i32, i32
  }
  func.func @transform_7(%arg0: i32) -> (i32, i32) {
    %c0_i32 = arith.constant 0 : i32
    %c0_i32_0 = arith.constant 0 : i32
    %c0_i32_1 = arith.constant 0 : i32
    return %c0_i32, %c0_i32_0 : i32, i32
  }
  func.func @transform_8(%arg0: i32) -> (i32, i32) {
    %c0_i32 = arith.constant 0 : i32
    %c0_i32_0 = arith.constant 0 : i32
    %c0_i32_1 = arith.constant 0 : i32
    return %c0_i32, %c0_i32_0 : i32, i32
  }
  func.func @transform_9(%arg0: i32) -> (i32, i32) {
    %c0_i32 = arith.constant 0 : i32
    %c0_i32_0 = arith.constant 0 : i32
    return %arg0, %c0_i32 : i32, i32
  }
}

module attributes {stable_mosaic.version = 11 : i64} {
  func.func @lstm_ae_kernel(%arg0: i32, %arg1: memref<8x8x16xf32, #tpu.memory_space<vmem>>, %arg2: memref<16x128xf32, #tpu.memory_space<vmem>>, %arg3: memref<32x128xf32, #tpu.memory_space<vmem>>, %arg4: memref<1x128xf32, #tpu.memory_space<vmem>>, %arg5: memref<32x128xf32, #tpu.memory_space<vmem>>, %arg6: memref<32x128xf32, #tpu.memory_space<vmem>>, %arg7: memref<1x128xf32, #tpu.memory_space<vmem>>, %arg8: memref<32x16xf32, #tpu.memory_space<vmem>>, %arg9: memref<1x16xf32, #tpu.memory_space<vmem>>, %arg10: memref<8x128xf32, #tpu.memory_space<vmem>>, %arg11: memref<8x8x16xf32, #tpu.memory_space<vmem>>, %arg12: memref<8x8x128xf32, #tpu.memory_space<vmem>>, %arg13: memref<8x8x32xf32, #tpu.memory_space<vmem>>) attributes {dimension_semantics = [#tpu.dimension_semantics<parallel>], iteration_bounds = array<i64: 1>, scalar_prefetch = 0 : i64, scratch_operands = 3 : i64, tpu.core_type = #tpu.core_type<tc>, window_params = [{transform_indices = @transform_0, window_bounds = array<i64: 8, 8, 16>}, {pipeline_mode = #tpu.pipeline_mode<synchronous>, transform_indices = @transform_1, window_bounds = array<i64: 16, 128>}, {pipeline_mode = #tpu.pipeline_mode<synchronous>, transform_indices = @transform_2, window_bounds = array<i64: 32, 128>}, {pipeline_mode = #tpu.pipeline_mode<synchronous>, transform_indices = @transform_3, window_bounds = array<i64: 1, 128>}, {pipeline_mode = #tpu.pipeline_mode<synchronous>, transform_indices = @transform_4, window_bounds = array<i64: 32, 128>}, {pipeline_mode = #tpu.pipeline_mode<synchronous>, transform_indices = @transform_5, window_bounds = array<i64: 32, 128>}, {pipeline_mode = #tpu.pipeline_mode<synchronous>, transform_indices = @transform_6, window_bounds = array<i64: 1, 128>}, {pipeline_mode = #tpu.pipeline_mode<synchronous>, transform_indices = @transform_7, window_bounds = array<i64: 32, 16>}, {pipeline_mode = #tpu.pipeline_mode<synchronous>, transform_indices = @transform_8, window_bounds = array<i64: 1, 16>}, {transform_indices = @transform_9, window_bounds = array<i64: 8, 128>}]} {
    %0 = tpu.iota {dimensions = array<i32: 1>} : vector<8x128xi32>
    %c64_i32 = arith.constant 64 : i32
    %1 = vector.broadcast %c64_i32 : i32 to vector<8x128xi32>
    %2 = arith.cmpi sge, %0, %1 : vector<8x128xi32>
    %c96_i32 = arith.constant 96 : i32
    %3 = vector.broadcast %c96_i32 : i32 to vector<8x128xi32>
    %4 = arith.cmpi slt, %0, %3 : vector<8x128xi32>
    %5 = arith.andi %2, %4 : vector<8x128xi1>
    %c0 = arith.constant 0 : index
    %c0_0 = arith.constant 0 : index
    %6 = vector.load %arg3[%c0, %c0_0] : memref<32x128xf32, #tpu.memory_space<vmem>>, vector<32x128xf32>
    %c0_1 = arith.constant 0 : index
    %c0_2 = arith.constant 0 : index
    %7 = vector.load %arg6[%c0_1, %c0_2] : memref<32x128xf32, #tpu.memory_space<vmem>>, vector<32x128xf32>
    %c0_3 = arith.constant 0 : index
    %c0_4 = arith.constant 0 : index
    %c0_5 = arith.constant 0 : index
    %8 = vector.load %arg1[%c0_3, %c0_4, %c0_5] : memref<8x8x16xf32, #tpu.memory_space<vmem>>, vector<8x1x16xf32>
    %9 = vector.shape_cast %8 : vector<8x1x16xf32> to vector<8x16xf32>
    %c0_6 = arith.constant 0 : index
    %c0_7 = arith.constant 0 : index
    %c0_8 = arith.constant 0 : index
    %10 = vector.load %arg11[%c0_6, %c0_7, %c0_8] : memref<8x8x16xf32, #tpu.memory_space<vmem>>, vector<1x8x16xf32>
    %11 = vector.shape_cast %10 : vector<1x8x16xf32> to vector<8x16xf32>
    %12 = vector.shape_cast %9 : vector<8x16xf32> to vector<1x8x16xf32>
    tpu.vector_store %arg11[%c0_6, %c0_7, %c0_8], %12 {strides = array<i32>} : memref<8x8x16xf32, #tpu.memory_space<vmem>>, vector<1x8x16xf32>,
    %c0_9 = arith.constant 0 : index
    %c1 = arith.constant 1 : index
    %c0_10 = arith.constant 0 : index
    %13 = vector.load %arg1[%c0_9, %c1, %c0_10] : memref<8x8x16xf32, #tpu.memory_space<vmem>>, vector<8x1x16xf32>
    %14 = vector.shape_cast %13 : vector<8x1x16xf32> to vector<8x16xf32>
    %c1_11 = arith.constant 1 : index
    %c0_12 = arith.constant 0 : index
    %c0_13 = arith.constant 0 : index
    %15 = vector.load %arg11[%c1_11, %c0_12, %c0_13] : memref<8x8x16xf32, #tpu.memory_space<vmem>>, vector<1x8x16xf32>
    %16 = vector.shape_cast %15 : vector<1x8x16xf32> to vector<8x16xf32>
    %17 = vector.shape_cast %14 : vector<8x16xf32> to vector<1x8x16xf32>
    tpu.vector_store %arg11[%c1_11, %c0_12, %c0_13], %17 {strides = array<i32>} : memref<8x8x16xf32, #tpu.memory_space<vmem>>, vector<1x8x16xf32>,
    %c0_14 = arith.constant 0 : index
    %c2 = arith.constant 2 : index
    %c0_15 = arith.constant 0 : index
    %18 = vector.load %arg1[%c0_14, %c2, %c0_15] : memref<8x8x16xf32, #tpu.memory_space<vmem>>, vector<8x1x16xf32>
    %19 = vector.shape_cast %18 : vector<8x1x16xf32> to vector<8x16xf32>
    %c2_16 = arith.constant 2 : index
    %c0_17 = arith.constant 0 : index
    %c0_18 = arith.constant 0 : index
    %20 = vector.load %arg11[%c2_16, %c0_17, %c0_18] : memref<8x8x16xf32, #tpu.memory_space<vmem>>, vector<1x8x16xf32>
    %21 = vector.shape_cast %20 : vector<1x8x16xf32> to vector<8x16xf32>
    %22 = vector.shape_cast %19 : vector<8x16xf32> to vector<1x8x16xf32>
    tpu.vector_store %arg11[%c2_16, %c0_17, %c0_18], %22 {strides = array<i32>} : memref<8x8x16xf32, #tpu.memory_space<vmem>>, vector<1x8x16xf32>,
    %c0_19 = arith.constant 0 : index
    %c3 = arith.constant 3 : index
    %c0_20 = arith.constant 0 : index
    %23 = vector.load %arg1[%c0_19, %c3, %c0_20] : memref<8x8x16xf32, #tpu.memory_space<vmem>>, vector<8x1x16xf32>
    %24 = vector.shape_cast %23 : vector<8x1x16xf32> to vector<8x16xf32>
    %c3_21 = arith.constant 3 : index
    %c0_22 = arith.constant 0 : index
    %c0_23 = arith.constant 0 : index
    %25 = vector.load %arg11[%c3_21, %c0_22, %c0_23] : memref<8x8x16xf32, #tpu.memory_space<vmem>>, vector<1x8x16xf32>
    %26 = vector.shape_cast %25 : vector<1x8x16xf32> to vector<8x16xf32>
    %27 = vector.shape_cast %24 : vector<8x16xf32> to vector<1x8x16xf32>
    tpu.vector_store %arg11[%c3_21, %c0_22, %c0_23], %27 {strides = array<i32>} : memref<8x8x16xf32, #tpu.memory_space<vmem>>, vector<1x8x16xf32>,
    %c0_24 = arith.constant 0 : index
    %c4 = arith.constant 4 : index
    %c0_25 = arith.constant 0 : index
    %28 = vector.load %arg1[%c0_24, %c4, %c0_25] : memref<8x8x16xf32, #tpu.memory_space<vmem>>, vector<8x1x16xf32>
    %29 = vector.shape_cast %28 : vector<8x1x16xf32> to vector<8x16xf32>
    %c4_26 = arith.constant 4 : index
    %c0_27 = arith.constant 0 : index
    %c0_28 = arith.constant 0 : index
    %30 = vector.load %arg11[%c4_26, %c0_27, %c0_28] : memref<8x8x16xf32, #tpu.memory_space<vmem>>, vector<1x8x16xf32>
    %31 = vector.shape_cast %30 : vector<1x8x16xf32> to vector<8x16xf32>
    %32 = vector.shape_cast %29 : vector<8x16xf32> to vector<1x8x16xf32>
    tpu.vector_store %arg11[%c4_26, %c0_27, %c0_28], %32 {strides = array<i32>} : memref<8x8x16xf32, #tpu.memory_space<vmem>>, vector<1x8x16xf32>,
    %c0_29 = arith.constant 0 : index
    %c5 = arith.constant 5 : index
    %c0_30 = arith.constant 0 : index
    %33 = vector.load %arg1[%c0_29, %c5, %c0_30] : memref<8x8x16xf32, #tpu.memory_space<vmem>>, vector<8x1x16xf32>
    %34 = vector.shape_cast %33 : vector<8x1x16xf32> to vector<8x16xf32>
    %c5_31 = arith.constant 5 : index
    %c0_32 = arith.constant 0 : index
    %c0_33 = arith.constant 0 : index
    %35 = vector.load %arg11[%c5_31, %c0_32, %c0_33] : memref<8x8x16xf32, #tpu.memory_space<vmem>>, vector<1x8x16xf32>
    %36 = vector.shape_cast %35 : vector<1x8x16xf32> to vector<8x16xf32>
    %37 = vector.shape_cast %34 : vector<8x16xf32> to vector<1x8x16xf32>
    tpu.vector_store %arg11[%c5_31, %c0_32, %c0_33], %37 {strides = array<i32>} : memref<8x8x16xf32, #tpu.memory_space<vmem>>, vector<1x8x16xf32>,
    %c0_34 = arith.constant 0 : index
    %c6 = arith.constant 6 : index
    %c0_35 = arith.constant 0 : index
    %38 = vector.load %arg1[%c0_34, %c6, %c0_35] : memref<8x8x16xf32, #tpu.memory_space<vmem>>, vector<8x1x16xf32>
    %39 = vector.shape_cast %38 : vector<8x1x16xf32> to vector<8x16xf32>
    %c6_36 = arith.constant 6 : index
    %c0_37 = arith.constant 0 : index
    %c0_38 = arith.constant 0 : index
    %40 = vector.load %arg11[%c6_36, %c0_37, %c0_38] : memref<8x8x16xf32, #tpu.memory_space<vmem>>, vector<1x8x16xf32>
    %41 = vector.shape_cast %40 : vector<1x8x16xf32> to vector<8x16xf32>
    %42 = vector.shape_cast %39 : vector<8x16xf32> to vector<1x8x16xf32>
    tpu.vector_store %arg11[%c6_36, %c0_37, %c0_38], %42 {strides = array<i32>} : memref<8x8x16xf32, #tpu.memory_space<vmem>>, vector<1x8x16xf32>,
    %c0_39 = arith.constant 0 : index
    %c7 = arith.constant 7 : index
    %c0_40 = arith.constant 0 : index
    %43 = vector.load %arg1[%c0_39, %c7, %c0_40] : memref<8x8x16xf32, #tpu.memory_space<vmem>>, vector<8x1x16xf32>
    %44 = vector.shape_cast %43 : vector<8x1x16xf32> to vector<8x16xf32>
    %c7_41 = arith.constant 7 : index
    %c0_42 = arith.constant 0 : index
    %c0_43 = arith.constant 0 : index
    %45 = vector.load %arg11[%c7_41, %c0_42, %c0_43] : memref<8x8x16xf32, #tpu.memory_space<vmem>>, vector<1x8x16xf32>
    %46 = vector.shape_cast %45 : vector<1x8x16xf32> to vector<8x16xf32>
    %47 = vector.shape_cast %44 : vector<8x16xf32> to vector<1x8x16xf32>
    tpu.vector_store %arg11[%c7_41, %c0_42, %c0_43], %47 {strides = array<i32>} : memref<8x8x16xf32, #tpu.memory_space<vmem>>, vector<1x8x16xf32>,
    %c0_44 = arith.constant 0 : index
    %c0_45 = arith.constant 0 : index
    %c0_46 = arith.constant 0 : index
    %48 = vector.load %arg11[%c0_44, %c0_45, %c0_46] : memref<8x8x16xf32, #tpu.memory_space<vmem>>, vector<8x8x16xf32>
    %49 = vector.shape_cast %48 : vector<8x8x16xf32> to vector<64x16xf32>
    %c0_47 = arith.constant 0 : index
    %c0_48 = arith.constant 0 : index
    %50 = vector.load %arg2[%c0_47, %c0_48] : memref<16x128xf32, #tpu.memory_space<vmem>>, vector<16x128xf32>
    %cst = arith.constant dense<0.000000e+00> : vector<64x128xf32>
    %51 = tpu.matmul %49, %50, %cst {dimension_numbers = #tpu.dot_dimension_numbers<[1], [0], [0], [1], [0, 0, 1, 1], [], []>} : vector<64x16xf32>, vector<16x128xf32>, vector<64x128xf32> -> vector<64x128xf32>
    %c0_49 = arith.constant 0 : index
    %c0_50 = arith.constant 0 : index
    %52 = vector.load %arg4[%c0_49, %c0_50] : memref<1x128xf32, #tpu.memory_space<vmem>>, vector<1x128xf32>
    %53 = vector.broadcast %52 : vector<1x128xf32> to vector<64x128xf32>
    %54 = arith.addf %51, %53 : vector<64x128xf32>
    %55 = vector.shape_cast %54 : vector<64x128xf32> to vector<8x8x128xf32>
    %c0_51 = arith.constant 0 : index
    %c0_52 = arith.constant 0 : index
    %c0_53 = arith.constant 0 : index
    %56 = vector.load %arg12[%c0_51, %c0_52, %c0_53] : memref<8x8x128xf32, #tpu.memory_space<vmem>>, vector<8x8x128xf32>
    tpu.vector_store %arg12[%c0_51, %c0_52, %c0_53], %55 {strides = array<i32>} : memref<8x8x128xf32, #tpu.memory_space<vmem>>, vector<8x8x128xf32>,
    %cst_54 = arith.constant 0.000000e+00 : f32
    %57 = vector.broadcast %cst_54 : f32 to vector<8x32xf32>
    %c0_i32 = arith.constant 0 : i32
    %58 = arith.index_cast %c0_i32 : i32 to index
    %c0_55 = arith.constant 0 : index
    %c0_56 = arith.constant 0 : index
    %59 = vector.load %arg12[%58, %c0_55, %c0_56] : memref<8x8x128xf32, #tpu.memory_space<vmem>>, vector<1x8x128xf32>
    %60 = vector.shape_cast %59 : vector<1x8x128xf32> to vector<8x128xf32>
    %cst_57 = arith.constant dense<0.000000e+00> : vector<8x128xf32>
    %61 = tpu.matmul %57, %6, %cst_57 {dimension_numbers = #tpu.dot_dimension_numbers<[1], [0], [0], [1], [0, 0, 1, 1], [], []>} : vector<8x32xf32>, vector<32x128xf32>, vector<8x128xf32> -> vector<8x128xf32>
    %62 = arith.addf %60, %61 : vector<8x128xf32>
    %cst_58 = arith.constant 5.000000e-01 : f32
    %63 = vector.broadcast %cst_58 : f32 to vector<8x128xf32>
    %64 = arith.mulf %63, %62 : vector<8x128xf32>
    %65 = arith.select %5, %62, %64 : vector<8x128xi1>, vector<8x128xf32>
    %66 = math.tanh %65 : vector<8x128xf32>
    %cst_59 = arith.constant 5.000000e-01 : f32
    %67 = vector.broadcast %cst_59 : f32 to vector<8x128xf32>
    %68 = arith.mulf %67, %66 : vector<8x128xf32>
    %cst_60 = arith.constant 5.000000e-01 : f32
    %69 = vector.broadcast %cst_60 : f32 to vector<8x128xf32>
    %70 = arith.addf %68, %69 : vector<8x128xf32>
    %71 = arith.select %5, %66, %70 : vector<8x128xi1>, vector<8x128xf32>
    %72 = vector.extract_strided_slice %71 {offsets = [0, 0], sizes = [8, 32], strides = [1, 1]} : vector<8x128xf32> to vector<8x32xf32>
    %73 = vector.extract_strided_slice %71 {offsets = [0, 32], sizes = [8, 32], strides = [1, 1]} : vector<8x128xf32> to vector<8x32xf32>
    %74 = vector.extract_strided_slice %71 {offsets = [0, 64], sizes = [8, 32], strides = [1, 1]} : vector<8x128xf32> to vector<8x32xf32>
    %75 = vector.extract_strided_slice %71 {offsets = [0, 96], sizes = [8, 32], strides = [1, 1]} : vector<8x128xf32> to vector<8x32xf32>
    %76 = arith.mulf %73, %57 : vector<8x32xf32>
    %77 = arith.mulf %72, %74 : vector<8x32xf32>
    %78 = arith.addf %76, %77 : vector<8x32xf32>
    %79 = math.tanh %78 : vector<8x32xf32>
    %80 = arith.mulf %75, %79 : vector<8x32xf32>
    %c1_i32 = arith.constant 1 : i32
    %81 = arith.index_cast %c1_i32 : i32 to index
    %c0_61 = arith.constant 0 : index
    %c0_62 = arith.constant 0 : index
    %82 = vector.load %arg12[%81, %c0_61, %c0_62] : memref<8x8x128xf32, #tpu.memory_space<vmem>>, vector<1x8x128xf32>
    %83 = vector.shape_cast %82 : vector<1x8x128xf32> to vector<8x128xf32>
    %cst_63 = arith.constant dense<0.000000e+00> : vector<8x128xf32>
    %84 = tpu.matmul %80, %6, %cst_63 {dimension_numbers = #tpu.dot_dimension_numbers<[1], [0], [0], [1], [0, 0, 1, 1], [], []>} : vector<8x32xf32>, vector<32x128xf32>, vector<8x128xf32> -> vector<8x128xf32>
    %85 = arith.addf %83, %84 : vector<8x128xf32>
    %cst_64 = arith.constant 5.000000e-01 : f32
    %86 = vector.broadcast %cst_64 : f32 to vector<8x128xf32>
    %87 = arith.mulf %86, %85 : vector<8x128xf32>
    %88 = arith.select %5, %85, %87 : vector<8x128xi1>, vector<8x128xf32>
    %89 = math.tanh %88 : vector<8x128xf32>
    %cst_65 = arith.constant 5.000000e-01 : f32
    %90 = vector.broadcast %cst_65 : f32 to vector<8x128xf32>
    %91 = arith.mulf %90, %89 : vector<8x128xf32>
    %cst_66 = arith.constant 5.000000e-01 : f32
    %92 = vector.broadcast %cst_66 : f32 to vector<8x128xf32>
    %93 = arith.addf %91, %92 : vector<8x128xf32>
    %94 = arith.select %5, %89, %93 : vector<8x128xi1>, vector<8x128xf32>
    %95 = vector.extract_strided_slice %94 {offsets = [0, 0], sizes = [8, 32], strides = [1, 1]} : vector<8x128xf32> to vector<8x32xf32>
    %96 = vector.extract_strided_slice %94 {offsets = [0, 32], sizes = [8, 32], strides = [1, 1]} : vector<8x128xf32> to vector<8x32xf32>
    %97 = vector.extract_strided_slice %94 {offsets = [0, 64], sizes = [8, 32], strides = [1, 1]} : vector<8x128xf32> to vector<8x32xf32>
    %98 = vector.extract_strided_slice %94 {offsets = [0, 96], sizes = [8, 32], strides = [1, 1]} : vector<8x128xf32> to vector<8x32xf32>
    %99 = arith.mulf %96, %78 : vector<8x32xf32>
    %100 = arith.mulf %95, %97 : vector<8x32xf32>
    %101 = arith.addf %99, %100 : vector<8x32xf32>
    %102 = math.tanh %101 : vector<8x32xf32>
    %103 = arith.mulf %98, %102 : vector<8x32xf32>
    %c2_i32 = arith.constant 2 : i32
    %104 = arith.index_cast %c2_i32 : i32 to index
    %c0_67 = arith.constant 0 : index
    %c0_68 = arith.constant 0 : index
    %105 = vector.load %arg12[%104, %c0_67, %c0_68] : memref<8x8x128xf32, #tpu.memory_space<vmem>>, vector<1x8x128xf32>
    %106 = vector.shape_cast %105 : vector<1x8x128xf32> to vector<8x128xf32>
    %cst_69 = arith.constant dense<0.000000e+00> : vector<8x128xf32>
    %107 = tpu.matmul %103, %6, %cst_69 {dimension_numbers = #tpu.dot_dimension_numbers<[1], [0], [0], [1], [0, 0, 1, 1], [], []>} : vector<8x32xf32>, vector<32x128xf32>, vector<8x128xf32> -> vector<8x128xf32>
    %108 = arith.addf %106, %107 : vector<8x128xf32>
    %cst_70 = arith.constant 5.000000e-01 : f32
    %109 = vector.broadcast %cst_70 : f32 to vector<8x128xf32>
    %110 = arith.mulf %109, %108 : vector<8x128xf32>
    %111 = arith.select %5, %108, %110 : vector<8x128xi1>, vector<8x128xf32>
    %112 = math.tanh %111 : vector<8x128xf32>
    %cst_71 = arith.constant 5.000000e-01 : f32
    %113 = vector.broadcast %cst_71 : f32 to vector<8x128xf32>
    %114 = arith.mulf %113, %112 : vector<8x128xf32>
    %cst_72 = arith.constant 5.000000e-01 : f32
    %115 = vector.broadcast %cst_72 : f32 to vector<8x128xf32>
    %116 = arith.addf %114, %115 : vector<8x128xf32>
    %117 = arith.select %5, %112, %116 : vector<8x128xi1>, vector<8x128xf32>
    %118 = vector.extract_strided_slice %117 {offsets = [0, 0], sizes = [8, 32], strides = [1, 1]} : vector<8x128xf32> to vector<8x32xf32>
    %119 = vector.extract_strided_slice %117 {offsets = [0, 32], sizes = [8, 32], strides = [1, 1]} : vector<8x128xf32> to vector<8x32xf32>
    %120 = vector.extract_strided_slice %117 {offsets = [0, 64], sizes = [8, 32], strides = [1, 1]} : vector<8x128xf32> to vector<8x32xf32>
    %121 = vector.extract_strided_slice %117 {offsets = [0, 96], sizes = [8, 32], strides = [1, 1]} : vector<8x128xf32> to vector<8x32xf32>
    %122 = arith.mulf %119, %101 : vector<8x32xf32>
    %123 = arith.mulf %118, %120 : vector<8x32xf32>
    %124 = arith.addf %122, %123 : vector<8x32xf32>
    %125 = math.tanh %124 : vector<8x32xf32>
    %126 = arith.mulf %121, %125 : vector<8x32xf32>
    %c3_i32 = arith.constant 3 : i32
    %127 = arith.index_cast %c3_i32 : i32 to index
    %c0_73 = arith.constant 0 : index
    %c0_74 = arith.constant 0 : index
    %128 = vector.load %arg12[%127, %c0_73, %c0_74] : memref<8x8x128xf32, #tpu.memory_space<vmem>>, vector<1x8x128xf32>
    %129 = vector.shape_cast %128 : vector<1x8x128xf32> to vector<8x128xf32>
    %cst_75 = arith.constant dense<0.000000e+00> : vector<8x128xf32>
    %130 = tpu.matmul %126, %6, %cst_75 {dimension_numbers = #tpu.dot_dimension_numbers<[1], [0], [0], [1], [0, 0, 1, 1], [], []>} : vector<8x32xf32>, vector<32x128xf32>, vector<8x128xf32> -> vector<8x128xf32>
    %131 = arith.addf %129, %130 : vector<8x128xf32>
    %cst_76 = arith.constant 5.000000e-01 : f32
    %132 = vector.broadcast %cst_76 : f32 to vector<8x128xf32>
    %133 = arith.mulf %132, %131 : vector<8x128xf32>
    %134 = arith.select %5, %131, %133 : vector<8x128xi1>, vector<8x128xf32>
    %135 = math.tanh %134 : vector<8x128xf32>
    %cst_77 = arith.constant 5.000000e-01 : f32
    %136 = vector.broadcast %cst_77 : f32 to vector<8x128xf32>
    %137 = arith.mulf %136, %135 : vector<8x128xf32>
    %cst_78 = arith.constant 5.000000e-01 : f32
    %138 = vector.broadcast %cst_78 : f32 to vector<8x128xf32>
    %139 = arith.addf %137, %138 : vector<8x128xf32>
    %140 = arith.select %5, %135, %139 : vector<8x128xi1>, vector<8x128xf32>
    %141 = vector.extract_strided_slice %140 {offsets = [0, 0], sizes = [8, 32], strides = [1, 1]} : vector<8x128xf32> to vector<8x32xf32>
    %142 = vector.extract_strided_slice %140 {offsets = [0, 32], sizes = [8, 32], strides = [1, 1]} : vector<8x128xf32> to vector<8x32xf32>
    %143 = vector.extract_strided_slice %140 {offsets = [0, 64], sizes = [8, 32], strides = [1, 1]} : vector<8x128xf32> to vector<8x32xf32>
    %144 = vector.extract_strided_slice %140 {offsets = [0, 96], sizes = [8, 32], strides = [1, 1]} : vector<8x128xf32> to vector<8x32xf32>
    %145 = arith.mulf %142, %124 : vector<8x32xf32>
    %146 = arith.mulf %141, %143 : vector<8x32xf32>
    %147 = arith.addf %145, %146 : vector<8x32xf32>
    %148 = math.tanh %147 : vector<8x32xf32>
    %149 = arith.mulf %144, %148 : vector<8x32xf32>
    %c4_i32 = arith.constant 4 : i32
    %150 = arith.index_cast %c4_i32 : i32 to index
    %c0_79 = arith.constant 0 : index
    %c0_80 = arith.constant 0 : index
    %151 = vector.load %arg12[%150, %c0_79, %c0_80] : memref<8x8x128xf32, #tpu.memory_space<vmem>>, vector<1x8x128xf32>
    %152 = vector.shape_cast %151 : vector<1x8x128xf32> to vector<8x128xf32>
    %cst_81 = arith.constant dense<0.000000e+00> : vector<8x128xf32>
    %153 = tpu.matmul %149, %6, %cst_81 {dimension_numbers = #tpu.dot_dimension_numbers<[1], [0], [0], [1], [0, 0, 1, 1], [], []>} : vector<8x32xf32>, vector<32x128xf32>, vector<8x128xf32> -> vector<8x128xf32>
    %154 = arith.addf %152, %153 : vector<8x128xf32>
    %cst_82 = arith.constant 5.000000e-01 : f32
    %155 = vector.broadcast %cst_82 : f32 to vector<8x128xf32>
    %156 = arith.mulf %155, %154 : vector<8x128xf32>
    %157 = arith.select %5, %154, %156 : vector<8x128xi1>, vector<8x128xf32>
    %158 = math.tanh %157 : vector<8x128xf32>
    %cst_83 = arith.constant 5.000000e-01 : f32
    %159 = vector.broadcast %cst_83 : f32 to vector<8x128xf32>
    %160 = arith.mulf %159, %158 : vector<8x128xf32>
    %cst_84 = arith.constant 5.000000e-01 : f32
    %161 = vector.broadcast %cst_84 : f32 to vector<8x128xf32>
    %162 = arith.addf %160, %161 : vector<8x128xf32>
    %163 = arith.select %5, %158, %162 : vector<8x128xi1>, vector<8x128xf32>
    %164 = vector.extract_strided_slice %163 {offsets = [0, 0], sizes = [8, 32], strides = [1, 1]} : vector<8x128xf32> to vector<8x32xf32>
    %165 = vector.extract_strided_slice %163 {offsets = [0, 32], sizes = [8, 32], strides = [1, 1]} : vector<8x128xf32> to vector<8x32xf32>
    %166 = vector.extract_strided_slice %163 {offsets = [0, 64], sizes = [8, 32], strides = [1, 1]} : vector<8x128xf32> to vector<8x32xf32>
    %167 = vector.extract_strided_slice %163 {offsets = [0, 96], sizes = [8, 32], strides = [1, 1]} : vector<8x128xf32> to vector<8x32xf32>
    %168 = arith.mulf %165, %147 : vector<8x32xf32>
    %169 = arith.mulf %164, %166 : vector<8x32xf32>
    %170 = arith.addf %168, %169 : vector<8x32xf32>
    %171 = math.tanh %170 : vector<8x32xf32>
    %172 = arith.mulf %167, %171 : vector<8x32xf32>
    %c5_i32 = arith.constant 5 : i32
    %173 = arith.index_cast %c5_i32 : i32 to index
    %c0_85 = arith.constant 0 : index
    %c0_86 = arith.constant 0 : index
    %174 = vector.load %arg12[%173, %c0_85, %c0_86] : memref<8x8x128xf32, #tpu.memory_space<vmem>>, vector<1x8x128xf32>
    %175 = vector.shape_cast %174 : vector<1x8x128xf32> to vector<8x128xf32>
    %cst_87 = arith.constant dense<0.000000e+00> : vector<8x128xf32>
    %176 = tpu.matmul %172, %6, %cst_87 {dimension_numbers = #tpu.dot_dimension_numbers<[1], [0], [0], [1], [0, 0, 1, 1], [], []>} : vector<8x32xf32>, vector<32x128xf32>, vector<8x128xf32> -> vector<8x128xf32>
    %177 = arith.addf %175, %176 : vector<8x128xf32>
    %cst_88 = arith.constant 5.000000e-01 : f32
    %178 = vector.broadcast %cst_88 : f32 to vector<8x128xf32>
    %179 = arith.mulf %178, %177 : vector<8x128xf32>
    %180 = arith.select %5, %177, %179 : vector<8x128xi1>, vector<8x128xf32>
    %181 = math.tanh %180 : vector<8x128xf32>
    %cst_89 = arith.constant 5.000000e-01 : f32
    %182 = vector.broadcast %cst_89 : f32 to vector<8x128xf32>
    %183 = arith.mulf %182, %181 : vector<8x128xf32>
    %cst_90 = arith.constant 5.000000e-01 : f32
    %184 = vector.broadcast %cst_90 : f32 to vector<8x128xf32>
    %185 = arith.addf %183, %184 : vector<8x128xf32>
    %186 = arith.select %5, %181, %185 : vector<8x128xi1>, vector<8x128xf32>
    %187 = vector.extract_strided_slice %186 {offsets = [0, 0], sizes = [8, 32], strides = [1, 1]} : vector<8x128xf32> to vector<8x32xf32>
    %188 = vector.extract_strided_slice %186 {offsets = [0, 32], sizes = [8, 32], strides = [1, 1]} : vector<8x128xf32> to vector<8x32xf32>
    %189 = vector.extract_strided_slice %186 {offsets = [0, 64], sizes = [8, 32], strides = [1, 1]} : vector<8x128xf32> to vector<8x32xf32>
    %190 = vector.extract_strided_slice %186 {offsets = [0, 96], sizes = [8, 32], strides = [1, 1]} : vector<8x128xf32> to vector<8x32xf32>
    %191 = arith.mulf %188, %170 : vector<8x32xf32>
    %192 = arith.mulf %187, %189 : vector<8x32xf32>
    %193 = arith.addf %191, %192 : vector<8x32xf32>
    %194 = math.tanh %193 : vector<8x32xf32>
    %195 = arith.mulf %190, %194 : vector<8x32xf32>
    %c6_i32 = arith.constant 6 : i32
    %196 = arith.index_cast %c6_i32 : i32 to index
    %c0_91 = arith.constant 0 : index
    %c0_92 = arith.constant 0 : index
    %197 = vector.load %arg12[%196, %c0_91, %c0_92] : memref<8x8x128xf32, #tpu.memory_space<vmem>>, vector<1x8x128xf32>
    %198 = vector.shape_cast %197 : vector<1x8x128xf32> to vector<8x128xf32>
    %cst_93 = arith.constant dense<0.000000e+00> : vector<8x128xf32>
    %199 = tpu.matmul %195, %6, %cst_93 {dimension_numbers = #tpu.dot_dimension_numbers<[1], [0], [0], [1], [0, 0, 1, 1], [], []>} : vector<8x32xf32>, vector<32x128xf32>, vector<8x128xf32> -> vector<8x128xf32>
    %200 = arith.addf %198, %199 : vector<8x128xf32>
    %cst_94 = arith.constant 5.000000e-01 : f32
    %201 = vector.broadcast %cst_94 : f32 to vector<8x128xf32>
    %202 = arith.mulf %201, %200 : vector<8x128xf32>
    %203 = arith.select %5, %200, %202 : vector<8x128xi1>, vector<8x128xf32>
    %204 = math.tanh %203 : vector<8x128xf32>
    %cst_95 = arith.constant 5.000000e-01 : f32
    %205 = vector.broadcast %cst_95 : f32 to vector<8x128xf32>
    %206 = arith.mulf %205, %204 : vector<8x128xf32>
    %cst_96 = arith.constant 5.000000e-01 : f32
    %207 = vector.broadcast %cst_96 : f32 to vector<8x128xf32>
    %208 = arith.addf %206, %207 : vector<8x128xf32>
    %209 = arith.select %5, %204, %208 : vector<8x128xi1>, vector<8x128xf32>
    %210 = vector.extract_strided_slice %209 {offsets = [0, 0], sizes = [8, 32], strides = [1, 1]} : vector<8x128xf32> to vector<8x32xf32>
    %211 = vector.extract_strided_slice %209 {offsets = [0, 32], sizes = [8, 32], strides = [1, 1]} : vector<8x128xf32> to vector<8x32xf32>
    %212 = vector.extract_strided_slice %209 {offsets = [0, 64], sizes = [8, 32], strides = [1, 1]} : vector<8x128xf32> to vector<8x32xf32>
    %213 = vector.extract_strided_slice %209 {offsets = [0, 96], sizes = [8, 32], strides = [1, 1]} : vector<8x128xf32> to vector<8x32xf32>
    %214 = arith.mulf %211, %193 : vector<8x32xf32>
    %215 = arith.mulf %210, %212 : vector<8x32xf32>
    %216 = arith.addf %214, %215 : vector<8x32xf32>
    %217 = math.tanh %216 : vector<8x32xf32>
    %218 = arith.mulf %213, %217 : vector<8x32xf32>
    %c7_i32 = arith.constant 7 : i32
    %219 = arith.index_cast %c7_i32 : i32 to index
    %c0_97 = arith.constant 0 : index
    %c0_98 = arith.constant 0 : index
    %220 = vector.load %arg12[%219, %c0_97, %c0_98] : memref<8x8x128xf32, #tpu.memory_space<vmem>>, vector<1x8x128xf32>
    %221 = vector.shape_cast %220 : vector<1x8x128xf32> to vector<8x128xf32>
    %cst_99 = arith.constant dense<0.000000e+00> : vector<8x128xf32>
    %222 = tpu.matmul %218, %6, %cst_99 {dimension_numbers = #tpu.dot_dimension_numbers<[1], [0], [0], [1], [0, 0, 1, 1], [], []>} : vector<8x32xf32>, vector<32x128xf32>, vector<8x128xf32> -> vector<8x128xf32>
    %223 = arith.addf %221, %222 : vector<8x128xf32>
    %cst_100 = arith.constant 5.000000e-01 : f32
    %224 = vector.broadcast %cst_100 : f32 to vector<8x128xf32>
    %225 = arith.mulf %224, %223 : vector<8x128xf32>
    %226 = arith.select %5, %223, %225 : vector<8x128xi1>, vector<8x128xf32>
    %227 = math.tanh %226 : vector<8x128xf32>
    %cst_101 = arith.constant 5.000000e-01 : f32
    %228 = vector.broadcast %cst_101 : f32 to vector<8x128xf32>
    %229 = arith.mulf %228, %227 : vector<8x128xf32>
    %cst_102 = arith.constant 5.000000e-01 : f32
    %230 = vector.broadcast %cst_102 : f32 to vector<8x128xf32>
    %231 = arith.addf %229, %230 : vector<8x128xf32>
    %232 = arith.select %5, %227, %231 : vector<8x128xi1>, vector<8x128xf32>
    %233 = vector.extract_strided_slice %232 {offsets = [0, 0], sizes = [8, 32], strides = [1, 1]} : vector<8x128xf32> to vector<8x32xf32>
    %234 = vector.extract_strided_slice %232 {offsets = [0, 32], sizes = [8, 32], strides = [1, 1]} : vector<8x128xf32> to vector<8x32xf32>
    %235 = vector.extract_strided_slice %232 {offsets = [0, 64], sizes = [8, 32], strides = [1, 1]} : vector<8x128xf32> to vector<8x32xf32>
    %236 = vector.extract_strided_slice %232 {offsets = [0, 96], sizes = [8, 32], strides = [1, 1]} : vector<8x128xf32> to vector<8x32xf32>
    %237 = arith.mulf %234, %216 : vector<8x32xf32>
    %238 = arith.mulf %233, %235 : vector<8x32xf32>
    %239 = arith.addf %237, %238 : vector<8x32xf32>
    %240 = math.tanh %239 : vector<8x32xf32>
    %241 = arith.mulf %236, %240 : vector<8x32xf32>
    %c8_i32 = arith.constant 8 : i32
    %c0_103 = arith.constant 0 : index
    %c0_104 = arith.constant 0 : index
    %242 = vector.load %arg5[%c0_103, %c0_104] : memref<32x128xf32, #tpu.memory_space<vmem>>, vector<32x128xf32>
    %cst_105 = arith.constant dense<0.000000e+00> : vector<8x128xf32>
    %243 = tpu.matmul %241, %242, %cst_105 {dimension_numbers = #tpu.dot_dimension_numbers<[1], [0], [0], [1], [0, 0, 1, 1], [], []>} : vector<8x32xf32>, vector<32x128xf32>, vector<8x128xf32> -> vector<8x128xf32>
    %c0_106 = arith.constant 0 : index
    %c0_107 = arith.constant 0 : index
    %244 = vector.load %arg7[%c0_106, %c0_107] : memref<1x128xf32, #tpu.memory_space<vmem>>, vector<1x128xf32>
    %245 = vector.broadcast %244 : vector<1x128xf32> to vector<8x128xf32>
    %246 = arith.addf %243, %245 : vector<8x128xf32>
    %c0_i32_108 = arith.constant 0 : i32
    %cst_109 = arith.constant dense<0.000000e+00> : vector<8x128xf32>
    %247 = tpu.matmul %57, %7, %cst_109 {dimension_numbers = #tpu.dot_dimension_numbers<[1], [0], [0], [1], [0, 0, 1, 1], [], []>} : vector<8x32xf32>, vector<32x128xf32>, vector<8x128xf32> -> vector<8x128xf32>
    %248 = arith.addf %246, %247 : vector<8x128xf32>
    %cst_110 = arith.constant 5.000000e-01 : f32
    %249 = vector.broadcast %cst_110 : f32 to vector<8x128xf32>
    %250 = arith.mulf %249, %248 : vector<8x128xf32>
    %251 = arith.select %5, %248, %250 : vector<8x128xi1>, vector<8x128xf32>
    %252 = math.tanh %251 : vector<8x128xf32>
    %cst_111 = arith.constant 5.000000e-01 : f32
    %253 = vector.broadcast %cst_111 : f32 to vector<8x128xf32>
    %254 = arith.mulf %253, %252 : vector<8x128xf32>
    %cst_112 = arith.constant 5.000000e-01 : f32
    %255 = vector.broadcast %cst_112 : f32 to vector<8x128xf32>
    %256 = arith.addf %254, %255 : vector<8x128xf32>
    %257 = arith.select %5, %252, %256 : vector<8x128xi1>, vector<8x128xf32>
    %258 = vector.extract_strided_slice %257 {offsets = [0, 0], sizes = [8, 32], strides = [1, 1]} : vector<8x128xf32> to vector<8x32xf32>
    %259 = vector.extract_strided_slice %257 {offsets = [0, 32], sizes = [8, 32], strides = [1, 1]} : vector<8x128xf32> to vector<8x32xf32>
    %260 = vector.extract_strided_slice %257 {offsets = [0, 64], sizes = [8, 32], strides = [1, 1]} : vector<8x128xf32> to vector<8x32xf32>
    %261 = vector.extract_strided_slice %257 {offsets = [0, 96], sizes = [8, 32], strides = [1, 1]} : vector<8x128xf32> to vector<8x32xf32>
    %262 = arith.mulf %259, %57 : vector<8x32xf32>
    %263 = arith.mulf %258, %260 : vector<8x32xf32>
    %264 = arith.addf %262, %263 : vector<8x32xf32>
    %265 = math.tanh %264 : vector<8x32xf32>
    %266 = arith.mulf %261, %265 : vector<8x32xf32>
    %267 = arith.index_cast %c0_i32_108 : i32 to index
    %c0_113 = arith.constant 0 : index
    %c0_114 = arith.constant 0 : index
    %268 = vector.load %arg13[%267, %c0_113, %c0_114] : memref<8x8x32xf32, #tpu.memory_space<vmem>>, vector<1x8x32xf32>
    %269 = vector.shape_cast %268 : vector<1x8x32xf32> to vector<8x32xf32>
    %270 = vector.shape_cast %266 : vector<8x32xf32> to vector<1x8x32xf32>
    tpu.vector_store %arg13[%267, %c0_113, %c0_114], %270 {strides = array<i32>} : memref<8x8x32xf32, #tpu.memory_space<vmem>>, vector<1x8x32xf32>,
    %c1_i32_115 = arith.constant 1 : i32
    %cst_116 = arith.constant dense<0.000000e+00> : vector<8x128xf32>
    %271 = tpu.matmul %266, %7, %cst_116 {dimension_numbers = #tpu.dot_dimension_numbers<[1], [0], [0], [1], [0, 0, 1, 1], [], []>} : vector<8x32xf32>, vector<32x128xf32>, vector<8x128xf32> -> vector<8x128xf32>
    %272 = arith.addf %246, %271 : vector<8x128xf32>
    %cst_117 = arith.constant 5.000000e-01 : f32
    %273 = vector.broadcast %cst_117 : f32 to vector<8x128xf32>
    %274 = arith.mulf %273, %272 : vector<8x128xf32>
    %275 = arith.select %5, %272, %274 : vector<8x128xi1>, vector<8x128xf32>
    %276 = math.tanh %275 : vector<8x128xf32>
    %cst_118 = arith.constant 5.000000e-01 : f32
    %277 = vector.broadcast %cst_118 : f32 to vector<8x128xf32>
    %278 = arith.mulf %277, %276 : vector<8x128xf32>
    %cst_119 = arith.constant 5.000000e-01 : f32
    %279 = vector.broadcast %cst_119 : f32 to vector<8x128xf32>
    %280 = arith.addf %278, %279 : vector<8x128xf32>
    %281 = arith.select %5, %276, %280 : vector<8x128xi1>, vector<8x128xf32>
    %282 = vector.extract_strided_slice %281 {offsets = [0, 0], sizes = [8, 32], strides = [1, 1]} : vector<8x128xf32> to vector<8x32xf32>
    %283 = vector.extract_strided_slice %281 {offsets = [0, 32], sizes = [8, 32], strides = [1, 1]} : vector<8x128xf32> to vector<8x32xf32>
    %284 = vector.extract_strided_slice %281 {offsets = [0, 64], sizes = [8, 32], strides = [1, 1]} : vector<8x128xf32> to vector<8x32xf32>
    %285 = vector.extract_strided_slice %281 {offsets = [0, 96], sizes = [8, 32], strides = [1, 1]} : vector<8x128xf32> to vector<8x32xf32>
    %286 = arith.mulf %283, %264 : vector<8x32xf32>
    %287 = arith.mulf %282, %284 : vector<8x32xf32>
    %288 = arith.addf %286, %287 : vector<8x32xf32>
    %289 = math.tanh %288 : vector<8x32xf32>
    %290 = arith.mulf %285, %289 : vector<8x32xf32>
    %291 = arith.index_cast %c1_i32_115 : i32 to index
    %c0_120 = arith.constant 0 : index
    %c0_121 = arith.constant 0 : index
    %292 = vector.load %arg13[%291, %c0_120, %c0_121] : memref<8x8x32xf32, #tpu.memory_space<vmem>>, vector<1x8x32xf32>
    %293 = vector.shape_cast %292 : vector<1x8x32xf32> to vector<8x32xf32>
    %294 = vector.shape_cast %290 : vector<8x32xf32> to vector<1x8x32xf32>
    tpu.vector_store %arg13[%291, %c0_120, %c0_121], %294 {strides = array<i32>} : memref<8x8x32xf32, #tpu.memory_space<vmem>>, vector<1x8x32xf32>,
    %c2_i32_122 = arith.constant 2 : i32
    %cst_123 = arith.constant dense<0.000000e+00> : vector<8x128xf32>
    %295 = tpu.matmul %290, %7, %cst_123 {dimension_numbers = #tpu.dot_dimension_numbers<[1], [0], [0], [1], [0, 0, 1, 1], [], []>} : vector<8x32xf32>, vector<32x128xf32>, vector<8x128xf32> -> vector<8x128xf32>
    %296 = arith.addf %246, %295 : vector<8x128xf32>
    %cst_124 = arith.constant 5.000000e-01 : f32
    %297 = vector.broadcast %cst_124 : f32 to vector<8x128xf32>
    %298 = arith.mulf %297, %296 : vector<8x128xf32>
    %299 = arith.select %5, %296, %298 : vector<8x128xi1>, vector<8x128xf32>
    %300 = math.tanh %299 : vector<8x128xf32>
    %cst_125 = arith.constant 5.000000e-01 : f32
    %301 = vector.broadcast %cst_125 : f32 to vector<8x128xf32>
    %302 = arith.mulf %301, %300 : vector<8x128xf32>
    %cst_126 = arith.constant 5.000000e-01 : f32
    %303 = vector.broadcast %cst_126 : f32 to vector<8x128xf32>
    %304 = arith.addf %302, %303 : vector<8x128xf32>
    %305 = arith.select %5, %300, %304 : vector<8x128xi1>, vector<8x128xf32>
    %306 = vector.extract_strided_slice %305 {offsets = [0, 0], sizes = [8, 32], strides = [1, 1]} : vector<8x128xf32> to vector<8x32xf32>
    %307 = vector.extract_strided_slice %305 {offsets = [0, 32], sizes = [8, 32], strides = [1, 1]} : vector<8x128xf32> to vector<8x32xf32>
    %308 = vector.extract_strided_slice %305 {offsets = [0, 64], sizes = [8, 32], strides = [1, 1]} : vector<8x128xf32> to vector<8x32xf32>
    %309 = vector.extract_strided_slice %305 {offsets = [0, 96], sizes = [8, 32], strides = [1, 1]} : vector<8x128xf32> to vector<8x32xf32>
    %310 = arith.mulf %307, %288 : vector<8x32xf32>
    %311 = arith.mulf %306, %308 : vector<8x32xf32>
    %312 = arith.addf %310, %311 : vector<8x32xf32>
    %313 = math.tanh %312 : vector<8x32xf32>
    %314 = arith.mulf %309, %313 : vector<8x32xf32>
    %315 = arith.index_cast %c2_i32_122 : i32 to index
    %c0_127 = arith.constant 0 : index
    %c0_128 = arith.constant 0 : index
    %316 = vector.load %arg13[%315, %c0_127, %c0_128] : memref<8x8x32xf32, #tpu.memory_space<vmem>>, vector<1x8x32xf32>
    %317 = vector.shape_cast %316 : vector<1x8x32xf32> to vector<8x32xf32>
    %318 = vector.shape_cast %314 : vector<8x32xf32> to vector<1x8x32xf32>
    tpu.vector_store %arg13[%315, %c0_127, %c0_128], %318 {strides = array<i32>} : memref<8x8x32xf32, #tpu.memory_space<vmem>>, vector<1x8x32xf32>,
    %c3_i32_129 = arith.constant 3 : i32
    %cst_130 = arith.constant dense<0.000000e+00> : vector<8x128xf32>
    %319 = tpu.matmul %314, %7, %cst_130 {dimension_numbers = #tpu.dot_dimension_numbers<[1], [0], [0], [1], [0, 0, 1, 1], [], []>} : vector<8x32xf32>, vector<32x128xf32>, vector<8x128xf32> -> vector<8x128xf32>
    %320 = arith.addf %246, %319 : vector<8x128xf32>
    %cst_131 = arith.constant 5.000000e-01 : f32
    %321 = vector.broadcast %cst_131 : f32 to vector<8x128xf32>
    %322 = arith.mulf %321, %320 : vector<8x128xf32>
    %323 = arith.select %5, %320, %322 : vector<8x128xi1>, vector<8x128xf32>
    %324 = math.tanh %323 : vector<8x128xf32>
    %cst_132 = arith.constant 5.000000e-01 : f32
    %325 = vector.broadcast %cst_132 : f32 to vector<8x128xf32>
    %326 = arith.mulf %325, %324 : vector<8x128xf32>
    %cst_133 = arith.constant 5.000000e-01 : f32
    %327 = vector.broadcast %cst_133 : f32 to vector<8x128xf32>
    %328 = arith.addf %326, %327 : vector<8x128xf32>
    %329 = arith.select %5, %324, %328 : vector<8x128xi1>, vector<8x128xf32>
    %330 = vector.extract_strided_slice %329 {offsets = [0, 0], sizes = [8, 32], strides = [1, 1]} : vector<8x128xf32> to vector<8x32xf32>
    %331 = vector.extract_strided_slice %329 {offsets = [0, 32], sizes = [8, 32], strides = [1, 1]} : vector<8x128xf32> to vector<8x32xf32>
    %332 = vector.extract_strided_slice %329 {offsets = [0, 64], sizes = [8, 32], strides = [1, 1]} : vector<8x128xf32> to vector<8x32xf32>
    %333 = vector.extract_strided_slice %329 {offsets = [0, 96], sizes = [8, 32], strides = [1, 1]} : vector<8x128xf32> to vector<8x32xf32>
    %334 = arith.mulf %331, %312 : vector<8x32xf32>
    %335 = arith.mulf %330, %332 : vector<8x32xf32>
    %336 = arith.addf %334, %335 : vector<8x32xf32>
    %337 = math.tanh %336 : vector<8x32xf32>
    %338 = arith.mulf %333, %337 : vector<8x32xf32>
    %339 = arith.index_cast %c3_i32_129 : i32 to index
    %c0_134 = arith.constant 0 : index
    %c0_135 = arith.constant 0 : index
    %340 = vector.load %arg13[%339, %c0_134, %c0_135] : memref<8x8x32xf32, #tpu.memory_space<vmem>>, vector<1x8x32xf32>
    %341 = vector.shape_cast %340 : vector<1x8x32xf32> to vector<8x32xf32>
    %342 = vector.shape_cast %338 : vector<8x32xf32> to vector<1x8x32xf32>
    tpu.vector_store %arg13[%339, %c0_134, %c0_135], %342 {strides = array<i32>} : memref<8x8x32xf32, #tpu.memory_space<vmem>>, vector<1x8x32xf32>,
    %c4_i32_136 = arith.constant 4 : i32
    %cst_137 = arith.constant dense<0.000000e+00> : vector<8x128xf32>
    %343 = tpu.matmul %338, %7, %cst_137 {dimension_numbers = #tpu.dot_dimension_numbers<[1], [0], [0], [1], [0, 0, 1, 1], [], []>} : vector<8x32xf32>, vector<32x128xf32>, vector<8x128xf32> -> vector<8x128xf32>
    %344 = arith.addf %246, %343 : vector<8x128xf32>
    %cst_138 = arith.constant 5.000000e-01 : f32
    %345 = vector.broadcast %cst_138 : f32 to vector<8x128xf32>
    %346 = arith.mulf %345, %344 : vector<8x128xf32>
    %347 = arith.select %5, %344, %346 : vector<8x128xi1>, vector<8x128xf32>
    %348 = math.tanh %347 : vector<8x128xf32>
    %cst_139 = arith.constant 5.000000e-01 : f32
    %349 = vector.broadcast %cst_139 : f32 to vector<8x128xf32>
    %350 = arith.mulf %349, %348 : vector<8x128xf32>
    %cst_140 = arith.constant 5.000000e-01 : f32
    %351 = vector.broadcast %cst_140 : f32 to vector<8x128xf32>
    %352 = arith.addf %350, %351 : vector<8x128xf32>
    %353 = arith.select %5, %348, %352 : vector<8x128xi1>, vector<8x128xf32>
    %354 = vector.extract_strided_slice %353 {offsets = [0, 0], sizes = [8, 32], strides = [1, 1]} : vector<8x128xf32> to vector<8x32xf32>
    %355 = vector.extract_strided_slice %353 {offsets = [0, 32], sizes = [8, 32], strides = [1, 1]} : vector<8x128xf32> to vector<8x32xf32>
    %356 = vector.extract_strided_slice %353 {offsets = [0, 64], sizes = [8, 32], strides = [1, 1]} : vector<8x128xf32> to vector<8x32xf32>
    %357 = vector.extract_strided_slice %353 {offsets = [0, 96], sizes = [8, 32], strides = [1, 1]} : vector<8x128xf32> to vector<8x32xf32>
    %358 = arith.mulf %355, %336 : vector<8x32xf32>
    %359 = arith.mulf %354, %356 : vector<8x32xf32>
    %360 = arith.addf %358, %359 : vector<8x32xf32>
    %361 = math.tanh %360 : vector<8x32xf32>
    %362 = arith.mulf %357, %361 : vector<8x32xf32>
    %363 = arith.index_cast %c4_i32_136 : i32 to index
    %c0_141 = arith.constant 0 : index
    %c0_142 = arith.constant 0 : index
    %364 = vector.load %arg13[%363, %c0_141, %c0_142] : memref<8x8x32xf32, #tpu.memory_space<vmem>>, vector<1x8x32xf32>
    %365 = vector.shape_cast %364 : vector<1x8x32xf32> to vector<8x32xf32>
    %366 = vector.shape_cast %362 : vector<8x32xf32> to vector<1x8x32xf32>
    tpu.vector_store %arg13[%363, %c0_141, %c0_142], %366 {strides = array<i32>} : memref<8x8x32xf32, #tpu.memory_space<vmem>>, vector<1x8x32xf32>,
    %c5_i32_143 = arith.constant 5 : i32
    %cst_144 = arith.constant dense<0.000000e+00> : vector<8x128xf32>
    %367 = tpu.matmul %362, %7, %cst_144 {dimension_numbers = #tpu.dot_dimension_numbers<[1], [0], [0], [1], [0, 0, 1, 1], [], []>} : vector<8x32xf32>, vector<32x128xf32>, vector<8x128xf32> -> vector<8x128xf32>
    %368 = arith.addf %246, %367 : vector<8x128xf32>
    %cst_145 = arith.constant 5.000000e-01 : f32
    %369 = vector.broadcast %cst_145 : f32 to vector<8x128xf32>
    %370 = arith.mulf %369, %368 : vector<8x128xf32>
    %371 = arith.select %5, %368, %370 : vector<8x128xi1>, vector<8x128xf32>
    %372 = math.tanh %371 : vector<8x128xf32>
    %cst_146 = arith.constant 5.000000e-01 : f32
    %373 = vector.broadcast %cst_146 : f32 to vector<8x128xf32>
    %374 = arith.mulf %373, %372 : vector<8x128xf32>
    %cst_147 = arith.constant 5.000000e-01 : f32
    %375 = vector.broadcast %cst_147 : f32 to vector<8x128xf32>
    %376 = arith.addf %374, %375 : vector<8x128xf32>
    %377 = arith.select %5, %372, %376 : vector<8x128xi1>, vector<8x128xf32>
    %378 = vector.extract_strided_slice %377 {offsets = [0, 0], sizes = [8, 32], strides = [1, 1]} : vector<8x128xf32> to vector<8x32xf32>
    %379 = vector.extract_strided_slice %377 {offsets = [0, 32], sizes = [8, 32], strides = [1, 1]} : vector<8x128xf32> to vector<8x32xf32>
    %380 = vector.extract_strided_slice %377 {offsets = [0, 64], sizes = [8, 32], strides = [1, 1]} : vector<8x128xf32> to vector<8x32xf32>
    %381 = vector.extract_strided_slice %377 {offsets = [0, 96], sizes = [8, 32], strides = [1, 1]} : vector<8x128xf32> to vector<8x32xf32>
    %382 = arith.mulf %379, %360 : vector<8x32xf32>
    %383 = arith.mulf %378, %380 : vector<8x32xf32>
    %384 = arith.addf %382, %383 : vector<8x32xf32>
    %385 = math.tanh %384 : vector<8x32xf32>
    %386 = arith.mulf %381, %385 : vector<8x32xf32>
    %387 = arith.index_cast %c5_i32_143 : i32 to index
    %c0_148 = arith.constant 0 : index
    %c0_149 = arith.constant 0 : index
    %388 = vector.load %arg13[%387, %c0_148, %c0_149] : memref<8x8x32xf32, #tpu.memory_space<vmem>>, vector<1x8x32xf32>
    %389 = vector.shape_cast %388 : vector<1x8x32xf32> to vector<8x32xf32>
    %390 = vector.shape_cast %386 : vector<8x32xf32> to vector<1x8x32xf32>
    tpu.vector_store %arg13[%387, %c0_148, %c0_149], %390 {strides = array<i32>} : memref<8x8x32xf32, #tpu.memory_space<vmem>>, vector<1x8x32xf32>,
    %c6_i32_150 = arith.constant 6 : i32
    %cst_151 = arith.constant dense<0.000000e+00> : vector<8x128xf32>
    %391 = tpu.matmul %386, %7, %cst_151 {dimension_numbers = #tpu.dot_dimension_numbers<[1], [0], [0], [1], [0, 0, 1, 1], [], []>} : vector<8x32xf32>, vector<32x128xf32>, vector<8x128xf32> -> vector<8x128xf32>
    %392 = arith.addf %246, %391 : vector<8x128xf32>
    %cst_152 = arith.constant 5.000000e-01 : f32
    %393 = vector.broadcast %cst_152 : f32 to vector<8x128xf32>
    %394 = arith.mulf %393, %392 : vector<8x128xf32>
    %395 = arith.select %5, %392, %394 : vector<8x128xi1>, vector<8x128xf32>
    %396 = math.tanh %395 : vector<8x128xf32>
    %cst_153 = arith.constant 5.000000e-01 : f32
    %397 = vector.broadcast %cst_153 : f32 to vector<8x128xf32>
    %398 = arith.mulf %397, %396 : vector<8x128xf32>
    %cst_154 = arith.constant 5.000000e-01 : f32
    %399 = vector.broadcast %cst_154 : f32 to vector<8x128xf32>
    %400 = arith.addf %398, %399 : vector<8x128xf32>
    %401 = arith.select %5, %396, %400 : vector<8x128xi1>, vector<8x128xf32>
    %402 = vector.extract_strided_slice %401 {offsets = [0, 0], sizes = [8, 32], strides = [1, 1]} : vector<8x128xf32> to vector<8x32xf32>
    %403 = vector.extract_strided_slice %401 {offsets = [0, 32], sizes = [8, 32], strides = [1, 1]} : vector<8x128xf32> to vector<8x32xf32>
    %404 = vector.extract_strided_slice %401 {offsets = [0, 64], sizes = [8, 32], strides = [1, 1]} : vector<8x128xf32> to vector<8x32xf32>
    %405 = vector.extract_strided_slice %401 {offsets = [0, 96], sizes = [8, 32], strides = [1, 1]} : vector<8x128xf32> to vector<8x32xf32>
    %406 = arith.mulf %403, %384 : vector<8x32xf32>
    %407 = arith.mulf %402, %404 : vector<8x32xf32>
    %408 = arith.addf %406, %407 : vector<8x32xf32>
    %409 = math.tanh %408 : vector<8x32xf32>
    %410 = arith.mulf %405, %409 : vector<8x32xf32>
    %411 = arith.index_cast %c6_i32_150 : i32 to index
    %c0_155 = arith.constant 0 : index
    %c0_156 = arith.constant 0 : index
    %412 = vector.load %arg13[%411, %c0_155, %c0_156] : memref<8x8x32xf32, #tpu.memory_space<vmem>>, vector<1x8x32xf32>
    %413 = vector.shape_cast %412 : vector<1x8x32xf32> to vector<8x32xf32>
    %414 = vector.shape_cast %410 : vector<8x32xf32> to vector<1x8x32xf32>
    tpu.vector_store %arg13[%411, %c0_155, %c0_156], %414 {strides = array<i32>} : memref<8x8x32xf32, #tpu.memory_space<vmem>>, vector<1x8x32xf32>,
    %c7_i32_157 = arith.constant 7 : i32
    %cst_158 = arith.constant dense<0.000000e+00> : vector<8x128xf32>
    %415 = tpu.matmul %410, %7, %cst_158 {dimension_numbers = #tpu.dot_dimension_numbers<[1], [0], [0], [1], [0, 0, 1, 1], [], []>} : vector<8x32xf32>, vector<32x128xf32>, vector<8x128xf32> -> vector<8x128xf32>
    %416 = arith.addf %246, %415 : vector<8x128xf32>
    %cst_159 = arith.constant 5.000000e-01 : f32
    %417 = vector.broadcast %cst_159 : f32 to vector<8x128xf32>
    %418 = arith.mulf %417, %416 : vector<8x128xf32>
    %419 = arith.select %5, %416, %418 : vector<8x128xi1>, vector<8x128xf32>
    %420 = math.tanh %419 : vector<8x128xf32>
    %cst_160 = arith.constant 5.000000e-01 : f32
    %421 = vector.broadcast %cst_160 : f32 to vector<8x128xf32>
    %422 = arith.mulf %421, %420 : vector<8x128xf32>
    %cst_161 = arith.constant 5.000000e-01 : f32
    %423 = vector.broadcast %cst_161 : f32 to vector<8x128xf32>
    %424 = arith.addf %422, %423 : vector<8x128xf32>
    %425 = arith.select %5, %420, %424 : vector<8x128xi1>, vector<8x128xf32>
    %426 = vector.extract_strided_slice %425 {offsets = [0, 0], sizes = [8, 32], strides = [1, 1]} : vector<8x128xf32> to vector<8x32xf32>
    %427 = vector.extract_strided_slice %425 {offsets = [0, 32], sizes = [8, 32], strides = [1, 1]} : vector<8x128xf32> to vector<8x32xf32>
    %428 = vector.extract_strided_slice %425 {offsets = [0, 64], sizes = [8, 32], strides = [1, 1]} : vector<8x128xf32> to vector<8x32xf32>
    %429 = vector.extract_strided_slice %425 {offsets = [0, 96], sizes = [8, 32], strides = [1, 1]} : vector<8x128xf32> to vector<8x32xf32>
    %430 = arith.mulf %427, %408 : vector<8x32xf32>
    %431 = arith.mulf %426, %428 : vector<8x32xf32>
    %432 = arith.addf %430, %431 : vector<8x32xf32>
    %433 = math.tanh %432 : vector<8x32xf32>
    %434 = arith.mulf %429, %433 : vector<8x32xf32>
    %435 = arith.index_cast %c7_i32_157 : i32 to index
    %c0_162 = arith.constant 0 : index
    %c0_163 = arith.constant 0 : index
    %436 = vector.load %arg13[%435, %c0_162, %c0_163] : memref<8x8x32xf32, #tpu.memory_space<vmem>>, vector<1x8x32xf32>
    %437 = vector.shape_cast %436 : vector<1x8x32xf32> to vector<8x32xf32>
    %438 = vector.shape_cast %434 : vector<8x32xf32> to vector<1x8x32xf32>
    tpu.vector_store %arg13[%435, %c0_162, %c0_163], %438 {strides = array<i32>} : memref<8x8x32xf32, #tpu.memory_space<vmem>>, vector<1x8x32xf32>,
    %c8_i32_164 = arith.constant 8 : i32
    %c0_165 = arith.constant 0 : index
    %c0_166 = arith.constant 0 : index
    %c0_167 = arith.constant 0 : index
    %439 = vector.load %arg13[%c0_165, %c0_166, %c0_167] : memref<8x8x32xf32, #tpu.memory_space<vmem>>, vector<8x8x32xf32>
    %440 = vector.shape_cast %439 : vector<8x8x32xf32> to vector<64x32xf32>
    %c0_168 = arith.constant 0 : index
    %c0_169 = arith.constant 0 : index
    %441 = vector.load %arg8[%c0_168, %c0_169] : memref<32x16xf32, #tpu.memory_space<vmem>>, vector<32x16xf32>
    %cst_170 = arith.constant dense<0.000000e+00> : vector<64x16xf32>
    %442 = tpu.matmul %440, %441, %cst_170 {dimension_numbers = #tpu.dot_dimension_numbers<[1], [0], [0], [1], [0, 0, 1, 1], [], []>} : vector<64x32xf32>, vector<32x16xf32>, vector<64x16xf32> -> vector<64x16xf32>
    %c0_171 = arith.constant 0 : index
    %c0_172 = arith.constant 0 : index
    %443 = vector.load %arg9[%c0_171, %c0_172] : memref<1x16xf32, #tpu.memory_space<vmem>>, vector<1x16xf32>
    %444 = vector.broadcast %443 : vector<1x16xf32> to vector<64x16xf32>
    %445 = arith.addf %442, %444 : vector<64x16xf32>
    %446 = vector.shape_cast %445 : vector<64x16xf32> to vector<8x8x16xf32>
    %447 = vector.extract_strided_slice %446 {offsets = [0, 0, 0], sizes = [1, 8, 16], strides = [1, 1, 1]} : vector<8x8x16xf32> to vector<1x8x16xf32>
    %448 = vector.shape_cast %447 : vector<1x8x16xf32> to vector<8x16xf32>
    %c0_173 = arith.constant 0 : index
    %c0_174 = arith.constant 0 : index
    %449 = vector.load %arg10[%c0_173, %c0_174] : memref<8x128xf32, #tpu.memory_space<vmem>>, vector<8x16xf32>
    tpu.vector_store %arg10[%c0_173, %c0_174], %448 {strides = array<i32>} : memref<8x128xf32, #tpu.memory_space<vmem>>, vector<8x16xf32>,
    %450 = vector.extract_strided_slice %446 {offsets = [1, 0, 0], sizes = [1, 8, 16], strides = [1, 1, 1]} : vector<8x8x16xf32> to vector<1x8x16xf32>
    %451 = vector.shape_cast %450 : vector<1x8x16xf32> to vector<8x16xf32>
    %c0_175 = arith.constant 0 : index
    %c16 = arith.constant 16 : index
    %452 = vector.load %arg10[%c0_175, %c16] : memref<8x128xf32, #tpu.memory_space<vmem>>, vector<8x16xf32>
    tpu.vector_store %arg10[%c0_175, %c16], %451 {strides = array<i32>} : memref<8x128xf32, #tpu.memory_space<vmem>>, vector<8x16xf32>,
    %453 = vector.extract_strided_slice %446 {offsets = [2, 0, 0], sizes = [1, 8, 16], strides = [1, 1, 1]} : vector<8x8x16xf32> to vector<1x8x16xf32>
    %454 = vector.shape_cast %453 : vector<1x8x16xf32> to vector<8x16xf32>
    %c0_176 = arith.constant 0 : index
    %c32 = arith.constant 32 : index
    %455 = vector.load %arg10[%c0_176, %c32] : memref<8x128xf32, #tpu.memory_space<vmem>>, vector<8x16xf32>
    tpu.vector_store %arg10[%c0_176, %c32], %454 {strides = array<i32>} : memref<8x128xf32, #tpu.memory_space<vmem>>, vector<8x16xf32>,
    %456 = vector.extract_strided_slice %446 {offsets = [3, 0, 0], sizes = [1, 8, 16], strides = [1, 1, 1]} : vector<8x8x16xf32> to vector<1x8x16xf32>
    %457 = vector.shape_cast %456 : vector<1x8x16xf32> to vector<8x16xf32>
    %c0_177 = arith.constant 0 : index
    %c48 = arith.constant 48 : index
    %458 = vector.load %arg10[%c0_177, %c48] : memref<8x128xf32, #tpu.memory_space<vmem>>, vector<8x16xf32>
    tpu.vector_store %arg10[%c0_177, %c48], %457 {strides = array<i32>} : memref<8x128xf32, #tpu.memory_space<vmem>>, vector<8x16xf32>,
    %459 = vector.extract_strided_slice %446 {offsets = [4, 0, 0], sizes = [1, 8, 16], strides = [1, 1, 1]} : vector<8x8x16xf32> to vector<1x8x16xf32>
    %460 = vector.shape_cast %459 : vector<1x8x16xf32> to vector<8x16xf32>
    %c0_178 = arith.constant 0 : index
    %c64 = arith.constant 64 : index
    %461 = vector.load %arg10[%c0_178, %c64] : memref<8x128xf32, #tpu.memory_space<vmem>>, vector<8x16xf32>
    tpu.vector_store %arg10[%c0_178, %c64], %460 {strides = array<i32>} : memref<8x128xf32, #tpu.memory_space<vmem>>, vector<8x16xf32>,
    %462 = vector.extract_strided_slice %446 {offsets = [5, 0, 0], sizes = [1, 8, 16], strides = [1, 1, 1]} : vector<8x8x16xf32> to vector<1x8x16xf32>
    %463 = vector.shape_cast %462 : vector<1x8x16xf32> to vector<8x16xf32>
    %c0_179 = arith.constant 0 : index
    %c80 = arith.constant 80 : index
    %464 = vector.load %arg10[%c0_179, %c80] : memref<8x128xf32, #tpu.memory_space<vmem>>, vector<8x16xf32>
    tpu.vector_store %arg10[%c0_179, %c80], %463 {strides = array<i32>} : memref<8x128xf32, #tpu.memory_space<vmem>>, vector<8x16xf32>,
    %465 = vector.extract_strided_slice %446 {offsets = [6, 0, 0], sizes = [1, 8, 16], strides = [1, 1, 1]} : vector<8x8x16xf32> to vector<1x8x16xf32>
    %466 = vector.shape_cast %465 : vector<1x8x16xf32> to vector<8x16xf32>
    %c0_180 = arith.constant 0 : index
    %c96 = arith.constant 96 : index
    %467 = vector.load %arg10[%c0_180, %c96] : memref<8x128xf32, #tpu.memory_space<vmem>>, vector<8x16xf32>
    tpu.vector_store %arg10[%c0_180, %c96], %466 {strides = array<i32>} : memref<8x128xf32, #tpu.memory_space<vmem>>, vector<8x16xf32>,
    %468 = vector.extract_strided_slice %446 {offsets = [7, 0, 0], sizes = [1, 8, 16], strides = [1, 1, 1]} : vector<8x8x16xf32> to vector<1x8x16xf32>
    %469 = vector.shape_cast %468 : vector<1x8x16xf32> to vector<8x16xf32>
    %c0_181 = arith.constant 0 : index
    %c112 = arith.constant 112 : index
    %470 = vector.load %arg10[%c0_181, %c112] : memref<8x128xf32, #tpu.memory_space<vmem>>, vector<8x16xf32>
    tpu.vector_store %arg10[%c0_181, %c112], %469 {strides = array<i32>} : memref<8x128xf32, #tpu.memory_space<vmem>>, vector<8x16xf32>,
    return
  }
  func.func @transform_0(%arg0: i32) -> (i32, i32, i32) {
    %c0_i32 = arith.constant 0 : i32
    %c0_i32_0 = arith.constant 0 : i32
    %c0_i32_1 = arith.constant 0 : i32
    return %arg0, %c0_i32, %c0_i32_0 : i32, i32, i32
  }
  func.func @transform_1(%arg0: i32) -> (i32, i32) {
    %c0_i32 = arith.constant 0 : i32
    %c0_i32_0 = arith.constant 0 : i32
    %c0_i32_1 = arith.constant 0 : i32
    return %c0_i32, %c0_i32_0 : i32, i32
  }
  func.func @transform_2(%arg0: i32) -> (i32, i32) {
    %c0_i32 = arith.constant 0 : i32
    %c0_i32_0 = arith.constant 0 : i32
    %c0_i32_1 = arith.constant 0 : i32
    return %c0_i32, %c0_i32_0 : i32, i32
  }
  func.func @transform_3(%arg0: i32) -> (i32, i32) {
    %c0_i32 = arith.constant 0 : i32
    %c0_i32_0 = arith.constant 0 : i32
    %c0_i32_1 = arith.constant 0 : i32
    return %c0_i32, %c0_i32_0 : i32, i32
  }
  func.func @transform_4(%arg0: i32) -> (i32, i32) {
    %c0_i32 = arith.constant 0 : i32
    %c0_i32_0 = arith.constant 0 : i32
    %c0_i32_1 = arith.constant 0 : i32
    return %c0_i32, %c0_i32_0 : i32, i32
  }
  func.func @transform_5(%arg0: i32) -> (i32, i32) {
    %c0_i32 = arith.constant 0 : i32
    %c0_i32_0 = arith.constant 0 : i32
    %c0_i32_1 = arith.constant 0 : i32
    return %c0_i32, %c0_i32_0 : i32, i32
  }
  func.func @transform_6(%arg0: i32) -> (i32, i32) {
    %c0_i32 = arith.constant 0 : i32
    %c0_i32_0 = arith.constant 0 : i32
    %c0_i32_1 = arith.constant 0 : i32
    return %c0_i32, %c0_i32_0 : i32, i32
  }
  func.func @transform_7(%arg0: i32) -> (i32, i32) {
    %c0_i32 = arith.constant 0 : i32
    %c0_i32_0 = arith.constant 0 : i32
    %c0_i32_1 = arith.constant 0 : i32
    return %c0_i32, %c0_i32_0 : i32, i32
  }
  func.func @transform_8(%arg0: i32) -> (i32, i32) {
    %c0_i32 = arith.constant 0 : i32
    %c0_i32_0 = arith.constant 0 : i32
    %c0_i32_1 = arith.constant 0 : i32
    return %c0_i32, %c0_i32_0 : i32, i32
  }
  func.func @transform_9(%arg0: i32) -> (i32, i32) {
    %c0_i32 = arith.constant 0 : i32
    %c0_i32_0 = arith.constant 0 : i32
    return %arg0, %c0_i32 : i32, i32
  }
}

</mosaic_0001>

<llo_original>
// kernel: tpu_custom_call.1
$region0: #{tpu_custom_call.1}
  #allocation0 [shape = 'u32[]', space=smem, size = 0x4, offset = 0x4, fixed_abs, tag = 'smem constant byte address 0x4 - core index']
  #allocation1 [shape = 'u32[144,128]{1,0:T(1,128)}', space=vmem, size = 0x12000, scoped, tag = 'internal scratch']
  #allocation2 [shape = 'f32[8,8,16]{2,1,0:T(8,128)}', space=vmem, size = 0x8000, scoped, tag = 'scratch operand']
  #allocation3 [shape = 'f32[8,8,128]{2,1,0:T(8,128)}', space=vmem, size = 0x8000, scoped, tag = 'scratch operand']
  #allocation4 [shape = 'f32[8,8,32]{2,1,0:T(8,128)}', space=vmem, size = 0x8000, scoped, tag = 'scratch operand']
  %s0 = inlined_call_operand.hbm [shape: f32[8,8,16], index: 0, kind: input, shape index: {}]
  %s1 = inlined_call_operand.hbm [shape: f32[16,128], index: 1, kind: input, shape index: {}]
  %s2 = inlined_call_operand.vmem [shape: f32[32,128], index: 2, kind: input, shape index: {}]
  %s3 = inlined_call_operand.vmem [shape: f32[1,128], index: 3, kind: input, shape index: {}]
  %s4 = inlined_call_operand.hbm [shape: f32[32,128], index: 4, kind: input, shape index: {}]
  %s5 = inlined_call_operand.vmem [shape: f32[32,128], index: 5, kind: input, shape index: {}]
  %s6 = inlined_call_operand.vmem [shape: f32[1,128], index: 6, kind: input, shape index: {}]
  %s7 = inlined_call_operand.vmem [shape: f32[32,16], index: 7, kind: input, shape index: {}]
  %s8 = inlined_call_operand.vmem [shape: f32[1,16], index: 8, kind: input, shape index: {}]
  %s9 = inlined_call_operand.hbm [shape: f32[8,128], index: 9, kind: output, shape index: {}]
  %s10 = sld [smem:[#allocation0]]
  $region58: #{tpu_custom_call.1} parent=0
    _
  %s12 = ssub.s32 1, %s10
  %s13 = scalar_select 0, %s12, %s10
  $region1: #{tpu_custom_call.1} parent=0
    #allocation5 [shape = 'u8[32768]{0}', space=vmem, size = 0x8000, scoped, tag = 'input window, operand 0, single buffered']
    #allocation6 [shape = 's32[1]{0}', space=sflag, size = 0x4, scoped, tag = 'scoped memory for tpu_custom_call.1']
    #allocation7 [shape = 's32[1]{0}', space=sflag, size = 0x4, scoped, tag = 'scoped memory for tpu_custom_call.1']
    #allocation8 [shape = 'u8[8192]{0}', space=vmem, size = 0x2000, scoped, tag = 'input window, operand 1, single buffered']
    #allocation9 [shape = 's32[1]{0}', space=sflag, size = 0x4, scoped, tag = 'scoped memory for tpu_custom_call.1']
    #allocation10 [shape = 'u8[16384]{0}', space=vmem, size = 0x4000, scoped, tag = 'input window, operand 4, single buffered']
    #allocation11 [shape = 'u8[4096]{0}', space=vmem, size = 0x1000, scoped, tag = 'output window, operand 0, single buffered']
    %14 = vsyncpa [#allocation6], 0
    %15 = vsyncpa [#allocation9], 0
    %16 = vsyncpa [#allocation7], 0
    // Predicated region
    $region2: #{tpu_custom_call.1} parent=1 // pred_check
      _
    $region3: #{tpu_custom_call.1} parent=1 // pred_check_branch
      %18 = sbr.rel (0) target = $region5
    $region4: #{tpu_custom_call.1} parent=1 // pred_region
      %s20 = ssub.s32 1024, 1024
      %21 = vsyncadd [#allocation6], %s20
      %s22 = sshll.u32 [#allocation5], 4
      %s23 = int_to_ptr.vmem [resolvable:$true] %s22
      %28 = dma.hbm_to_vmem [thread:$0]  %s0, 1024, %s23, [#allocation6], 128, 128, 8
    $region5: #{tpu_custom_call.1} parent=1 // pred_fallthru
      _
    // Predicated region
    $region6: #{tpu_custom_call.1} parent=1 // pred_check
      _
    $region7: #{tpu_custom_call.1} parent=1 // pred_check_branch
      %30 = sbr.rel (0) target = $region9
    $region8: #{tpu_custom_call.1} parent=1 // pred_region
      %s32 = ssub.s32 256, 256
      %33 = vsyncadd [#allocation9], %s32
      %s34 = sshll.u32 [#allocation8], 4
      %s35 = int_to_ptr.vmem [resolvable:$true] %s34
      %40 = dma.hbm_to_vmem [thread:$0]  %s1, 256, %s35, [#allocation9], 128, 128, 8
    $region9: #{tpu_custom_call.1} parent=1 // pred_fallthru
      _
    // Predicated region
    $region10: #{tpu_custom_call.1} parent=1 // pred_check
      _
    $region11: #{tpu_custom_call.1} parent=1 // pred_check_branch
      %42 = sbr.rel (0) target = $region13
    $region12: #{tpu_custom_call.1} parent=1 // pred_region
      _
    $region13: #{tpu_custom_call.1} parent=1 // pred_fallthru
      _
    // Predicated region
    $region14: #{tpu_custom_call.1} parent=1 // pred_check
      _
    $region15: #{tpu_custom_call.1} parent=1 // pred_check_branch
      %44 = sbr.rel (0) target = $region17
    $region16: #{tpu_custom_call.1} parent=1 // pred_region
      _
    $region17: #{tpu_custom_call.1} parent=1 // pred_fallthru
      _
    // Predicated region
    $region18: #{tpu_custom_call.1} parent=1 // pred_check
      _
    $region19: #{tpu_custom_call.1} parent=1 // pred_check_branch
      %46 = sbr.rel (0) target = $region21
    $region20: #{tpu_custom_call.1} parent=1 // pred_region
      %s48 = ssub.s32 512, 512
      %49 = vsyncadd [#allocation9], %s48
      %s50 = sshll.u32 [#allocation10], 4
      %s51 = int_to_ptr.vmem [resolvable:$true] %s50
      %56 = dma.hbm_to_vmem [thread:$0]  %s4, 512, %s51, [#allocation9], 128, 128, 8
    $region21: #{tpu_custom_call.1} parent=1 // pred_fallthru
      _
    // Predicated region
    $region22: #{tpu_custom_call.1} parent=1 // pred_check
      _
    $region23: #{tpu_custom_call.1} parent=1 // pred_check_branch
      %58 = sbr.rel (0) target = $region25
    $region24: #{tpu_custom_call.1} parent=1 // pred_region
      _
    $region25: #{tpu_custom_call.1} parent=1 // pred_fallthru
      _
    // Predicated region
    $region26: #{tpu_custom_call.1} parent=1 // pred_check
      _
    $region27: #{tpu_custom_call.1} parent=1 // pred_check_branch
      %60 = sbr.rel (0) target = $region29
    $region28: #{tpu_custom_call.1} parent=1 // pred_region
      _
    $region29: #{tpu_custom_call.1} parent=1 // pred_fallthru
      _
    // Predicated region
    $region30: #{tpu_custom_call.1} parent=1 // pred_check
      _
    $region31: #{tpu_custom_call.1} parent=1 // pred_check_branch
      %62 = sbr.rel (0) target = $region33
    $region32: #{tpu_custom_call.1} parent=1 // pred_region
      _
    $region33: #{tpu_custom_call.1} parent=1 // pred_fallthru
      _
    // Predicated region
    $region34: #{tpu_custom_call.1} parent=1 // pred_check
      _
    $region35: #{tpu_custom_call.1} parent=1 // pred_check_branch
      %64 = sbr.rel (0) target = $region37
    $region36: #{tpu_custom_call.1} parent=1 // pred_region
      _
    $region37: #{tpu_custom_call.1} parent=1 // pred_fallthru
      _
    // Predicated region
    $region38: #{tpu_custom_call.1} parent=1 // pred_check
      _
    $region39: #{tpu_custom_call.1} parent=1 // pred_check_branch
      %66 = sbr.rel (0) target = $region41
    $region40: #{tpu_custom_call.1} parent=1 // pred_region
      %67 = dma.done [#allocation6], 1024
    $region41: #{tpu_custom_call.1} parent=1 // pred_fallthru
      _
    // Predicated region
    $region42: #{tpu_custom_call.1} parent=1 // pred_check
      _
    $region43: #{tpu_custom_call.1} parent=1 // pred_check_branch
      %69 = sbr.rel (0) target = $region45
    $region44: #{tpu_custom_call.1} parent=1 // pred_region
      %70 = dma.done [#allocation9], 256
    $region45: #{tpu_custom_call.1} parent=1 // pred_fallthru
      _
    // Predicated region
    $region46: #{tpu_custom_call.1} parent=1 // pred_check
      _
    $region47: #{tpu_custom_call.1} parent=1 // pred_check_branch
      %72 = sbr.rel (0) target = $region49
    $region48: #{tpu_custom_call.1} parent=1 // pred_region
      %73 = dma.done [#allocation9], 512
    $region49: #{tpu_custom_call.1} parent=1 // pred_fallthru
      _
    %v74 = vlaneseq
    %v75 = vand.u32 %v74, 127
    %vm76 = vcmp.ge.s32.totalorder %v75, 64
    %vm77 = vcmp.lt.s32.totalorder %v75, 96
    %vm78 = vmand %vm76, %vm77
    %v79 = vld [vmem:[%s2] sm:$0xff]
    %v80 = vld [vmem:[%s2 + $0x8] sm:$0xff]
    %v81 = vld [vmem:[%s2 + $0x10] sm:$0xff]
    %v82 = vld [vmem:[%s2 + $0x18] sm:$0xff]
    %v83 = vld [vmem:[%s5] sm:$0xff]
    %v84 = vld [vmem:[%s5 + $0x8] sm:$0xff]
    %v85 = vld [vmem:[%s5 + $0x10] sm:$0xff]
    %v86 = vld [vmem:[%s5 + $0x18] sm:$0xff]
    %v87 = vld [vmem:[#allocation5] sm:$0x1]
    %v88 = vld [vmem:[#allocation5 + $0x8] sm:$0x1]
    %v89 = vld [vmem:[#allocation5 + $0x10] sm:$0x1]
    %v90 = vld [vmem:[#allocation5 + $0x18] sm:$0x1]
    %v91 = vld [vmem:[#allocation5 + $0x20] sm:$0x1]
    %v92 = vld [vmem:[#allocation5 + $0x28] sm:$0x1]
    %v93 = vld [vmem:[#allocation5 + $0x30] sm:$0x1]
    %v94 = vld [vmem:[#allocation5 + $0x38] sm:$0x1]
    %v103 = vrot.slane %v88, 7
    %vm104 = vcmask 1041409
    %v105 = vsel %vm104, %v103, %v87
    %v106 = vrot.slane %v89, 6
    %vm107 = vcmask 1042434
    %v108 = vsel %vm107, %v106, %v105
    %v109 = vrot.slane %v90, 5
    %vm110 = vcmask 1043459
    %v111 = vsel %vm110, %v109, %v108
    %v112 = vrot.slane %v91, 4
    %vm113 = vcmask 1044484
    %v114 = vsel %vm113, %v112, %v111
    %v115 = vrot.slane %v92, 3
    %vm116 = vcmask 1045509
    %v117 = vsel %vm116, %v115, %v114
    %v118 = vrot.slane %v93, 2
    %vm119 = vcmask 1046534
    %v120 = vsel %vm119, %v118, %v117
    %v121 = vrot.slane %v94, 1
    %vm122 = vcmask 1047559
    %v123 = vsel %vm122, %v121, %v120
    %vm125 = vcmask 130048
    %126 = vst.msk [vmem:[#allocation2] sm:$0xff] %vm125, %v123
    %v127 = vld [vmem:[#allocation5 + $0x1] sm:$0x1]
    %v128 = vld [vmem:[#allocation5 + $0x9] sm:$0x1]
    %v129 = vld [vmem:[#allocation5 + $0x11] sm:$0x1]
    %v130 = vld [vmem:[#allocation5 + $0x19] sm:$0x1]
    %v131 = vld [vmem:[#allocation5 + $0x21] sm:$0x1]
    %v132 = vld [vmem:[#allocation5 + $0x29] sm:$0x1]
    %v133 = vld [vmem:[#allocation5 + $0x31] sm:$0x1]
    %v134 = vld [vmem:[#allocation5 + $0x39] sm:$0x1]
    %v143 = vrot.slane %v128, 7
    %v144 = vsel %vm104, %v143, %v127
    %v145 = vrot.slane %v129, 6
    %v146 = vsel %vm107, %v145, %v144
    %v147 = vrot.slane %v130, 5
    %v148 = vsel %vm110, %v147, %v146
    %v149 = vrot.slane %v131, 4
    %v150 = vsel %vm113, %v149, %v148
    %v151 = vrot.slane %v132, 3
    %v152 = vsel %vm116, %v151, %v150
    %v153 = vrot.slane %v133, 2
    %v154 = vsel %vm119, %v153, %v152
    %v155 = vrot.slane %v134, 1
    %v156 = vsel %vm122, %v155, %v154
    %s158 = scalar_lea.vmem [#allocation2], 8
    %159 = vst.msk [vmem:[%s158] sm:$0xff] %vm125, %v156
    %v160 = vld [vmem:[#allocation5 + $0x2] sm:$0x1]
    %v161 = vld [vmem:[#allocation5 + $0xa] sm:$0x1]
    %v162 = vld [vmem:[#allocation5 + $0x12] sm:$0x1]
    %v163 = vld [vmem:[#allocation5 + $0x1a] sm:$0x1]
    %v164 = vld [vmem:[#allocation5 + $0x22] sm:$0x1]
    %v165 = vld [vmem:[#allocation5 + $0x2a] sm:$0x1]
    %v166 = vld [vmem:[#allocation5 + $0x32] sm:$0x1]
    %v167 = vld [vmem:[#allocation5 + $0x3a] sm:$0x1]
    %v176 = vrot.slane %v161, 7
    %v177 = vsel %vm104, %v176, %v160
    %v178 = vrot.slane %v162, 6
    %v179 = vsel %vm107, %v178, %v177
    %v180 = vrot.slane %v163, 5
    %v181 = vsel %vm110, %v180, %v179
    %v182 = vrot.slane %v164, 4
    %v183 = vsel %vm113, %v182, %v181
    %v184 = vrot.slane %v165, 3
    %v185 = vsel %vm116, %v184, %v183
    %v186 = vrot.slane %v166, 2
    %v187 = vsel %vm119, %v186, %v185
    %v188 = vrot.slane %v167, 1
    %v189 = vsel %vm122, %v188, %v187
    %s191 = scalar_lea.vmem [#allocation2], 16
    %192 = vst.msk [vmem:[%s191] sm:$0xff] %vm125, %v189
    %v193 = vld [vmem:[#allocation5 + $0x3] sm:$0x1]
    %v194 = vld [vmem:[#allocation5 + $0xb] sm:$0x1]
    %v195 = vld [vmem:[#allocation5 + $0x13] sm:$0x1]
    %v196 = vld [vmem:[#allocation5 + $0x1b] sm:$0x1]
    %v197 = vld [vmem:[#allocation5 + $0x23] sm:$0x1]
    %v198 = vld [vmem:[#allocation5 + $0x2b] sm:$0x1]
    %v199 = vld [vmem:[#allocation5 + $0x33] sm:$0x1]
    %v200 = vld [vmem:[#allocation5 + $0x3b] sm:$0x1]
    %v209 = vrot.slane %v194, 7
    %v210 = vsel %vm104, %v209, %v193
    %v211 = vrot.slane %v195, 6
    %v212 = vsel %vm107, %v211, %v210
    %v213 = vrot.slane %v196, 5
    %v214 = vsel %vm110, %v213, %v212
    %v215 = vrot.slane %v197, 4
    %v216 = vsel %vm113, %v215, %v214
    %v217 = vrot.slane %v198, 3
    %v218 = vsel %vm116, %v217, %v216
    %v219 = vrot.slane %v199, 2
    %v220 = vsel %vm119, %v219, %v218
    %v221 = vrot.slane %v200, 1
    %v222 = vsel %vm122, %v221, %v220
    %s224 = scalar_lea.vmem [#allocation2], 24
    %225 = vst.msk [vmem:[%s224] sm:$0xff] %vm125, %v222
    %v226 = vld [vmem:[#allocation5 + $0x4] sm:$0x1]
    %v227 = vld [vmem:[#allocation5 + $0xc] sm:$0x1]
    %v228 = vld [vmem:[#allocation5 + $0x14] sm:$0x1]
    %v229 = vld [vmem:[#allocation5 + $0x1c] sm:$0x1]
    %v230 = vld [vmem:[#allocation5 + $0x24] sm:$0x1]
    %v231 = vld [vmem:[#allocation5 + $0x2c] sm:$0x1]
    %v232 = vld [vmem:[#allocation5 + $0x34] sm:$0x1]
    %v233 = vld [vmem:[#allocation5 + $0x3c] sm:$0x1]
    %v242 = vrot.slane %v227, 7
    %v243 = vsel %vm104, %v242, %v226
    %v244 = vrot.slane %v228, 6
    %v245 = vsel %vm107, %v244, %v243
    %v246 = vrot.slane %v229, 5
    %v247 = vsel %vm110, %v246, %v245
    %v248 = vrot.slane %v230, 4
    %v249 = vsel %vm113, %v248, %v247
    %v250 = vrot.slane %v231, 3
    %v251 = vsel %vm116, %v250, %v249
    %v252 = vrot.slane %v232, 2
    %v253 = vsel %vm119, %v252, %v251
    %v254 = vrot.slane %v233, 1
    %v255 = vsel %vm122, %v254, %v253
    %s257 = scalar_lea.vmem [#allocation2], 32
    %258 = vst.msk [vmem:[%s257] sm:$0xff] %vm125, %v255
    %v259 = vld [vmem:[#allocation5 + $0x5] sm:$0x1]
    %v260 = vld [vmem:[#allocation5 + $0xd] sm:$0x1]
    %v261 = vld [vmem:[#allocation5 + $0x15] sm:$0x1]
    %v262 = vld [vmem:[#allocation5 + $0x1d] sm:$0x1]
    %v263 = vld [vmem:[#allocation5 + $0x25] sm:$0x1]
    %v264 = vld [vmem:[#allocation5 + $0x2d] sm:$0x1]
    %v265 = vld [vmem:[#allocation5 + $0x35] sm:$0x1]
    %v266 = vld [vmem:[#allocation5 + $0x3d] sm:$0x1]
    %v275 = vrot.slane %v260, 7
    %v276 = vsel %vm104, %v275, %v259
    %v277 = vrot.slane %v261, 6
    %v278 = vsel %vm107, %v277, %v276
    %v279 = vrot.slane %v262, 5
    %v280 = vsel %vm110, %v279, %v278
    %v281 = vrot.slane %v263, 4
    %v282 = vsel %vm113, %v281, %v280
    %v283 = vrot.slane %v264, 3
    %v284 = vsel %vm116, %v283, %v282
    %v285 = vrot.slane %v265, 2
    %v286 = vsel %vm119, %v285, %v284
    %v287 = vrot.slane %v266, 1
    %v288 = vsel %vm122, %v287, %v286
    %s290 = scalar_lea.vmem [#allocation2], 40
    %291 = vst.msk [vmem:[%s290] sm:$0xff] %vm125, %v288
    %v292 = vld [vmem:[#allocation5 + $0x6] sm:$0x1]
    %v293 = vld [vmem:[#allocation5 + $0xe] sm:$0x1]
    %v294 = vld [vmem:[#allocation5 + $0x16] sm:$0x1]
    %v295 = vld [vmem:[#allocation5 + $0x1e] sm:$0x1]
    %v296 = vld [vmem:[#allocation5 + $0x26] sm:$0x1]
    %v297 = vld [vmem:[#allocation5 + $0x2e] sm:$0x1]
    %v298 = vld [vmem:[#allocation5 + $0x36] sm:$0x1]
    %v299 = vld [vmem:[#allocation5 + $0x3e] sm:$0x1]
    %v308 = vrot.slane %v293, 7
    %v309 = vsel %vm104, %v308, %v292
    %v310 = vrot.slane %v294, 6
    %v311 = vsel %vm107, %v310, %v309
    %v312 = vrot.slane %v295, 5
    %v313 = vsel %vm110, %v312, %v311
    %v314 = vrot.slane %v296, 4
    %v315 = vsel %vm113, %v314, %v313
    %v316 = vrot.slane %v297, 3
    %v317 = vsel %vm116, %v316, %v315
    %v318 = vrot.slane %v298, 2
    %v319 = vsel %vm119, %v318, %v317
    %v320 = vrot.slane %v299, 1
    %v321 = vsel %vm122, %v320, %v319
    %s323 = scalar_lea.vmem [#allocation2], 48
    %324 = vst.msk [vmem:[%s323] sm:$0xff] %vm125, %v321
    %v325 = vld [vmem:[#allocation5 + $0x7] sm:$0x1]
    %v326 = vld [vmem:[#allocation5 + $0xf] sm:$0x1]
    %v327 = vld [vmem:[#allocation5 + $0x17] sm:$0x1]
    %v328 = vld [vmem:[#allocation5 + $0x1f] sm:$0x1]
    %v329 = vld [vmem:[#allocation5 + $0x27] sm:$0x1]
    %v330 = vld [vmem:[#allocation5 + $0x2f] sm:$0x1]
    %v331 = vld [vmem:[#allocation5 + $0x37] sm:$0x1]
    %v332 = vld [vmem:[#allocation5 + $0x3f] sm:$0x1]
    %v341 = vrot.slane %v326, 7
    %v342 = vsel %vm104, %v341, %v325
    %v343 = vrot.slane %v327, 6
    %v344 = vsel %vm107, %v343, %v342
    %v345 = vrot.slane %v328, 5
    %v346 = vsel %vm110, %v345, %v344
    %v347 = vrot.slane %v329, 4
    %v348 = vsel %vm113, %v347, %v346
    %v349 = vrot.slane %v330, 3
    %v350 = vsel %vm116, %v349, %v348
    %v351 = vrot.slane %v331, 2
    %v352 = vsel %vm119, %v351, %v350
    %v353 = vrot.slane %v332, 1
    %v354 = vsel %vm122, %v353, %v352
    %s356 = scalar_lea.vmem [#allocation2], 56
    %357 = vst.msk [vmem:[%s356] sm:$0xff] %vm125, %v354
    %v358 = vld [vmem:[#allocation2] sm:$0xff]
    %v359 = vld [vmem:[#allocation2 + $0x8] sm:$0xff]
    %v360 = vld [vmem:[#allocation2 + $0x10] sm:$0xff]
    %v361 = vld [vmem:[#allocation2 + $0x18] sm:$0xff]
    %v362 = vld [vmem:[#allocation2 + $0x20] sm:$0xff]
    %v363 = vld [vmem:[#allocation2 + $0x28] sm:$0xff]
    %v364 = vld [vmem:[#allocation2 + $0x30] sm:$0xff]
    %v365 = vld [vmem:[#allocation2 + $0x38] sm:$0xff]
    %v366 = vld [vmem:[#allocation8] sm:$0xff]
    %v367 = vld [vmem:[#allocation8 + $0x8] sm:$0xff]
    %v368 = vld [vmem:[%s3] sm:$0x1]
    %v370 = vlaneseq
    %v371 = vshrl.u32 %v370, 7
    %v372 = vsub.s32 0, %v371
    %v373 = vrot.slane %v368, %v372
    %v376 = vsel %vm125, %v358, 0
    %v379 = vsel %vm125, %v359, 0
    %v382 = vsel %vm125, %v360, 0
    %v385 = vsel %vm125, %v361, 0
    %v388 = vsel %vm125, %v362, 0
    %v391 = vsel %vm125, %v363, 0
    %v394 = vsel %vm125, %v364, 0
    %v397 = vsel %vm125, %v365, 0
    %399 = vmatprep.subr.mxu0 0.0
    %400 = vmatpush1.msra.mxu0 %v366
    %401 = vmatprep.subr.mxu0 0.0
    %402 = vmatpush1.msra.mxu0 %v367
    %403 = vmatprep.subr.mxu0 0.0
    %404 = vmatpush1.msra.mxu0 0.0
    %405 = vmatprep.subr.mxu0 0.0
    %406 = vmatpush1.msra.mxu0 0.0
    %407 = vmatprep.subr.mxu0 0.0
    %408 = vmatpush1.msra.mxu0 0.0
    %409 = vmatprep.subr.mxu0 0.0
    %410 = vmatpush1.msra.mxu0 0.0
    %411 = vmatprep.subr.mxu0 0.0
    %412 = vmatpush1.msra.mxu0 0.0
    %413 = vmatprep.subr.mxu0 0.0
    %414 = vmatpush1.msra.mxu0 0.0
    %415 = vmatprep.subr.mxu0 0.0
    %416 = vmatpush1.msra.mxu0 0.0
    %417 = vmatprep.subr.mxu0 0.0
    %418 = vmatpush1.msra.mxu0 0.0
    %419 = vmatprep.subr.mxu0 0.0
    %420 = vmatpush1.msra.mxu0 0.0
    %421 = vmatprep.subr.mxu0 0.0
    %422 = vmatpush1.msra.mxu0 0.0
    %423 = vmatprep.subr.mxu0 0.0
    %424 = vmatpush1.msra.mxu0 0.0
    %425 = vmatprep.subr.mxu0 0.0
    %426 = vmatpush1.msra.mxu0 0.0
    %427 = vmatprep.subr.mxu0 0.0
    %428 = vmatpush1.msra.mxu0 0.0
    %429 = vmatprep.subr.mxu0 0.0
    %430 = vmatpush1.msra.mxu0 0.0
    %431 = vmatprep.subr.mxu0 0.0
    %432 = vmatpush1.msra.mxu0 0.0
    %433 = vmatprep.subr.mxu0 0.0
    %434 = vmatpush1.msra.mxu0 0.0
    %435 = vmatprep.subr.mxu0 0.0
    %436 = vmatpush1.msra.mxu0 0.0
    %437 = vmatprep.subr.mxu0 0.0
    %438 = vmatpush1.msra.mxu0 0.0
    %439 = vmatprep.subr.mxu0 0.0
    %440 = vmatpush1.msra.mxu0 0.0
    %441 = vmatprep.subr.mxu0 0.0
    %442 = vmatpush1.msra.mxu0 0.0
    %443 = vmatprep.subr.mxu0 0.0
    %444 = vmatpush1.msra.mxu0 0.0
    %445 = vmatprep.subr.mxu0 0.0
    %446 = vmatpush1.msra.mxu0 0.0
    %447 = vmatprep.subr.mxu0 0.0
    %448 = vmatpush1.msra.mxu0 0.0
    %449 = vmatprep.subr.mxu0 0.0
    %450 = vmatpush1.msra.mxu0 0.0
    %451 = vmatprep.subr.mxu0 0.0
    %452 = vmatpush1.msra.mxu0 0.0
    %453 = vmatprep.subr.mxu0 0.0
    %454 = vmatpush1.msra.mxu0 0.0
    %455 = vmatprep.subr.mxu0 0.0
    %456 = vmatpush1.msra.mxu0 0.0
    %457 = vmatprep.subr.mxu0 0.0
    %458 = vmatpush1.msra.mxu0 0.0
    %459 = vmatprep.subr.mxu0 0.0
    %460 = vmatpush1.msra.mxu0 0.0
    %461 = vmatprep.subr.mxu0 0.0
    %462 = vmatpush1.msra.mxu0 0.0
    %463 = vmatprep.mubr.f32.mxu0 0.0
    %464 = vmatmul.mubr.f32.gmra.mrb[0].mxu0 %v376
    %v465 = vpop.f32.mrb[0].mxu0
    %v466 = vadd.f32 %v373, %v465
    %v467 = vpop.f32.mrb[0].mxu0
    %468 = vmatprep.mubr.f32.mxu0 0.0
    %469 = vmatmul.mubr.f32.gmra.mrb[0].mxu0 %v379
    %v470 = vpop.f32.mrb[0].mxu0
    %v471 = vadd.f32 %v373, %v470
    %v472 = vpop.f32.mrb[0].mxu0
    %473 = vmatprep.mubr.f32.mxu0 0.0
    %474 = vmatmul.mubr.f32.gmra.mrb[0].mxu0 %v382
    %v475 = vpop.f32.mrb[0].mxu0
    %v476 = vadd.f32 %v373, %v475
    %v477 = vpop.f32.mrb[0].mxu0
    %478 = vmatprep.mubr.f32.mxu0 0.0
    %479 = vmatmul.mubr.f32.gmra.mrb[0].mxu0 %v385
    %v480 = vpop.f32.mrb[0].mxu0
    %v481 = vadd.f32 %v373, %v480
    %v482 = vpop.f32.mrb[0].mxu0
    %483 = vmatprep.mubr.f32.mxu0 0.0
    %484 = vmatmul.mubr.f32.gmra.mrb[0].mxu0 %v388
    %v485 = vpop.f32.mrb[0].mxu0
    %v486 = vadd.f32 %v373, %v485
    %v487 = vpop.f32.mrb[0].mxu0
    %488 = vmatprep.mubr.f32.mxu0 0.0
    %489 = vmatmul.mubr.f32.gmra.mrb[0].mxu0 %v391
    %v490 = vpop.f32.mrb[0].mxu0
    %v491 = vadd.f32 %v373, %v490
    %v492 = vpop.f32.mrb[0].mxu0
    %493 = vmatprep.mubr.f32.mxu0 0.0
    %494 = vmatmul.mubr.f32.gmra.mrb[0].mxu0 %v394
    %v495 = vpop.f32.mrb[0].mxu0
    %v496 = vadd.f32 %v373, %v495
    %v497 = vpop.f32.mrb[0].mxu0
    %498 = vmatprep.mubr.f32.mxu0 0.0
    %499 = vmatmul.mubr.f32.gmra.mrb[0].mxu0 %v397
    %v500 = vpop.f32.mrb[0].mxu0
    %v501 = vadd.f32 %v373, %v500
    %v502 = vpop.f32.mrb[0].mxu0
    %503 = vdwg.mxu0
    %504 = vst [vmem:[#allocation3] sm:$0xff] %v466
    %505 = vst [vmem:[#allocation3 + $0x8] sm:$0xff] %v471
    %506 = vst [vmem:[#allocation3 + $0x10] sm:$0xff] %v476
    %507 = vst [vmem:[#allocation3 + $0x18] sm:$0xff] %v481
    %508 = vst [vmem:[#allocation3 + $0x20] sm:$0xff] %v486
    %509 = vst [vmem:[#allocation3 + $0x28] sm:$0xff] %v491
    %510 = vst [vmem:[#allocation3 + $0x30] sm:$0xff] %v496
    %511 = vst [vmem:[#allocation3 + $0x38] sm:$0xff] %v501
    %v512 = vld [vmem:[#allocation3] sm:$0xff]
    %vm513 = vcmask 261120
    %v515 = vsel %vm513, 0.0, 0
    %517 = vmatprep.subr.mxu0 0.0
    %518 = vmatpush1.msra.mxu0 %v79
    %519 = vmatprep.subr.mxu0 0.0
    %520 = vmatpush1.msra.mxu0 %v80
    %521 = vmatprep.subr.mxu0 0.0
    %522 = vmatpush1.msra.mxu0 %v81
    %523 = vmatprep.subr.mxu0 0.0
    %524 = vmatpush1.msra.mxu0 %v82
    %525 = vmatprep.subr.mxu0 0.0
    %526 = vmatpush1.msra.mxu0 0.0
    %527 = vmatprep.subr.mxu0 0.0
    %528 = vmatpush1.msra.mxu0 0.0
    %529 = vmatprep.subr.mxu0 0.0
    %530 = vmatpush1.msra.mxu0 0.0
    %531 = vmatprep.subr.mxu0 0.0
    %532 = vmatpush1.msra.mxu0 0.0
    %533 = vmatprep.subr.mxu0 0.0
    %534 = vmatpush1.msra.mxu0 0.0
    %535 = vmatprep.subr.mxu0 0.0
    %536 = vmatpush1.msra.mxu0 0.0
    %537 = vmatprep.subr.mxu0 0.0
    %538 = vmatpush1.msra.mxu0 0.0
    %539 = vmatprep.subr.mxu0 0.0
    %540 = vmatpush1.msra.mxu0 0.0
    %541 = vmatprep.subr.mxu0 0.0
    %542 = vmatpush1.msra.mxu0 0.0
    %543 = vmatprep.subr.mxu0 0.0
    %544 = vmatpush1.msra.mxu0 0.0
    %545 = vmatprep.subr.mxu0 0.0
    %546 = vmatpush1.msra.mxu0 0.0
    %547 = vmatprep.subr.mxu0 0.0
    %548 = vmatpush1.msra.mxu0 0.0
    %549 = vmatprep.subr.mxu0 0.0
    %550 = vmatpush1.msra.mxu0 0.0
    %551 = vmatprep.subr.mxu0 0.0
    %552 = vmatpush1.msra.mxu0 0.0
    %553 = vmatprep.subr.mxu0 0.0
    %554 = vmatpush1.msra.mxu0 0.0
    %555 = vmatprep.subr.mxu0 0.0
    %556 = vmatpush1.msra.mxu0 0.0
    %557 = vmatprep.subr.mxu0 0.0
    %558 = vmatpush1.msra.mxu0 0.0
    %559 = vmatprep.subr.mxu0 0.0
    %560 = vmatpush1.msra.mxu0 0.0
    %561 = vmatprep.subr.mxu0 0.0
    %562 = vmatpush1.msra.mxu0 0.0
    %563 = vmatprep.subr.mxu0 0.0
    %564 = vmatpush1.msra.mxu0 0.0
    %565 = vmatprep.subr.mxu0 0.0
    %566 = vmatpush1.msra.mxu0 0.0
    %567 = vmatprep.subr.mxu0 0.0
    %568 = vmatpush1.msra.mxu0 0.0
    %569 = vmatprep.subr.mxu0 0.0
    %570 = vmatpush1.msra.mxu0 0.0
    %571 = vmatprep.subr.mxu0 0.0
    %572 = vmatpush1.msra.mxu0 0.0
    %573 = vmatprep.subr.mxu0 0.0
    %574 = vmatpush1.msra.mxu0 0.0
    %575 = vmatprep.subr.mxu0 0.0
    %576 = vmatpush1.msra.mxu0 0.0
    %577 = vmatprep.subr.mxu0 0.0
    %578 = vmatpush1.msra.mxu0 0.0
    %579 = vmatprep.subr.mxu0 0.0
    %580 = vmatpush1.msra.mxu0 0.0
    %581 = vmatprep.mubr.f32.mxu0 0.0
    %582 = vmatmul.mubr.f32.gmra.mrb[0].mxu0 %v515
    %v583 = vpop.f32.mrb[0].mxu0
    %v584 = vadd.f32 0.0, %v583
    %v585 = vpop.f32.mrb[0].mxu0
    %586 = vdwg.mxu0
    %v587 = vadd.f32 %v512, %v584
    %v588 = vmul.f32 %v587, 0.5
    %v589 = vsel %vm78, %v587, %v588
    %v590 = vtanh.pop %v589
    %v591 = vmul.f32 %v590, 0.5
    %v592 = vadd.f32 %v591, 0.5
    %v593 = vsel %vm78, %v590, %v592
    %v594 = vmul.f32 %v593, 0.0
    %596 = vrot.lane.b32.xlu0 %v593, 64
    %v597 = vpop.permute.xlu0 %596
    %v599 = vmul.f32 %v593, %v597
    %601 = vrot.lane.b32.xlu0 %v599, 32
    %v602 = vpop.permute.xlu0 %601
    %v604 = vadd.f32 %v594, %v602
    %v605 = vtanh.pop %v604
    %607 = vrot.lane.b32.xlu0 %v605, 64
    %v608 = vpop.permute.xlu0 %607
    %v610 = vmul.f32 %v593, %v608
    %s611 = scalar_lea.vmem [#allocation3], 8
    %v612 = vld [vmem:[%s611] sm:$0xff]
    %614 = vrot.lane.b32.xlu0 %v610, 32
    %v615 = vpop.permute.xlu0 %614
    %v616 = vsel %vm513, %v615, 0
    %618 = vmatprep.subr.mxu0 0.0
    %619 = vmatpush1.msra.mxu0 %v79
    %620 = vmatprep.subr.mxu0 0.0
    %621 = vmatpush1.msra.mxu0 %v80
    %622 = vmatprep.subr.mxu0 0.0
    %623 = vmatpush1.msra.mxu0 %v81
    %624 = vmatprep.subr.mxu0 0.0
    %625 = vmatpush1.msra.mxu0 %v82
    %626 = vmatprep.subr.mxu0 0.0
    %627 = vmatpush1.msra.mxu0 0.0
    %628 = vmatprep.subr.mxu0 0.0
    %629 = vmatpush1.msra.mxu0 0.0
    %630 = vmatprep.subr.mxu0 0.0
    %631 = vmatpush1.msra.mxu0 0.0
    %632 = vmatprep.subr.mxu0 0.0
    %633 = vmatpush1.msra.mxu0 0.0
    %634 = vmatprep.subr.mxu0 0.0
    %635 = vmatpush1.msra.mxu0 0.0
    %636 = vmatprep.subr.mxu0 0.0
    %637 = vmatpush1.msra.mxu0 0.0
    %638 = vmatprep.subr.mxu0 0.0
    %639 = vmatpush1.msra.mxu0 0.0
    %640 = vmatprep.subr.mxu0 0.0
    %641 = vmatpush1.msra.mxu0 0.0
    %642 = vmatprep.subr.mxu0 0.0
    %643 = vmatpush1.msra.mxu0 0.0
    %644 = vmatprep.subr.mxu0 0.0
    %645 = vmatpush1.msra.mxu0 0.0
    %646 = vmatprep.subr.mxu0 0.0
    %647 = vmatpush1.msra.mxu0 0.0
    %648 = vmatprep.subr.mxu0 0.0
    %649 = vmatpush1.msra.mxu0 0.0
    %650 = vmatprep.subr.mxu0 0.0
    %651 = vmatpush1.msra.mxu0 0.0
    %652 = vmatprep.subr.mxu0 0.0
    %653 = vmatpush1.msra.mxu0 0.0
    %654 = vmatprep.subr.mxu0 0.0
    %655 = vmatpush1.msra.mxu0 0.0
    %656 = vmatprep.subr.mxu0 0.0
    %657 = vmatpush1.msra.mxu0 0.0
    %658 = vmatprep.subr.mxu0 0.0
    %659 = vmatpush1.msra.mxu0 0.0
    %660 = vmatprep.subr.mxu0 0.0
    %661 = vmatpush1.msra.mxu0 0.0
    %662 = vmatprep.subr.mxu0 0.0
    %663 = vmatpush1.msra.mxu0 0.0
    %664 = vmatprep.subr.mxu0 0.0
    %665 = vmatpush1.msra.mxu0 0.0
    %666 = vmatprep.subr.mxu0 0.0
    %667 = vmatpush1.msra.mxu0 0.0
    %668 = vmatprep.subr.mxu0 0.0
    %669 = vmatpush1.msra.mxu0 0.0
    %670 = vmatprep.subr.mxu0 0.0
    %671 = vmatpush1.msra.mxu0 0.0
    %672 = vmatprep.subr.mxu0 0.0
    %673 = vmatpush1.msra.mxu0 0.0
    %674 = vmatprep.subr.mxu0 0.0
    %675 = vmatpush1.msra.mxu0 0.0
    %676 = vmatprep.subr.mxu0 0.0
    %677 = vmatpush1.msra.mxu0 0.0
    %678 = vmatprep.subr.mxu0 0.0
    %679 = vmatpush1.msra.mxu0 0.0
    %680 = vmatprep.subr.mxu0 0.0
    %681 = vmatpush1.msra.mxu0 0.0
    %682 = vmatprep.mubr.f32.mxu0 0.0
    %683 = vmatmul.mubr.f32.gmra.mrb[0].mxu0 %v616
    %v684 = vpop.f32.mrb[0].mxu0
    %v685 = vadd.f32 0.0, %v684
    %v686 = vpop.f32.mrb[0].mxu0
    %687 = vdwg.mxu0
    %v688 = vadd.f32 %v612, %v685
    %v689 = vmul.f32 %v688, 0.5
    %v690 = vsel %vm78, %v688, %v689
    %v691 = vtanh.pop %v690
    %v692 = vmul.f32 %v691, 0.5
    %v693 = vadd.f32 %v692, 0.5
    %v694 = vsel %vm78, %v691, %v693
    %v695 = vmul.f32 %v694, %v604
    %697 = vrot.lane.b32.xlu0 %v694, 64
    %v698 = vpop.permute.xlu0 %697
    %v700 = vmul.f32 %v694, %v698
    %702 = vrot.lane.b32.xlu0 %v700, 32
    %v703 = vpop.permute.xlu0 %702
    %v705 = vadd.f32 %v695, %v703
    %v706 = vtanh.pop %v705
    %708 = vrot.lane.b32.xlu0 %v706, 64
    %v709 = vpop.permute.xlu0 %708
    %v711 = vmul.f32 %v694, %v709
    %s712 = scalar_lea.vmem [#allocation3], 16
    %v713 = vld [vmem:[%s712] sm:$0xff]
    %715 = vrot.lane.b32.xlu0 %v711, 32
    %v716 = vpop.permute.xlu0 %715
    %v717 = vsel %vm513, %v716, 0
    %719 = vmatprep.subr.mxu0 0.0
    %720 = vmatpush1.msra.mxu0 %v79
    %721 = vmatprep.subr.mxu0 0.0
    %722 = vmatpush1.msra.mxu0 %v80
    %723 = vmatprep.subr.mxu0 0.0
    %724 = vmatpush1.msra.mxu0 %v81
    %725 = vmatprep.subr.mxu0 0.0
    %726 = vmatpush1.msra.mxu0 %v82
    %727 = vmatprep.subr.mxu0 0.0
    %728 = vmatpush1.msra.mxu0 0.0
    %729 = vmatprep.subr.mxu0 0.0
    %730 = vmatpush1.msra.mxu0 0.0
    %731 = vmatprep.subr.mxu0 0.0
    %732 = vmatpush1.msra.mxu0 0.0
    %733 = vmatprep.subr.mxu0 0.0
    %734 = vmatpush1.msra.mxu0 0.0
    %735 = vmatprep.subr.mxu0 0.0
    %736 = vmatpush1.msra.mxu0 0.0
    %737 = vmatprep.subr.mxu0 0.0
    %738 = vmatpush1.msra.mxu0 0.0
    %739 = vmatprep.subr.mxu0 0.0
    %740 = vmatpush1.msra.mxu0 0.0
    %741 = vmatprep.subr.mxu0 0.0
    %742 = vmatpush1.msra.mxu0 0.0
    %743 = vmatprep.subr.mxu0 0.0
    %744 = vmatpush1.msra.mxu0 0.0
    %745 = vmatprep.subr.mxu0 0.0
    %746 = vmatpush1.msra.mxu0 0.0
    %747 = vmatprep.subr.mxu0 0.0
    %748 = vmatpush1.msra.mxu0 0.0
    %749 = vmatprep.subr.mxu0 0.0
    %750 = vmatpush1.msra.mxu0 0.0
    %751 = vmatprep.subr.mxu0 0.0
    %752 = vmatpush1.msra.mxu0 0.0
    %753 = vmatprep.subr.mxu0 0.0
    %754 = vmatpush1.msra.mxu0 0.0
    %755 = vmatprep.subr.mxu0 0.0
    %756 = vmatpush1.msra.mxu0 0.0
    %757 = vmatprep.subr.mxu0 0.0
    %758 = vmatpush1.msra.mxu0 0.0
    %759 = vmatprep.subr.mxu0 0.0
    %760 = vmatpush1.msra.mxu0 0.0
    %761 = vmatprep.subr.mxu0 0.0
    %762 = vmatpush1.msra.mxu0 0.0
    %763 = vmatprep.subr.mxu0 0.0
    %764 = vmatpush1.msra.mxu0 0.0
    %765 = vmatprep.subr.mxu0 0.0
    %766 = vmatpush1.msra.mxu0 0.0
    %767 = vmatprep.subr.mxu0 0.0
    %768 = vmatpush1.msra.mxu0 0.0
    %769 = vmatprep.subr.mxu0 0.0
    %770 = vmatpush1.msra.mxu0 0.0
    %771 = vmatprep.subr.mxu0 0.0
    %772 = vmatpush1.msra.mxu0 0.0
    %773 = vmatprep.subr.mxu0 0.0
    %774 = vmatpush1.msra.mxu0 0.0
    %775 = vmatprep.subr.mxu0 0.0
    %776 = vmatpush1.msra.mxu0 0.0
    %777 = vmatprep.subr.mxu0 0.0
    %778 = vmatpush1.msra.mxu0 0.0
    %779 = vmatprep.subr.mxu0 0.0
    %780 = vmatpush1.msra.mxu0 0.0
    %781 = vmatprep.subr.mxu0 0.0
    %782 = vmatpush1.msra.mxu0 0.0
    %783 = vmatprep.mubr.f32.mxu0 0.0
    %784 = vmatmul.mubr.f32.gmra.mrb[0].mxu0 %v717
    %v785 = vpop.f32.mrb[0].mxu0
    %v786 = vadd.f32 0.0, %v785
    %v787 = vpop.f32.mrb[0].mxu0
    %788 = vdwg.mxu0
    %v789 = vadd.f32 %v713, %v786
    %v790 = vmul.f32 %v789, 0.5
    %v791 = vsel %vm78, %v789, %v790
    %v792 = vtanh.pop %v791
    %v793 = vmul.f32 %v792, 0.5
    %v794 = vadd.f32 %v793, 0.5
    %v795 = vsel %vm78, %v792, %v794
    %v796 = vmul.f32 %v795, %v705
    %798 = vrot.lane.b32.xlu0 %v795, 64
    %v799 = vpop.permute.xlu0 %798
    %v801 = vmul.f32 %v795, %v799
    %803 = vrot.lane.b32.xlu0 %v801, 32
    %v804 = vpop.permute.xlu0 %803
    %v806 = vadd.f32 %v796, %v804
    %v807 = vtanh.pop %v806
    %809 = vrot.lane.b32.xlu0 %v807, 64
    %v810 = vpop.permute.xlu0 %809
    %v812 = vmul.f32 %v795, %v810
    %s813 = scalar_lea.vmem [#allocation3], 24
    %v814 = vld [vmem:[%s813] sm:$0xff]
    %816 = vrot.lane.b32.xlu0 %v812, 32
    %v817 = vpop.permute.xlu0 %816
    %v818 = vsel %vm513, %v817, 0
    %820 = vmatprep.subr.mxu0 0.0
    %821 = vmatpush1.msra.mxu0 %v79
    %822 = vmatprep.subr.mxu0 0.0
    %823 = vmatpush1.msra.mxu0 %v80
    %824 = vmatprep.subr.mxu0 0.0
    %825 = vmatpush1.msra.mxu0 %v81
    %826 = vmatprep.subr.mxu0 0.0
    %827 = vmatpush1.msra.mxu0 %v82
    %828 = vmatprep.subr.mxu0 0.0
    %829 = vmatpush1.msra.mxu0 0.0
    %830 = vmatprep.subr.mxu0 0.0
    %831 = vmatpush1.msra.mxu0 0.0
    %832 = vmatprep.subr.mxu0 0.0
    %833 = vmatpush1.msra.mxu0 0.0
    %834 = vmatprep.subr.mxu0 0.0
    %835 = vmatpush1.msra.mxu0 0.0
    %836 = vmatprep.subr.mxu0 0.0
    %837 = vmatpush1.msra.mxu0 0.0
    %838 = vmatprep.subr.mxu0 0.0
    %839 = vmatpush1.msra.mxu0 0.0
    %840 = vmatprep.subr.mxu0 0.0
    %841 = vmatpush1.msra.mxu0 0.0
    %842 = vmatprep.subr.mxu0 0.0
    %843 = vmatpush1.msra.mxu0 0.0
    %844 = vmatprep.subr.mxu0 0.0
    %845 = vmatpush1.msra.mxu0 0.0
    %846 = vmatprep.subr.mxu0 0.0
    %847 = vmatpush1.msra.mxu0 0.0
    %848 = vmatprep.subr.mxu0 0.0
    %849 = vmatpush1.msra.mxu0 0.0
    %850 = vmatprep.subr.mxu0 0.0
    %851 = vmatpush1.msra.mxu0 0.0
    %852 = vmatprep.subr.mxu0 0.0
    %853 = vmatpush1.msra.mxu0 0.0
    %854 = vmatprep.subr.mxu0 0.0
    %855 = vmatpush1.msra.mxu0 0.0
    %856 = vmatprep.subr.mxu0 0.0
    %857 = vmatpush1.msra.mxu0 0.0
    %858 = vmatprep.subr.mxu0 0.0
    %859 = vmatpush1.msra.mxu0 0.0
    %860 = vmatprep.subr.mxu0 0.0
    %861 = vmatpush1.msra.mxu0 0.0
    %862 = vmatprep.subr.mxu0 0.0
    %863 = vmatpush1.msra.mxu0 0.0
    %864 = vmatprep.subr.mxu0 0.0
    %865 = vmatpush1.msra.mxu0 0.0
    %866 = vmatprep.subr.mxu0 0.0
    %867 = vmatpush1.msra.mxu0 0.0
    %868 = vmatprep.subr.mxu0 0.0
    %869 = vmatpush1.msra.mxu0 0.0
    %870 = vmatprep.subr.mxu0 0.0
    %871 = vmatpush1.msra.mxu0 0.0
    %872 = vmatprep.subr.mxu0 0.0
    %873 = vmatpush1.msra.mxu0 0.0
    %874 = vmatprep.subr.mxu0 0.0
    %875 = vmatpush1.msra.mxu0 0.0
    %876 = vmatprep.subr.mxu0 0.0
    %877 = vmatpush1.msra.mxu0 0.0
    %878 = vmatprep.subr.mxu0 0.0
    %879 = vmatpush1.msra.mxu0 0.0
    %880 = vmatprep.subr.mxu0 0.0
    %881 = vmatpush1.msra.mxu0 0.0
    %882 = vmatprep.subr.mxu0 0.0
    %883 = vmatpush1.msra.mxu0 0.0
    %884 = vmatprep.mubr.f32.mxu0 0.0
    %885 = vmatmul.mubr.f32.gmra.mrb[0].mxu0 %v818
    %v886 = vpop.f32.mrb[0].mxu0
    %v887 = vadd.f32 0.0, %v886
    %v888 = vpop.f32.mrb[0].mxu0
    %889 = vdwg.mxu0
    %v890 = vadd.f32 %v814, %v887
    %v891 = vmul.f32 %v890, 0.5
    %v892 = vsel %vm78, %v890, %v891
    %v893 = vtanh.pop %v892
    %v894 = vmul.f32 %v893, 0.5
    %v895 = vadd.f32 %v894, 0.5
    %v896 = vsel %vm78, %v893, %v895
    %v897 = vmul.f32 %v896, %v806
    %899 = vrot.lane.b32.xlu0 %v896, 64
    %v900 = vpop.permute.xlu0 %899
    %v902 = vmul.f32 %v896, %v900
    %904 = vrot.lane.b32.xlu0 %v902, 32
    %v905 = vpop.permute.xlu0 %904
    %v907 = vadd.f32 %v897, %v905
    %v908 = vtanh.pop %v907
    %910 = vrot.lane.b32.xlu0 %v908, 64
    %v911 = vpop.permute.xlu0 %910
    %v913 = vmul.f32 %v896, %v911
    %s914 = scalar_lea.vmem [#allocation3], 32
    %v915 = vld [vmem:[%s914] sm:$0xff]
    %917 = vrot.lane.b32.xlu0 %v913, 32
    %v918 = vpop.permute.xlu0 %917
    %v919 = vsel %vm513, %v918, 0
    %921 = vmatprep.subr.mxu0 0.0
    %922 = vmatpush1.msra.mxu0 %v79
    %923 = vmatprep.subr.mxu0 0.0
    %924 = vmatpush1.msra.mxu0 %v80
    %925 = vmatprep.subr.mxu0 0.0
    %926 = vmatpush1.msra.mxu0 %v81
    %927 = vmatprep.subr.mxu0 0.0
    %928 = vmatpush1.msra.mxu0 %v82
    %929 = vmatprep.subr.mxu0 0.0
    %930 = vmatpush1.msra.mxu0 0.0
    %931 = vmatprep.subr.mxu0 0.0
    %932 = vmatpush1.msra.mxu0 0.0
    %933 = vmatprep.subr.mxu0 0.0
    %934 = vmatpush1.msra.mxu0 0.0
    %935 = vmatprep.subr.mxu0 0.0
    %936 = vmatpush1.msra.mxu0 0.0
    %937 = vmatprep.subr.mxu0 0.0
    %938 = vmatpush1.msra.mxu0 0.0
    %939 = vmatprep.subr.mxu0 0.0
    %940 = vmatpush1.msra.mxu0 0.0
    %941 = vmatprep.subr.mxu0 0.0
    %942 = vmatpush1.msra.mxu0 0.0
    %943 = vmatprep.subr.mxu0 0.0
    %944 = vmatpush1.msra.mxu0 0.0
    %945 = vmatprep.subr.mxu0 0.0
    %946 = vmatpush1.msra.mxu0 0.0
    %947 = vmatprep.subr.mxu0 0.0
    %948 = vmatpush1.msra.mxu0 0.0
    %949 = vmatprep.subr.mxu0 0.0
    %950 = vmatpush1.msra.mxu0 0.0
    %951 = vmatprep.subr.mxu0 0.0
    %952 = vmatpush1.msra.mxu0 0.0
    %953 = vmatprep.subr.mxu0 0.0
    %954 = vmatpush1.msra.mxu0 0.0
    %955 = vmatprep.subr.mxu0 0.0
    %956 = vmatpush1.msra.mxu0 0.0
    %957 = vmatprep.subr.mxu0 0.0
    %958 = vmatpush1.msra.mxu0 0.0
    %959 = vmatprep.subr.mxu0 0.0
    %960 = vmatpush1.msra.mxu0 0.0
    %961 = vmatprep.subr.mxu0 0.0
    %962 = vmatpush1.msra.mxu0 0.0
    %963 = vmatprep.subr.mxu0 0.0
    %964 = vmatpush1.msra.mxu0 0.0
    %965 = vmatprep.subr.mxu0 0.0
    %966 = vmatpush1.msra.mxu0 0.0
    %967 = vmatprep.subr.mxu0 0.0
    %968 = vmatpush1.msra.mxu0 0.0
    %969 = vmatprep.subr.mxu0 0.0
    %970 = vmatpush1.msra.mxu0 0.0
    %971 = vmatprep.subr.mxu0 0.0
    %972 = vmatpush1.msra.mxu0 0.0
    %973 = vmatprep.subr.mxu0 0.0
    %974 = vmatpush1.msra.mxu0 0.0
    %975 = vmatprep.subr.mxu0 0.0
    %976 = vmatpush1.msra.mxu0 0.0
    %977 = vmatprep.subr.mxu0 0.0
    %978 = vmatpush1.msra.mxu0 0.0
    %979 = vmatprep.subr.mxu0 0.0
    %980 = vmatpush1.msra.mxu0 0.0
    %981 = vmatprep.subr.mxu0 0.0
    %982 = vmatpush1.msra.mxu0 0.0
    %983 = vmatprep.subr.mxu0 0.0
    %984 = vmatpush1.msra.mxu0 0.0
    %985 = vmatprep.mubr.f32.mxu0 0.0
    %986 = vmatmul.mubr.f32.gmra.mrb[0].mxu0 %v919
    %v987 = vpop.f32.mrb[0].mxu0
    %v988 = vadd.f32 0.0, %v987
    %v989 = vpop.f32.mrb[0].mxu0
    %990 = vdwg.mxu0
    %v991 = vadd.f32 %v915, %v988
    %v992 = vmul.f32 %v991, 0.5
    %v993 = vsel %vm78, %v991, %v992
    %v994 = vtanh.pop %v993
    %v995 = vmul.f32 %v994, 0.5
    %v996 = vadd.f32 %v995, 0.5
    %v997 = vsel %vm78, %v994, %v996
    %v998 = vmul.f32 %v997, %v907
    %1000 = vrot.lane.b32.xlu0 %v997, 64
    %v1001 = vpop.permute.xlu0 %1000
    %v1003 = vmul.f32 %v997, %v1001
    %1005 = vrot.lane.b32.xlu0 %v1003, 32
    %v1006 = vpop.permute.xlu0 %1005
    %v1008 = vadd.f32 %v998, %v1006
    %v1009 = vtanh.pop %v1008
    %1011 = vrot.lane.b32.xlu0 %v1009, 64
    %v1012 = vpop.permute.xlu0 %1011
    %v1014 = vmul.f32 %v997, %v1012
    %s1015 = scalar_lea.vmem [#allocation3], 40
    %v1016 = vld [vmem:[%s1015] sm:$0xff]
    %1018 = vrot.lane.b32.xlu0 %v1014, 32
    %v1019 = vpop.permute.xlu0 %1018
    %v1020 = vsel %vm513, %v1019, 0
    %1022 = vmatprep.subr.mxu0 0.0
    %1023 = vmatpush1.msra.mxu0 %v79
    %1024 = vmatprep.subr.mxu0 0.0
    %1025 = vmatpush1.msra.mxu0 %v80
    %1026 = vmatprep.subr.mxu0 0.0
    %1027 = vmatpush1.msra.mxu0 %v81
    %1028 = vmatprep.subr.mxu0 0.0
    %1029 = vmatpush1.msra.mxu0 %v82
    %1030 = vmatprep.subr.mxu0 0.0
    %1031 = vmatpush1.msra.mxu0 0.0
    %1032 = vmatprep.subr.mxu0 0.0
    %1033 = vmatpush1.msra.mxu0 0.0
    %1034 = vmatprep.subr.mxu0 0.0
    %1035 = vmatpush1.msra.mxu0 0.0
    %1036 = vmatprep.subr.mxu0 0.0
    %1037 = vmatpush1.msra.mxu0 0.0
    %1038 = vmatprep.subr.mxu0 0.0
    %1039 = vmatpush1.msra.mxu0 0.0
    %1040 = vmatprep.subr.mxu0 0.0
    %1041 = vmatpush1.msra.mxu0 0.0
    %1042 = vmatprep.subr.mxu0 0.0
    %1043 = vmatpush1.msra.mxu0 0.0
    %1044 = vmatprep.subr.mxu0 0.0
    %1045 = vmatpush1.msra.mxu0 0.0
    %1046 = vmatprep.subr.mxu0 0.0
    %1047 = vmatpush1.msra.mxu0 0.0
    %1048 = vmatprep.subr.mxu0 0.0
    %1049 = vmatpush1.msra.mxu0 0.0
    %1050 = vmatprep.subr.mxu0 0.0
    %1051 = vmatpush1.msra.mxu0 0.0
    %1052 = vmatprep.subr.mxu0 0.0
    %1053 = vmatpush1.msra.mxu0 0.0
    %1054 = vmatprep.subr.mxu0 0.0
    %1055 = vmatpush1.msra.mxu0 0.0
    %1056 = vmatprep.subr.mxu0 0.0
    %1057 = vmatpush1.msra.mxu0 0.0
    %1058 = vmatprep.subr.mxu0 0.0
    %1059 = vmatpush1.msra.mxu0 0.0
    %1060 = vmatprep.subr.mxu0 0.0
    %1061 = vmatpush1.msra.mxu0 0.0
    %1062 = vmatprep.subr.mxu0 0.0
    %1063 = vmatpush1.msra.mxu0 0.0
    %1064 = vmatprep.subr.mxu0 0.0
    %1065 = vmatpush1.msra.mxu0 0.0
    %1066 = vmatprep.subr.mxu0 0.0
    %1067 = vmatpush1.msra.mxu0 0.0
    %1068 = vmatprep.subr.mxu0 0.0
    %1069 = vmatpush1.msra.mxu0 0.0
    %1070 = vmatprep.subr.mxu0 0.0
    %1071 = vmatpush1.msra.mxu0 0.0
    %1072 = vmatprep.subr.mxu0 0.0
    %1073 = vmatpush1.msra.mxu0 0.0
    %1074 = vmatprep.subr.mxu0 0.0
    %1075 = vmatpush1.msra.mxu0 0.0
    %1076 = vmatprep.subr.mxu0 0.0
    %1077 = vmatpush1.msra.mxu0 0.0
    %1078 = vmatprep.subr.mxu0 0.0
    %1079 = vmatpush1.msra.mxu0 0.0
    %1080 = vmatprep.subr.mxu0 0.0
    %1081 = vmatpush1.msra.mxu0 0.0
    %1082 = vmatprep.subr.mxu0 0.0
    %1083 = vmatpush1.msra.mxu0 0.0
    %1084 = vmatprep.subr.mxu0 0.0
    %1085 = vmatpush1.msra.mxu0 0.0
    %1086 = vmatprep.mubr.f32.mxu0 0.0
    %1087 = vmatmul.mubr.f32.gmra.mrb[0].mxu0 %v1020
    %v1088 = vpop.f32.mrb[0].mxu0
    %v1089 = vadd.f32 0.0, %v1088
    %v1090 = vpop.f32.mrb[0].mxu0
    %1091 = vdwg.mxu0
    %v1092 = vadd.f32 %v1016, %v1089
    %v1093 = vmul.f32 %v1092, 0.5
    %v1094 = vsel %vm78, %v1092, %v1093
    %v1095 = vtanh.pop %v1094
    %v1096 = vmul.f32 %v1095, 0.5
    %v1097 = vadd.f32 %v1096, 0.5
    %v1098 = vsel %vm78, %v1095, %v1097
    %v1099 = vmul.f32 %v1098, %v1008
    %1101 = vrot.lane.b32.xlu0 %v1098, 64
    %v1102 = vpop.permute.xlu0 %1101
    %v1104 = vmul.f32 %v1098, %v1102
    %1106 = vrot.lane.b32.xlu0 %v1104, 32
    %v1107 = vpop.permute.xlu0 %1106
    %v1109 = vadd.f32 %v1099, %v1107
    %v1110 = vtanh.pop %v1109
    %1112 = vrot.lane.b32.xlu0 %v1110, 64
    %v1113 = vpop.permute.xlu0 %1112
    %v1115 = vmul.f32 %v1098, %v1113
    %s1116 = scalar_lea.vmem [#allocation3], 48
    %v1117 = vld [vmem:[%s1116] sm:$0xff]
    %1119 = vrot.lane.b32.xlu0 %v1115, 32
    %v1120 = vpop.permute.xlu0 %1119
    %v1121 = vsel %vm513, %v1120, 0
    %1123 = vmatprep.subr.mxu0 0.0
    %1124 = vmatpush1.msra.mxu0 %v79
    %1125 = vmatprep.subr.mxu0 0.0
    %1126 = vmatpush1.msra.mxu0 %v80
    %1127 = vmatprep.subr.mxu0 0.0
    %1128 = vmatpush1.msra.mxu0 %v81
    %1129 = vmatprep.subr.mxu0 0.0
    %1130 = vmatpush1.msra.mxu0 %v82
    %1131 = vmatprep.subr.mxu0 0.0
    %1132 = vmatpush1.msra.mxu0 0.0
    %1133 = vmatprep.subr.mxu0 0.0
    %1134 = vmatpush1.msra.mxu0 0.0
    %1135 = vmatprep.subr.mxu0 0.0
    %1136 = vmatpush1.msra.mxu0 0.0
    %1137 = vmatprep.subr.mxu0 0.0
    %1138 = vmatpush1.msra.mxu0 0.0
    %1139 = vmatprep.subr.mxu0 0.0
    %1140 = vmatpush1.msra.mxu0 0.0
    %1141 = vmatprep.subr.mxu0 0.0
    %1142 = vmatpush1.msra.mxu0 0.0
    %1143 = vmatprep.subr.mxu0 0.0
    %1144 = vmatpush1.msra.mxu0 0.0
    %1145 = vmatprep.subr.mxu0 0.0
    %1146 = vmatpush1.msra.mxu0 0.0
    %1147 = vmatprep.subr.mxu0 0.0
    %1148 = vmatpush1.msra.mxu0 0.0
    %1149 = vmatprep.subr.mxu0 0.0
    %1150 = vmatpush1.msra.mxu0 0.0
    %1151 = vmatprep.subr.mxu0 0.0
    %1152 = vmatpush1.msra.mxu0 0.0
    %1153 = vmatprep.subr.mxu0 0.0
    %1154 = vmatpush1.msra.mxu0 0.0
    %1155 = vmatprep.subr.mxu0 0.0
    %1156 = vmatpush1.msra.mxu0 0.0
    %1157 = vmatprep.subr.mxu0 0.0
    %1158 = vmatpush1.msra.mxu0 0.0
    %1159 = vmatprep.subr.mxu0 0.0
    %1160 = vmatpush1.msra.mxu0 0.0
    %1161 = vmatprep.subr.mxu0 0.0
    %1162 = vmatpush1.msra.mxu0 0.0
    %1163 = vmatprep.subr.mxu0 0.0
    %1164 = vmatpush1.msra.mxu0 0.0
    %1165 = vmatprep.subr.mxu0 0.0
    %1166 = vmatpush1.msra.mxu0 0.0
    %1167 = vmatprep.subr.mxu0 0.0
    %1168 = vmatpush1.msra.mxu0 0.0
    %1169 = vmatprep.subr.mxu0 0.0
    %1170 = vmatpush1.msra.mxu0 0.0
    %1171 = vmatprep.subr.mxu0 0.0
    %1172 = vmatpush1.msra.mxu0 0.0
    %1173 = vmatprep.subr.mxu0 0.0
    %1174 = vmatpush1.msra.mxu0 0.0
    %1175 = vmatprep.subr.mxu0 0.0
    %1176 = vmatpush1.msra.mxu0 0.0
    %1177 = vmatprep.subr.mxu0 0.0
    %1178 = vmatpush1.msra.mxu0 0.0
    %1179 = vmatprep.subr.mxu0 0.0
    %1180 = vmatpush1.msra.mxu0 0.0
    %1181 = vmatprep.subr.mxu0 0.0
    %1182 = vmatpush1.msra.mxu0 0.0
    %1183 = vmatprep.subr.mxu0 0.0
    %1184 = vmatpush1.msra.mxu0 0.0
    %1185 = vmatprep.subr.mxu0 0.0
    %1186 = vmatpush1.msra.mxu0 0.0
    %1187 = vmatprep.mubr.f32.mxu0 0.0
    %1188 = vmatmul.mubr.f32.gmra.mrb[0].mxu0 %v1121
    %v1189 = vpop.f32.mrb[0].mxu0
    %v1190 = vadd.f32 0.0, %v1189
    %v1191 = vpop.f32.mrb[0].mxu0
    %1192 = vdwg.mxu0
    %v1193 = vadd.f32 %v1117, %v1190
    %v1194 = vmul.f32 %v1193, 0.5
    %v1195 = vsel %vm78, %v1193, %v1194
    %v1196 = vtanh.pop %v1195
    %v1197 = vmul.f32 %v1196, 0.5
    %v1198 = vadd.f32 %v1197, 0.5
    %v1199 = vsel %vm78, %v1196, %v1198
    %v1200 = vmul.f32 %v1199, %v1109
    %1202 = vrot.lane.b32.xlu0 %v1199, 64
    %v1203 = vpop.permute.xlu0 %1202
    %v1205 = vmul.f32 %v1199, %v1203
    %1207 = vrot.lane.b32.xlu0 %v1205, 32
    %v1208 = vpop.permute.xlu0 %1207
    %v1210 = vadd.f32 %v1200, %v1208
    %v1211 = vtanh.pop %v1210
    %1213 = vrot.lane.b32.xlu0 %v1211, 64
    %v1214 = vpop.permute.xlu0 %1213
    %v1216 = vmul.f32 %v1199, %v1214
    %s1217 = scalar_lea.vmem [#allocation3], 56
    %v1218 = vld [vmem:[%s1217] sm:$0xff]
    %1220 = vrot.lane.b32.xlu0 %v1216, 32
    %v1221 = vpop.permute.xlu0 %1220
    %v1222 = vsel %vm513, %v1221, 0
    %1224 = vmatprep.subr.mxu0 0.0
    %1225 = vmatpush1.msra.mxu0 %v79
    %1226 = vmatprep.subr.mxu0 0.0
    %1227 = vmatpush1.msra.mxu0 %v80
    %1228 = vmatprep.subr.mxu0 0.0
    %1229 = vmatpush1.msra.mxu0 %v81
    %1230 = vmatprep.subr.mxu0 0.0
    %1231 = vmatpush1.msra.mxu0 %v82
    %1232 = vmatprep.subr.mxu0 0.0
    %1233 = vmatpush1.msra.mxu0 0.0
    %1234 = vmatprep.subr.mxu0 0.0
    %1235 = vmatpush1.msra.mxu0 0.0
    %1236 = vmatprep.subr.mxu0 0.0
    %1237 = vmatpush1.msra.mxu0 0.0
    %1238 = vmatprep.subr.mxu0 0.0
    %1239 = vmatpush1.msra.mxu0 0.0
    %1240 = vmatprep.subr.mxu0 0.0
    %1241 = vmatpush1.msra.mxu0 0.0
    %1242 = vmatprep.subr.mxu0 0.0
    %1243 = vmatpush1.msra.mxu0 0.0
    %1244 = vmatprep.subr.mxu0 0.0
    %1245 = vmatpush1.msra.mxu0 0.0
    %1246 = vmatprep.subr.mxu0 0.0
    %1247 = vmatpush1.msra.mxu0 0.0
    %1248 = vmatprep.subr.mxu0 0.0
    %1249 = vmatpush1.msra.mxu0 0.0
    %1250 = vmatprep.subr.mxu0 0.0
    %1251 = vmatpush1.msra.mxu0 0.0
    %1252 = vmatprep.subr.mxu0 0.0
    %1253 = vmatpush1.msra.mxu0 0.0
    %1254 = vmatprep.subr.mxu0 0.0
    %1255 = vmatpush1.msra.mxu0 0.0
    %1256 = vmatprep.subr.mxu0 0.0
    %1257 = vmatpush1.msra.mxu0 0.0
    %1258 = vmatprep.subr.mxu0 0.0
    %1259 = vmatpush1.msra.mxu0 0.0
    %1260 = vmatprep.subr.mxu0 0.0
    %1261 = vmatpush1.msra.mxu0 0.0
    %1262 = vmatprep.subr.mxu0 0.0
    %1263 = vmatpush1.msra.mxu0 0.0
    %1264 = vmatprep.subr.mxu0 0.0
    %1265 = vmatpush1.msra.mxu0 0.0
    %1266 = vmatprep.subr.mxu0 0.0
    %1267 = vmatpush1.msra.mxu0 0.0
    %1268 = vmatprep.subr.mxu0 0.0
    %1269 = vmatpush1.msra.mxu0 0.0
    %1270 = vmatprep.subr.mxu0 0.0
    %1271 = vmatpush1.msra.mxu0 0.0
    %1272 = vmatprep.subr.mxu0 0.0
    %1273 = vmatpush1.msra.mxu0 0.0
    %1274 = vmatprep.subr.mxu0 0.0
    %1275 = vmatpush1.msra.mxu0 0.0
    %1276 = vmatprep.subr.mxu0 0.0
    %1277 = vmatpush1.msra.mxu0 0.0
    %1278 = vmatprep.subr.mxu0 0.0
    %1279 = vmatpush1.msra.mxu0 0.0
    %1280 = vmatprep.subr.mxu0 0.0
    %1281 = vmatpush1.msra.mxu0 0.0
    %1282 = vmatprep.subr.mxu0 0.0
    %1283 = vmatpush1.msra.mxu0 0.0
    %1284 = vmatprep.subr.mxu0 0.0
    %1285 = vmatpush1.msra.mxu0 0.0
    %1286 = vmatprep.subr.mxu0 0.0
    %1287 = vmatpush1.msra.mxu0 0.0
    %1288 = vmatprep.mubr.f32.mxu0 0.0
    %1289 = vmatmul.mubr.f32.gmra.mrb[0].mxu0 %v1222
    %v1290 = vpop.f32.mrb[0].mxu0
    %v1291 = vadd.f32 0.0, %v1290
    %v1292 = vpop.f32.mrb[0].mxu0
    %1293 = vdwg.mxu0
    %v1294 = vadd.f32 %v1218, %v1291
    %v1295 = vmul.f32 %v1294, 0.5
    %v1296 = vsel %vm78, %v1294, %v1295
    %v1297 = vtanh.pop %v1296
    %v1298 = vmul.f32 %v1297, 0.5
    %v1299 = vadd.f32 %v1298, 0.5
    %v1300 = vsel %vm78, %v1297, %v1299
    %v1301 = vmul.f32 %v1300, %v1210
    %1303 = vrot.lane.b32.xlu0 %v1300, 64
    %v1304 = vpop.permute.xlu0 %1303
    %v1306 = vmul.f32 %v1300, %v1304
    %1308 = vrot.lane.b32.xlu0 %v1306, 32
    %v1309 = vpop.permute.xlu0 %1308
    %v1311 = vadd.f32 %v1301, %v1309
    %v1312 = vtanh.pop %v1311
    %1314 = vrot.lane.b32.xlu0 %v1312, 64
    %v1315 = vpop.permute.xlu0 %1314
    %v1317 = vmul.f32 %v1300, %v1315
    %v1318 = vld [vmem:[#allocation10] sm:$0xff]
    %v1319 = vld [vmem:[#allocation10 + $0x8] sm:$0xff]
    %v1320 = vld [vmem:[#allocation10 + $0x10] sm:$0xff]
    %v1321 = vld [vmem:[#allocation10 + $0x18] sm:$0xff]
    %v1322 = vld [vmem:[%s6] sm:$0x1]
    %v1324 = vlaneseq
    %v1325 = vshrl.u32 %v1324, 7
    %v1326 = vsub.s32 0, %v1325
    %v1327 = vrot.slane %v1322, %v1326
    %1330 = vrot.lane.b32.xlu0 %v1317, 32
    %v1331 = vpop.permute.xlu0 %1330
    %v1332 = vsel %vm513, %v1331, 0
    %1334 = vmatprep.subr.mxu0 0.0
    %1335 = vmatpush1.msra.mxu0 %v1318
    %1336 = vmatprep.subr.mxu0 0.0
    %1337 = vmatpush1.msra.mxu0 %v1319
    %1338 = vmatprep.subr.mxu0 0.0
    %1339 = vmatpush1.msra.mxu0 %v1320
    %1340 = vmatprep.subr.mxu0 0.0
    %1341 = vmatpush1.msra.mxu0 %v1321
    %1342 = vmatprep.subr.mxu0 0.0
    %1343 = vmatpush1.msra.mxu0 0.0
    %1344 = vmatprep.subr.mxu0 0.0
    %1345 = vmatpush1.msra.mxu0 0.0
    %1346 = vmatprep.subr.mxu0 0.0
    %1347 = vmatpush1.msra.mxu0 0.0
    %1348 = vmatprep.subr.mxu0 0.0
    %1349 = vmatpush1.msra.mxu0 0.0
    %1350 = vmatprep.subr.mxu0 0.0
    %1351 = vmatpush1.msra.mxu0 0.0
    %1352 = vmatprep.subr.mxu0 0.0
    %1353 = vmatpush1.msra.mxu0 0.0
    %1354 = vmatprep.subr.mxu0 0.0
    %1355 = vmatpush1.msra.mxu0 0.0
    %1356 = vmatprep.subr.mxu0 0.0
    %1357 = vmatpush1.msra.mxu0 0.0
    %1358 = vmatprep.subr.mxu0 0.0
    %1359 = vmatpush1.msra.mxu0 0.0
    %1360 = vmatprep.subr.mxu0 0.0
    %1361 = vmatpush1.msra.mxu0 0.0
    %1362 = vmatprep.subr.mxu0 0.0
    %1363 = vmatpush1.msra.mxu0 0.0
    %1364 = vmatprep.subr.mxu0 0.0
    %1365 = vmatpush1.msra.mxu0 0.0
    %1366 = vmatprep.subr.mxu0 0.0
    %1367 = vmatpush1.msra.mxu0 0.0
    %1368 = vmatprep.subr.mxu0 0.0
    %1369 = vmatpush1.msra.mxu0 0.0
    %1370 = vmatprep.subr.mxu0 0.0
    %1371 = vmatpush1.msra.mxu0 0.0
    %1372 = vmatprep.subr.mxu0 0.0
    %1373 = vmatpush1.msra.mxu0 0.0
    %1374 = vmatprep.subr.mxu0 0.0
    %1375 = vmatpush1.msra.mxu0 0.0
    %1376 = vmatprep.subr.mxu0 0.0
    %1377 = vmatpush1.msra.mxu0 0.0
    %1378 = vmatprep.subr.mxu0 0.0
    %1379 = vmatpush1.msra.mxu0 0.0
    %1380 = vmatprep.subr.mxu0 0.0
    %1381 = vmatpush1.msra.mxu0 0.0
    %1382 = vmatprep.subr.mxu0 0.0
    %1383 = vmatpush1.msra.mxu0 0.0
    %1384 = vmatprep.subr.mxu0 0.0
    %1385 = vmatpush1.msra.mxu0 0.0
    %1386 = vmatprep.subr.mxu0 0.0
    %1387 = vmatpush1.msra.mxu0 0.0
    %1388 = vmatprep.subr.mxu0 0.0
    %1389 = vmatpush1.msra.mxu0 0.0
    %1390 = vmatprep.subr.mxu0 0.0
    %1391 = vmatpush1.msra.mxu0 0.0
    %1392 = vmatprep.subr.mxu0 0.0
    %1393 = vmatpush1.msra.mxu0 0.0
    %1394 = vmatprep.subr.mxu0 0.0
    %1395 = vmatpush1.msra.mxu0 0.0
    %1396 = vmatprep.subr.mxu0 0.0
    %1397 = vmatpush1.msra.mxu0 0.0
    %1398 = vmatprep.mubr.f32.mxu0 0.0
    %1399 = vmatmul.mubr.f32.gmra.mrb[0].mxu0 %v1332
    %v1400 = vpop.f32.mrb[0].mxu0
    %v1401 = vadd.f32 %v1327, %v1400
    %v1402 = vpop.f32.mrb[0].mxu0
    %1403 = vdwg.mxu0
    %1404 = vmatprep.subr.mxu0 0.0
    %1405 = vmatpush1.msra.mxu0 %v83
    %1406 = vmatprep.subr.mxu0 0.0
    %1407 = vmatpush1.msra.mxu0 %v84
    %1408 = vmatprep.subr.mxu0 0.0
    %1409 = vmatpush1.msra.mxu0 %v85
    %1410 = vmatprep.subr.mxu0 0.0
    %1411 = vmatpush1.msra.mxu0 %v86
    %1412 = vmatprep.subr.mxu0 0.0
    %1413 = vmatpush1.msra.mxu0 0.0
    %1414 = vmatprep.subr.mxu0 0.0
    %1415 = vmatpush1.msra.mxu0 0.0
    %1416 = vmatprep.subr.mxu0 0.0
    %1417 = vmatpush1.msra.mxu0 0.0
    %1418 = vmatprep.subr.mxu0 0.0
    %1419 = vmatpush1.msra.mxu0 0.0
    %1420 = vmatprep.subr.mxu0 0.0
    %1421 = vmatpush1.msra.mxu0 0.0
    %1422 = vmatprep.subr.mxu0 0.0
    %1423 = vmatpush1.msra.mxu0 0.0
    %1424 = vmatprep.subr.mxu0 0.0
    %1425 = vmatpush1.msra.mxu0 0.0
    %1426 = vmatprep.subr.mxu0 0.0
    %1427 = vmatpush1.msra.mxu0 0.0
    %1428 = vmatprep.subr.mxu0 0.0
    %1429 = vmatpush1.msra.mxu0 0.0
    %1430 = vmatprep.subr.mxu0 0.0
    %1431 = vmatpush1.msra.mxu0 0.0
    %1432 = vmatprep.subr.mxu0 0.0
    %1433 = vmatpush1.msra.mxu0 0.0
    %1434 = vmatprep.subr.mxu0 0.0
    %1435 = vmatpush1.msra.mxu0 0.0
    %1436 = vmatprep.subr.mxu0 0.0
    %1437 = vmatpush1.msra.mxu0 0.0
    %1438 = vmatprep.subr.mxu0 0.0
    %1439 = vmatpush1.msra.mxu0 0.0
    %1440 = vmatprep.subr.mxu0 0.0
    %1441 = vmatpush1.msra.mxu0 0.0
    %1442 = vmatprep.subr.mxu0 0.0
    %1443 = vmatpush1.msra.mxu0 0.0
    %1444 = vmatprep.subr.mxu0 0.0
    %1445 = vmatpush1.msra.mxu0 0.0
    %1446 = vmatprep.subr.mxu0 0.0
    %1447 = vmatpush1.msra.mxu0 0.0
    %1448 = vmatprep.subr.mxu0 0.0
    %1449 = vmatpush1.msra.mxu0 0.0
    %1450 = vmatprep.subr.mxu0 0.0
    %1451 = vmatpush1.msra.mxu0 0.0
    %1452 = vmatprep.subr.mxu0 0.0
    %1453 = vmatpush1.msra.mxu0 0.0
    %1454 = vmatprep.subr.mxu0 0.0
    %1455 = vmatpush1.msra.mxu0 0.0
    %1456 = vmatprep.subr.mxu0 0.0
    %1457 = vmatpush1.msra.mxu0 0.0
    %1458 = vmatprep.subr.mxu0 0.0
    %1459 = vmatpush1.msra.mxu0 0.0
    %1460 = vmatprep.subr.mxu0 0.0
    %1461 = vmatpush1.msra.mxu0 0.0
    %1462 = vmatprep.subr.mxu0 0.0
    %1463 = vmatpush1.msra.mxu0 0.0
    %1464 = vmatprep.subr.mxu0 0.0
    %1465 = vmatpush1.msra.mxu0 0.0
    %1466 = vmatprep.subr.mxu0 0.0
    %1467 = vmatpush1.msra.mxu0 0.0
    %1468 = vmatprep.mubr.f32.mxu0 0.0
    %1469 = vmatmul.mubr.f32.gmra.mrb[0].mxu0 %v515
    %v1470 = vpop.f32.mrb[0].mxu0
    %v1471 = vadd.f32 0.0, %v1470
    %v1472 = vpop.f32.mrb[0].mxu0
    %1473 = vdwg.mxu0
    %v1474 = vadd.f32 %v1401, %v1471
    %v1475 = vmul.f32 %v1474, 0.5
    %v1476 = vsel %vm78, %v1474, %v1475
    %v1477 = vtanh.pop %v1476
    %v1478 = vmul.f32 %v1477, 0.5
    %v1479 = vadd.f32 %v1478, 0.5
    %v1480 = vsel %vm78, %v1477, %v1479
    %v1481 = vmul.f32 %v1480, 0.0
    %1483 = vrot.lane.b32.xlu0 %v1480, 64
    %v1484 = vpop.permute.xlu0 %1483
    %v1486 = vmul.f32 %v1480, %v1484
    %1488 = vrot.lane.b32.xlu0 %v1486, 32
    %v1489 = vpop.permute.xlu0 %1488
    %v1491 = vadd.f32 %v1481, %v1489
    %v1492 = vtanh.pop %v1491
    %1494 = vrot.lane.b32.xlu0 %v1492, 64
    %v1495 = vpop.permute.xlu0 %1494
    %v1497 = vmul.f32 %v1480, %v1495
    %1499 = vrot.lane.b32.xlu0 %v1497, 32
    %v1500 = vpop.permute.xlu0 %1499
    %1502 = vst.msk [vmem:[#allocation4] sm:$0xff] %vm513, %v1500
    %v1503 = vsel %vm513, %v1500, 0
    %1505 = vmatprep.subr.mxu0 0.0
    %1506 = vmatpush1.msra.mxu0 %v83
    %1507 = vmatprep.subr.mxu0 0.0
    %1508 = vmatpush1.msra.mxu0 %v84
    %1509 = vmatprep.subr.mxu0 0.0
    %1510 = vmatpush1.msra.mxu0 %v85
    %1511 = vmatprep.subr.mxu0 0.0
    %1512 = vmatpush1.msra.mxu0 %v86
    %1513 = vmatprep.subr.mxu0 0.0
    %1514 = vmatpush1.msra.mxu0 0.0
    %1515 = vmatprep.subr.mxu0 0.0
    %1516 = vmatpush1.msra.mxu0 0.0
    %1517 = vmatprep.subr.mxu0 0.0
    %1518 = vmatpush1.msra.mxu0 0.0
    %1519 = vmatprep.subr.mxu0 0.0
    %1520 = vmatpush1.msra.mxu0 0.0
    %1521 = vmatprep.subr.mxu0 0.0
    %1522 = vmatpush1.msra.mxu0 0.0
    %1523 = vmatprep.subr.mxu0 0.0
    %1524 = vmatpush1.msra.mxu0 0.0
    %1525 = vmatprep.subr.mxu0 0.0
    %1526 = vmatpush1.msra.mxu0 0.0
    %1527 = vmatprep.subr.mxu0 0.0
    %1528 = vmatpush1.msra.mxu0 0.0
    %1529 = vmatprep.subr.mxu0 0.0
    %1530 = vmatpush1.msra.mxu0 0.0
    %1531 = vmatprep.subr.mxu0 0.0
    %1532 = vmatpush1.msra.mxu0 0.0
    %1533 = vmatprep.subr.mxu0 0.0
    %1534 = vmatpush1.msra.mxu0 0.0
    %1535 = vmatprep.subr.mxu0 0.0
    %1536 = vmatpush1.msra.mxu0 0.0
    %1537 = vmatprep.subr.mxu0 0.0
    %1538 = vmatpush1.msra.mxu0 0.0
    %1539 = vmatprep.subr.mxu0 0.0
    %1540 = vmatpush1.msra.mxu0 0.0
    %1541 = vmatprep.subr.mxu0 0.0
    %1542 = vmatpush1.msra.mxu0 0.0
    %1543 = vmatprep.subr.mxu0 0.0
    %1544 = vmatpush1.msra.mxu0 0.0
    %1545 = vmatprep.subr.mxu0 0.0
    %1546 = vmatpush1.msra.mxu0 0.0
    %1547 = vmatprep.subr.mxu0 0.0
    %1548 = vmatpush1.msra.mxu0 0.0
    %1549 = vmatprep.subr.mxu0 0.0
    %1550 = vmatpush1.msra.mxu0 0.0
    %1551 = vmatprep.subr.mxu0 0.0
    %1552 = vmatpush1.msra.mxu0 0.0
    %1553 = vmatprep.subr.mxu0 0.0
    %1554 = vmatpush1.msra.mxu0 0.0
    %1555 = vmatprep.subr.mxu0 0.0
    %1556 = vmatpush1.msra.mxu0 0.0
    %1557 = vmatprep.subr.mxu0 0.0
    %1558 = vmatpush1.msra.mxu0 0.0
    %1559 = vmatprep.subr.mxu0 0.0
    %1560 = vmatpush1.msra.mxu0 0.0
    %1561 = vmatprep.subr.mxu0 0.0
    %1562 = vmatpush1.msra.mxu0 0.0
    %1563 = vmatprep.subr.mxu0 0.0
    %1564 = vmatpush1.msra.mxu0 0.0
    %1565 = vmatprep.subr.mxu0 0.0
    %1566 = vmatpush1.msra.mxu0 0.0
    %1567 = vmatprep.subr.mxu0 0.0
    %1568 = vmatpush1.msra.mxu0 0.0
    %1569 = vmatprep.mubr.f32.mxu0 0.0
    %1570 = vmatmul.mubr.f32.gmra.mrb[0].mxu0 %v1503
    %v1571 = vpop.f32.mrb[0].mxu0
    %v1572 = vadd.f32 0.0, %v1571
    %v1573 = vpop.f32.mrb[0].mxu0
    %1574 = vdwg.mxu0
    %v1575 = vadd.f32 %v1401, %v1572
    %v1576 = vmul.f32 %v1575, 0.5
    %v1577 = vsel %vm78, %v1575, %v1576
    %v1578 = vtanh.pop %v1577
    %v1579 = vmul.f32 %v1578, 0.5
    %v1580 = vadd.f32 %v1579, 0.5
    %v1581 = vsel %vm78, %v1578, %v1580
    %v1582 = vmul.f32 %v1581, %v1491
    %1584 = vrot.lane.b32.xlu0 %v1581, 64
    %v1585 = vpop.permute.xlu0 %1584
    %v1587 = vmul.f32 %v1581, %v1585
    %1589 = vrot.lane.b32.xlu0 %v1587, 32
    %v1590 = vpop.permute.xlu0 %1589
    %v1592 = vadd.f32 %v1582, %v1590
    %v1593 = vtanh.pop %v1592
    %1595 = vrot.lane.b32.xlu0 %v1593, 64
    %v1596 = vpop.permute.xlu0 %1595
    %v1598 = vmul.f32 %v1581, %v1596
    %1600 = vrot.lane.b32.xlu0 %v1598, 32
    %v1601 = vpop.permute.xlu0 %1600
    %s1603 = scalar_lea.vmem [#allocation4], 8
    %1604 = vst.msk [vmem:[%s1603] sm:$0xff] %vm513, %v1601
    %v1605 = vsel %vm513, %v1601, 0
    %1607 = vmatprep.subr.mxu0 0.0
    %1608 = vmatpush1.msra.mxu0 %v83
    %1609 = vmatprep.subr.mxu0 0.0
    %1610 = vmatpush1.msra.mxu0 %v84
    %1611 = vmatprep.subr.mxu0 0.0
    %1612 = vmatpush1.msra.mxu0 %v85
    %1613 = vmatprep.subr.mxu0 0.0
    %1614 = vmatpush1.msra.mxu0 %v86
    %1615 = vmatprep.subr.mxu0 0.0
    %1616 = vmatpush1.msra.mxu0 0.0
    %1617 = vmatprep.subr.mxu0 0.0
    %1618 = vmatpush1.msra.mxu0 0.0
    %1619 = vmatprep.subr.mxu0 0.0
    %1620 = vmatpush1.msra.mxu0 0.0
    %1621 = vmatprep.subr.mxu0 0.0
    %1622 = vmatpush1.msra.mxu0 0.0
    %1623 = vmatprep.subr.mxu0 0.0
    %1624 = vmatpush1.msra.mxu0 0.0
    %1625 = vmatprep.subr.mxu0 0.0
    %1626 = vmatpush1.msra.mxu0 0.0
    %1627 = vmatprep.subr.mxu0 0.0
    %1628 = vmatpush1.msra.mxu0 0.0
    %1629 = vmatprep.subr.mxu0 0.0
    %1630 = vmatpush1.msra.mxu0 0.0
    %1631 = vmatprep.subr.mxu0 0.0
    %1632 = vmatpush1.msra.mxu0 0.0
    %1633 = vmatprep.subr.mxu0 0.0
    %1634 = vmatpush1.msra.mxu0 0.0
    %1635 = vmatprep.subr.mxu0 0.0
    %1636 = vmatpush1.msra.mxu0 0.0
    %1637 = vmatprep.subr.mxu0 0.0
    %1638 = vmatpush1.msra.mxu0 0.0
    %1639 = vmatprep.subr.mxu0 0.0
    %1640 = vmatpush1.msra.mxu0 0.0
    %1641 = vmatprep.subr.mxu0 0.0
    %1642 = vmatpush1.msra.mxu0 0.0
    %1643 = vmatprep.subr.mxu0 0.0
    %1644 = vmatpush1.msra.mxu0 0.0
    %1645 = vmatprep.subr.mxu0 0.0
    %1646 = vmatpush1.msra.mxu0 0.0
    %1647 = vmatprep.subr.mxu0 0.0
    %1648 = vmatpush1.msra.mxu0 0.0
    %1649 = vmatprep.subr.mxu0 0.0
    %1650 = vmatpush1.msra.mxu0 0.0
    %1651 = vmatprep.subr.mxu0 0.0
    %1652 = vmatpush1.msra.mxu0 0.0
    %1653 = vmatprep.subr.mxu0 0.0
    %1654 = vmatpush1.msra.mxu0 0.0
    %1655 = vmatprep.subr.mxu0 0.0
    %1656 = vmatpush1.msra.mxu0 0.0
    %1657 = vmatprep.subr.mxu0 0.0
    %1658 = vmatpush1.msra.mxu0 0.0
    %1659 = vmatprep.subr.mxu0 0.0
    %1660 = vmatpush1.msra.mxu0 0.0
    %1661 = vmatprep.subr.mxu0 0.0
    %1662 = vmatpush1.msra.mxu0 0.0
    %1663 = vmatprep.subr.mxu0 0.0
    %1664 = vmatpush1.msra.mxu0 0.0
    %1665 = vmatprep.subr.mxu0 0.0
    %1666 = vmatpush1.msra.mxu0 0.0
    %1667 = vmatprep.subr.mxu0 0.0
    %1668 = vmatpush1.msra.mxu0 0.0
    %1669 = vmatprep.subr.mxu0 0.0
    %1670 = vmatpush1.msra.mxu0 0.0
    %1671 = vmatprep.mubr.f32.mxu0 0.0
    %1672 = vmatmul.mubr.f32.gmra.mrb[0].mxu0 %v1605
    %v1673 = vpop.f32.mrb[0].mxu0
    %v1674 = vadd.f32 0.0, %v1673
    %v1675 = vpop.f32.mrb[0].mxu0
    %1676 = vdwg.mxu0
    %v1677 = vadd.f32 %v1401, %v1674
    %v1678 = vmul.f32 %v1677, 0.5
    %v1679 = vsel %vm78, %v1677, %v1678
    %v1680 = vtanh.pop %v1679
    %v1681 = vmul.f32 %v1680, 0.5
    %v1682 = vadd.f32 %v1681, 0.5
    %v1683 = vsel %vm78, %v1680, %v1682
    %v1684 = vmul.f32 %v1683, %v1592
    %1686 = vrot.lane.b32.xlu0 %v1683, 64
    %v1687 = vpop.permute.xlu0 %1686
    %v1689 = vmul.f32 %v1683, %v1687
    %1691 = vrot.lane.b32.xlu0 %v1689, 32
    %v1692 = vpop.permute.xlu0 %1691
    %v1694 = vadd.f32 %v1684, %v1692
    %v1695 = vtanh.pop %v1694
    %1697 = vrot.lane.b32.xlu0 %v1695, 64
    %v1698 = vpop.permute.xlu0 %1697
    %v1700 = vmul.f32 %v1683, %v1698
    %1702 = vrot.lane.b32.xlu0 %v1700, 32
    %v1703 = vpop.permute.xlu0 %1702
    %s1705 = scalar_lea.vmem [#allocation4], 16
    %1706 = vst.msk [vmem:[%s1705] sm:$0xff] %vm513, %v1703
    %v1707 = vsel %vm513, %v1703, 0
    %1709 = vmatprep.subr.mxu0 0.0
    %1710 = vmatpush1.msra.mxu0 %v83
    %1711 = vmatprep.subr.mxu0 0.0
    %1712 = vmatpush1.msra.mxu0 %v84
    %1713 = vmatprep.subr.mxu0 0.0
    %1714 = vmatpush1.msra.mxu0 %v85
    %1715 = vmatprep.subr.mxu0 0.0
    %1716 = vmatpush1.msra.mxu0 %v86
    %1717 = vmatprep.subr.mxu0 0.0
    %1718 = vmatpush1.msra.mxu0 0.0
    %1719 = vmatprep.subr.mxu0 0.0
    %1720 = vmatpush1.msra.mxu0 0.0
    %1721 = vmatprep.subr.mxu0 0.0
    %1722 = vmatpush1.msra.mxu0 0.0
    %1723 = vmatprep.subr.mxu0 0.0
    %1724 = vmatpush1.msra.mxu0 0.0
    %1725 = vmatprep.subr.mxu0 0.0
    %1726 = vmatpush1.msra.mxu0 0.0
    %1727 = vmatprep.subr.mxu0 0.0
    %1728 = vmatpush1.msra.mxu0 0.0
    %1729 = vmatprep.subr.mxu0 0.0
    %1730 = vmatpush1.msra.mxu0 0.0
    %1731 = vmatprep.subr.mxu0 0.0
    %1732 = vmatpush1.msra.mxu0 0.0
    %1733 = vmatprep.subr.mxu0 0.0
    %1734 = vmatpush1.msra.mxu0 0.0
    %1735 = vmatprep.subr.mxu0 0.0
    %1736 = vmatpush1.msra.mxu0 0.0
    %1737 = vmatprep.subr.mxu0 0.0
    %1738 = vmatpush1.msra.mxu0 0.0
    %1739 = vmatprep.subr.mxu0 0.0
    %1740 = vmatpush1.msra.mxu0 0.0
    %1741 = vmatprep.subr.mxu0 0.0
    %1742 = vmatpush1.msra.mxu0 0.0
    %1743 = vmatprep.subr.mxu0 0.0
    %1744 = vmatpush1.msra.mxu0 0.0
    %1745 = vmatprep.subr.mxu0 0.0
    %1746 = vmatpush1.msra.mxu0 0.0
    %1747 = vmatprep.subr.mxu0 0.0
    %1748 = vmatpush1.msra.mxu0 0.0
    %1749 = vmatprep.subr.mxu0 0.0
    %1750 = vmatpush1.msra.mxu0 0.0
    %1751 = vmatprep.subr.mxu0 0.0
    %1752 = vmatpush1.msra.mxu0 0.0
    %1753 = vmatprep.subr.mxu0 0.0
    %1754 = vmatpush1.msra.mxu0 0.0
    %1755 = vmatprep.subr.mxu0 0.0
    %1756 = vmatpush1.msra.mxu0 0.0
    %1757 = vmatprep.subr.mxu0 0.0
    %1758 = vmatpush1.msra.mxu0 0.0
    %1759 = vmatprep.subr.mxu0 0.0
    %1760 = vmatpush1.msra.mxu0 0.0
    %1761 = vmatprep.subr.mxu0 0.0
    %1762 = vmatpush1.msra.mxu0 0.0
    %1763 = vmatprep.subr.mxu0 0.0
    %1764 = vmatpush1.msra.mxu0 0.0
    %1765 = vmatprep.subr.mxu0 0.0
    %1766 = vmatpush1.msra.mxu0 0.0
    %1767 = vmatprep.subr.mxu0 0.0
    %1768 = vmatpush1.msra.mxu0 0.0
    %1769 = vmatprep.subr.mxu0 0.0
    %1770 = vmatpush1.msra.mxu0 0.0
    %1771 = vmatprep.subr.mxu0 0.0
    %1772 = vmatpush1.msra.mxu0 0.0
    %1773 = vmatprep.mubr.f32.mxu0 0.0
    %1774 = vmatmul.mubr.f32.gmra.mrb[0].mxu0 %v1707
    %v1775 = vpop.f32.mrb[0].mxu0
    %v1776 = vadd.f32 0.0, %v1775
    %v1777 = vpop.f32.mrb[0].mxu0
    %1778 = vdwg.mxu0
    %v1779 = vadd.f32 %v1401, %v1776
    %v1780 = vmul.f32 %v1779, 0.5
    %v1781 = vsel %vm78, %v1779, %v1780
    %v1782 = vtanh.pop %v1781
    %v1783 = vmul.f32 %v1782, 0.5
    %v1784 = vadd.f32 %v1783, 0.5
    %v1785 = vsel %vm78, %v1782, %v1784
    %v1786 = vmul.f32 %v1785, %v1694
    %1788 = vrot.lane.b32.xlu0 %v1785, 64
    %v1789 = vpop.permute.xlu0 %1788
    %v1791 = vmul.f32 %v1785, %v1789
    %1793 = vrot.lane.b32.xlu0 %v1791, 32
    %v1794 = vpop.permute.xlu0 %1793
    %v1796 = vadd.f32 %v1786, %v1794
    %v1797 = vtanh.pop %v1796
    %1799 = vrot.lane.b32.xlu0 %v1797, 64
    %v1800 = vpop.permute.xlu0 %1799
    %v1802 = vmul.f32 %v1785, %v1800
    %1804 = vrot.lane.b32.xlu0 %v1802, 32
    %v1805 = vpop.permute.xlu0 %1804
    %s1807 = scalar_lea.vmem [#allocation4], 24
    %1808 = vst.msk [vmem:[%s1807] sm:$0xff] %vm513, %v1805
    %v1809 = vsel %vm513, %v1805, 0
    %1811 = vmatprep.subr.mxu0 0.0
    %1812 = vmatpush1.msra.mxu0 %v83
    %1813 = vmatprep.subr.mxu0 0.0
    %1814 = vmatpush1.msra.mxu0 %v84
    %1815 = vmatprep.subr.mxu0 0.0
    %1816 = vmatpush1.msra.mxu0 %v85
    %1817 = vmatprep.subr.mxu0 0.0
    %1818 = vmatpush1.msra.mxu0 %v86
    %1819 = vmatprep.subr.mxu0 0.0
    %1820 = vmatpush1.msra.mxu0 0.0
    %1821 = vmatprep.subr.mxu0 0.0
    %1822 = vmatpush1.msra.mxu0 0.0
    %1823 = vmatprep.subr.mxu0 0.0
    %1824 = vmatpush1.msra.mxu0 0.0
    %1825 = vmatprep.subr.mxu0 0.0
    %1826 = vmatpush1.msra.mxu0 0.0
    %1827 = vmatprep.subr.mxu0 0.0
    %1828 = vmatpush1.msra.mxu0 0.0
    %1829 = vmatprep.subr.mxu0 0.0
    %1830 = vmatpush1.msra.mxu0 0.0
    %1831 = vmatprep.subr.mxu0 0.0
    %1832 = vmatpush1.msra.mxu0 0.0
    %1833 = vmatprep.subr.mxu0 0.0
    %1834 = vmatpush1.msra.mxu0 0.0
    %1835 = vmatprep.subr.mxu0 0.0
    %1836 = vmatpush1.msra.mxu0 0.0
    %1837 = vmatprep.subr.mxu0 0.0
    %1838 = vmatpush1.msra.mxu0 0.0
    %1839 = vmatprep.subr.mxu0 0.0
    %1840 = vmatpush1.msra.mxu0 0.0
    %1841 = vmatprep.subr.mxu0 0.0
    %1842 = vmatpush1.msra.mxu0 0.0
    %1843 = vmatprep.subr.mxu0 0.0
    %1844 = vmatpush1.msra.mxu0 0.0
    %1845 = vmatprep.subr.mxu0 0.0
    %1846 = vmatpush1.msra.mxu0 0.0
    %1847 = vmatprep.subr.mxu0 0.0
    %1848 = vmatpush1.msra.mxu0 0.0
    %1849 = vmatprep.subr.mxu0 0.0
    %1850 = vmatpush1.msra.mxu0 0.0
    %1851 = vmatprep.subr.mxu0 0.0
    %1852 = vmatpush1.msra.mxu0 0.0
    %1853 = vmatprep.subr.mxu0 0.0
    %1854 = vmatpush1.msra.mxu0 0.0
    %1855 = vmatprep.subr.mxu0 0.0
    %1856 = vmatpush1.msra.mxu0 0.0
    %1857 = vmatprep.subr.mxu0 0.0
    %1858 = vmatpush1.msra.mxu0 0.0
    %1859 = vmatprep.subr.mxu0 0.0
    %1860 = vmatpush1.msra.mxu0 0.0
    %1861 = vmatprep.subr.mxu0 0.0
    %1862 = vmatpush1.msra.mxu0 0.0
    %1863 = vmatprep.subr.mxu0 0.0
    %1864 = vmatpush1.msra.mxu0 0.0
    %1865 = vmatprep.subr.mxu0 0.0
    %1866 = vmatpush1.msra.mxu0 0.0
    %1867 = vmatprep.subr.mxu0 0.0
    %1868 = vmatpush1.msra.mxu0 0.0
    %1869 = vmatprep.subr.mxu0 0.0
    %1870 = vmatpush1.msra.mxu0 0.0
    %1871 = vmatprep.subr.mxu0 0.0
    %1872 = vmatpush1.msra.mxu0 0.0
    %1873 = vmatprep.subr.mxu0 0.0
    %1874 = vmatpush1.msra.mxu0 0.0
    %1875 = vmatprep.mubr.f32.mxu0 0.0
    %1876 = vmatmul.mubr.f32.gmra.mrb[0].mxu0 %v1809
    %v1877 = vpop.f32.mrb[0].mxu0
    %v1878 = vadd.f32 0.0, %v1877
    %v1879 = vpop.f32.mrb[0].mxu0
    %1880 = vdwg.mxu0
    %v1881 = vadd.f32 %v1401, %v1878
    %v1882 = vmul.f32 %v1881, 0.5
    %v1883 = vsel %vm78, %v1881, %v1882
    %v1884 = vtanh.pop %v1883
    %v1885 = vmul.f32 %v1884, 0.5
    %v1886 = vadd.f32 %v1885, 0.5
    %v1887 = vsel %vm78, %v1884, %v1886
    %v1888 = vmul.f32 %v1887, %v1796
    %1890 = vrot.lane.b32.xlu0 %v1887, 64
    %v1891 = vpop.permute.xlu0 %1890
    %v1893 = vmul.f32 %v1887, %v1891
    %1895 = vrot.lane.b32.xlu0 %v1893, 32
    %v1896 = vpop.permute.xlu0 %1895
    %v1898 = vadd.f32 %v1888, %v1896
    %v1899 = vtanh.pop %v1898
    %1901 = vrot.lane.b32.xlu0 %v1899, 64
    %v1902 = vpop.permute.xlu0 %1901
    %v1904 = vmul.f32 %v1887, %v1902
    %1906 = vrot.lane.b32.xlu0 %v1904, 32
    %v1907 = vpop.permute.xlu0 %1906
    %s1909 = scalar_lea.vmem [#allocation4], 32
    %1910 = vst.msk [vmem:[%s1909] sm:$0xff] %vm513, %v1907
    %v1911 = vsel %vm513, %v1907, 0
    %1913 = vmatprep.subr.mxu0 0.0
    %1914 = vmatpush1.msra.mxu0 %v83
    %1915 = vmatprep.subr.mxu0 0.0
    %1916 = vmatpush1.msra.mxu0 %v84
    %1917 = vmatprep.subr.mxu0 0.0
    %1918 = vmatpush1.msra.mxu0 %v85
    %1919 = vmatprep.subr.mxu0 0.0
    %1920 = vmatpush1.msra.mxu0 %v86
    %1921 = vmatprep.subr.mxu0 0.0
    %1922 = vmatpush1.msra.mxu0 0.0
    %1923 = vmatprep.subr.mxu0 0.0
    %1924 = vmatpush1.msra.mxu0 0.0
    %1925 = vmatprep.subr.mxu0 0.0
    %1926 = vmatpush1.msra.mxu0 0.0
    %1927 = vmatprep.subr.mxu0 0.0
    %1928 = vmatpush1.msra.mxu0 0.0
    %1929 = vmatprep.subr.mxu0 0.0
    %1930 = vmatpush1.msra.mxu0 0.0
    %1931 = vmatprep.subr.mxu0 0.0
    %1932 = vmatpush1.msra.mxu0 0.0
    %1933 = vmatprep.subr.mxu0 0.0
    %1934 = vmatpush1.msra.mxu0 0.0
    %1935 = vmatprep.subr.mxu0 0.0
    %1936 = vmatpush1.msra.mxu0 0.0
    %1937 = vmatprep.subr.mxu0 0.0
    %1938 = vmatpush1.msra.mxu0 0.0
    %1939 = vmatprep.subr.mxu0 0.0
    %1940 = vmatpush1.msra.mxu0 0.0
    %1941 = vmatprep.subr.mxu0 0.0
    %1942 = vmatpush1.msra.mxu0 0.0
    %1943 = vmatprep.subr.mxu0 0.0
    %1944 = vmatpush1.msra.mxu0 0.0
    %1945 = vmatprep.subr.mxu0 0.0
    %1946 = vmatpush1.msra.mxu0 0.0
    %1947 = vmatprep.subr.mxu0 0.0
    %1948 = vmatpush1.msra.mxu0 0.0
    %1949 = vmatprep.subr.mxu0 0.0
    %1950 = vmatpush1.msra.mxu0 0.0
    %1951 = vmatprep.subr.mxu0 0.0
    %1952 = vmatpush1.msra.mxu0 0.0
    %1953 = vmatprep.subr.mxu0 0.0
    %1954 = vmatpush1.msra.mxu0 0.0
    %1955 = vmatprep.subr.mxu0 0.0
    %1956 = vmatpush1.msra.mxu0 0.0
    %1957 = vmatprep.subr.mxu0 0.0
    %1958 = vmatpush1.msra.mxu0 0.0
    %1959 = vmatprep.subr.mxu0 0.0
    %1960 = vmatpush1.msra.mxu0 0.0
    %1961 = vmatprep.subr.mxu0 0.0
    %1962 = vmatpush1.msra.mxu0 0.0
    %1963 = vmatprep.subr.mxu0 0.0
    %1964 = vmatpush1.msra.mxu0 0.0
    %1965 = vmatprep.subr.mxu0 0.0
    %1966 = vmatpush1.msra.mxu0 0.0
    %1967 = vmatprep.subr.mxu0 0.0
    %1968 = vmatpush1.msra.mxu0 0.0
    %1969 = vmatprep.subr.mxu0 0.0
    %1970 = vmatpush1.msra.mxu0 0.0
    %1971 = vmatprep.subr.mxu0 0.0
    %1972 = vmatpush1.msra.mxu0 0.0
    %1973 = vmatprep.subr.mxu0 0.0
    %1974 = vmatpush1.msra.mxu0 0.0
    %1975 = vmatprep.subr.mxu0 0.0
    %1976 = vmatpush1.msra.mxu0 0.0
    %1977 = vmatprep.mubr.f32.mxu0 0.0
    %1978 = vmatmul.mubr.f32.gmra.mrb[0].mxu0 %v1911
    %v1979 = vpop.f32.mrb[0].mxu0
    %v1980 = vadd.f32 0.0, %v1979
    %v1981 = vpop.f32.mrb[0].mxu0
    %1982 = vdwg.mxu0
    %v1983 = vadd.f32 %v1401, %v1980
    %v1984 = vmul.f32 %v1983, 0.5
    %v1985 = vsel %vm78, %v1983, %v1984
    %v1986 = vtanh.pop %v1985
    %v1987 = vmul.f32 %v1986, 0.5
    %v1988 = vadd.f32 %v1987, 0.5
    %v1989 = vsel %vm78, %v1986, %v1988
    %v1990 = vmul.f32 %v1989, %v1898
    %1992 = vrot.lane.b32.xlu0 %v1989, 64
    %v1993 = vpop.permute.xlu0 %1992
    %v1995 = vmul.f32 %v1989, %v1993
    %1997 = vrot.lane.b32.xlu0 %v1995, 32
    %v1998 = vpop.permute.xlu0 %1997
    %v2000 = vadd.f32 %v1990, %v1998
    %v2001 = vtanh.pop %v2000
    %2003 = vrot.lane.b32.xlu0 %v2001, 64
    %v2004 = vpop.permute.xlu0 %2003
    %v2006 = vmul.f32 %v1989, %v2004
    %2008 = vrot.lane.b32.xlu0 %v2006, 32
    %v2009 = vpop.permute.xlu0 %2008
    %s2011 = scalar_lea.vmem [#allocation4], 40
    %2012 = vst.msk [vmem:[%s2011] sm:$0xff] %vm513, %v2009
    %v2013 = vsel %vm513, %v2009, 0
    %2015 = vmatprep.subr.mxu0 0.0
    %2016 = vmatpush1.msra.mxu0 %v83
    %2017 = vmatprep.subr.mxu0 0.0
    %2018 = vmatpush1.msra.mxu0 %v84
    %2019 = vmatprep.subr.mxu0 0.0
    %2020 = vmatpush1.msra.mxu0 %v85
    %2021 = vmatprep.subr.mxu0 0.0
    %2022 = vmatpush1.msra.mxu0 %v86
    %2023 = vmatprep.subr.mxu0 0.0
    %2024 = vmatpush1.msra.mxu0 0.0
    %2025 = vmatprep.subr.mxu0 0.0
    %2026 = vmatpush1.msra.mxu0 0.0
    %2027 = vmatprep.subr.mxu0 0.0
    %2028 = vmatpush1.msra.mxu0 0.0
    %2029 = vmatprep.subr.mxu0 0.0
    %2030 = vmatpush1.msra.mxu0 0.0
    %2031 = vmatprep.subr.mxu0 0.0
    %2032 = vmatpush1.msra.mxu0 0.0
    %2033 = vmatprep.subr.mxu0 0.0
    %2034 = vmatpush1.msra.mxu0 0.0
    %2035 = vmatprep.subr.mxu0 0.0
    %2036 = vmatpush1.msra.mxu0 0.0
    %2037 = vmatprep.subr.mxu0 0.0
    %2038 = vmatpush1.msra.mxu0 0.0
    %2039 = vmatprep.subr.mxu0 0.0
    %2040 = vmatpush1.msra.mxu0 0.0
    %2041 = vmatprep.subr.mxu0 0.0
    %2042 = vmatpush1.msra.mxu0 0.0
    %2043 = vmatprep.subr.mxu0 0.0
    %2044 = vmatpush1.msra.mxu0 0.0
    %2045 = vmatprep.subr.mxu0 0.0
    %2046 = vmatpush1.msra.mxu0 0.0
    %2047 = vmatprep.subr.mxu0 0.0
    %2048 = vmatpush1.msra.mxu0 0.0
    %2049 = vmatprep.subr.mxu0 0.0
    %2050 = vmatpush1.msra.mxu0 0.0
    %2051 = vmatprep.subr.mxu0 0.0
    %2052 = vmatpush1.msra.mxu0 0.0
    %2053 = vmatprep.subr.mxu0 0.0
    %2054 = vmatpush1.msra.mxu0 0.0
    %2055 = vmatprep.subr.mxu0 0.0
    %2056 = vmatpush1.msra.mxu0 0.0
    %2057 = vmatprep.subr.mxu0 0.0
    %2058 = vmatpush1.msra.mxu0 0.0
    %2059 = vmatprep.subr.mxu0 0.0
    %2060 = vmatpush1.msra.mxu0 0.0
    %2061 = vmatprep.subr.mxu0 0.0
    %2062 = vmatpush1.msra.mxu0 0.0
    %2063 = vmatprep.subr.mxu0 0.0
    %2064 = vmatpush1.msra.mxu0 0.0
    %2065 = vmatprep.subr.mxu0 0.0
    %2066 = vmatpush1.msra.mxu0 0.0
    %2067 = vmatprep.subr.mxu0 0.0
    %2068 = vmatpush1.msra.mxu0 0.0
    %2069 = vmatprep.subr.mxu0 0.0
    %2070 = vmatpush1.msra.mxu0 0.0
    %2071 = vmatprep.subr.mxu0 0.0
    %2072 = vmatpush1.msra.mxu0 0.0
    %2073 = vmatprep.subr.mxu0 0.0
    %2074 = vmatpush1.msra.mxu0 0.0
    %2075 = vmatprep.subr.mxu0 0.0
    %2076 = vmatpush1.msra.mxu0 0.0
    %2077 = vmatprep.subr.mxu0 0.0
    %2078 = vmatpush1.msra.mxu0 0.0
    %2079 = vmatprep.mubr.f32.mxu0 0.0
    %2080 = vmatmul.mubr.f32.gmra.mrb[0].mxu0 %v2013
    %v2081 = vpop.f32.mrb[0].mxu0
    %v2082 = vadd.f32 0.0, %v2081
    %v2083 = vpop.f32.mrb[0].mxu0
    %2084 = vdwg.mxu0
    %v2085 = vadd.f32 %v1401, %v2082
    %v2086 = vmul.f32 %v2085, 0.5
    %v2087 = vsel %vm78, %v2085, %v2086
    %v2088 = vtanh.pop %v2087
    %v2089 = vmul.f32 %v2088, 0.5
    %v2090 = vadd.f32 %v2089, 0.5
    %v2091 = vsel %vm78, %v2088, %v2090
    %v2092 = vmul.f32 %v2091, %v2000
    %2094 = vrot.lane.b32.xlu0 %v2091, 64
    %v2095 = vpop.permute.xlu0 %2094
    %v2097 = vmul.f32 %v2091, %v2095
    %2099 = vrot.lane.b32.xlu0 %v2097, 32
    %v2100 = vpop.permute.xlu0 %2099
    %v2102 = vadd.f32 %v2092, %v2100
    %v2103 = vtanh.pop %v2102
    %2105 = vrot.lane.b32.xlu0 %v2103, 64
    %v2106 = vpop.permute.xlu0 %2105
    %v2108 = vmul.f32 %v2091, %v2106
    %2110 = vrot.lane.b32.xlu0 %v2108, 32
    %v2111 = vpop.permute.xlu0 %2110
    %s2113 = scalar_lea.vmem [#allocation4], 48
    %2114 = vst.msk [vmem:[%s2113] sm:$0xff] %vm513, %v2111
    %v2115 = vsel %vm513, %v2111, 0
    %2117 = vmatprep.subr.mxu0 0.0
    %2118 = vmatpush1.msra.mxu0 %v83
    %2119 = vmatprep.subr.mxu0 0.0
    %2120 = vmatpush1.msra.mxu0 %v84
    %2121 = vmatprep.subr.mxu0 0.0
    %2122 = vmatpush1.msra.mxu0 %v85
    %2123 = vmatprep.subr.mxu0 0.0
    %2124 = vmatpush1.msra.mxu0 %v86
    %2125 = vmatprep.subr.mxu0 0.0
    %2126 = vmatpush1.msra.mxu0 0.0
    %2127 = vmatprep.subr.mxu0 0.0
    %2128 = vmatpush1.msra.mxu0 0.0
    %2129 = vmatprep.subr.mxu0 0.0
    %2130 = vmatpush1.msra.mxu0 0.0
    %2131 = vmatprep.subr.mxu0 0.0
    %2132 = vmatpush1.msra.mxu0 0.0
    %2133 = vmatprep.subr.mxu0 0.0
    %2134 = vmatpush1.msra.mxu0 0.0
    %2135 = vmatprep.subr.mxu0 0.0
    %2136 = vmatpush1.msra.mxu0 0.0
    %2137 = vmatprep.subr.mxu0 0.0
    %2138 = vmatpush1.msra.mxu0 0.0
    %2139 = vmatprep.subr.mxu0 0.0
    %2140 = vmatpush1.msra.mxu0 0.0
    %2141 = vmatprep.subr.mxu0 0.0
    %2142 = vmatpush1.msra.mxu0 0.0
    %2143 = vmatprep.subr.mxu0 0.0
    %2144 = vmatpush1.msra.mxu0 0.0
    %2145 = vmatprep.subr.mxu0 0.0
    %2146 = vmatpush1.msra.mxu0 0.0
    %2147 = vmatprep.subr.mxu0 0.0
    %2148 = vmatpush1.msra.mxu0 0.0
    %2149 = vmatprep.subr.mxu0 0.0
    %2150 = vmatpush1.msra.mxu0 0.0
    %2151 = vmatprep.subr.mxu0 0.0
    %2152 = vmatpush1.msra.mxu0 0.0
    %2153 = vmatprep.subr.mxu0 0.0
    %2154 = vmatpush1.msra.mxu0 0.0
    %2155 = vmatprep.subr.mxu0 0.0
    %2156 = vmatpush1.msra.mxu0 0.0
    %2157 = vmatprep.subr.mxu0 0.0
    %2158 = vmatpush1.msra.mxu0 0.0
    %2159 = vmatprep.subr.mxu0 0.0
    %2160 = vmatpush1.msra.mxu0 0.0
    %2161 = vmatprep.subr.mxu0 0.0
    %2162 = vmatpush1.msra.mxu0 0.0
    %2163 = vmatprep.subr.mxu0 0.0
    %2164 = vmatpush1.msra.mxu0 0.0
    %2165 = vmatprep.subr.mxu0 0.0
    %2166 = vmatpush1.msra.mxu0 0.0
    %2167 = vmatprep.subr.mxu0 0.0
    %2168 = vmatpush1.msra.mxu0 0.0
    %2169 = vmatprep.subr.mxu0 0.0
    %2170 = vmatpush1.msra.mxu0 0.0
    %2171 = vmatprep.subr.mxu0 0.0
    %2172 = vmatpush1.msra.mxu0 0.0
    %2173 = vmatprep.subr.mxu0 0.0
    %2174 = vmatpush1.msra.mxu0 0.0
    %2175 = vmatprep.subr.mxu0 0.0
    %2176 = vmatpush1.msra.mxu0 0.0
    %2177 = vmatprep.subr.mxu0 0.0
    %2178 = vmatpush1.msra.mxu0 0.0
    %2179 = vmatprep.subr.mxu0 0.0
    %2180 = vmatpush1.msra.mxu0 0.0
    %2181 = vmatprep.mubr.f32.mxu0 0.0
    %2182 = vmatmul.mubr.f32.gmra.mrb[0].mxu0 %v2115
    %v2183 = vpop.f32.mrb[0].mxu0
    %v2184 = vadd.f32 0.0, %v2183
    %v2185 = vpop.f32.mrb[0].mxu0
    %2186 = vdwg.mxu0
    %v2187 = vadd.f32 %v1401, %v2184
    %v2188 = vmul.f32 %v2187, 0.5
    %v2189 = vsel %vm78, %v2187, %v2188
    %v2190 = vtanh.pop %v2189
    %v2191 = vmul.f32 %v2190, 0.5
    %v2192 = vadd.f32 %v2191, 0.5
    %v2193 = vsel %vm78, %v2190, %v2192
    %v2194 = vmul.f32 %v2193, %v2102
    %2196 = vrot.lane.b32.xlu0 %v2193, 64
    %v2197 = vpop.permute.xlu0 %2196
    %v2199 = vmul.f32 %v2193, %v2197
    %2201 = vrot.lane.b32.xlu0 %v2199, 32
    %v2202 = vpop.permute.xlu0 %2201
    %v2204 = vadd.f32 %v2194, %v2202
    %v2205 = vtanh.pop %v2204
    %2207 = vrot.lane.b32.xlu0 %v2205, 64
    %v2208 = vpop.permute.xlu0 %2207
    %v2210 = vmul.f32 %v2193, %v2208
    %2212 = vrot.lane.b32.xlu0 %v2210, 32
    %v2213 = vpop.permute.xlu0 %2212
    %s2215 = scalar_lea.vmem [#allocation4], 56
    %2216 = vst.msk [vmem:[%s2215] sm:$0xff] %vm513, %v2213
    %v2217 = vld [vmem:[#allocation4] sm:$0xff]
    %v2218 = vld [vmem:[#allocation4 + $0x8] sm:$0xff]
    %v2219 = vld [vmem:[#allocation4 + $0x10] sm:$0xff]
    %v2220 = vld [vmem:[#allocation4 + $0x18] sm:$0xff]
    %v2221 = vld [vmem:[#allocation4 + $0x20] sm:$0xff]
    %v2222 = vld [vmem:[#allocation4 + $0x28] sm:$0xff]
    %v2223 = vld [vmem:[#allocation4 + $0x30] sm:$0xff]
    %v2224 = vld [vmem:[#allocation4 + $0x38] sm:$0xff]
    %v2225 = vld [vmem:[%s7] sm:$0xff]
    %v2226 = vld [vmem:[%s7 + $0x8] sm:$0xff]
    %v2227 = vld [vmem:[%s7 + $0x10] sm:$0xff]
    %v2228 = vld [vmem:[%s7 + $0x18] sm:$0xff]
    %v2229 = vld [vmem:[%s8] sm:$0x1]
    %v2231 = vlaneseq
    %v2232 = vshrl.u32 %v2231, 7
    %v2233 = vsub.s32 0, %v2232
    %v2234 = vrot.slane %v2229, %v2233
    %v2237 = vsel %vm513, %v2217, 0
    %v2240 = vsel %vm513, %v2218, 0
    %v2243 = vsel %vm513, %v2219, 0
    %v2246 = vsel %vm513, %v2220, 0
    %v2249 = vsel %vm513, %v2221, 0
    %v2252 = vsel %vm513, %v2222, 0
    %v2255 = vsel %vm513, %v2223, 0
    %v2258 = vsel %vm513, %v2224, 0
    %2260 = vmatprep.subr.mxu0 0.0
    %2261 = vmatpush1.msra.mxu0 %v2225
    %2262 = vmatprep.subr.mxu0 0.0
    %2263 = vmatpush1.msra.mxu0 %v2226
    %2264 = vmatprep.subr.mxu0 0.0
    %2265 = vmatpush1.msra.mxu0 %v2227
    %2266 = vmatprep.subr.mxu0 0.0
    %2267 = vmatpush1.msra.mxu0 %v2228
    %2268 = vmatprep.subr.mxu0 0.0
    %2269 = vmatpush1.msra.mxu0 0.0
    %2270 = vmatprep.subr.mxu0 0.0
    %2271 = vmatpush1.msra.mxu0 0.0
    %2272 = vmatprep.subr.mxu0 0.0
    %2273 = vmatpush1.msra.mxu0 0.0
    %2274 = vmatprep.subr.mxu0 0.0
    %2275 = vmatpush1.msra.mxu0 0.0
    %2276 = vmatprep.subr.mxu0 0.0
    %2277 = vmatpush1.msra.mxu0 0.0
    %2278 = vmatprep.subr.mxu0 0.0
    %2279 = vmatpush1.msra.mxu0 0.0
    %2280 = vmatprep.subr.mxu0 0.0
    %2281 = vmatpush1.msra.mxu0 0.0
    %2282 = vmatprep.subr.mxu0 0.0
    %2283 = vmatpush1.msra.mxu0 0.0
    %2284 = vmatprep.subr.mxu0 0.0
    %2285 = vmatpush1.msra.mxu0 0.0
    %2286 = vmatprep.subr.mxu0 0.0
    %2287 = vmatpush1.msra.mxu0 0.0
    %2288 = vmatprep.subr.mxu0 0.0
    %2289 = vmatpush1.msra.mxu0 0.0
    %2290 = vmatprep.subr.mxu0 0.0
    %2291 = vmatpush1.msra.mxu0 0.0
    %2292 = vmatprep.subr.mxu0 0.0
    %2293 = vmatpush1.msra.mxu0 0.0
    %2294 = vmatprep.subr.mxu0 0.0
    %2295 = vmatpush1.msra.mxu0 0.0
    %2296 = vmatprep.subr.mxu0 0.0
    %2297 = vmatpush1.msra.mxu0 0.0
    %2298 = vmatprep.subr.mxu0 0.0
    %2299 = vmatpush1.msra.mxu0 0.0
    %2300 = vmatprep.subr.mxu0 0.0
    %2301 = vmatpush1.msra.mxu0 0.0
    %2302 = vmatprep.subr.mxu0 0.0
    %2303 = vmatpush1.msra.mxu0 0.0
    %2304 = vmatprep.subr.mxu0 0.0
    %2305 = vmatpush1.msra.mxu0 0.0
    %2306 = vmatprep.subr.mxu0 0.0
    %2307 = vmatpush1.msra.mxu0 0.0
    %2308 = vmatprep.subr.mxu0 0.0
    %2309 = vmatpush1.msra.mxu0 0.0
    %2310 = vmatprep.subr.mxu0 0.0
    %2311 = vmatpush1.msra.mxu0 0.0
    %2312 = vmatprep.subr.mxu0 0.0
    %2313 = vmatpush1.msra.mxu0 0.0
    %2314 = vmatprep.subr.mxu0 0.0
    %2315 = vmatpush1.msra.mxu0 0.0
    %2316 = vmatprep.subr.mxu0 0.0
    %2317 = vmatpush1.msra.mxu0 0.0
    %2318 = vmatprep.subr.mxu0 0.0
    %2319 = vmatpush1.msra.mxu0 0.0
    %2320 = vmatprep.subr.mxu0 0.0
    %2321 = vmatpush1.msra.mxu0 0.0
    %2322 = vmatprep.subr.mxu0 0.0
    %2323 = vmatpush1.msra.mxu0 0.0
    %2324 = vmatprep.mubr.f32.mxu0 0.0
    %2325 = vmatmul.mubr.f32.gmra.mrb[0].mxu0 %v2237
    %v2326 = vpop.f32.mrb[0].mxu0
    %v2327 = vadd.f32 %v2234, %v2326
    %v2328 = vpop.f32.mrb[0].mxu0
    %2329 = vmatprep.mubr.f32.mxu0 0.0
    %2330 = vmatmul.mubr.f32.gmra.mrb[0].mxu0 %v2240
    %v2331 = vpop.f32.mrb[0].mxu0
    %v2332 = vadd.f32 %v2234, %v2331
    %v2333 = vpop.f32.mrb[0].mxu0
    %2334 = vmatprep.mubr.f32.mxu0 0.0
    %2335 = vmatmul.mubr.f32.gmra.mrb[0].mxu0 %v2243
    %v2336 = vpop.f32.mrb[0].mxu0
    %v2337 = vadd.f32 %v2234, %v2336
    %v2338 = vpop.f32.mrb[0].mxu0
    %2339 = vmatprep.mubr.f32.mxu0 0.0
    %2340 = vmatmul.mubr.f32.gmra.mrb[0].mxu0 %v2246
    %v2341 = vpop.f32.mrb[0].mxu0
    %v2342 = vadd.f32 %v2234, %v2341
    %v2343 = vpop.f32.mrb[0].mxu0
    %2344 = vmatprep.mubr.f32.mxu0 0.0
    %2345 = vmatmul.mubr.f32.gmra.mrb[0].mxu0 %v2249
    %v2346 = vpop.f32.mrb[0].mxu0
    %v2347 = vadd.f32 %v2234, %v2346
    %v2348 = vpop.f32.mrb[0].mxu0
    %2349 = vmatprep.mubr.f32.mxu0 0.0
    %2350 = vmatmul.mubr.f32.gmra.mrb[0].mxu0 %v2252
    %v2351 = vpop.f32.mrb[0].mxu0
    %v2352 = vadd.f32 %v2234, %v2351
    %v2353 = vpop.f32.mrb[0].mxu0
    %2354 = vmatprep.mubr.f32.mxu0 0.0
    %2355 = vmatmul.mubr.f32.gmra.mrb[0].mxu0 %v2255
    %v2356 = vpop.f32.mrb[0].mxu0
    %v2357 = vadd.f32 %v2234, %v2356
    %v2358 = vpop.f32.mrb[0].mxu0
    %2359 = vmatprep.mubr.f32.mxu0 0.0
    %2360 = vmatmul.mubr.f32.gmra.mrb[0].mxu0 %v2258
    %v2361 = vpop.f32.mrb[0].mxu0
    %v2362 = vadd.f32 %v2234, %v2361
    %v2363 = vpop.f32.mrb[0].mxu0
    %2364 = vdwg.mxu0
    %2365 = vst.msk [vmem:[#allocation11] sm:$0xff] %vm125, %v2327
    %2367 = vrot.lane.b32.xlu0 %v2332, 16
    %v2368 = vpop.permute.xlu0 %2367
    %vm2370 = vcmask 261248
    %2371 = vst.msk [vmem:[#allocation11] sm:$0xff] %vm2370, %v2368
    %2373 = vrot.lane.b32.xlu0 %v2337, 32
    %v2374 = vpop.permute.xlu0 %2373
    %vm2376 = vcmask 392448
    %2377 = vst.msk [vmem:[#allocation11] sm:$0xff] %vm2376, %v2374
    %2379 = vrot.lane.b32.xlu0 %v2342, 48
    %v2380 = vpop.permute.xlu0 %2379
    %vm2382 = vcmask 523648
    %2383 = vst.msk [vmem:[#allocation11] sm:$0xff] %vm2382, %v2380
    %2385 = vrot.lane.b32.xlu0 %v2347, 64
    %v2386 = vpop.permute.xlu0 %2385
    %vm2388 = vcmask 654848
    %2389 = vst.msk [vmem:[#allocation11] sm:$0xff] %vm2388, %v2386
    %2391 = vrot.lane.b32.xlu0 %v2352, 80
    %v2392 = vpop.permute.xlu0 %2391
    %vm2394 = vcmask 786048
    %2395 = vst.msk [vmem:[#allocation11] sm:$0xff] %vm2394, %v2392
    %2397 = vrot.lane.b32.xlu0 %v2357, 96
    %v2398 = vpop.permute.xlu0 %2397
    %vm2400 = vcmask 917248
    %2401 = vst.msk [vmem:[#allocation11] sm:$0xff] %vm2400, %v2398
    %2403 = vrot.lane.b32.xlu0 %v2362, 112
    %v2404 = vpop.permute.xlu0 %2403
    %vm2406 = vcmask 1048448
    %2407 = vst.msk [vmem:[#allocation11] sm:$0xff] %vm2406, %v2404
    // Predicated region
    $region50: #{tpu_custom_call.1} parent=1 // pred_check
      _
    $region51: #{tpu_custom_call.1} parent=1 // pred_check_branch
      %2409 = sbr.rel (0) target = $region53
    $region52: #{tpu_custom_call.1} parent=1 // pred_region
      %s2411 = ssub.s32 128, 128
      %2412 = vsyncadd [#allocation7], %s2411
      %s2414 = sshll.u32 [#allocation11], 4
      %s2415 = int_to_ptr.vmem [resolvable:$true] %s2414
      %2417 = dma.vmem_to_hbm [thread:$0]  %s2415, 128, %s9, [#allocation7]
    $region53: #{tpu_custom_call.1} parent=1 // pred_fallthru
      _
    // Predicated region
    $region54: #{tpu_custom_call.1} parent=1 // pred_check
      _
    $region55: #{tpu_custom_call.1} parent=1 // pred_check_branch
      %2419 = sbr.rel (0) target = $region57
    $region56: #{tpu_custom_call.1} parent=1 // pred_region
      %2420 = dma.done [#allocation7], 128
    $region57: #{tpu_custom_call.1} parent=1 // pred_fallthru
      _
    %2421 = vsyncpa [#allocation6], 1
    %2422 = vsyncpa [#allocation9], 1
    %2423 = vsyncpa [#allocation7], 1

// kernel: tpu_custom_call.1
$region0: #{tpu_custom_call.1}
  #allocation0 [shape = 'u32[]', space=smem, size = 0x4, offset = 0x4, fixed_abs, tag = 'smem constant byte address 0x4 - core index']
  #allocation1 [shape = 'u32[144,128]{1,0:T(1,128)}', space=vmem, size = 0x12000, scoped, tag = 'internal scratch']
  #allocation2 [shape = 'f32[8,8,16]{2,1,0:T(8,128)}', space=vmem, size = 0x8000, scoped, tag = 'scratch operand']
  #allocation3 [shape = 'f32[8,8,128]{2,1,0:T(8,128)}', space=vmem, size = 0x8000, scoped, tag = 'scratch operand']
  #allocation4 [shape = 'f32[8,8,32]{2,1,0:T(8,128)}', space=vmem, size = 0x8000, scoped, tag = 'scratch operand']
  %s0 = inlined_call_operand.hbm [shape: f32[8,8,16], index: 0, kind: input, shape index: {}]
  %s1 = inlined_call_operand.hbm [shape: f32[16,128], index: 1, kind: input, shape index: {}]
  %s2 = inlined_call_operand.vmem [shape: f32[32,128], index: 2, kind: input, shape index: {}]
  %s3 = inlined_call_operand.vmem [shape: f32[1,128], index: 3, kind: input, shape index: {}]
  %s4 = inlined_call_operand.hbm [shape: f32[32,128], index: 4, kind: input, shape index: {}]
  %s5 = inlined_call_operand.vmem [shape: f32[32,128], index: 5, kind: input, shape index: {}]
  %s6 = inlined_call_operand.vmem [shape: f32[1,128], index: 6, kind: input, shape index: {}]
  %s7 = inlined_call_operand.vmem [shape: f32[32,16], index: 7, kind: input, shape index: {}]
  %s8 = inlined_call_operand.vmem [shape: f32[1,16], index: 8, kind: input, shape index: {}]
  %s9 = inlined_call_operand.hbm [shape: f32[8,128], index: 9, kind: output, shape index: {}]
  %s10 = sld [smem:[#allocation0]]
  $region58: #{tpu_custom_call.1} parent=0
    _
  %s12 = ssub.s32 1, %s10
  %s13 = scalar_select 0, %s12, %s10
  $region1: #{tpu_custom_call.1} parent=0
    #allocation5 [shape = 'u8[32768]{0}', space=vmem, size = 0x8000, scoped, tag = 'input window, operand 0, single buffered']
    #allocation6 [shape = 's32[1]{0}', space=sflag, size = 0x4, scoped, tag = 'scoped memory for tpu_custom_call.1']
    #allocation7 [shape = 's32[1]{0}', space=sflag, size = 0x4, scoped, tag = 'scoped memory for tpu_custom_call.1']
    #allocation8 [shape = 'u8[8192]{0}', space=vmem, size = 0x2000, scoped, tag = 'input window, operand 1, single buffered']
    #allocation9 [shape = 's32[1]{0}', space=sflag, size = 0x4, scoped, tag = 'scoped memory for tpu_custom_call.1']
    #allocation10 [shape = 'u8[16384]{0}', space=vmem, size = 0x4000, scoped, tag = 'input window, operand 4, single buffered']
    #allocation11 [shape = 'u8[4096]{0}', space=vmem, size = 0x1000, scoped, tag = 'output window, operand 0, single buffered']
    %14 = vsyncpa [#allocation6], 0
    %15 = vsyncpa [#allocation9], 0
    %16 = vsyncpa [#allocation7], 0
    // Predicated region
    $region2: #{tpu_custom_call.1} parent=1 // pred_check
      _
    $region3: #{tpu_custom_call.1} parent=1 // pred_check_branch
      %18 = sbr.rel (0) target = $region5
    $region4: #{tpu_custom_call.1} parent=1 // pred_region
      %s20 = ssub.s32 1024, 1024
      %21 = vsyncadd [#allocation6], %s20
      %s22 = sshll.u32 [#allocation5], 4
      %s23 = int_to_ptr.vmem [resolvable:$true] %s22
      %28 = dma.hbm_to_vmem [thread:$0]  %s0, 1024, %s23, [#allocation6], 128, 128, 8
    $region5: #{tpu_custom_call.1} parent=1 // pred_fallthru
      _
    // Predicated region
    $region6: #{tpu_custom_call.1} parent=1 // pred_check
      _
    $region7: #{tpu_custom_call.1} parent=1 // pred_check_branch
      %30 = sbr.rel (0) target = $region9
    $region8: #{tpu_custom_call.1} parent=1 // pred_region
      %s32 = ssub.s32 256, 256
      %33 = vsyncadd [#allocation9], %s32
      %s34 = sshll.u32 [#allocation8], 4
      %s35 = int_to_ptr.vmem [resolvable:$true] %s34
      %40 = dma.hbm_to_vmem [thread:$0]  %s1, 256, %s35, [#allocation9], 128, 128, 8
    $region9: #{tpu_custom_call.1} parent=1 // pred_fallthru
      _
    // Predicated region
    $region10: #{tpu_custom_call.1} parent=1 // pred_check
      _
    $region11: #{tpu_custom_call.1} parent=1 // pred_check_branch
      %42 = sbr.rel (0) target = $region13
    $region12: #{tpu_custom_call.1} parent=1 // pred_region
      _
    $region13: #{tpu_custom_call.1} parent=1 // pred_fallthru
      _
    // Predicated region
    $region14: #{tpu_custom_call.1} parent=1 // pred_check
      _
    $region15: #{tpu_custom_call.1} parent=1 // pred_check_branch
      %44 = sbr.rel (0) target = $region17
    $region16: #{tpu_custom_call.1} parent=1 // pred_region
      _
    $region17: #{tpu_custom_call.1} parent=1 // pred_fallthru
      _
    // Predicated region
    $region18: #{tpu_custom_call.1} parent=1 // pred_check
      _
    $region19: #{tpu_custom_call.1} parent=1 // pred_check_branch
      %46 = sbr.rel (0) target = $region21
    $region20: #{tpu_custom_call.1} parent=1 // pred_region
      %s48 = ssub.s32 512, 512
      %49 = vsyncadd [#allocation9], %s48
      %s50 = sshll.u32 [#allocation10], 4
      %s51 = int_to_ptr.vmem [resolvable:$true] %s50
      %56 = dma.hbm_to_vmem [thread:$0]  %s4, 512, %s51, [#allocation9], 128, 128, 8
    $region21: #{tpu_custom_call.1} parent=1 // pred_fallthru
      _
    // Predicated region
    $region22: #{tpu_custom_call.1} parent=1 // pred_check
      _
    $region23: #{tpu_custom_call.1} parent=1 // pred_check_branch
      %58 = sbr.rel (0) target = $region25
    $region24: #{tpu_custom_call.1} parent=1 // pred_region
      _
    $region25: #{tpu_custom_call.1} parent=1 // pred_fallthru
      _
    // Predicated region
    $region26: #{tpu_custom_call.1} parent=1 // pred_check
      _
    $region27: #{tpu_custom_call.1} parent=1 // pred_check_branch
      %60 = sbr.rel (0) target = $region29
    $region28: #{tpu_custom_call.1} parent=1 // pred_region
      _
    $region29: #{tpu_custom_call.1} parent=1 // pred_fallthru
      _
    // Predicated region
    $region30: #{tpu_custom_call.1} parent=1 // pred_check
      _
    $region31: #{tpu_custom_call.1} parent=1 // pred_check_branch
      %62 = sbr.rel (0) target = $region33
    $region32: #{tpu_custom_call.1} parent=1 // pred_region
      _
    $region33: #{tpu_custom_call.1} parent=1 // pred_fallthru
      _
    // Predicated region
    $region34: #{tpu_custom_call.1} parent=1 // pred_check
      _
    $region35: #{tpu_custom_call.1} parent=1 // pred_check_branch
      %64 = sbr.rel (0) target = $region37
    $region36: #{tpu_custom_call.1} parent=1 // pred_region
      _
    $region37: #{tpu_custom_call.1} parent=1 // pred_fallthru
      _
    // Predicated region
    $region38: #{tpu_custom_call.1} parent=1 // pred_check
      _
    $region39: #{tpu_custom_call.1} parent=1 // pred_check_branch
      %66 = sbr.rel (0) target = $region41
    $region40: #{tpu_custom_call.1} parent=1 // pred_region
      %67 = dma.done [#allocation6], 1024
    $region41: #{tpu_custom_call.1} parent=1 // pred_fallthru
      _
    // Predicated region
    $region42: #{tpu_custom_call.1} parent=1 // pred_check
      _
    $region43: #{tpu_custom_call.1} parent=1 // pred_check_branch
      %69 = sbr.rel (0) target = $region45
    $region44: #{tpu_custom_call.1} parent=1 // pred_region
      %70 = dma.done [#allocation9], 256
    $region45: #{tpu_custom_call.1} parent=1 // pred_fallthru
      _
    // Predicated region
    $region46: #{tpu_custom_call.1} parent=1 // pred_check
      _
    $region47: #{tpu_custom_call.1} parent=1 // pred_check_branch
      %72 = sbr.rel (0) target = $region49
    $region48: #{tpu_custom_call.1} parent=1 // pred_region
      %73 = dma.done [#allocation9], 512
    $region49: #{tpu_custom_call.1} parent=1 // pred_fallthru
      _
    %v74 = vlaneseq
    %v75 = vand.u32 %v74, 127
    %vm76 = vcmp.ge.s32.totalorder %v75, 64
    %vm77 = vcmp.lt.s32.totalorder %v75, 96
    %vm78 = vmand %vm76, %vm77
    %v79 = vld [vmem:[%s2] sm:$0xff]
    %v80 = vld [vmem:[%s2 + $0x8] sm:$0xff]
    %v81 = vld [vmem:[%s2 + $0x10] sm:$0xff]
    %v82 = vld [vmem:[%s2 + $0x18] sm:$0xff]
    %v83 = vld [vmem:[%s5] sm:$0xff]
    %v84 = vld [vmem:[%s5 + $0x8] sm:$0xff]
    %v85 = vld [vmem:[%s5 + $0x10] sm:$0xff]
    %v86 = vld [vmem:[%s5 + $0x18] sm:$0xff]
    %v87 = vld [vmem:[#allocation5] sm:$0x1]
    %v88 = vld [vmem:[#allocation5 + $0x8] sm:$0x1]
    %v89 = vld [vmem:[#allocation5 + $0x10] sm:$0x1]
    %v90 = vld [vmem:[#allocation5 + $0x18] sm:$0x1]
    %v91 = vld [vmem:[#allocation5 + $0x20] sm:$0x1]
    %v92 = vld [vmem:[#allocation5 + $0x28] sm:$0x1]
    %v93 = vld [vmem:[#allocation5 + $0x30] sm:$0x1]
    %v94 = vld [vmem:[#allocation5 + $0x38] sm:$0x1]
    %v103 = vrot.slane %v88, 7
    %vm104 = vcmask 1041409
    %v105 = vsel %vm104, %v103, %v87
    %v106 = vrot.slane %v89, 6
    %vm107 = vcmask 1042434
    %v108 = vsel %vm107, %v106, %v105
    %v109 = vrot.slane %v90, 5
    %vm110 = vcmask 1043459
    %v111 = vsel %vm110, %v109, %v108
    %v112 = vrot.slane %v91, 4
    %vm113 = vcmask 1044484
    %v114 = vsel %vm113, %v112, %v111
    %v115 = vrot.slane %v92, 3
    %vm116 = vcmask 1045509
    %v117 = vsel %vm116, %v115, %v114
    %v118 = vrot.slane %v93, 2
    %vm119 = vcmask 1046534
    %v120 = vsel %vm119, %v118, %v117
    %v121 = vrot.slane %v94, 1
    %vm122 = vcmask 1047559
    %v123 = vsel %vm122, %v121, %v120
    %vm125 = vcmask 130048
    %126 = vst.msk [vmem:[#allocation2] sm:$0xff] %vm125, %v123
    %v127 = vld [vmem:[#allocation5 + $0x1] sm:$0x1]
    %v128 = vld [vmem:[#allocation5 + $0x9] sm:$0x1]
    %v129 = vld [vmem:[#allocation5 + $0x11] sm:$0x1]
    %v130 = vld [vmem:[#allocation5 + $0x19] sm:$0x1]
    %v131 = vld [vmem:[#allocation5 + $0x21] sm:$0x1]
    %v132 = vld [vmem:[#allocation5 + $0x29] sm:$0x1]
    %v133 = vld [vmem:[#allocation5 + $0x31] sm:$0x1]
    %v134 = vld [vmem:[#allocation5 + $0x39] sm:$0x1]
    %v143 = vrot.slane %v128, 7
    %v144 = vsel %vm104, %v143, %v127
    %v145 = vrot.slane %v129, 6
    %v146 = vsel %vm107, %v145, %v144
    %v147 = vrot.slane %v130, 5
    %v148 = vsel %vm110, %v147, %v146
    %v149 = vrot.slane %v131, 4
    %v150 = vsel %vm113, %v149, %v148
    %v151 = vrot.slane %v132, 3
    %v152 = vsel %vm116, %v151, %v150
    %v153 = vrot.slane %v133, 2
    %v154 = vsel %vm119, %v153, %v152
    %v155 = vrot.slane %v134, 1
    %v156 = vsel %vm122, %v155, %v154
    %s158 = scalar_lea.vmem [#allocation2], 8
    %159 = vst.msk [vmem:[%s158] sm:$0xff] %vm125, %v156
    %v160 = vld [vmem:[#allocation5 + $0x2] sm:$0x1]
    %v161 = vld [vmem:[#allocation5 + $0xa] sm:$0x1]
    %v162 = vld [vmem:[#allocation5 + $0x12] sm:$0x1]
    %v163 = vld [vmem:[#allocation5 + $0x1a] sm:$0x1]
    %v164 = vld [vmem:[#allocation5 + $0x22] sm:$0x1]
    %v165 = vld [vmem:[#allocation5 + $0x2a] sm:$0x1]
    %v166 = vld [vmem:[#allocation5 + $0x32] sm:$0x1]
    %v167 = vld [vmem:[#allocation5 + $0x3a] sm:$0x1]
    %v176 = vrot.slane %v161, 7
    %v177 = vsel %vm104, %v176, %v160
    %v178 = vrot.slane %v162, 6
    %v179 = vsel %vm107, %v178, %v177
    %v180 = vrot.slane %v163, 5
    %v181 = vsel %vm110, %v180, %v179
    %v182 = vrot.slane %v164, 4
    %v183 = vsel %vm113, %v182, %v181
    %v184 = vrot.slane %v165, 3
    %v185 = vsel %vm116, %v184, %v183
    %v186 = vrot.slane %v166, 2
    %v187 = vsel %vm119, %v186, %v185
    %v188 = vrot.slane %v167, 1
    %v189 = vsel %vm122, %v188, %v187
    %s191 = scalar_lea.vmem [#allocation2], 16
    %192 = vst.msk [vmem:[%s191] sm:$0xff] %vm125, %v189
    %v193 = vld [vmem:[#allocation5 + $0x3] sm:$0x1]
    %v194 = vld [vmem:[#allocation5 + $0xb] sm:$0x1]
    %v195 = vld [vmem:[#allocation5 + $0x13] sm:$0x1]
    %v196 = vld [vmem:[#allocation5 + $0x1b] sm:$0x1]
    %v197 = vld [vmem:[#allocation5 + $0x23] sm:$0x1]
    %v198 = vld [vmem:[#allocation5 + $0x2b] sm:$0x1]
    %v199 = vld [vmem:[#allocation5 + $0x33] sm:$0x1]
    %v200 = vld [vmem:[#allocation5 + $0x3b] sm:$0x1]
    %v209 = vrot.slane %v194, 7
    %v210 = vsel %vm104, %v209, %v193
    %v211 = vrot.slane %v195, 6
    %v212 = vsel %vm107, %v211, %v210
    %v213 = vrot.slane %v196, 5
    %v214 = vsel %vm110, %v213, %v212
    %v215 = vrot.slane %v197, 4
    %v216 = vsel %vm113, %v215, %v214
    %v217 = vrot.slane %v198, 3
    %v218 = vsel %vm116, %v217, %v216
    %v219 = vrot.slane %v199, 2
    %v220 = vsel %vm119, %v219, %v218
    %v221 = vrot.slane %v200, 1
    %v222 = vsel %vm122, %v221, %v220
    %s224 = scalar_lea.vmem [#allocation2], 24
    %225 = vst.msk [vmem:[%s224] sm:$0xff] %vm125, %v222
    %v226 = vld [vmem:[#allocation5 + $0x4] sm:$0x1]
    %v227 = vld [vmem:[#allocation5 + $0xc] sm:$0x1]
    %v228 = vld [vmem:[#allocation5 + $0x14] sm:$0x1]
    %v229 = vld [vmem:[#allocation5 + $0x1c] sm:$0x1]
    %v230 = vld [vmem:[#allocation5 + $0x24] sm:$0x1]
    %v231 = vld [vmem:[#allocation5 + $0x2c] sm:$0x1]
    %v232 = vld [vmem:[#allocation5 + $0x34] sm:$0x1]
    %v233 = vld [vmem:[#allocation5 + $0x3c] sm:$0x1]
    %v242 = vrot.slane %v227, 7
    %v243 = vsel %vm104, %v242, %v226
    %v244 = vrot.slane %v228, 6
    %v245 = vsel %vm107, %v244, %v243
    %v246 = vrot.slane %v229, 5
    %v247 = vsel %vm110, %v246, %v245
    %v248 = vrot.slane %v230, 4
    %v249 = vsel %vm113, %v248, %v247
    %v250 = vrot.slane %v231, 3
    %v251 = vsel %vm116, %v250, %v249
    %v252 = vrot.slane %v232, 2
    %v253 = vsel %vm119, %v252, %v251
    %v254 = vrot.slane %v233, 1
    %v255 = vsel %vm122, %v254, %v253
    %s257 = scalar_lea.vmem [#allocation2], 32
    %258 = vst.msk [vmem:[%s257] sm:$0xff] %vm125, %v255
    %v259 = vld [vmem:[#allocation5 + $0x5] sm:$0x1]
    %v260 = vld [vmem:[#allocation5 + $0xd] sm:$0x1]
    %v261 = vld [vmem:[#allocation5 + $0x15] sm:$0x1]
    %v262 = vld [vmem:[#allocation5 + $0x1d] sm:$0x1]
    %v263 = vld [vmem:[#allocation5 + $0x25] sm:$0x1]
    %v264 = vld [vmem:[#allocation5 + $0x2d] sm:$0x1]
    %v265 = vld [vmem:[#allocation5 + $0x35] sm:$0x1]
    %v266 = vld [vmem:[#allocation5 + $0x3d] sm:$0x1]
    %v275 = vrot.slane %v260, 7
    %v276 = vsel %vm104, %v275, %v259
    %v277 = vrot.slane %v261, 6
    %v278 = vsel %vm107, %v277, %v276
    %v279 = vrot.slane %v262, 5
    %v280 = vsel %vm110, %v279, %v278
    %v281 = vrot.slane %v263, 4
    %v282 = vsel %vm113, %v281, %v280
    %v283 = vrot.slane %v264, 3
    %v284 = vsel %vm116, %v283, %v282
    %v285 = vrot.slane %v265, 2
    %v286 = vsel %vm119, %v285, %v284
    %v287 = vrot.slane %v266, 1
    %v288 = vsel %vm122, %v287, %v286
    %s290 = scalar_lea.vmem [#allocation2], 40
    %291 = vst.msk [vmem:[%s290] sm:$0xff] %vm125, %v288
    %v292 = vld [vmem:[#allocation5 + $0x6] sm:$0x1]
    %v293 = vld [vmem:[#allocation5 + $0xe] sm:$0x1]
    %v294 = vld [vmem:[#allocation5 + $0x16] sm:$0x1]
    %v295 = vld [vmem:[#allocation5 + $0x1e] sm:$0x1]
    %v296 = vld [vmem:[#allocation5 + $0x26] sm:$0x1]
    %v297 = vld [vmem:[#allocation5 + $0x2e] sm:$0x1]
    %v298 = vld [vmem:[#allocation5 + $0x36] sm:$0x1]
    %v299 = vld [vmem:[#allocation5 + $0x3e] sm:$0x1]
    %v308 = vrot.slane %v293, 7
    %v309 = vsel %vm104, %v308, %v292
    %v310 = vrot.slane %v294, 6
    %v311 = vsel %vm107, %v310, %v309
    %v312 = vrot.slane %v295, 5
    %v313 = vsel %vm110, %v312, %v311
    %v314 = vrot.slane %v296, 4
    %v315 = vsel %vm113, %v314, %v313
    %v316 = vrot.slane %v297, 3
    %v317 = vsel %vm116, %v316, %v315
    %v318 = vrot.slane %v298, 2
    %v319 = vsel %vm119, %v318, %v317
    %v320 = vrot.slane %v299, 1
    %v321 = vsel %vm122, %v320, %v319
    %s323 = scalar_lea.vmem [#allocation2], 48
    %324 = vst.msk [vmem:[%s323] sm:$0xff] %vm125, %v321
    %v325 = vld [vmem:[#allocation5 + $0x7] sm:$0x1]
    %v326 = vld [vmem:[#allocation5 + $0xf] sm:$0x1]
    %v327 = vld [vmem:[#allocation5 + $0x17] sm:$0x1]
    %v328 = vld [vmem:[#allocation5 + $0x1f] sm:$0x1]
    %v329 = vld [vmem:[#allocation5 + $0x27] sm:$0x1]
    %v330 = vld [vmem:[#allocation5 + $0x2f] sm:$0x1]
    %v331 = vld [vmem:[#allocation5 + $0x37] sm:$0x1]
    %v332 = vld [vmem:[#allocation5 + $0x3f] sm:$0x1]
    %v341 = vrot.slane %v326, 7
    %v342 = vsel %vm104, %v341, %v325
    %v343 = vrot.slane %v327, 6
    %v344 = vsel %vm107, %v343, %v342
    %v345 = vrot.slane %v328, 5
    %v346 = vsel %vm110, %v345, %v344
    %v347 = vrot.slane %v329, 4
    %v348 = vsel %vm113, %v347, %v346
    %v349 = vrot.slane %v330, 3
    %v350 = vsel %vm116, %v349, %v348
    %v351 = vrot.slane %v331, 2
    %v352 = vsel %vm119, %v351, %v350
    %v353 = vrot.slane %v332, 1
    %v354 = vsel %vm122, %v353, %v352
    %s356 = scalar_lea.vmem [#allocation2], 56
    %357 = vst.msk [vmem:[%s356] sm:$0xff] %vm125, %v354
    %v358 = vld [vmem:[#allocation2] sm:$0xff]
    %v359 = vld [vmem:[#allocation2 + $0x8] sm:$0xff]
    %v360 = vld [vmem:[#allocation2 + $0x10] sm:$0xff]
    %v361 = vld [vmem:[#allocation2 + $0x18] sm:$0xff]
    %v362 = vld [vmem:[#allocation2 + $0x20] sm:$0xff]
    %v363 = vld [vmem:[#allocation2 + $0x28] sm:$0xff]
    %v364 = vld [vmem:[#allocation2 + $0x30] sm:$0xff]
    %v365 = vld [vmem:[#allocation2 + $0x38] sm:$0xff]
    %v366 = vld [vmem:[#allocation8] sm:$0xff]
    %v367 = vld [vmem:[#allocation8 + $0x8] sm:$0xff]
    %v368 = vld [vmem:[%s3] sm:$0x1]
    %v370 = vlaneseq
    %v371 = vshrl.u32 %v370, 7
    %v372 = vsub.s32 0, %v371
    %v373 = vrot.slane %v368, %v372
    %v376 = vsel %vm125, %v358, 0
    %v379 = vsel %vm125, %v359, 0
    %v382 = vsel %vm125, %v360, 0
    %v385 = vsel %vm125, %v361, 0
    %v388 = vsel %vm125, %v362, 0
    %v391 = vsel %vm125, %v363, 0
    %v394 = vsel %vm125, %v364, 0
    %v397 = vsel %vm125, %v365, 0
    %399 = vmatprep.subr.mxu0 0.0
    %400 = vmatpush1.msra.mxu0 %v366
    %401 = vmatprep.subr.mxu0 0.0
    %402 = vmatpush1.msra.mxu0 %v367
    %403 = vmatprep.subr.mxu0 0.0
    %404 = vmatpush1.msra.mxu0 0.0
    %405 = vmatprep.subr.mxu0 0.0
    %406 = vmatpush1.msra.mxu0 0.0
    %407 = vmatprep.subr.mxu0 0.0
    %408 = vmatpush1.msra.mxu0 0.0
    %409 = vmatprep.subr.mxu0 0.0
    %410 = vmatpush1.msra.mxu0 0.0
    %411 = vmatprep.subr.mxu0 0.0
    %412 = vmatpush1.msra.mxu0 0.0
    %413 = vmatprep.subr.mxu0 0.0
    %414 = vmatpush1.msra.mxu0 0.0
    %415 = vmatprep.subr.mxu0 0.0
    %416 = vmatpush1.msra.mxu0 0.0
    %417 = vmatprep.subr.mxu0 0.0
    %418 = vmatpush1.msra.mxu0 0.0
    %419 = vmatprep.subr.mxu0 0.0
    %420 = vmatpush1.msra.mxu0 0.0
    %421 = vmatprep.subr.mxu0 0.0
    %422 = vmatpush1.msra.mxu0 0.0
    %423 = vmatprep.subr.mxu0 0.0
    %424 = vmatpush1.msra.mxu0 0.0
    %425 = vmatprep.subr.mxu0 0.0
    %426 = vmatpush1.msra.mxu0 0.0
    %427 = vmatprep.subr.mxu0 0.0
    %428 = vmatpush1.msra.mxu0 0.0
    %429 = vmatprep.subr.mxu0 0.0
    %430 = vmatpush1.msra.mxu0 0.0
    %431 = vmatprep.subr.mxu0 0.0
    %432 = vmatpush1.msra.mxu0 0.0
    %433 = vmatprep.subr.mxu0 0.0
    %434 = vmatpush1.msra.mxu0 0.0
    %435 = vmatprep.subr.mxu0 0.0
    %436 = vmatpush1.msra.mxu0 0.0
    %437 = vmatprep.subr.mxu0 0.0
    %438 = vmatpush1.msra.mxu0 0.0
    %439 = vmatprep.subr.mxu0 0.0
    %440 = vmatpush1.msra.mxu0 0.0
    %441 = vmatprep.subr.mxu0 0.0
    %442 = vmatpush1.msra.mxu0 0.0
    %443 = vmatprep.subr.mxu0 0.0
    %444 = vmatpush1.msra.mxu0 0.0
    %445 = vmatprep.subr.mxu0 0.0
    %446 = vmatpush1.msra.mxu0 0.0
    %447 = vmatprep.subr.mxu0 0.0
    %448 = vmatpush1.msra.mxu0 0.0
    %449 = vmatprep.subr.mxu0 0.0
    %450 = vmatpush1.msra.mxu0 0.0
    %451 = vmatprep.subr.mxu0 0.0
    %452 = vmatpush1.msra.mxu0 0.0
    %453 = vmatprep.subr.mxu0 0.0
    %454 = vmatpush1.msra.mxu0 0.0
    %455 = vmatprep.subr.mxu0 0.0
    %456 = vmatpush1.msra.mxu0 0.0
    %457 = vmatprep.subr.mxu0 0.0
    %458 = vmatpush1.msra.mxu0 0.0
    %459 = vmatprep.subr.mxu0 0.0
    %460 = vmatpush1.msra.mxu0 0.0
    %461 = vmatprep.subr.mxu0 0.0
    %462 = vmatpush1.msra.mxu0 0.0
    %463 = vmatprep.mubr.f32.mxu0 0.0
    %464 = vmatmul.mubr.f32.gmra.mrb[0].mxu0 %v376
    %v465 = vpop.f32.mrb[0].mxu0
    %v466 = vadd.f32 %v373, %v465
    %v467 = vpop.f32.mrb[0].mxu0
    %468 = vmatprep.mubr.f32.mxu0 0.0
    %469 = vmatmul.mubr.f32.gmra.mrb[0].mxu0 %v379
    %v470 = vpop.f32.mrb[0].mxu0
    %v471 = vadd.f32 %v373, %v470
    %v472 = vpop.f32.mrb[0].mxu0
    %473 = vmatprep.mubr.f32.mxu0 0.0
    %474 = vmatmul.mubr.f32.gmra.mrb[0].mxu0 %v382
    %v475 = vpop.f32.mrb[0].mxu0
    %v476 = vadd.f32 %v373, %v475
    %v477 = vpop.f32.mrb[0].mxu0
    %478 = vmatprep.mubr.f32.mxu0 0.0
    %479 = vmatmul.mubr.f32.gmra.mrb[0].mxu0 %v385
    %v480 = vpop.f32.mrb[0].mxu0
    %v481 = vadd.f32 %v373, %v480
    %v482 = vpop.f32.mrb[0].mxu0
    %483 = vmatprep.mubr.f32.mxu0 0.0
    %484 = vmatmul.mubr.f32.gmra.mrb[0].mxu0 %v388
    %v485 = vpop.f32.mrb[0].mxu0
    %v486 = vadd.f32 %v373, %v485
    %v487 = vpop.f32.mrb[0].mxu0
    %488 = vmatprep.mubr.f32.mxu0 0.0
    %489 = vmatmul.mubr.f32.gmra.mrb[0].mxu0 %v391
    %v490 = vpop.f32.mrb[0].mxu0
    %v491 = vadd.f32 %v373, %v490
    %v492 = vpop.f32.mrb[0].mxu0
    %493 = vmatprep.mubr.f32.mxu0 0.0
    %494 = vmatmul.mubr.f32.gmra.mrb[0].mxu0 %v394
    %v495 = vpop.f32.mrb[0].mxu0
    %v496 = vadd.f32 %v373, %v495
    %v497 = vpop.f32.mrb[0].mxu0
    %498 = vmatprep.mubr.f32.mxu0 0.0
    %499 = vmatmul.mubr.f32.gmra.mrb[0].mxu0 %v397
    %v500 = vpop.f32.mrb[0].mxu0
    %v501 = vadd.f32 %v373, %v500
    %v502 = vpop.f32.mrb[0].mxu0
    %503 = vdwg.mxu0
    %504 = vst [vmem:[#allocation3] sm:$0xff] %v466
    %505 = vst [vmem:[#allocation3 + $0x8] sm:$0xff] %v471
    %506 = vst [vmem:[#allocation3 + $0x10] sm:$0xff] %v476
    %507 = vst [vmem:[#allocation3 + $0x18] sm:$0xff] %v481
    %508 = vst [vmem:[#allocation3 + $0x20] sm:$0xff] %v486
    %509 = vst [vmem:[#allocation3 + $0x28] sm:$0xff] %v491
    %510 = vst [vmem:[#allocation3 + $0x30] sm:$0xff] %v496
    %511 = vst [vmem:[#allocation3 + $0x38] sm:$0xff] %v501
    %v512 = vld [vmem:[#allocation3] sm:$0xff]
    %vm513 = vcmask 261120
    %v515 = vsel %vm513, 0.0, 0
    %517 = vmatprep.subr.mxu0 0.0
    %518 = vmatpush1.msra.mxu0 %v79
    %519 = vmatprep.subr.mxu0 0.0
    %520 = vmatpush1.msra.mxu0 %v80
    %521 = vmatprep.subr.mxu0 0.0
    %522 = vmatpush1.msra.mxu0 %v81
    %523 = vmatprep.subr.mxu0 0.0
    %524 = vmatpush1.msra.mxu0 %v82
    %525 = vmatprep.subr.mxu0 0.0
    %526 = vmatpush1.msra.mxu0 0.0
    %527 = vmatprep.subr.mxu0 0.0
    %528 = vmatpush1.msra.mxu0 0.0
    %529 = vmatprep.subr.mxu0 0.0
    %530 = vmatpush1.msra.mxu0 0.0
    %531 = vmatprep.subr.mxu0 0.0
    %532 = vmatpush1.msra.mxu0 0.0
    %533 = vmatprep.subr.mxu0 0.0
    %534 = vmatpush1.msra.mxu0 0.0
    %535 = vmatprep.subr.mxu0 0.0
    %536 = vmatpush1.msra.mxu0 0.0
    %537 = vmatprep.subr.mxu0 0.0
    %538 = vmatpush1.msra.mxu0 0.0
    %539 = vmatprep.subr.mxu0 0.0
    %540 = vmatpush1.msra.mxu0 0.0
    %541 = vmatprep.subr.mxu0 0.0
    %542 = vmatpush1.msra.mxu0 0.0
    %543 = vmatprep.subr.mxu0 0.0
    %544 = vmatpush1.msra.mxu0 0.0
    %545 = vmatprep.subr.mxu0 0.0
    %546 = vmatpush1.msra.mxu0 0.0
    %547 = vmatprep.subr.mxu0 0.0
    %548 = vmatpush1.msra.mxu0 0.0
    %549 = vmatprep.subr.mxu0 0.0
    %550 = vmatpush1.msra.mxu0 0.0
    %551 = vmatprep.subr.mxu0 0.0
    %552 = vmatpush1.msra.mxu0 0.0
    %553 = vmatprep.subr.mxu0 0.0
    %554 = vmatpush1.msra.mxu0 0.0
    %555 = vmatprep.subr.mxu0 0.0
    %556 = vmatpush1.msra.mxu0 0.0
    %557 = vmatprep.subr.mxu0 0.0
    %558 = vmatpush1.msra.mxu0 0.0
    %559 = vmatprep.subr.mxu0 0.0
    %560 = vmatpush1.msra.mxu0 0.0
    %561 = vmatprep.subr.mxu0 0.0
    %562 = vmatpush1.msra.mxu0 0.0
    %563 = vmatprep.subr.mxu0 0.0
    %564 = vmatpush1.msra.mxu0 0.0
    %565 = vmatprep.subr.mxu0 0.0
    %566 = vmatpush1.msra.mxu0 0.0
    %567 = vmatprep.subr.mxu0 0.0
    %568 = vmatpush1.msra.mxu0 0.0
    %569 = vmatprep.subr.mxu0 0.0
    %570 = vmatpush1.msra.mxu0 0.0
    %571 = vmatprep.subr.mxu0 0.0
    %572 = vmatpush1.msra.mxu0 0.0
    %573 = vmatprep.subr.mxu0 0.0
    %574 = vmatpush1.msra.mxu0 0.0
    %575 = vmatprep.subr.mxu0 0.0
    %576 = vmatpush1.msra.mxu0 0.0
    %577 = vmatprep.subr.mxu0 0.0
    %578 = vmatpush1.msra.mxu0 0.0
    %579 = vmatprep.subr.mxu0 0.0
    %580 = vmatpush1.msra.mxu0 0.0
    %581 = vmatprep.mubr.f32.mxu0 0.0
    %582 = vmatmul.mubr.f32.gmra.mrb[0].mxu0 %v515
    %v583 = vpop.f32.mrb[0].mxu0
    %v584 = vadd.f32 0.0, %v583
    %v585 = vpop.f32.mrb[0].mxu0
    %586 = vdwg.mxu0
    %v587 = vadd.f32 %v512, %v584
    %v588 = vmul.f32 %v587, 0.5
    %v589 = vsel %vm78, %v587, %v588
    %v590 = vtanh.pop %v589
    %v591 = vmul.f32 %v590, 0.5
    %v592 = vadd.f32 %v591, 0.5
    %v593 = vsel %vm78, %v590, %v592
    %v594 = vmul.f32 %v593, 0.0
    %596 = vrot.lane.b32.xlu0 %v593, 64
    %v597 = vpop.permute.xlu0 %596
    %v599 = vmul.f32 %v593, %v597
    %601 = vrot.lane.b32.xlu0 %v599, 32
    %v602 = vpop.permute.xlu0 %601
    %v604 = vadd.f32 %v594, %v602
    %v605 = vtanh.pop %v604
    %607 = vrot.lane.b32.xlu0 %v605, 64
    %v608 = vpop.permute.xlu0 %607
    %v610 = vmul.f32 %v593, %v608
    %s611 = scalar_lea.vmem [#allocation3], 8
    %v612 = vld [vmem:[%s611] sm:$0xff]
    %614 = vrot.lane.b32.xlu0 %v610, 32
    %v615 = vpop.permute.xlu0 %614
    %v616 = vsel %vm513, %v615, 0
    %618 = vmatprep.subr.mxu0 0.0
    %619 = vmatpush1.msra.mxu0 %v79
    %620 = vmatprep.subr.mxu0 0.0
    %621 = vmatpush1.msra.mxu0 %v80
    %622 = vmatprep.subr.mxu0 0.0
    %623 = vmatpush1.msra.mxu0 %v81
    %624 = vmatprep.subr.mxu0 0.0
    %625 = vmatpush1.msra.mxu0 %v82
    %626 = vmatprep.subr.mxu0 0.0
    %627 = vmatpush1.msra.mxu0 0.0
    %628 = vmatprep.subr.mxu0 0.0
    %629 = vmatpush1.msra.mxu0 0.0
    %630 = vmatprep.subr.mxu0 0.0
    %631 = vmatpush1.msra.mxu0 0.0
    %632 = vmatprep.subr.mxu0 0.0
    %633 = vmatpush1.msra.mxu0 0.0
    %634 = vmatprep.subr.mxu0 0.0
    %635 = vmatpush1.msra.mxu0 0.0
    %636 = vmatprep.subr.mxu0 0.0
    %637 = vmatpush1.msra.mxu0 0.0
    %638 = vmatprep.subr.mxu0 0.0
    %639 = vmatpush1.msra.mxu0 0.0
    %640 = vmatprep.subr.mxu0 0.0
    %641 = vmatpush1.msra.mxu0 0.0
    %642 = vmatprep.subr.mxu0 0.0
    %643 = vmatpush1.msra.mxu0 0.0
    %644 = vmatprep.subr.mxu0 0.0
    %645 = vmatpush1.msra.mxu0 0.0
    %646 = vmatprep.subr.mxu0 0.0
    %647 = vmatpush1.msra.mxu0 0.0
    %648 = vmatprep.subr.mxu0 0.0
    %649 = vmatpush1.msra.mxu0 0.0
    %650 = vmatprep.subr.mxu0 0.0
    %651 = vmatpush1.msra.mxu0 0.0
    %652 = vmatprep.subr.mxu0 0.0
    %653 = vmatpush1.msra.mxu0 0.0
    %654 = vmatprep.subr.mxu0 0.0
    %655 = vmatpush1.msra.mxu0 0.0
    %656 = vmatprep.subr.mxu0 0.0
    %657 = vmatpush1.msra.mxu0 0.0
    %658 = vmatprep.subr.mxu0 0.0
    %659 = vmatpush1.msra.mxu0 0.0
    %660 = vmatprep.subr.mxu0 0.0
    %661 = vmatpush1.msra.mxu0 0.0
    %662 = vmatprep.subr.mxu0 0.0
    %663 = vmatpush1.msra.mxu0 0.0
    %664 = vmatprep.subr.mxu0 0.0
    %665 = vmatpush1.msra.mxu0 0.0
    %666 = vmatprep.subr.mxu0 0.0
    %667 = vmatpush1.msra.mxu0 0.0
    %668 = vmatprep.subr.mxu0 0.0
    %669 = vmatpush1.msra.mxu0 0.0
    %670 = vmatprep.subr.mxu0 0.0
    %671 = vmatpush1.msra.mxu0 0.0
    %672 = vmatprep.subr.mxu0 0.0
    %673 = vmatpush1.msra.mxu0 0.0
    %674 = vmatprep.subr.mxu0 0.0
    %675 = vmatpush1.msra.mxu0 0.0
    %676 = vmatprep.subr.mxu0 0.0
    %677 = vmatpush1.msra.mxu0 0.0
    %678 = vmatprep.subr.mxu0 0.0
    %679 = vmatpush1.msra.mxu0 0.0
    %680 = vmatprep.subr.mxu0 0.0
    %681 = vmatpush1.msra.mxu0 0.0
    %682 = vmatprep.mubr.f32.mxu0 0.0
    %683 = vmatmul.mubr.f32.gmra.mrb[0].mxu0 %v616
    %v684 = vpop.f32.mrb[0].mxu0
    %v685 = vadd.f32 0.0, %v684
    %v686 = vpop.f32.mrb[0].mxu0
    %687 = vdwg.mxu0
    %v688 = vadd.f32 %v612, %v685
    %v689 = vmul.f32 %v688, 0.5
    %v690 = vsel %vm78, %v688, %v689
    %v691 = vtanh.pop %v690
    %v692 = vmul.f32 %v691, 0.5
    %v693 = vadd.f32 %v692, 0.5
    %v694 = vsel %vm78, %v691, %v693
    %v695 = vmul.f32 %v694, %v604
    %697 = vrot.lane.b32.xlu0 %v694, 64
    %v698 = vpop.permute.xlu0 %697
    %v700 = vmul.f32 %v694, %v698
    %702 = vrot.lane.b32.xlu0 %v700, 32
    %v703 = vpop.permute.xlu0 %702
    %v705 = vadd.f32 %v695, %v703
    %v706 = vtanh.pop %v705
    %708 = vrot.lane.b32.xlu0 %v706, 64
    %v709 = vpop.permute.xlu0 %708
    %v711 = vmul.f32 %v694, %v709
    %s712 = scalar_lea.vmem [#allocation3], 16
    %v713 = vld [vmem:[%s712] sm:$0xff]
    %715 = vrot.lane.b32.xlu0 %v711, 32
    %v716 = vpop.permute.xlu0 %715
    %v717 = vsel %vm513, %v716, 0
    %719 = vmatprep.subr.mxu0 0.0
    %720 = vmatpush1.msra.mxu0 %v79
    %721 = vmatprep.subr.mxu0 0.0
    %722 = vmatpush1.msra.mxu0 %v80
    %723 = vmatprep.subr.mxu0 0.0
    %724 = vmatpush1.msra.mxu0 %v81
    %725 = vmatprep.subr.mxu0 0.0
    %726 = vmatpush1.msra.mxu0 %v82
    %727 = vmatprep.subr.mxu0 0.0
    %728 = vmatpush1.msra.mxu0 0.0
    %729 = vmatprep.subr.mxu0 0.0
    %730 = vmatpush1.msra.mxu0 0.0
    %731 = vmatprep.subr.mxu0 0.0
    %732 = vmatpush1.msra.mxu0 0.0
    %733 = vmatprep.subr.mxu0 0.0
    %734 = vmatpush1.msra.mxu0 0.0
    %735 = vmatprep.subr.mxu0 0.0
    %736 = vmatpush1.msra.mxu0 0.0
    %737 = vmatprep.subr.mxu0 0.0
    %738 = vmatpush1.msra.mxu0 0.0
    %739 = vmatprep.subr.mxu0 0.0
    %740 = vmatpush1.msra.mxu0 0.0
    %741 = vmatprep.subr.mxu0 0.0
    %742 = vmatpush1.msra.mxu0 0.0
    %743 = vmatprep.subr.mxu0 0.0
    %744 = vmatpush1.msra.mxu0 0.0
    %745 = vmatprep.subr.mxu0 0.0
    %746 = vmatpush1.msra.mxu0 0.0
    %747 = vmatprep.subr.mxu0 0.0
    %748 = vmatpush1.msra.mxu0 0.0
    %749 = vmatprep.subr.mxu0 0.0
    %750 = vmatpush1.msra.mxu0 0.0
    %751 = vmatprep.subr.mxu0 0.0
    %752 = vmatpush1.msra.mxu0 0.0
    %753 = vmatprep.subr.mxu0 0.0
    %754 = vmatpush1.msra.mxu0 0.0
    %755 = vmatprep.subr.mxu0 0.0
    %756 = vmatpush1.msra.mxu0 0.0
    %757 = vmatprep.subr.mxu0 0.0
    %758 = vmatpush1.msra.mxu0 0.0
    %759 = vmatprep.subr.mxu0 0.0
    %760 = vmatpush1.msra.mxu0 0.0
    %761 = vmatprep.subr.mxu0 0.0
    %762 = vmatpush1.msra.mxu0 0.0
    %763 = vmatprep.subr.mxu0 0.0
    %764 = vmatpush1.msra.mxu0 0.0
    %765 = vmatprep.subr.mxu0 0.0
    %766 = vmatpush1.msra.mxu0 0.0
    %767 = vmatprep.subr.mxu0 0.0
    %768 = vmatpush1.msra.mxu0 0.0
    %769 = vmatprep.subr.mxu0 0.0
    %770 = vmatpush1.msra.mxu0 0.0
    %771 = vmatprep.subr.mxu0 0.0
    %772 = vmatpush1.msra.mxu0 0.0
    %773 = vmatprep.subr.mxu0 0.0
    %774 = vmatpush1.msra.mxu0 0.0
    %775 = vmatprep.subr.mxu0 0.0
    %776 = vmatpush1.msra.mxu0 0.0
    %777 = vmatprep.subr.mxu0 0.0
    %778 = vmatpush1.msra.mxu0 0.0
    %779 = vmatprep.subr.mxu0 0.0
    %780 = vmatpush1.msra.mxu0 0.0
    %781 = vmatprep.subr.mxu0 0.0
    %782 = vmatpush1.msra.mxu0 0.0
    %783 = vmatprep.mubr.f32.mxu0 0.0
    %784 = vmatmul.mubr.f32.gmra.mrb[0].mxu0 %v717
    %v785 = vpop.f32.mrb[0].mxu0
    %v786 = vadd.f32 0.0, %v785
    %v787 = vpop.f32.mrb[0].mxu0
    %788 = vdwg.mxu0
    %v789 = vadd.f32 %v713, %v786
    %v790 = vmul.f32 %v789, 0.5
    %v791 = vsel %vm78, %v789, %v790
    %v792 = vtanh.pop %v791
    %v793 = vmul.f32 %v792, 0.5
    %v794 = vadd.f32 %v793, 0.5
    %v795 = vsel %vm78, %v792, %v794
    %v796 = vmul.f32 %v795, %v705
    %798 = vrot.lane.b32.xlu0 %v795, 64
    %v799 = vpop.permute.xlu0 %798
    %v801 = vmul.f32 %v795, %v799
    %803 = vrot.lane.b32.xlu0 %v801, 32
    %v804 = vpop.permute.xlu0 %803
    %v806 = vadd.f32 %v796, %v804
    %v807 = vtanh.pop %v806
    %809 = vrot.lane.b32.xlu0 %v807, 64
    %v810 = vpop.permute.xlu0 %809
    %v812 = vmul.f32 %v795, %v810
    %s813 = scalar_lea.vmem [#allocation3], 24
    %v814 = vld [vmem:[%s813] sm:$0xff]
    %816 = vrot.lane.b32.xlu0 %v812, 32
    %v817 = vpop.permute.xlu0 %816
    %v818 = vsel %vm513, %v817, 0
    %820 = vmatprep.subr.mxu0 0.0
    %821 = vmatpush1.msra.mxu0 %v79
    %822 = vmatprep.subr.mxu0 0.0
    %823 = vmatpush1.msra.mxu0 %v80
    %824 = vmatprep.subr.mxu0 0.0
    %825 = vmatpush1.msra.mxu0 %v81
    %826 = vmatprep.subr.mxu0 0.0
    %827 = vmatpush1.msra.mxu0 %v82
    %828 = vmatprep.subr.mxu0 0.0
    %829 = vmatpush1.msra.mxu0 0.0
    %830 = vmatprep.subr.mxu0 0.0
    %831 = vmatpush1.msra.mxu0 0.0
    %832 = vmatprep.subr.mxu0 0.0
    %833 = vmatpush1.msra.mxu0 0.0
    %834 = vmatprep.subr.mxu0 0.0
    %835 = vmatpush1.msra.mxu0 0.0
    %836 = vmatprep.subr.mxu0 0.0
    %837 = vmatpush1.msra.mxu0 0.0
    %838 = vmatprep.subr.mxu0 0.0
    %839 = vmatpush1.msra.mxu0 0.0
    %840 = vmatprep.subr.mxu0 0.0
    %841 = vmatpush1.msra.mxu0 0.0
    %842 = vmatprep.subr.mxu0 0.0
    %843 = vmatpush1.msra.mxu0 0.0
    %844 = vmatprep.subr.mxu0 0.0
    %845 = vmatpush1.msra.mxu0 0.0
    %846 = vmatprep.subr.mxu0 0.0
    %847 = vmatpush1.msra.mxu0 0.0
    %848 = vmatprep.subr.mxu0 0.0
    %849 = vmatpush1.msra.mxu0 0.0
    %850 = vmatprep.subr.mxu0 0.0
    %851 = vmatpush1.msra.mxu0 0.0
    %852 = vmatprep.subr.mxu0 0.0
    %853 = vmatpush1.msra.mxu0 0.0
    %854 = vmatprep.subr.mxu0 0.0
    %855 = vmatpush1.msra.mxu0 0.0
    %856 = vmatprep.subr.mxu0 0.0
    %857 = vmatpush1.msra.mxu0 0.0
    %858 = vmatprep.subr.mxu0 0.0
    %859 = vmatpush1.msra.mxu0 0.0
    %860 = vmatprep.subr.mxu0 0.0
    %861 = vmatpush1.msra.mxu0 0.0
    %862 = vmatprep.subr.mxu0 0.0
    %863 = vmatpush1.msra.mxu0 0.0
    %864 = vmatprep.subr.mxu0 0.0
    %865 = vmatpush1.msra.mxu0 0.0
    %866 = vmatprep.subr.mxu0 0.0
    %867 = vmatpush1.msra.mxu0 0.0
    %868 = vmatprep.subr.mxu0 0.0
    %869 = vmatpush1.msra.mxu0 0.0
    %870 = vmatprep.subr.mxu0 0.0
    %871 = vmatpush1.msra.mxu0 0.0
    %872 = vmatprep.subr.mxu0 0.0
    %873 = vmatpush1.msra.mxu0 0.0
    %874 = vmatprep.subr.mxu0 0.0
    %875 = vmatpush1.msra.mxu0 0.0
    %876 = vmatprep.subr.mxu0 0.0
    %877 = vmatpush1.msra.mxu0 0.0
    %878 = vmatprep.subr.mxu0 0.0
    %879 = vmatpush1.msra.mxu0 0.0
    %880 = vmatprep.subr.mxu0 0.0
    %881 = vmatpush1.msra.mxu0 0.0
    %882 = vmatprep.subr.mxu0 0.0
    %883 = vmatpush1.msra.mxu0 0.0
    %884 = vmatprep.mubr.f32.mxu0 0.0
    %885 = vmatmul.mubr.f32.gmra.mrb[0].mxu0 %v818
    %v886 = vpop.f32.mrb[0].mxu0
    %v887 = vadd.f32 0.0, %v886
    %v888 = vpop.f32.mrb[0].mxu0
    %889 = vdwg.mxu0
    %v890 = vadd.f32 %v814, %v887
    %v891 = vmul.f32 %v890, 0.5
    %v892 = vsel %vm78, %v890, %v891
    %v893 = vtanh.pop %v892
    %v894 = vmul.f32 %v893, 0.5
    %v895 = vadd.f32 %v894, 0.5
    %v896 = vsel %vm78, %v893, %v895
    %v897 = vmul.f32 %v896, %v806
    %899 = vrot.lane.b32.xlu0 %v896, 64
    %v900 = vpop.permute.xlu0 %899
    %v902 = vmul.f32 %v896, %v900
    %904 = vrot.lane.b32.xlu0 %v902, 32
    %v905 = vpop.permute.xlu0 %904
    %v907 = vadd.f32 %v897, %v905
    %v908 = vtanh.pop %v907
    %910 = vrot.lane.b32.xlu0 %v908, 64
    %v911 = vpop.permute.xlu0 %910
    %v913 = vmul.f32 %v896, %v911
    %s914 = scalar_lea.vmem [#allocation3], 32
    %v915 = vld [vmem:[%s914] sm:$0xff]
    %917 = vrot.lane.b32.xlu0 %v913, 32
    %v918 = vpop.permute.xlu0 %917
    %v919 = vsel %vm513, %v918, 0
    %921 = vmatprep.subr.mxu0 0.0
    %922 = vmatpush1.msra.mxu0 %v79
    %923 = vmatprep.subr.mxu0 0.0
    %924 = vmatpush1.msra.mxu0 %v80
    %925 = vmatprep.subr.mxu0 0.0
    %926 = vmatpush1.msra.mxu0 %v81
    %927 = vmatprep.subr.mxu0 0.0
    %928 = vmatpush1.msra.mxu0 %v82
    %929 = vmatprep.subr.mxu0 0.0
    %930 = vmatpush1.msra.mxu0 0.0
    %931 = vmatprep.subr.mxu0 0.0
    %932 = vmatpush1.msra.mxu0 0.0
    %933 = vmatprep.subr.mxu0 0.0
    %934 = vmatpush1.msra.mxu0 0.0
    %935 = vmatprep.subr.mxu0 0.0
    %936 = vmatpush1.msra.mxu0 0.0
    %937 = vmatprep.subr.mxu0 0.0
    %938 = vmatpush1.msra.mxu0 0.0
    %939 = vmatprep.subr.mxu0 0.0
    %940 = vmatpush1.msra.mxu0 0.0
    %941 = vmatprep.subr.mxu0 0.0
    %942 = vmatpush1.msra.mxu0 0.0
    %943 = vmatprep.subr.mxu0 0.0
    %944 = vmatpush1.msra.mxu0 0.0
    %945 = vmatprep.subr.mxu0 0.0
    %946 = vmatpush1.msra.mxu0 0.0
    %947 = vmatprep.subr.mxu0 0.0
    %948 = vmatpush1.msra.mxu0 0.0
    %949 = vmatprep.subr.mxu0 0.0
    %950 = vmatpush1.msra.mxu0 0.0
    %951 = vmatprep.subr.mxu0 0.0
    %952 = vmatpush1.msra.mxu0 0.0
    %953 = vmatprep.subr.mxu0 0.0
    %954 = vmatpush1.msra.mxu0 0.0
    %955 = vmatprep.subr.mxu0 0.0
    %956 = vmatpush1.msra.mxu0 0.0
    %957 = vmatprep.subr.mxu0 0.0
    %958 = vmatpush1.msra.mxu0 0.0
    %959 = vmatprep.subr.mxu0 0.0
    %960 = vmatpush1.msra.mxu0 0.0
    %961 = vmatprep.subr.mxu0 0.0
    %962 = vmatpush1.msra.mxu0 0.0
    %963 = vmatprep.subr.mxu0 0.0
    %964 = vmatpush1.msra.mxu0 0.0
    %965 = vmatprep.subr.mxu0 0.0
    %966 = vmatpush1.msra.mxu0 0.0
    %967 = vmatprep.subr.mxu0 0.0
    %968 = vmatpush1.msra.mxu0 0.0
    %969 = vmatprep.subr.mxu0 0.0
    %970 = vmatpush1.msra.mxu0 0.0
    %971 = vmatprep.subr.mxu0 0.0
    %972 = vmatpush1.msra.mxu0 0.0
    %973 = vmatprep.subr.mxu0 0.0
    %974 = vmatpush1.msra.mxu0 0.0
    %975 = vmatprep.subr.mxu0 0.0
    %976 = vmatpush1.msra.mxu0 0.0
    %977 = vmatprep.subr.mxu0 0.0
    %978 = vmatpush1.msra.mxu0 0.0
    %979 = vmatprep.subr.mxu0 0.0
    %980 = vmatpush1.msra.mxu0 0.0
    %981 = vmatprep.subr.mxu0 0.0
    %982 = vmatpush1.msra.mxu0 0.0
    %983 = vmatprep.subr.mxu0 0.0
    %984 = vmatpush1.msra.mxu0 0.0
    %985 = vmatprep.mubr.f32.mxu0 0.0
    %986 = vmatmul.mubr.f32.gmra.mrb[0].mxu0 %v919
    %v987 = vpop.f32.mrb[0].mxu0
    %v988 = vadd.f32 0.0, %v987
    %v989 = vpop.f32.mrb[0].mxu0
    %990 = vdwg.mxu0
    %v991 = vadd.f32 %v915, %v988
    %v992 = vmul.f32 %v991, 0.5
    %v993 = vsel %vm78, %v991, %v992
    %v994 = vtanh.pop %v993
    %v995 = vmul.f32 %v994, 0.5
    %v996 = vadd.f32 %v995, 0.5
    %v997 = vsel %vm78, %v994, %v996
    %v998 = vmul.f32 %v997, %v907
    %1000 = vrot.lane.b32.xlu0 %v997, 64
    %v1001 = vpop.permute.xlu0 %1000
    %v1003 = vmul.f32 %v997, %v1001
    %1005 = vrot.lane.b32.xlu0 %v1003, 32
    %v1006 = vpop.permute.xlu0 %1005
    %v1008 = vadd.f32 %v998, %v1006
    %v1009 = vtanh.pop %v1008
    %1011 = vrot.lane.b32.xlu0 %v1009, 64
    %v1012 = vpop.permute.xlu0 %1011
    %v1014 = vmul.f32 %v997, %v1012
    %s1015 = scalar_lea.vmem [#allocation3], 40
    %v1016 = vld [vmem:[%s1015] sm:$0xff]
    %1018 = vrot.lane.b32.xlu0 %v1014, 32
    %v1019 = vpop.permute.xlu0 %1018
    %v1020 = vsel %vm513, %v1019, 0
    %1022 = vmatprep.subr.mxu0 0.0
    %1023 = vmatpush1.msra.mxu0 %v79
    %1024 = vmatprep.subr.mxu0 0.0
    %1025 = vmatpush1.msra.mxu0 %v80
    %1026 = vmatprep.subr.mxu0 0.0
    %1027 = vmatpush1.msra.mxu0 %v81
    %1028 = vmatprep.subr.mxu0 0.0
    %1029 = vmatpush1.msra.mxu0 %v82
    %1030 = vmatprep.subr.mxu0 0.0
    %1031 = vmatpush1.msra.mxu0 0.0
    %1032 = vmatprep.subr.mxu0 0.0
    %1033 = vmatpush1.msra.mxu0 0.0
    %1034 = vmatprep.subr.mxu0 0.0
    %1035 = vmatpush1.msra.mxu0 0.0
    %1036 = vmatprep.subr.mxu0 0.0
    %1037 = vmatpush1.msra.mxu0 0.0
    %1038 = vmatprep.subr.mxu0 0.0
    %1039 = vmatpush1.msra.mxu0 0.0
    %1040 = vmatprep.subr.mxu0 0.0
    %1041 = vmatpush1.msra.mxu0 0.0
    %1042 = vmatprep.subr.mxu0 0.0
    %1043 = vmatpush1.msra.mxu0 0.0
    %1044 = vmatprep.subr.mxu0 0.0
    %1045 = vmatpush1.msra.mxu0 0.0
    %1046 = vmatprep.subr.mxu0 0.0
    %1047 = vmatpush1.msra.mxu0 0.0
    %1048 = vmatprep.subr.mxu0 0.0
    %1049 = vmatpush1.msra.mxu0 0.0
    %1050 = vmatprep.subr.mxu0 0.0
    %1051 = vmatpush1.msra.mxu0 0.0
    %1052 = vmatprep.subr.mxu0 0.0
    %1053 = vmatpush1.msra.mxu0 0.0
    %1054 = vmatprep.subr.mxu0 0.0
    %1055 = vmatpush1.msra.mxu0 0.0
    %1056 = vmatprep.subr.mxu0 0.0
    %1057 = vmatpush1.msra.mxu0 0.0
    %1058 = vmatprep.subr.mxu0 0.0
    %1059 = vmatpush1.msra.mxu0 0.0
    %1060 = vmatprep.subr.mxu0 0.0
    %1061 = vmatpush1.msra.mxu0 0.0
    %1062 = vmatprep.subr.mxu0 0.0
    %1063 = vmatpush1.msra.mxu0 0.0
    %1064 = vmatprep.subr.mxu0 0.0
    %1065 = vmatpush1.msra.mxu0 0.0
    %1066 = vmatprep.subr.mxu0 0.0
    %1067 = vmatpush1.msra.mxu0 0.0
    %1068 = vmatprep.subr.mxu0 0.0
    %1069 = vmatpush1.msra.mxu0 0.0
    %1070 = vmatprep.subr.mxu0 0.0
    %1071 = vmatpush1.msra.mxu0 0.0
    %1072 = vmatprep.subr.mxu0 0.0
    %1073 = vmatpush1.msra.mxu0 0.0
    %1074 = vmatprep.subr.mxu0 0.0
    %1075 = vmatpush1.msra.mxu0 0.0
    %1076 = vmatprep.subr.mxu0 0.0
    %1077 = vmatpush1.msra.mxu0 0.0
    %1078 = vmatprep.subr.mxu0 0.0
    %1079 = vmatpush1.msra.mxu0 0.0
    %1080 = vmatprep.subr.mxu0 0.0
    %1081 = vmatpush1.msra.mxu0 0.0
    %1082 = vmatprep.subr.mxu0 0.0
    %1083 = vmatpush1.msra.mxu0 0.0
    %1084 = vmatprep.subr.mxu0 0.0
    %1085 = vmatpush1.msra.mxu0 0.0
    %1086 = vmatprep.mubr.f32.mxu0 0.0
    %1087 = vmatmul.mubr.f32.gmra.mrb[0].mxu0 %v1020
    %v1088 = vpop.f32.mrb[0].mxu0
    %v1089 = vadd.f32 0.0, %v1088
    %v1090 = vpop.f32.mrb[0].mxu0
    %1091 = vdwg.mxu0
    %v1092 = vadd.f32 %v1016, %v1089
    %v1093 = vmul.f32 %v1092, 0.5
    %v1094 = vsel %vm78, %v1092, %v1093
    %v1095 = vtanh.pop %v1094
    %v1096 = vmul.f32 %v1095, 0.5
    %v1097 = vadd.f32 %v1096, 0.5
    %v1098 = vsel %vm78, %v1095, %v1097
    %v1099 = vmul.f32 %v1098, %v1008
    %1101 = vrot.lane.b32.xlu0 %v1098, 64
    %v1102 = vpop.permute.xlu0 %1101
    %v1104 = vmul.f32 %v1098, %v1102
    %1106 = vrot.lane.b32.xlu0 %v1104, 32
    %v1107 = vpop.permute.xlu0 %1106
    %v1109 = vadd.f32 %v1099, %v1107
    %v1110 = vtanh.pop %v1109
    %1112 = vrot.lane.b32.xlu0 %v1110, 64
    %v1113 = vpop.permute.xlu0 %1112
    %v1115 = vmul.f32 %v1098, %v1113
    %s1116 = scalar_lea.vmem [#allocation3], 48
    %v1117 = vld [vmem:[%s1116] sm:$0xff]
    %1119 = vrot.lane.b32.xlu0 %v1115, 32
    %v1120 = vpop.permute.xlu0 %1119
    %v1121 = vsel %vm513, %v1120, 0
    %1123 = vmatprep.subr.mxu0 0.0
    %1124 = vmatpush1.msra.mxu0 %v79
    %1125 = vmatprep.subr.mxu0 0.0
    %1126 = vmatpush1.msra.mxu0 %v80
    %1127 = vmatprep.subr.mxu0 0.0
    %1128 = vmatpush1.msra.mxu0 %v81
    %1129 = vmatprep.subr.mxu0 0.0
    %1130 = vmatpush1.msra.mxu0 %v82
    %1131 = vmatprep.subr.mxu0 0.0
    %1132 = vmatpush1.msra.mxu0 0.0
    %1133 = vmatprep.subr.mxu0 0.0
    %1134 = vmatpush1.msra.mxu0 0.0
    %1135 = vmatprep.subr.mxu0 0.0
    %1136 = vmatpush1.msra.mxu0 0.0
    %1137 = vmatprep.subr.mxu0 0.0
    %1138 = vmatpush1.msra.mxu0 0.0
    %1139 = vmatprep.subr.mxu0 0.0
    %1140 = vmatpush1.msra.mxu0 0.0
    %1141 = vmatprep.subr.mxu0 0.0
    %1142 = vmatpush1.msra.mxu0 0.0
    %1143 = vmatprep.subr.mxu0 0.0
    %1144 = vmatpush1.msra.mxu0 0.0
    %1145 = vmatprep.subr.mxu0 0.0
    %1146 = vmatpush1.msra.mxu0 0.0
    %1147 = vmatprep.subr.mxu0 0.0
    %1148 = vmatpush1.msra.mxu0 0.0
    %1149 = vmatprep.subr.mxu0 0.0
    %1150 = vmatpush1.msra.mxu0 0.0
    %1151 = vmatprep.subr.mxu0 0.0
    %1152 = vmatpush1.msra.mxu0 0.0
    %1153 = vmatprep.subr.mxu0 0.0
    %1154 = vmatpush1.msra.mxu0 0.0
    %1155 = vmatprep.subr.mxu0 0.0
    %1156 = vmatpush1.msra.mxu0 0.0
    %1157 = vmatprep.subr.mxu0 0.0
    %1158 = vmatpush1.msra.mxu0 0.0
    %1159 = vmatprep.subr.mxu0 0.0
    %1160 = vmatpush1.msra.mxu0 0.0
    %1161 = vmatprep.subr.mxu0 0.0
    %1162 = vmatpush1.msra.mxu0 0.0
    %1163 = vmatprep.subr.mxu0 0.0
    %1164 = vmatpush1.msra.mxu0 0.0
    %1165 = vmatprep.subr.mxu0 0.0
    %1166 = vmatpush1.msra.mxu0 0.0
    %1167 = vmatprep.subr.mxu0 0.0
    %1168 = vmatpush1.msra.mxu0 0.0
    %1169 = vmatprep.subr.mxu0 0.0
    %1170 = vmatpush1.msra.mxu0 0.0
    %1171 = vmatprep.subr.mxu0 0.0
    %1172 = vmatpush1.msra.mxu0 0.0
    %1173 = vmatprep.subr.mxu0 0.0
    %1174 = vmatpush1.msra.mxu0 0.0
    %1175 = vmatprep.subr.mxu0 0.0
    %1176 = vmatpush1.msra.mxu0 0.0
    %1177 = vmatprep.subr.mxu0 0.0
    %1178 = vmatpush1.msra.mxu0 0.0
    %1179 = vmatprep.subr.mxu0 0.0
    %1180 = vmatpush1.msra.mxu0 0.0
    %1181 = vmatprep.subr.mxu0 0.0
    %1182 = vmatpush1.msra.mxu0 0.0
    %1183 = vmatprep.subr.mxu0 0.0
    %1184 = vmatpush1.msra.mxu0 0.0
    %1185 = vmatprep.subr.mxu0 0.0
    %1186 = vmatpush1.msra.mxu0 0.0
    %1187 = vmatprep.mubr.f32.mxu0 0.0
    %1188 = vmatmul.mubr.f32.gmra.mrb[0].mxu0 %v1121
    %v1189 = vpop.f32.mrb[0].mxu0
    %v1190 = vadd.f32 0.0, %v1189
    %v1191 = vpop.f32.mrb[0].mxu0
    %1192 = vdwg.mxu0
    %v1193 = vadd.f32 %v1117, %v1190
    %v1194 = vmul.f32 %v1193, 0.5
    %v1195 = vsel %vm78, %v1193, %v1194
    %v1196 = vtanh.pop %v1195
    %v1197 = vmul.f32 %v1196, 0.5
    %v1198 = vadd.f32 %v1197, 0.5
    %v1199 = vsel %vm78, %v1196, %v1198
    %v1200 = vmul.f32 %v1199, %v1109
    %1202 = vrot.lane.b32.xlu0 %v1199, 64
    %v1203 = vpop.permute.xlu0 %1202
    %v1205 = vmul.f32 %v1199, %v1203
    %1207 = vrot.lane.b32.xlu0 %v1205, 32
    %v1208 = vpop.permute.xlu0 %1207
    %v1210 = vadd.f32 %v1200, %v1208
    %v1211 = vtanh.pop %v1210
    %1213 = vrot.lane.b32.xlu0 %v1211, 64
    %v1214 = vpop.permute.xlu0 %1213
    %v1216 = vmul.f32 %v1199, %v1214
    %s1217 = scalar_lea.vmem [#allocation3], 56
    %v1218 = vld [vmem:[%s1217] sm:$0xff]
    %1220 = vrot.lane.b32.xlu0 %v1216, 32
    %v1221 = vpop.permute.xlu0 %1220
    %v1222 = vsel %vm513, %v1221, 0
    %1224 = vmatprep.subr.mxu0 0.0
    %1225 = vmatpush1.msra.mxu0 %v79
    %1226 = vmatprep.subr.mxu0 0.0
    %1227 = vmatpush1.msra.mxu0 %v80
    %1228 = vmatprep.subr.mxu0 0.0
    %1229 = vmatpush1.msra.mxu0 %v81
    %1230 = vmatprep.subr.mxu0 0.0
    %1231 = vmatpush1.msra.mxu0 %v82
    %1232 = vmatprep.subr.mxu0 0.0
    %1233 = vmatpush1.msra.mxu0 0.0
    %1234 = vmatprep.subr.mxu0 0.0
    %1235 = vmatpush1.msra.mxu0 0.0
    %1236 = vmatprep.subr.mxu0 0.0
    %1237 = vmatpush1.msra.mxu0 0.0
    %1238 = vmatprep.subr.mxu0 0.0
    %1239 = vmatpush1.msra.mxu0 0.0
    %1240 = vmatprep.subr.mxu0 0.0
    %1241 = vmatpush1.msra.mxu0 0.0
    %1242 = vmatprep.subr.mxu0 0.0
    %1243 = vmatpush1.msra.mxu0 0.0
    %1244 = vmatprep.subr.mxu0 0.0
    %1245 = vmatpush1.msra.mxu0 0.0
    %1246 = vmatprep.subr.mxu0 0.0
    %1247 = vmatpush1.msra.mxu0 0.0
    %1248 = vmatprep.subr.mxu0 0.0
    %1249 = vmatpush1.msra.mxu0 0.0
    %1250 = vmatprep.subr.mxu0 0.0
    %1251 = vmatpush1.msra.mxu0 0.0
    %1252 = vmatprep.subr.mxu0 0.0
    %1253 = vmatpush1.msra.mxu0 0.0
    %1254 = vmatprep.subr.mxu0 0.0
    %1255 = vmatpush1.msra.mxu0 0.0
    %1256 = vmatprep.subr.mxu0 0.0
    %1257 = vmatpush1.msra.mxu0 0.0
    %1258 = vmatprep.subr.mxu0 0.0
    %1259 = vmatpush1.msra.mxu0 0.0
    %1260 = vmatprep.subr.mxu0 0.0
    %1261 = vmatpush1.msra.mxu0 0.0
    %1262 = vmatprep.subr.mxu0 0.0
    %1263 = vmatpush1.msra.mxu0 0.0
    %1264 = vmatprep.subr.mxu0 0.0
    %1265 = vmatpush1.msra.mxu0 0.0
    %1266 = vmatprep.subr.mxu0 0.0
    %1267 = vmatpush1.msra.mxu0 0.0
    %1268 = vmatprep.subr.mxu0 0.0
    %1269 = vmatpush1.msra.mxu0 0.0
    %1270 = vmatprep.subr.mxu0 0.0
    %1271 = vmatpush1.msra.mxu0 0.0
    %1272 = vmatprep.subr.mxu0 0.0
    %1273 = vmatpush1.msra.mxu0 0.0
    %1274 = vmatprep.subr.mxu0 0.0
    %1275 = vmatpush1.msra.mxu0 0.0
    %1276 = vmatprep.subr.mxu0 0.0
    %1277 = vmatpush1.msra.mxu0 0.0
    %1278 = vmatprep.subr.mxu0 0.0
    %1279 = vmatpush1.msra.mxu0 0.0
    %1280 = vmatprep.subr.mxu0 0.0
    %1281 = vmatpush1.msra.mxu0 0.0
    %1282 = vmatprep.subr.mxu0 0.0
    %1283 = vmatpush1.msra.mxu0 0.0
    %1284 = vmatprep.subr.mxu0 0.0
    %1285 = vmatpush1.msra.mxu0 0.0
    %1286 = vmatprep.subr.mxu0 0.0
    %1287 = vmatpush1.msra.mxu0 0.0
    %1288 = vmatprep.mubr.f32.mxu0 0.0
    %1289 = vmatmul.mubr.f32.gmra.mrb[0].mxu0 %v1222
    %v1290 = vpop.f32.mrb[0].mxu0
    %v1291 = vadd.f32 0.0, %v1290
    %v1292 = vpop.f32.mrb[0].mxu0
    %1293 = vdwg.mxu0
    %v1294 = vadd.f32 %v1218, %v1291
    %v1295 = vmul.f32 %v1294, 0.5
    %v1296 = vsel %vm78, %v1294, %v1295
    %v1297 = vtanh.pop %v1296
    %v1298 = vmul.f32 %v1297, 0.5
    %v1299 = vadd.f32 %v1298, 0.5
    %v1300 = vsel %vm78, %v1297, %v1299
    %v1301 = vmul.f32 %v1300, %v1210
    %1303 = vrot.lane.b32.xlu0 %v1300, 64
    %v1304 = vpop.permute.xlu0 %1303
    %v1306 = vmul.f32 %v1300, %v1304
    %1308 = vrot.lane.b32.xlu0 %v1306, 32
    %v1309 = vpop.permute.xlu0 %1308
    %v1311 = vadd.f32 %v1301, %v1309
    %v1312 = vtanh.pop %v1311
    %1314 = vrot.lane.b32.xlu0 %v1312, 64
    %v1315 = vpop.permute.xlu0 %1314
    %v1317 = vmul.f32 %v1300, %v1315
    %v1318 = vld [vmem:[#allocation10] sm:$0xff]
    %v1319 = vld [vmem:[#allocation10 + $0x8] sm:$0xff]
    %v1320 = vld [vmem:[#allocation10 + $0x10] sm:$0xff]
    %v1321 = vld [vmem:[#allocation10 + $0x18] sm:$0xff]
    %v1322 = vld [vmem:[%s6] sm:$0x1]
    %v1324 = vlaneseq
    %v1325 = vshrl.u32 %v1324, 7
    %v1326 = vsub.s32 0, %v1325
    %v1327 = vrot.slane %v1322, %v1326
    %1330 = vrot.lane.b32.xlu0 %v1317, 32
    %v1331 = vpop.permute.xlu0 %1330
    %v1332 = vsel %vm513, %v1331, 0
    %1334 = vmatprep.subr.mxu0 0.0
    %1335 = vmatpush1.msra.mxu0 %v1318
    %1336 = vmatprep.subr.mxu0 0.0
    %1337 = vmatpush1.msra.mxu0 %v1319
    %1338 = vmatprep.subr.mxu0 0.0
    %1339 = vmatpush1.msra.mxu0 %v1320
    %1340 = vmatprep.subr.mxu0 0.0
    %1341 = vmatpush1.msra.mxu0 %v1321
    %1342 = vmatprep.subr.mxu0 0.0
    %1343 = vmatpush1.msra.mxu0 0.0
    %1344 = vmatprep.subr.mxu0 0.0
    %1345 = vmatpush1.msra.mxu0 0.0
    %1346 = vmatprep.subr.mxu0 0.0
    %1347 = vmatpush1.msra.mxu0 0.0
    %1348 = vmatprep.subr.mxu0 0.0
    %1349 = vmatpush1.msra.mxu0 0.0
    %1350 = vmatprep.subr.mxu0 0.0
    %1351 = vmatpush1.msra.mxu0 0.0
    %1352 = vmatprep.subr.mxu0 0.0
    %1353 = vmatpush1.msra.mxu0 0.0
    %1354 = vmatprep.subr.mxu0 0.0
    %1355 = vmatpush1.msra.mxu0 0.0
    %1356 = vmatprep.subr.mxu0 0.0
    %1357 = vmatpush1.msra.mxu0 0.0
    %1358 = vmatprep.subr.mxu0 0.0
    %1359 = vmatpush1.msra.mxu0 0.0
    %1360 = vmatprep.subr.mxu0 0.0
    %1361 = vmatpush1.msra.mxu0 0.0
    %1362 = vmatprep.subr.mxu0 0.0
    %1363 = vmatpush1.msra.mxu0 0.0
    %1364 = vmatprep.subr.mxu0 0.0
    %1365 = vmatpush1.msra.mxu0 0.0
    %1366 = vmatprep.subr.mxu0 0.0
    %1367 = vmatpush1.msra.mxu0 0.0
    %1368 = vmatprep.subr.mxu0 0.0
    %1369 = vmatpush1.msra.mxu0 0.0
    %1370 = vmatprep.subr.mxu0 0.0
    %1371 = vmatpush1.msra.mxu0 0.0
    %1372 = vmatprep.subr.mxu0 0.0
    %1373 = vmatpush1.msra.mxu0 0.0
    %1374 = vmatprep.subr.mxu0 0.0
    %1375 = vmatpush1.msra.mxu0 0.0
    %1376 = vmatprep.subr.mxu0 0.0
    %1377 = vmatpush1.msra.mxu0 0.0
    %1378 = vmatprep.subr.mxu0 0.0
    %1379 = vmatpush1.msra.mxu0 0.0
    %1380 = vmatprep.subr.mxu0 0.0
    %1381 = vmatpush1.msra.mxu0 0.0
    %1382 = vmatprep.subr.mxu0 0.0
    %1383 = vmatpush1.msra.mxu0 0.0
    %1384 = vmatprep.subr.mxu0 0.0
    %1385 = vmatpush1.msra.mxu0 0.0
    %1386 = vmatprep.subr.mxu0 0.0
    %1387 = vmatpush1.msra.mxu0 0.0
    %1388 = vmatprep.subr.mxu0 0.0
    %1389 = vmatpush1.msra.mxu0 0.0
    %1390 = vmatprep.subr.mxu0 0.0
    %1391 = vmatpush1.msra.mxu0 0.0
    %1392 = vmatprep.subr.mxu0 0.0
    %1393 = vmatpush1.msra.mxu0 0.0
    %1394 = vmatprep.subr.mxu0 0.0
    %1395 = vmatpush1.msra.mxu0 0.0
    %1396 = vmatprep.subr.mxu0 0.0
    %1397 = vmatpush1.msra.mxu0 0.0
    %1398 = vmatprep.mubr.f32.mxu0 0.0
    %1399 = vmatmul.mubr.f32.gmra.mrb[0].mxu0 %v1332
    %v1400 = vpop.f32.mrb[0].mxu0
    %v1401 = vadd.f32 %v1327, %v1400
    %v1402 = vpop.f32.mrb[0].mxu0
    %1403 = vdwg.mxu0
    %1404 = vmatprep.subr.mxu0 0.0
    %1405 = vmatpush1.msra.mxu0 %v83
    %1406 = vmatprep.subr.mxu0 0.0
    %1407 = vmatpush1.msra.mxu0 %v84
    %1408 = vmatprep.subr.mxu0 0.0
    %1409 = vmatpush1.msra.mxu0 %v85
    %1410 = vmatprep.subr.mxu0 0.0
    %1411 = vmatpush1.msra.mxu0 %v86
    %1412 = vmatprep.subr.mxu0 0.0
    %1413 = vmatpush1.msra.mxu0 0.0
    %1414 = vmatprep.subr.mxu0 0.0
    %1415 = vmatpush1.msra.mxu0 0.0
    %1416 = vmatprep.subr.mxu0 0.0
    %1417 = vmatpush1.msra.mxu0 0.0
    %1418 = vmatprep.subr.mxu0 0.0
    %1419 = vmatpush1.msra.mxu0 0.0
    %1420 = vmatprep.subr.mxu0 0.0
    %1421 = vmatpush1.msra.mxu0 0.0
    %1422 = vmatprep.subr.mxu0 0.0
    %1423 = vmatpush1.msra.mxu0 0.0
    %1424 = vmatprep.subr.mxu0 0.0
    %1425 = vmatpush1.msra.mxu0 0.0
    %1426 = vmatprep.subr.mxu0 0.0
    %1427 = vmatpush1.msra.mxu0 0.0
    %1428 = vmatprep.subr.mxu0 0.0
    %1429 = vmatpush1.msra.mxu0 0.0
    %1430 = vmatprep.subr.mxu0 0.0
    %1431 = vmatpush1.msra.mxu0 0.0
    %1432 = vmatprep.subr.mxu0 0.0
    %1433 = vmatpush1.msra.mxu0 0.0
    %1434 = vmatprep.subr.mxu0 0.0
    %1435 = vmatpush1.msra.mxu0 0.0
    %1436 = vmatprep.subr.mxu0 0.0
    %1437 = vmatpush1.msra.mxu0 0.0
    %1438 = vmatprep.subr.mxu0 0.0
    %1439 = vmatpush1.msra.mxu0 0.0
    %1440 = vmatprep.subr.mxu0 0.0
    %1441 = vmatpush1.msra.mxu0 0.0
    %1442 = vmatprep.subr.mxu0 0.0
    %1443 = vmatpush1.msra.mxu0 0.0
    %1444 = vmatprep.subr.mxu0 0.0
    %1445 = vmatpush1.msra.mxu0 0.0
    %1446 = vmatprep.subr.mxu0 0.0
    %1447 = vmatpush1.msra.mxu0 0.0
    %1448 = vmatprep.subr.mxu0 0.0
    %1449 = vmatpush1.msra.mxu0 0.0
    %1450 = vmatprep.subr.mxu0 0.0
    %1451 = vmatpush1.msra.mxu0 0.0
    %1452 = vmatprep.subr.mxu0 0.0
    %1453 = vmatpush1.msra.mxu0 0.0
    %1454 = vmatprep.subr.mxu0 0.0
    %1455 = vmatpush1.msra.mxu0 0.0
    %1456 = vmatprep.subr.mxu0 0.0
    %1457 = vmatpush1.msra.mxu0 0.0
    %1458 = vmatprep.subr.mxu0 0.0
    %1459 = vmatpush1.msra.mxu0 0.0
    %1460 = vmatprep.subr.mxu0 0.0
    %1461 = vmatpush1.msra.mxu0 0.0
    %1462 = vmatprep.subr.mxu0 0.0
    %1463 = vmatpush1.msra.mxu0 0.0
    %1464 = vmatprep.subr.mxu0 0.0
    %1465 = vmatpush1.msra.mxu0 0.0
    %1466 = vmatprep.subr.mxu0 0.0
    %1467 = vmatpush1.msra.mxu0 0.0
    %1468 = vmatprep.mubr.f32.mxu0 0.0
    %1469 = vmatmul.mubr.f32.gmra.mrb[0].mxu0 %v515
    %v1470 = vpop.f32.mrb[0].mxu0
    %v1471 = vadd.f32 0.0, %v1470
    %v1472 = vpop.f32.mrb[0].mxu0
    %1473 = vdwg.mxu0
    %v1474 = vadd.f32 %v1401, %v1471
    %v1475 = vmul.f32 %v1474, 0.5
    %v1476 = vsel %vm78, %v1474, %v1475
    %v1477 = vtanh.pop %v1476
    %v1478 = vmul.f32 %v1477, 0.5
    %v1479 = vadd.f32 %v1478, 0.5
    %v1480 = vsel %vm78, %v1477, %v1479
    %v1481 = vmul.f32 %v1480, 0.0
    %1483 = vrot.lane.b32.xlu0 %v1480, 64
    %v1484 = vpop.permute.xlu0 %1483
    %v1486 = vmul.f32 %v1480, %v1484
    %1488 = vrot.lane.b32.xlu0 %v1486, 32
    %v1489 = vpop.permute.xlu0 %1488
    %v1491 = vadd.f32 %v1481, %v1489
    %v1492 = vtanh.pop %v1491
    %1494 = vrot.lane.b32.xlu0 %v1492, 64
    %v1495 = vpop.permute.xlu0 %1494
    %v1497 = vmul.f32 %v1480, %v1495
    %1499 = vrot.lane.b32.xlu0 %v1497, 32
    %v1500 = vpop.permute.xlu0 %1499
    %1502 = vst.msk [vmem:[#allocation4] sm:$0xff] %vm513, %v1500
    %v1503 = vsel %vm513, %v1500, 0
    %1505 = vmatprep.subr.mxu0 0.0
    %1506 = vmatpush1.msra.mxu0 %v83
    %1507 = vmatprep.subr.mxu0 0.0
    %1508 = vmatpush1.msra.mxu0 %v84
    %1509 = vmatprep.subr.mxu0 0.0
    %1510 = vmatpush1.msra.mxu0 %v85
    %1511 = vmatprep.subr.mxu0 0.0
    %1512 = vmatpush1.msra.mxu0 %v86
    %1513 = vmatprep.subr.mxu0 0.0
    %1514 = vmatpush1.msra.mxu0 0.0
    %1515 = vmatprep.subr.mxu0 0.0
    %1516 = vmatpush1.msra.mxu0 0.0
    %1517 = vmatprep.subr.mxu0 0.0
    %1518 = vmatpush1.msra.mxu0 0.0
    %1519 = vmatprep.subr.mxu0 0.0
    %1520 = vmatpush1.msra.mxu0 0.0
    %1521 = vmatprep.subr.mxu0 0.0
    %1522 = vmatpush1.msra.mxu0 0.0
    %1523 = vmatprep.subr.mxu0 0.0
    %1524 = vmatpush1.msra.mxu0 0.0
    %1525 = vmatprep.subr.mxu0 0.0
    %1526 = vmatpush1.msra.mxu0 0.0
    %1527 = vmatprep.subr.mxu0 0.0
    %1528 = vmatpush1.msra.mxu0 0.0
    %1529 = vmatprep.subr.mxu0 0.0
    %1530 = vmatpush1.msra.mxu0 0.0
    %1531 = vmatprep.subr.mxu0 0.0
    %1532 = vmatpush1.msra.mxu0 0.0
    %1533 = vmatprep.subr.mxu0 0.0
    %1534 = vmatpush1.msra.mxu0 0.0
    %1535 = vmatprep.subr.mxu0 0.0
    %1536 = vmatpush1.msra.mxu0 0.0
    %1537 = vmatprep.subr.mxu0 0.0
    %1538 = vmatpush1.msra.mxu0 0.0
    %1539 = vmatprep.subr.mxu0 0.0
    %1540 = vmatpush1.msra.mxu0 0.0
    %1541 = vmatprep.subr.mxu0 0.0
    %1542 = vmatpush1.msra.mxu0 0.0
    %1543 = vmatprep.subr.mxu0 0.0
    %1544 = vmatpush1.msra.mxu0 0.0
    %1545 = vmatprep.subr.mxu0 0.0
    %1546 = vmatpush1.msra.mxu0 0.0
    %1547 = vmatprep.subr.mxu0 0.0
    %1548 = vmatpush1.msra.mxu0 0.0
    %1549 = vmatprep.subr.mxu0 0.0
    %1550 = vmatpush1.msra.mxu0 0.0
    %1551 = vmatprep.subr.mxu0 0.0
    %1552 = vmatpush1.msra.mxu0 0.0
    %1553 = vmatprep.subr.mxu0 0.0
    %1554 = vmatpush1.msra.mxu0 0.0
    %1555 = vmatprep.subr.mxu0 0.0
    %1556 = vmatpush1.msra.mxu0 0.0
    %1557 = vmatprep.subr.mxu0 0.0
    %1558 = vmatpush1.msra.mxu0 0.0
    %1559 = vmatprep.subr.mxu0 0.0
    %1560 = vmatpush1.msra.mxu0 0.0
    %1561 = vmatprep.subr.mxu0 0.0
    %1562 = vmatpush1.msra.mxu0 0.0
    %1563 = vmatprep.subr.mxu0 0.0
    %1564 = vmatpush1.msra.mxu0 0.0
    %1565 = vmatprep.subr.mxu0 0.0
    %1566 = vmatpush1.msra.mxu0 0.0
    %1567 = vmatprep.subr.mxu0 0.0
    %1568 = vmatpush1.msra.mxu0 0.0
    %1569 = vmatprep.mubr.f32.mxu0 0.0
    %1570 = vmatmul.mubr.f32.gmra.mrb[0].mxu0 %v1503
    %v1571 = vpop.f32.mrb[0].mxu0
    %v1572 = vadd.f32 0.0, %v1571
    %v1573 = vpop.f32.mrb[0].mxu0
    %1574 = vdwg.mxu0
    %v1575 = vadd.f32 %v1401, %v1572
    %v1576 = vmul.f32 %v1575, 0.5
    %v1577 = vsel %vm78, %v1575, %v1576
    %v1578 = vtanh.pop %v1577
    %v1579 = vmul.f32 %v1578, 0.5
    %v1580 = vadd.f32 %v1579, 0.5
    %v1581 = vsel %vm78, %v1578, %v1580
    %v1582 = vmul.f32 %v1581, %v1491
    %1584 = vrot.lane.b32.xlu0 %v1581, 64
    %v1585 = vpop.permute.xlu0 %1584
    %v1587 = vmul.f32 %v1581, %v1585
    %1589 = vrot.lane.b32.xlu0 %v1587, 32
    %v1590 = vpop.permute.xlu0 %1589
    %v1592 = vadd.f32 %v1582, %v1590
    %v1593 = vtanh.pop %v1592
    %1595 = vrot.lane.b32.xlu0 %v1593, 64
    %v1596 = vpop.permute.xlu0 %1595
    %v1598 = vmul.f32 %v1581, %v1596
    %1600 = vrot.lane.b32.xlu0 %v1598, 32
    %v1601 = vpop.permute.xlu0 %1600
    %s1603 = scalar_lea.vmem [#allocation4], 8
    %1604 = vst.msk [vmem:[%s1603] sm:$0xff] %vm513, %v1601
    %v1605 = vsel %vm513, %v1601, 0
    %1607 = vmatprep.subr.mxu0 0.0
    %1608 = vmatpush1.msra.mxu0 %v83
    %1609 = vmatprep.subr.mxu0 0.0
    %1610 = vmatpush1.msra.mxu0 %v84
    %1611 = vmatprep.subr.mxu0 0.0
    %1612 = vmatpush1.msra.mxu0 %v85
    %1613 = vmatprep.subr.mxu0 0.0
    %1614 = vmatpush1.msra.mxu0 %v86
    %1615 = vmatprep.subr.mxu0 0.0
    %1616 = vmatpush1.msra.mxu0 0.0
    %1617 = vmatprep.subr.mxu0 0.0
    %1618 = vmatpush1.msra.mxu0 0.0
    %1619 = vmatprep.subr.mxu0 0.0
    %1620 = vmatpush1.msra.mxu0 0.0
    %1621 = vmatprep.subr.mxu0 0.0
    %1622 = vmatpush1.msra.mxu0 0.0
    %1623 = vmatprep.subr.mxu0 0.0
    %1624 = vmatpush1.msra.mxu0 0.0
    %1625 = vmatprep.subr.mxu0 0.0
    %1626 = vmatpush1.msra.mxu0 0.0
    %1627 = vmatprep.subr.mxu0 0.0
    %1628 = vmatpush1.msra.mxu0 0.0
    %1629 = vmatprep.subr.mxu0 0.0
    %1630 = vmatpush1.msra.mxu0 0.0
    %1631 = vmatprep.subr.mxu0 0.0
    %1632 = vmatpush1.msra.mxu0 0.0
    %1633 = vmatprep.subr.mxu0 0.0
    %1634 = vmatpush1.msra.mxu0 0.0
    %1635 = vmatprep.subr.mxu0 0.0
    %1636 = vmatpush1.msra.mxu0 0.0
    %1637 = vmatprep.subr.mxu0 0.0
    %1638 = vmatpush1.msra.mxu0 0.0
    %1639 = vmatprep.subr.mxu0 0.0
    %1640 = vmatpush1.msra.mxu0 0.0
    %1641 = vmatprep.subr.mxu0 0.0
    %1642 = vmatpush1.msra.mxu0 0.0
    %1643 = vmatprep.subr.mxu0 0.0
    %1644 = vmatpush1.msra.mxu0 0.0
    %1645 = vmatprep.subr.mxu0 0.0
    %1646 = vmatpush1.msra.mxu0 0.0
    %1647 = vmatprep.subr.mxu0 0.0
    %1648 = vmatpush1.msra.mxu0 0.0
    %1649 = vmatprep.subr.mxu0 0.0
    %1650 = vmatpush1.msra.mxu0 0.0
    %1651 = vmatprep.subr.mxu0 0.0
    %1652 = vmatpush1.msra.mxu0 0.0
    %1653 = vmatprep.subr.mxu0 0.0
    %1654 = vmatpush1.msra.mxu0 0.0
    %1655 = vmatprep.subr.mxu0 0.0
    %1656 = vmatpush1.msra.mxu0 0.0
    %1657 = vmatprep.subr.mxu0 0.0
    %1658 = vmatpush1.msra.mxu0 0.0
    %1659 = vmatprep.subr.mxu0 0.0
    %1660 = vmatpush1.msra.mxu0 0.0
    %1661 = vmatprep.subr.mxu0 0.0
    %1662 = vmatpush1.msra.mxu0 0.0
    %1663 = vmatprep.subr.mxu0 0.0
    %1664 = vmatpush1.msra.mxu0 0.0
    %1665 = vmatprep.subr.mxu0 0.0
    %1666 = vmatpush1.msra.mxu0 0.0
    %1667 = vmatprep.subr.mxu0 0.0
    %1668 = vmatpush1.msra.mxu0 0.0
    %1669 = vmatprep.subr.mxu0 0.0
    %1670 = vmatpush1.msra.mxu0 0.0
    %1671 = vmatprep.mubr.f32.mxu0 0.0
    %1672 = vmatmul.mubr.f32.gmra.mrb[0].mxu0 %v1605
    %v1673 = vpop.f32.mrb[0].mxu0
    %v1674 = vadd.f32 0.0, %v1673
    %v1675 = vpop.f32.mrb[0].mxu0
    %1676 = vdwg.mxu0
    %v1677 = vadd.f32 %v1401, %v1674
    %v1678 = vmul.f32 %v1677, 0.5
    %v1679 = vsel %vm78, %v1677, %v1678
    %v1680 = vtanh.pop %v1679
    %v1681 = vmul.f32 %v1680, 0.5
    %v1682 = vadd.f32 %v1681, 0.5
    %v1683 = vsel %vm78, %v1680, %v1682
    %v1684 = vmul.f32 %v1683, %v1592
    %1686 = vrot.lane.b32.xlu0 %v1683, 64
    %v1687 = vpop.permute.xlu0 %1686
    %v1689 = vmul.f32 %v1683, %v1687
    %1691 = vrot.lane.b32.xlu0 %v1689, 32
    %v1692 = vpop.permute.xlu0 %1691
    %v1694 = vadd.f32 %v1684, %v1692
    %v1695 = vtanh.pop %v1694
    %1697 = vrot.lane.b32.xlu0 %v1695, 64
    %v1698 = vpop.permute.xlu0 %1697
    %v1700 = vmul.f32 %v1683, %v1698
    %1702 = vrot.lane.b32.xlu0 %v1700, 32
    %v1703 = vpop.permute.xlu0 %1702
    %s1705 = scalar_lea.vmem [#allocation4], 16
    %1706 = vst.msk [vmem:[%s1705] sm:$0xff] %vm513, %v1703
    %v1707 = vsel %vm513, %v1703, 0
    %1709 = vmatprep.subr.mxu0 0.0
    %1710 = vmatpush1.msra.mxu0 %v83
    %1711 = vmatprep.subr.mxu0 0.0
    %1712 = vmatpush1.msra.mxu0 %v84
    %1713 = vmatprep.subr.mxu0 0.0
    %1714 = vmatpush1.msra.mxu0 %v85
    %1715 = vmatprep.subr.mxu0 0.0
    %1716 = vmatpush1.msra.mxu0 %v86
    %1717 = vmatprep.subr.mxu0 0.0
    %1718 = vmatpush1.msra.mxu0 0.0
    %1719 = vmatprep.subr.mxu0 0.0
    %1720 = vmatpush1.msra.mxu0 0.0
    %1721 = vmatprep.subr.mxu0 0.0
    %1722 = vmatpush1.msra.mxu0 0.0
    %1723 = vmatprep.subr.mxu0 0.0
    %1724 = vmatpush1.msra.mxu0 0.0
    %1725 = vmatprep.subr.mxu0 0.0
    %1726 = vmatpush1.msra.mxu0 0.0
    %1727 = vmatprep.subr.mxu0 0.0
    %1728 = vmatpush1.msra.mxu0 0.0
    %1729 = vmatprep.subr.mxu0 0.0
    %1730 = vmatpush1.msra.mxu0 0.0
    %1731 = vmatprep.subr.mxu0 0.0
    %1732 = vmatpush1.msra.mxu0 0.0
    %1733 = vmatprep.subr.mxu0 0.0
    %1734 = vmatpush1.msra.mxu0 0.0
    %1735 = vmatprep.subr.mxu0 0.0
    %1736 = vmatpush1.msra.mxu0 0.0
    %1737 = vmatprep.subr.mxu0 0.0
    %1738 = vmatpush1.msra.mxu0 0.0
    %1739 = vmatprep.subr.mxu0 0.0
    %1740 = vmatpush1.msra.mxu0 0.0
    %1741 = vmatprep.subr.mxu0 0.0
    %1742 = vmatpush1.msra.mxu0 0.0
    %1743 = vmatprep.subr.mxu0 0.0
    %1744 = vmatpush1.msra.mxu0 0.0
    %1745 = vmatprep.subr.mxu0 0.0
    %1746 = vmatpush1.msra.mxu0 0.0
    %1747 = vmatprep.subr.mxu0 0.0
    %1748 = vmatpush1.msra.mxu0 0.0
    %1749 = vmatprep.subr.mxu0 0.0
    %1750 = vmatpush1.msra.mxu0 0.0
    %1751 = vmatprep.subr.mxu0 0.0
    %1752 = vmatpush1.msra.mxu0 0.0
    %1753 = vmatprep.subr.mxu0 0.0
    %1754 = vmatpush1.msra.mxu0 0.0
    %1755 = vmatprep.subr.mxu0 0.0
    %1756 = vmatpush1.msra.mxu0 0.0
    %1757 = vmatprep.subr.mxu0 0.0
    %1758 = vmatpush1.msra.mxu0 0.0
    %1759 = vmatprep.subr.mxu0 0.0
    %1760 = vmatpush1.msra.mxu0 0.0
    %1761 = vmatprep.subr.mxu0 0.0
    %1762 = vmatpush1.msra.mxu0 0.0
    %1763 = vmatprep.subr.mxu0 0.0
    %1764 = vmatpush1.msra.mxu0 0.0
    %1765 = vmatprep.subr.mxu0 0.0
    %1766 = vmatpush1.msra.mxu0 0.0
    %1767 = vmatprep.subr.mxu0 0.0
    %1768 = vmatpush1.msra.mxu0 0.0
    %1769 = vmatprep.subr.mxu0 0.0
    %1770 = vmatpush1.msra.mxu0 0.0
    %1771 = vmatprep.subr.mxu0 0.0
    %1772 = vmatpush1.msra.mxu0 0.0
    %1773 = vmatprep.mubr.f32.mxu0 0.0
    %1774 = vmatmul.mubr.f32.gmra.mrb[0].mxu0 %v1707
    %v1775 = vpop.f32.mrb[0].mxu0
    %v1776 = vadd.f32 0.0, %v1775
    %v1777 = vpop.f32.mrb[0].mxu0
    %1778 = vdwg.mxu0
    %v1779 = vadd.f32 %v1401, %v1776
    %v1780 = vmul.f32 %v1779, 0.5
    %v1781 = vsel %vm78, %v1779, %v1780
    %v1782 = vtanh.pop %v1781
    %v1783 = vmul.f32 %v1782, 0.5
    %v1784 = vadd.f32 %v1783, 0.5
    %v1785 = vsel %vm78, %v1782, %v1784
    %v1786 = vmul.f32 %v1785, %v1694
    %1788 = vrot.lane.b32.xlu0 %v1785, 64
    %v1789 = vpop.permute.xlu0 %1788
    %v1791 = vmul.f32 %v1785, %v1789
    %1793 = vrot.lane.b32.xlu0 %v1791, 32
    %v1794 = vpop.permute.xlu0 %1793
    %v1796 = vadd.f32 %v1786, %v1794
    %v1797 = vtanh.pop %v1796
    %1799 = vrot.lane.b32.xlu0 %v1797, 64
    %v1800 = vpop.permute.xlu0 %1799
    %v1802 = vmul.f32 %v1785, %v1800
    %1804 = vrot.lane.b32.xlu0 %v1802, 32
    %v1805 = vpop.permute.xlu0 %1804
    %s1807 = scalar_lea.vmem [#allocation4], 24
    %1808 = vst.msk [vmem:[%s1807] sm:$0xff] %vm513, %v1805
    %v1809 = vsel %vm513, %v1805, 0
    %1811 = vmatprep.subr.mxu0 0.0
    %1812 = vmatpush1.msra.mxu0 %v83
    %1813 = vmatprep.subr.mxu0 0.0
    %1814 = vmatpush1.msra.mxu0 %v84
    %1815 = vmatprep.subr.mxu0 0.0
    %1816 = vmatpush1.msra.mxu0 %v85
    %1817 = vmatprep.subr.mxu0 0.0
    %1818 = vmatpush1.msra.mxu0 %v86
    %1819 = vmatprep.subr.mxu0 0.0
    %1820 = vmatpush1.msra.mxu0 0.0
    %1821 = vmatprep.subr.mxu0 0.0
    %1822 = vmatpush1.msra.mxu0 0.0
    %1823 = vmatprep.subr.mxu0 0.0
    %1824 = vmatpush1.msra.mxu0 0.0
    %1825 = vmatprep.subr.mxu0 0.0
    %1826 = vmatpush1.msra.mxu0 0.0
    %1827 = vmatprep.subr.mxu0 0.0
    %1828 = vmatpush1.msra.mxu0 0.0
    %1829 = vmatprep.subr.mxu0 0.0
    %1830 = vmatpush1.msra.mxu0 0.0
    %1831 = vmatprep.subr.mxu0 0.0
    %1832 = vmatpush1.msra.mxu0 0.0
    %1833 = vmatprep.subr.mxu0 0.0
    %1834 = vmatpush1.msra.mxu0 0.0
    %1835 = vmatprep.subr.mxu0 0.0
    %1836 = vmatpush1.msra.mxu0 0.0
    %1837 = vmatprep.subr.mxu0 0.0
    %1838 = vmatpush1.msra.mxu0 0.0
    %1839 = vmatprep.subr.mxu0 0.0
    %1840 = vmatpush1.msra.mxu0 0.0
    %1841 = vmatprep.subr.mxu0 0.0
    %1842 = vmatpush1.msra.mxu0 0.0
    %1843 = vmatprep.subr.mxu0 0.0
    %1844 = vmatpush1.msra.mxu0 0.0
    %1845 = vmatprep.subr.mxu0 0.0
    %1846 = vmatpush1.msra.mxu0 0.0
    %1847 = vmatprep.subr.mxu0 0.0
    %1848 = vmatpush1.msra.mxu0 0.0
    %1849 = vmatprep.subr.mxu0 0.0
    %1850 = vmatpush1.msra.mxu0 0.0
    %1851 = vmatprep.subr.mxu0 0.0
    %1852 = vmatpush1.msra.mxu0 0.0
    %1853 = vmatprep.subr.mxu0 0.0
    %1854 = vmatpush1.msra.mxu0 0.0
    %1855 = vmatprep.subr.mxu0 0.0
    %1856 = vmatpush1.msra.mxu0 0.0
    %1857 = vmatprep.subr.mxu0 0.0
    %1858 = vmatpush1.msra.mxu0 0.0
    %1859 = vmatprep.subr.mxu0 0.0
    %1860 = vmatpush1.msra.mxu0 0.0
    %1861 = vmatprep.subr.mxu0 0.0
    %1862 = vmatpush1.msra.mxu0 0.0
    %1863 = vmatprep.subr.mxu0 0.0
    %1864 = vmatpush1.msra.mxu0 0.0
    %1865 = vmatprep.subr.mxu0 0.0
    %1866 = vmatpush1.msra.mxu0 0.0
    %1867 = vmatprep.subr.mxu0 0.0
    %1868 = vmatpush1.msra.mxu0 0.0
    %1869 = vmatprep.subr.mxu0 0.0
    %1870 = vmatpush1.msra.mxu0 0.0
    %1871 = vmatprep.subr.mxu0 0.0
    %1872 = vmatpush1.msra.mxu0 0.0
    %1873 = vmatprep.subr.mxu0 0.0
    %1874 = vmatpush1.msra.mxu0 0.0
    %1875 = vmatprep.mubr.f32.mxu0 0.0
    %1876 = vmatmul.mubr.f32.gmra.mrb[0].mxu0 %v1809
    %v1877 = vpop.f32.mrb[0].mxu0
    %v1878 = vadd.f32 0.0, %v1877
    %v1879 = vpop.f32.mrb[0].mxu0
    %1880 = vdwg.mxu0
    %v1881 = vadd.f32 %v1401, %v1878
    %v1882 = vmul.f32 %v1881, 0.5
    %v1883 = vsel %vm78, %v1881, %v1882
    %v1884 = vtanh.pop %v1883
    %v1885 = vmul.f32 %v1884, 0.5
    %v1886 = vadd.f32 %v1885, 0.5
    %v1887 = vsel %vm78, %v1884, %v1886
    %v1888 = vmul.f32 %v1887, %v1796
    %1890 = vrot.lane.b32.xlu0 %v1887, 64
    %v1891 = vpop.permute.xlu0 %1890
    %v1893 = vmul.f32 %v1887, %v1891
    %1895 = vrot.lane.b32.xlu0 %v1893, 32
    %v1896 = vpop.permute.xlu0 %1895
    %v1898 = vadd.f32 %v1888, %v1896
    %v1899 = vtanh.pop %v1898
    %1901 = vrot.lane.b32.xlu0 %v1899, 64
    %v1902 = vpop.permute.xlu0 %1901
    %v1904 = vmul.f32 %v1887, %v1902
    %1906 = vrot.lane.b32.xlu0 %v1904, 32
    %v1907 = vpop.permute.xlu0 %1906
    %s1909 = scalar_lea.vmem [#allocation4], 32
    %1910 = vst.msk [vmem:[%s1909] sm:$0xff] %vm513, %v1907
    %v1911 = vsel %vm513, %v1907, 0
    %1913 = vmatprep.subr.mxu0 0.0
    %1914 = vmatpush1.msra.mxu0 %v83
    %1915 = vmatprep.subr.mxu0 0.0
    %1916 = vmatpush1.msra.mxu0 %v84
    %1917 = vmatprep.subr.mxu0 0.0
    %1918 = vmatpush1.msra.mxu0 %v85
    %1919 = vmatprep.subr.mxu0 0.0
    %1920 = vmatpush1.msra.mxu0 %v86
    %1921 = vmatprep.subr.mxu0 0.0
    %1922 = vmatpush1.msra.mxu0 0.0
    %1923 = vmatprep.subr.mxu0 0.0
    %1924 = vmatpush1.msra.mxu0 0.0
    %1925 = vmatprep.subr.mxu0 0.0
    %1926 = vmatpush1.msra.mxu0 0.0
    %1927 = vmatprep.subr.mxu0 0.0
    %1928 = vmatpush1.msra.mxu0 0.0
    %1929 = vmatprep.subr.mxu0 0.0
    %1930 = vmatpush1.msra.mxu0 0.0
    %1931 = vmatprep.subr.mxu0 0.0
    %1932 = vmatpush1.msra.mxu0 0.0
    %1933 = vmatprep.subr.mxu0 0.0
    %1934 = vmatpush1.msra.mxu0 0.0
    %1935 = vmatprep.subr.mxu0 0.0
    %1936 = vmatpush1.msra.mxu0 0.0
    %1937 = vmatprep.subr.mxu0 0.0
    %1938 = vmatpush1.msra.mxu0 0.0
    %1939 = vmatprep.subr.mxu0 0.0
    %1940 = vmatpush1.msra.mxu0 0.0
    %1941 = vmatprep.subr.mxu0 0.0
    %1942 = vmatpush1.msra.mxu0 0.0
    %1943 = vmatprep.subr.mxu0 0.0
    %1944 = vmatpush1.msra.mxu0 0.0
    %1945 = vmatprep.subr.mxu0 0.0
    %1946 = vmatpush1.msra.mxu0 0.0
    %1947 = vmatprep.subr.mxu0 0.0
    %1948 = vmatpush1.msra.mxu0 0.0
    %1949 = vmatprep.subr.mxu0 0.0
    %1950 = vmatpush1.msra.mxu0 0.0
    %1951 = vmatprep.subr.mxu0 0.0
    %1952 = vmatpush1.msra.mxu0 0.0
    %1953 = vmatprep.subr.mxu0 0.0
    %1954 = vmatpush1.msra.mxu0 0.0
    %1955 = vmatprep.subr.mxu0 0.0
    %1956 = vmatpush1.msra.mxu0 0.0
    %1957 = vmatprep.subr.mxu0 0.0
    %1958 = vmatpush1.msra.mxu0 0.0
    %1959 = vmatprep.subr.mxu0 0.0
    %1960 = vmatpush1.msra.mxu0 0.0
    %1961 = vmatprep.subr.mxu0 0.0
    %1962 = vmatpush1.msra.mxu0 0.0
    %1963 = vmatprep.subr.mxu0 0.0
    %1964 = vmatpush1.msra.mxu0 0.0
    %1965 = vmatprep.subr.mxu0 0.0
    %1966 = vmatpush1.msra.mxu0 0.0
    %1967 = vmatprep.subr.mxu0 0.0
    %1968 = vmatpush1.msra.mxu0 0.0
    %1969 = vmatprep.subr.mxu0 0.0
    %1970 = vmatpush1.msra.mxu0 0.0
    %1971 = vmatprep.subr.mxu0 0.0
    %1972 = vmatpush1.msra.mxu0 0.0
    %1973 = vmatprep.subr.mxu0 0.0
    %1974 = vmatpush1.msra.mxu0 0.0
    %1975 = vmatprep.subr.mxu0 0.0
    %1976 = vmatpush1.msra.mxu0 0.0
    %1977 = vmatprep.mubr.f32.mxu0 0.0
    %1978 = vmatmul.mubr.f32.gmra.mrb[0].mxu0 %v1911
    %v1979 = vpop.f32.mrb[0].mxu0
    %v1980 = vadd.f32 0.0, %v1979
    %v1981 = vpop.f32.mrb[0].mxu0
    %1982 = vdwg.mxu0
    %v1983 = vadd.f32 %v1401, %v1980
    %v1984 = vmul.f32 %v1983, 0.5
    %v1985 = vsel %vm78, %v1983, %v1984
    %v1986 = vtanh.pop %v1985
    %v1987 = vmul.f32 %v1986, 0.5
    %v1988 = vadd.f32 %v1987, 0.5
    %v1989 = vsel %vm78, %v1986, %v1988
    %v1990 = vmul.f32 %v1989, %v1898
    %1992 = vrot.lane.b32.xlu0 %v1989, 64
    %v1993 = vpop.permute.xlu0 %1992
    %v1995 = vmul.f32 %v1989, %v1993
    %1997 = vrot.lane.b32.xlu0 %v1995, 32
    %v1998 = vpop.permute.xlu0 %1997
    %v2000 = vadd.f32 %v1990, %v1998
    %v2001 = vtanh.pop %v2000
    %2003 = vrot.lane.b32.xlu0 %v2001, 64
    %v2004 = vpop.permute.xlu0 %2003
    %v2006 = vmul.f32 %v1989, %v2004
    %2008 = vrot.lane.b32.xlu0 %v2006, 32
    %v2009 = vpop.permute.xlu0 %2008
    %s2011 = scalar_lea.vmem [#allocation4], 40
    %2012 = vst.msk [vmem:[%s2011] sm:$0xff] %vm513, %v2009
    %v2013 = vsel %vm513, %v2009, 0
    %2015 = vmatprep.subr.mxu0 0.0
    %2016 = vmatpush1.msra.mxu0 %v83
    %2017 = vmatprep.subr.mxu0 0.0
    %2018 = vmatpush1.msra.mxu0 %v84
    %2019 = vmatprep.subr.mxu0 0.0
    %2020 = vmatpush1.msra.mxu0 %v85
    %2021 = vmatprep.subr.mxu0 0.0
    %2022 = vmatpush1.msra.mxu0 %v86
    %2023 = vmatprep.subr.mxu0 0.0
    %2024 = vmatpush1.msra.mxu0 0.0
    %2025 = vmatprep.subr.mxu0 0.0
    %2026 = vmatpush1.msra.mxu0 0.0
    %2027 = vmatprep.subr.mxu0 0.0
    %2028 = vmatpush1.msra.mxu0 0.0
    %2029 = vmatprep.subr.mxu0 0.0
    %2030 = vmatpush1.msra.mxu0 0.0
    %2031 = vmatprep.subr.mxu0 0.0
    %2032 = vmatpush1.msra.mxu0 0.0
    %2033 = vmatprep.subr.mxu0 0.0
    %2034 = vmatpush1.msra.mxu0 0.0
    %2035 = vmatprep.subr.mxu0 0.0
    %2036 = vmatpush1.msra.mxu0 0.0
    %2037 = vmatprep.subr.mxu0 0.0
    %2038 = vmatpush1.msra.mxu0 0.0
    %2039 = vmatprep.subr.mxu0 0.0
    %2040 = vmatpush1.msra.mxu0 0.0
    %2041 = vmatprep.subr.mxu0 0.0
    %2042 = vmatpush1.msra.mxu0 0.0
    %2043 = vmatprep.subr.mxu0 0.0
    %2044 = vmatpush1.msra.mxu0 0.0
    %2045 = vmatprep.subr.mxu0 0.0
    %2046 = vmatpush1.msra.mxu0 0.0
    %2047 = vmatprep.subr.mxu0 0.0
    %2048 = vmatpush1.msra.mxu0 0.0
    %2049 = vmatprep.subr.mxu0 0.0
    %2050 = vmatpush1.msra.mxu0 0.0
    %2051 = vmatprep.subr.mxu0 0.0
    %2052 = vmatpush1.msra.mxu0 0.0
    %2053 = vmatprep.subr.mxu0 0.0
    %2054 = vmatpush1.msra.mxu0 0.0
    %2055 = vmatprep.subr.mxu0 0.0
    %2056 = vmatpush1.msra.mxu0 0.0
    %2057 = vmatprep.subr.mxu0 0.0
    %2058 = vmatpush1.msra.mxu0 0.0
    %2059 = vmatprep.subr.mxu0 0.0
    %2060 = vmatpush1.msra.mxu0 0.0
    %2061 = vmatprep.subr.mxu0 0.0
    %2062 = vmatpush1.msra.mxu0 0.0
    %2063 = vmatprep.subr.mxu0 0.0
    %2064 = vmatpush1.msra.mxu0 0.0
    %2065 = vmatprep.subr.mxu0 0.0
    %2066 = vmatpush1.msra.mxu0 0.0
    %2067 = vmatprep.subr.mxu0 0.0
    %2068 = vmatpush1.msra.mxu0 0.0
    %2069 = vmatprep.subr.mxu0 0.0
    %2070 = vmatpush1.msra.mxu0 0.0
    %2071 = vmatprep.subr.mxu0 0.0
    %2072 = vmatpush1.msra.mxu0 0.0
    %2073 = vmatprep.subr.mxu0 0.0
    %2074 = vmatpush1.msra.mxu0 0.0
    %2075 = vmatprep.subr.mxu0 0.0
    %2076 = vmatpush1.msra.mxu0 0.0
    %2077 = vmatprep.subr.mxu0 0.0
    %2078 = vmatpush1.msra.mxu0 0.0
    %2079 = vmatprep.mubr.f32.mxu0 0.0
    %2080 = vmatmul.mubr.f32.gmra.mrb[0].mxu0 %v2013
    %v2081 = vpop.f32.mrb[0].mxu0
    %v2082 = vadd.f32 0.0, %v2081
    %v2083 = vpop.f32.mrb[0].mxu0
    %2084 = vdwg.mxu0
    %v2085 = vadd.f32 %v1401, %v2082
    %v2086 = vmul.f32 %v2085, 0.5
    %v2087 = vsel %vm78, %v2085, %v2086
    %v2088 = vtanh.pop %v2087
    %v2089 = vmul.f32 %v2088, 0.5
    %v2090 = vadd.f32 %v2089, 0.5
    %v2091 = vsel %vm78, %v2088, %v2090
    %v2092 = vmul.f32 %v2091, %v2000
    %2094 = vrot.lane.b32.xlu0 %v2091, 64
    %v2095 = vpop.permute.xlu0 %2094
    %v2097 = vmul.f32 %v2091, %v2095
    %2099 = vrot.lane.b32.xlu0 %v2097, 32
    %v2100 = vpop.permute.xlu0 %2099
    %v2102 = vadd.f32 %v2092, %v2100
    %v2103 = vtanh.pop %v2102
    %2105 = vrot.lane.b32.xlu0 %v2103, 64
    %v2106 = vpop.permute.xlu0 %2105
    %v2108 = vmul.f32 %v2091, %v2106
    %2110 = vrot.lane.b32.xlu0 %v2108, 32
    %v2111 = vpop.permute.xlu0 %2110
    %s2113 = scalar_lea.vmem [#allocation4], 48
    %2114 = vst.msk [vmem:[%s2113] sm:$0xff] %vm513, %v2111
    %v2115 = vsel %vm513, %v2111, 0
    %2117 = vmatprep.subr.mxu0 0.0
    %2118 = vmatpush1.msra.mxu0 %v83
    %2119 = vmatprep.subr.mxu0 0.0
    %2120 = vmatpush1.msra.mxu0 %v84
    %2121 = vmatprep.subr.mxu0 0.0
    %2122 = vmatpush1.msra.mxu0 %v85
    %2123 = vmatprep.subr.mxu0 0.0
    %2124 = vmatpush1.msra.mxu0 %v86
    %2125 = vmatprep.subr.mxu0 0.0
    %2126 = vmatpush1.msra.mxu0 0.0
    %2127 = vmatprep.subr.mxu0 0.0
    %2128 = vmatpush1.msra.mxu0 0.0
    %2129 = vmatprep.subr.mxu0 0.0
    %2130 = vmatpush1.msra.mxu0 0.0
    %2131 = vmatprep.subr.mxu0 0.0
    %2132 = vmatpush1.msra.mxu0 0.0
    %2133 = vmatprep.subr.mxu0 0.0
    %2134 = vmatpush1.msra.mxu0 0.0
    %2135 = vmatprep.subr.mxu0 0.0
    %2136 = vmatpush1.msra.mxu0 0.0
    %2137 = vmatprep.subr.mxu0 0.0
    %2138 = vmatpush1.msra.mxu0 0.0
    %2139 = vmatprep.subr.mxu0 0.0
    %2140 = vmatpush1.msra.mxu0 0.0
    %2141 = vmatprep.subr.mxu0 0.0
    %2142 = vmatpush1.msra.mxu0 0.0
    %2143 = vmatprep.subr.mxu0 0.0
    %2144 = vmatpush1.msra.mxu0 0.0
    %2145 = vmatprep.subr.mxu0 0.0
    %2146 = vmatpush1.msra.mxu0 0.0
    %2147 = vmatprep.subr.mxu0 0.0
    %2148 = vmatpush1.msra.mxu0 0.0
    %2149 = vmatprep.subr.mxu0 0.0
    %2150 = vmatpush1.msra.mxu0 0.0
    %2151 = vmatprep.subr.mxu0 0.0
    %2152 = vmatpush1.msra.mxu0 0.0
    %2153 = vmatprep.subr.mxu0 0.0
    %2154 = vmatpush1.msra.mxu0 0.0
    %2155 = vmatprep.subr.mxu0 0.0
    %2156 = vmatpush1.msra.mxu0 0.0
    %2157 = vmatprep.subr.mxu0 0.0
    %2158 = vmatpush1.msra.mxu0 0.0
    %2159 = vmatprep.subr.mxu0 0.0
    %2160 = vmatpush1.msra.mxu0 0.0
    %2161 = vmatprep.subr.mxu0 0.0
    %2162 = vmatpush1.msra.mxu0 0.0
    %2163 = vmatprep.subr.mxu0 0.0
    %2164 = vmatpush1.msra.mxu0 0.0
    %2165 = vmatprep.subr.mxu0 0.0
    %2166 = vmatpush1.msra.mxu0 0.0
    %2167 = vmatprep.subr.mxu0 0.0
    %2168 = vmatpush1.msra.mxu0 0.0
    %2169 = vmatprep.subr.mxu0 0.0
    %2170 = vmatpush1.msra.mxu0 0.0
    %2171 = vmatprep.subr.mxu0 0.0
    %2172 = vmatpush1.msra.mxu0 0.0
    %2173 = vmatprep.subr.mxu0 0.0
    %2174 = vmatpush1.msra.mxu0 0.0
    %2175 = vmatprep.subr.mxu0 0.0
    %2176 = vmatpush1.msra.mxu0 0.0
    %2177 = vmatprep.subr.mxu0 0.0
    %2178 = vmatpush1.msra.mxu0 0.0
    %2179 = vmatprep.subr.mxu0 0.0
    %2180 = vmatpush1.msra.mxu0 0.0
    %2181 = vmatprep.mubr.f32.mxu0 0.0
    %2182 = vmatmul.mubr.f32.gmra.mrb[0].mxu0 %v2115
    %v2183 = vpop.f32.mrb[0].mxu0
    %v2184 = vadd.f32 0.0, %v2183
    %v2185 = vpop.f32.mrb[0].mxu0
    %2186 = vdwg.mxu0
    %v2187 = vadd.f32 %v1401, %v2184
    %v2188 = vmul.f32 %v2187, 0.5
    %v2189 = vsel %vm78, %v2187, %v2188
    %v2190 = vtanh.pop %v2189
    %v2191 = vmul.f32 %v2190, 0.5
    %v2192 = vadd.f32 %v2191, 0.5
    %v2193 = vsel %vm78, %v2190, %v2192
    %v2194 = vmul.f32 %v2193, %v2102
    %2196 = vrot.lane.b32.xlu0 %v2193, 64
    %v2197 = vpop.permute.xlu0 %2196
    %v2199 = vmul.f32 %v2193, %v2197
    %2201 = vrot.lane.b32.xlu0 %v2199, 32
    %v2202 = vpop.permute.xlu0 %2201
    %v2204 = vadd.f32 %v2194, %v2202
    %v2205 = vtanh.pop %v2204
    %2207 = vrot.lane.b32.xlu0 %v2205, 64
    %v2208 = vpop.permute.xlu0 %2207
    %v2210 = vmul.f32 %v2193, %v2208
    %2212 = vrot.lane.b32.xlu0 %v2210, 32
    %v2213 = vpop.permute.xlu0 %2212
    %s2215 = scalar_lea.vmem [#allocation4], 56
    %2216 = vst.msk [vmem:[%s2215] sm:$0xff] %vm513, %v2213
    %v2217 = vld [vmem:[#allocation4] sm:$0xff]
    %v2218 = vld [vmem:[#allocation4 + $0x8] sm:$0xff]
    %v2219 = vld [vmem:[#allocation4 + $0x10] sm:$0xff]
    %v2220 = vld [vmem:[#allocation4 + $0x18] sm:$0xff]
    %v2221 = vld [vmem:[#allocation4 + $0x20] sm:$0xff]
    %v2222 = vld [vmem:[#allocation4 + $0x28] sm:$0xff]
    %v2223 = vld [vmem:[#allocation4 + $0x30] sm:$0xff]
    %v2224 = vld [vmem:[#allocation4 + $0x38] sm:$0xff]
    %v2225 = vld [vmem:[%s7] sm:$0xff]
    %v2226 = vld [vmem:[%s7 + $0x8] sm:$0xff]
    %v2227 = vld [vmem:[%s7 + $0x10] sm:$0xff]
    %v2228 = vld [vmem:[%s7 + $0x18] sm:$0xff]
    %v2229 = vld [vmem:[%s8] sm:$0x1]
    %v2231 = vlaneseq
    %v2232 = vshrl.u32 %v2231, 7
    %v2233 = vsub.s32 0, %v2232
    %v2234 = vrot.slane %v2229, %v2233
    %v2237 = vsel %vm513, %v2217, 0
    %v2240 = vsel %vm513, %v2218, 0
    %v2243 = vsel %vm513, %v2219, 0
    %v2246 = vsel %vm513, %v2220, 0
    %v2249 = vsel %vm513, %v2221, 0
    %v2252 = vsel %vm513, %v2222, 0
    %v2255 = vsel %vm513, %v2223, 0
    %v2258 = vsel %vm513, %v2224, 0
    %2260 = vmatprep.subr.mxu0 0.0
    %2261 = vmatpush1.msra.mxu0 %v2225
    %2262 = vmatprep.subr.mxu0 0.0
    %2263 = vmatpush1.msra.mxu0 %v2226
    %2264 = vmatprep.subr.mxu0 0.0
    %2265 = vmatpush1.msra.mxu0 %v2227
    %2266 = vmatprep.subr.mxu0 0.0
    %2267 = vmatpush1.msra.mxu0 %v2228
    %2268 = vmatprep.subr.mxu0 0.0
    %2269 = vmatpush1.msra.mxu0 0.0
    %2270 = vmatprep.subr.mxu0 0.0
    %2271 = vmatpush1.msra.mxu0 0.0
    %2272 = vmatprep.subr.mxu0 0.0
    %2273 = vmatpush1.msra.mxu0 0.0
    %2274 = vmatprep.subr.mxu0 0.0
    %2275 = vmatpush1.msra.mxu0 0.0
    %2276 = vmatprep.subr.mxu0 0.0
    %2277 = vmatpush1.msra.mxu0 0.0
    %2278 = vmatprep.subr.mxu0 0.0
    %2279 = vmatpush1.msra.mxu0 0.0
    %2280 = vmatprep.subr.mxu0 0.0
    %2281 = vmatpush1.msra.mxu0 0.0
    %2282 = vmatprep.subr.mxu0 0.0
    %2283 = vmatpush1.msra.mxu0 0.0
    %2284 = vmatprep.subr.mxu0 0.0
    %2285 = vmatpush1.msra.mxu0 0.0
    %2286 = vmatprep.subr.mxu0 0.0
    %2287 = vmatpush1.msra.mxu0 0.0
    %2288 = vmatprep.subr.mxu0 0.0
    %2289 = vmatpush1.msra.mxu0 0.0
    %2290 = vmatprep.subr.mxu0 0.0
    %2291 = vmatpush1.msra.mxu0 0.0
    %2292 = vmatprep.subr.mxu0 0.0
    %2293 = vmatpush1.msra.mxu0 0.0
    %2294 = vmatprep.subr.mxu0 0.0
    %2295 = vmatpush1.msra.mxu0 0.0
    %2296 = vmatprep.subr.mxu0 0.0
    %2297 = vmatpush1.msra.mxu0 0.0
    %2298 = vmatprep.subr.mxu0 0.0
    %2299 = vmatpush1.msra.mxu0 0.0
    %2300 = vmatprep.subr.mxu0 0.0
    %2301 = vmatpush1.msra.mxu0 0.0
    %2302 = vmatprep.subr.mxu0 0.0
    %2303 = vmatpush1.msra.mxu0 0.0
    %2304 = vmatprep.subr.mxu0 0.0
    %2305 = vmatpush1.msra.mxu0 0.0
    %2306 = vmatprep.subr.mxu0 0.0
    %2307 = vmatpush1.msra.mxu0 0.0
    %2308 = vmatprep.subr.mxu0 0.0
    %2309 = vmatpush1.msra.mxu0 0.0
    %2310 = vmatprep.subr.mxu0 0.0
    %2311 = vmatpush1.msra.mxu0 0.0
    %2312 = vmatprep.subr.mxu0 0.0
    %2313 = vmatpush1.msra.mxu0 0.0
    %2314 = vmatprep.subr.mxu0 0.0
    %2315 = vmatpush1.msra.mxu0 0.0
    %2316 = vmatprep.subr.mxu0 0.0
    %2317 = vmatpush1.msra.mxu0 0.0
    %2318 = vmatprep.subr.mxu0 0.0
    %2319 = vmatpush1.msra.mxu0 0.0
    %2320 = vmatprep.subr.mxu0 0.0
    %2321 = vmatpush1.msra.mxu0 0.0
    %2322 = vmatprep.subr.mxu0 0.0
    %2323 = vmatpush1.msra.mxu0 0.0
    %2324 = vmatprep.mubr.f32.mxu0 0.0
    %2325 = vmatmul.mubr.f32.gmra.mrb[0].mxu0 %v2237
    %v2326 = vpop.f32.mrb[0].mxu0
    %v2327 = vadd.f32 %v2234, %v2326
    %v2328 = vpop.f32.mrb[0].mxu0
    %2329 = vmatprep.mubr.f32.mxu0 0.0
    %2330 = vmatmul.mubr.f32.gmra.mrb[0].mxu0 %v2240
    %v2331 = vpop.f32.mrb[0].mxu0
    %v2332 = vadd.f32 %v2234, %v2331
    %v2333 = vpop.f32.mrb[0].mxu0
    %2334 = vmatprep.mubr.f32.mxu0 0.0
    %2335 = vmatmul.mubr.f32.gmra.mrb[0].mxu0 %v2243
    %v2336 = vpop.f32.mrb[0].mxu0
    %v2337 = vadd.f32 %v2234, %v2336
    %v2338 = vpop.f32.mrb[0].mxu0
    %2339 = vmatprep.mubr.f32.mxu0 0.0
    %2340 = vmatmul.mubr.f32.gmra.mrb[0].mxu0 %v2246
    %v2341 = vpop.f32.mrb[0].mxu0
    %v2342 = vadd.f32 %v2234, %v2341
    %v2343 = vpop.f32.mrb[0].mxu0
    %2344 = vmatprep.mubr.f32.mxu0 0.0
    %2345 = vmatmul.mubr.f32.gmra.mrb[0].mxu0 %v2249
    %v2346 = vpop.f32.mrb[0].mxu0
    %v2347 = vadd.f32 %v2234, %v2346
    %v2348 = vpop.f32.mrb[0].mxu0
    %2349 = vmatprep.mubr.f32.mxu0 0.0
    %2350 = vmatmul.mubr.f32.gmra.mrb[0].mxu0 %v2252
    %v2351 = vpop.f32.mrb[0].mxu0
    %v2352 = vadd.f32 %v2234, %v2351
    %v2353 = vpop.f32.mrb[0].mxu0
    %2354 = vmatprep.mubr.f32.mxu0 0.0
    %2355 = vmatmul.mubr.f32.gmra.mrb[0].mxu0 %v2255
    %v2356 = vpop.f32.mrb[0].mxu0
    %v2357 = vadd.f32 %v2234, %v2356
    %v2358 = vpop.f32.mrb[0].mxu0
    %2359 = vmatprep.mubr.f32.mxu0 0.0
    %2360 = vmatmul.mubr.f32.gmra.mrb[0].mxu0 %v2258
    %v2361 = vpop.f32.mrb[0].mxu0
    %v2362 = vadd.f32 %v2234, %v2361
    %v2363 = vpop.f32.mrb[0].mxu0
    %2364 = vdwg.mxu0
    %2365 = vst.msk [vmem:[#allocation11] sm:$0xff] %vm125, %v2327
    %2367 = vrot.lane.b32.xlu0 %v2332, 16
    %v2368 = vpop.permute.xlu0 %2367
    %vm2370 = vcmask 261248
    %2371 = vst.msk [vmem:[#allocation11] sm:$0xff] %vm2370, %v2368
    %2373 = vrot.lane.b32.xlu0 %v2337, 32
    %v2374 = vpop.permute.xlu0 %2373
    %vm2376 = vcmask 392448
    %2377 = vst.msk [vmem:[#allocation11] sm:$0xff] %vm2376, %v2374
    %2379 = vrot.lane.b32.xlu0 %v2342, 48
    %v2380 = vpop.permute.xlu0 %2379
    %vm2382 = vcmask 523648
    %2383 = vst.msk [vmem:[#allocation11] sm:$0xff] %vm2382, %v2380
    %2385 = vrot.lane.b32.xlu0 %v2347, 64
    %v2386 = vpop.permute.xlu0 %2385
    %vm2388 = vcmask 654848
    %2389 = vst.msk [vmem:[#allocation11] sm:$0xff] %vm2388, %v2386
    %2391 = vrot.lane.b32.xlu0 %v2352, 80
    %v2392 = vpop.permute.xlu0 %2391
    %vm2394 = vcmask 786048
    %2395 = vst.msk [vmem:[#allocation11] sm:$0xff] %vm2394, %v2392
    %2397 = vrot.lane.b32.xlu0 %v2357, 96
    %v2398 = vpop.permute.xlu0 %2397
    %vm2400 = vcmask 917248
    %2401 = vst.msk [vmem:[#allocation11] sm:$0xff] %vm2400, %v2398
    %2403 = vrot.lane.b32.xlu0 %v2362, 112
    %v2404 = vpop.permute.xlu0 %2403
    %vm2406 = vcmask 1048448
    %2407 = vst.msk [vmem:[#allocation11] sm:$0xff] %vm2406, %v2404
    // Predicated region
    $region50: #{tpu_custom_call.1} parent=1 // pred_check
      _
    $region51: #{tpu_custom_call.1} parent=1 // pred_check_branch
      %2409 = sbr.rel (0) target = $region53
    $region52: #{tpu_custom_call.1} parent=1 // pred_region
      %s2411 = ssub.s32 128, 128
      %2412 = vsyncadd [#allocation7], %s2411
      %s2414 = sshll.u32 [#allocation11], 4
      %s2415 = int_to_ptr.vmem [resolvable:$true] %s2414
      %2417 = dma.vmem_to_hbm [thread:$0]  %s2415, 128, %s9, [#allocation7]
    $region53: #{tpu_custom_call.1} parent=1 // pred_fallthru
      _
    // Predicated region
    $region54: #{tpu_custom_call.1} parent=1 // pred_check
      _
    $region55: #{tpu_custom_call.1} parent=1 // pred_check_branch
      %2419 = sbr.rel (0) target = $region57
    $region56: #{tpu_custom_call.1} parent=1 // pred_region
      %2420 = dma.done [#allocation7], 128
    $region57: #{tpu_custom_call.1} parent=1 // pred_fallthru
      _
    %2421 = vsyncpa [#allocation6], 1
    %2422 = vsyncpa [#allocation9], 1
    %2423 = vsyncpa [#allocation7], 1

</llo_original>
